<compile_context>
chip_gen: v7x
topology: tpu7x:2x2x1
jax: 0.10.0
libtpu: 0.0.40
codegen_flags: <defaults>
</compile_context>

<pallas_src>
from math import pi

import numpy as np
import jax
import jax.numpy as jnp
from jax import lax
from jax.scipy.linalg import block_diag
from jax.experimental import pallas as pl
from jax.experimental.pallas import tpu as pltpu

jax.config.update("jax_default_matmul_precision", "highest")  # for ref / wrapper dots

# ---------------- configuration (mirrors Arguments / design) ----------------
N_QUBITS = 4
N_LAYERS = 2
SEQ = 8
BATCH = 2
A_IN, V_IN, T_IN = 5, 6, 7
A_HID = V_HID = T_HID = 4                  # a_hid + v_hid + t_hid == 3 * n_qubits
IN_TOT = A_IN + V_IN + T_IN                # 18
HID_TOT = A_HID + V_HID + T_HID            # 12
DIM = 2 ** N_QUBITS                        # 16
PI = float(pi)

# ---- constant-slab row layout (lane width 128, sections 8-row aligned) ----
ROW_WIH = 0            # (18, 12) block-diag input->hidden (transposed)
ROW_WHH = 24           # (12, 12) block-diag hidden->hidden (transposed)
ROW_WP = 40            # (12, 12) block-diag projection (transposed)
ROW_BRNN = 56          # (1, 12)  b_ih + b_hh concatenated
ROW_BP = 57            # (1, 12)  projection bias concatenated
ROW_PFLIP = 64         # 4 x (16,16) bit-flip permutations (qubit q at +16q)
ROW_UMAT = 128         # 2 x (32,32) per-layer real block unitaries
ROW_BIT = 192          # 4 x (1,16) bit-of-index masks
ROW_W16 = 196          # (1,16) folded readout weights  zmat @ wr.T
ROW_BR = 197           # (1,1)  regressor bias
SLAB_ROWS = 200
SLAB_COLS = 128


def make_design():
    design = {'n_layers': N_LAYERS, 'change_qubit': None}
    for l in range(N_LAYERS):
        for j in range(N_QUBITS):
            design[f'rot{l}{j}'] = 'Rx' if (l + j) % 2 == 0 else 'Ry'
            gate = 'IsingXX' if j % 2 == 0 else 'IsingZZ'
            design[f'enta{l}{j}'] = (gate, [j, (j + 1) % N_QUBITS])
    return design


# ---------------- host-side static structure (design-only, cached) ----------------
def _embed1_np(U2, q, n):
    M = np.array([[1.0]], dtype=np.complex128)
    I2 = np.eye(2, dtype=np.complex128)
    for i in range(n):                       # PennyLane: wire 0 is most significant
        M = np.kron(M, U2 if i == q else I2)
    return M


def build_static_constants(design):
    X = np.array([[0, 1], [1, 0]], dtype=np.complex128)
    Y = np.array([[0, -1j], [1j, 0]], dtype=np.complex128)
    Z = np.array([[1, 0], [0, -1]], dtype=np.complex128)
    idx = np.arange(DIM)
    bit = np.zeros((N_QUBITS, DIM), np.float32)
    pflip = np.zeros((N_QUBITS, DIM, DIM), np.float32)
    for q in range(N_QUBITS):
        v = 1 << (N_QUBITS - 1 - q)
        bit[q] = (idx >> (N_QUBITS - 1 - q)) & 1
        pflip[q, idx ^ v, idx] = 1.0         # (psi @ P)[j] = psi[j ^ v]
    zmat = (1.0 - 2.0 * bit.T).astype(np.float32)          # (16, 4)

    rot_gen = np.zeros((N_LAYERS, N_QUBITS, DIM, DIM), np.complex64)
    ent_gen = np.zeros((N_LAYERS, N_QUBITS, DIM, DIM), np.complex64)
    ent_used = np.zeros((N_LAYERS, N_QUBITS), np.bool_)
    for l in range(N_LAYERS):
        for j in range(N_QUBITS):
            G = X if design[f'rot{l}{j}'] == 'Rx' else Y
            rot_gen[l, j] = _embed1_np(G, j, N_QUBITS)      # RX/RY(t)=cos I - i sin G
            gate, wires = design[f'enta{l}{j}']
            if wires[0] != wires[1]:
                ent_used[l, j] = True
                P2 = X if gate == 'IsingXX' else Z
                ent_gen[l, j] = (_embed1_np(P2, wires[0], N_QUBITS)
                                 @ _embed1_np(P2, wires[1], N_QUBITS))
    return dict(bit=jnp.asarray(bit), pflip=jnp.asarray(pflip),
                zmat=jnp.asarray(zmat),
                rot_gen=jnp.asarray(rot_gen), ent_gen=jnp.asarray(ent_gen),
                ent_used=ent_used)           # ent_used stays NumPy (static branching)


# ---------------- traced (jit-able) parameter folding ----------------
def build_layer_block_mats(q_rot, q_enta, const):
    """Fold each layer's batch-independent gates into one (32,32) real block
    matrix  [[Re(U^T), Im(U^T)], [-Im(U^T), Re(U^T)]]  (row-vector convention)."""
    eye = jnp.eye(DIM, dtype=jnp.complex64)
    mats = []
    for l in range(N_LAYERS):
        U = eye
        for j in range(N_QUBITS):
            t = q_rot[j, l]
            U = (jnp.cos(t / 2) * eye - 1j * jnp.sin(t / 2) * const['rot_gen'][l, j]) @ U
            if const['ent_used'][l, j]:
                te = q_enta[j, l]
                U = (jnp.cos(te / 2) * eye
                     - 1j * jnp.sin(te / 2) * const['ent_gen'][l, j]) @ U
        UT = U.T
        ure = jnp.real(UT).astype(jnp.float32)
        uim = jnp.imag(UT).astype(jnp.float32)
        m = jnp.concatenate([jnp.concatenate([ure, uim], axis=1),
                             jnp.concatenate([-uim, ure], axis=1)], axis=0)
        mats.append(m)
    return jnp.concatenate(mats, axis=0)     # (N_LAYERS*32, 32)


def build_const_slab(params, const, layer_mats):
    pa, pv, pt = params['a'], params['v'], params['t']
    wih_bd = block_diag(pa['wih'].T, pv['wih'].T, pt['wih'].T)   # (18, 12)
    whh_bd = block_diag(pa['whh'].T, pv['whh'].T, pt['whh'].T)   # (12, 12)
    wp_bd = block_diag(pa['wp'].T, pv['wp'].T, pt['wp'].T)       # (12, 12)
    b_rnn = jnp.concatenate([pa['b'], pv['b'], pt['b']])         # (12,)
    bp = jnp.concatenate([pa['bp'], pv['bp'], pt['bp']])         # (12,)
    w16 = (const['zmat'] @ params['wr'].T)[:, 0]                 # (16,) folded readout

    slab = jnp.zeros((SLAB_ROWS, SLAB_COLS), jnp.float32)
    slab = slab.at[ROW_WIH:ROW_WIH + IN_TOT, :HID_TOT].set(wih_bd)
    slab = slab.at[ROW_WHH:ROW_WHH + HID_TOT, :HID_TOT].set(whh_bd)
    slab = slab.at[ROW_WP:ROW_WP + HID_TOT, :HID_TOT].set(wp_bd)
    slab = slab.at[ROW_BRNN, :HID_TOT].set(b_rnn)
    slab = slab.at[ROW_BP, :HID_TOT].set(bp)
    slab = slab.at[ROW_PFLIP:ROW_PFLIP + N_QUBITS * DIM, :DIM].set(
        const['pflip'].reshape(N_QUBITS * DIM, DIM))
    slab = slab.at[ROW_UMAT:ROW_UMAT + N_LAYERS * 2 * DIM, :2 * DIM].set(layer_mats)
    slab = slab.at[ROW_BIT:ROW_BIT + N_QUBITS, :DIM].set(const['bit'])
    slab = slab.at[ROW_W16, :DIM].set(w16)
    slab = slab.at[ROW_BR, 0].set(params['br'][0])
    return slab


# ------------------------------ Pallas kernel --------------------------------
def qnet_kernel(x_ref, cs_ref, out_ref):
    f32 = jnp.float32

    # ---- fused classical RNNs (block-diagonal weights) ----
    wih = cs_ref[pl.ds(ROW_WIH, IN_TOT), pl.ds(0, HID_TOT)]
    whh = cs_ref[pl.ds(ROW_WHH, HID_TOT), pl.ds(0, HID_TOT)]
    wp = cs_ref[pl.ds(ROW_WP, HID_TOT), pl.ds(0, HID_TOT)]
    b_rnn = cs_ref[pl.ds(ROW_BRNN, 1), pl.ds(0, HID_TOT)]
    bp = cs_ref[pl.ds(ROW_BP, 1), pl.ds(0, HID_TOT)]

    # input projection for ALL timesteps at once (hoisted off the recurrence)
    xp = jnp.dot(x_ref[...], wih, preferred_element_type=f32) + b_rnn   # (SEQ*B, 12)

    h = jnp.zeros((BATCH, HID_TOT), f32)
    for t in range(SEQ):                       # serial tanh recurrence (unrolled)
        h = jnp.tanh(xp[t * BATCH:(t + 1) * BATCH, :]
                     + jnp.dot(h, whh, preferred_element_type=f32))

    # ---- fused projection heads: relu on cols 0:4, sigmoid*pi on cols 4:12 ----
    z = jnp.dot(h, wp, preferred_element_type=f32) + bp
    lane = lax.broadcasted_iota(jnp.int32, (BATCH, HID_TOT), 1)
    x_p = jnp.where(lane < A_HID, jnp.maximum(z, 0.0), PI / (1.0 + jnp.exp(-z)))

    # ---- per-qubit Rot(phi,theta,omega)=RZ(om)RY(th)RZ(phi) coeffs (layer-invariant)
    coeffs, pmats = [], []
    for q in range(N_QUBITS):
        phi = x_p[:, 3 * q:3 * q + 1]
        th = x_p[:, 3 * q + 1:3 * q + 2]
        om = x_p[:, 3 * q + 2:3 * q + 3]
        hs, hd = 0.5 * (phi + om), 0.5 * (phi - om)
        ct, st = jnp.cos(0.5 * th), jnp.sin(0.5 * th)
        u00re, u00im = jnp.cos(hs) * ct, -jnp.sin(hs) * ct
        u01re, u01im = -jnp.cos(hd) * st, -jnp.sin(hd) * st
        u10re, u10im = jnp.cos(hd) * st, -jnp.sin(hd) * st
        u11re, u11im = jnp.cos(hs) * ct, jnp.sin(hs) * ct
        mask = cs_ref[pl.ds(ROW_BIT + q, 1), pl.ds(0, DIM)]     # (1,16): bit q of index
        nm = 1.0 - mask
        coeffs.append((mask * u11re + nm * u00re, mask * u11im + nm * u00im,
                       mask * u10re + nm * u01re, mask * u10im + nm * u01im))
        pmats.append(cs_ref[pl.ds(ROW_PFLIP + DIM * q, DIM), pl.ds(0, DIM)])

    # ---- quantum statevector evolution (|0..0> initial state) ----
    re = (lax.broadcasted_iota(jnp.int32, (BATCH, DIM), 1) == 0).astype(f32)
    im = jnp.zeros((BATCH, DIM), f32)

    for layer in range(N_LAYERS):
        # batch-dependent Rot gates (same input angles every layer, per reference)
        for q in range(N_QUBITS):
            d0re, d0im, d1re, d1im = coeffs[q]
            ri = jnp.concatenate([re, im], axis=0)              # (2B, 16)
            f = jnp.dot(ri, pmats[q], preferred_element_type=f32)
            fre, fim = f[0:BATCH, :], f[BATCH:2 * BATCH, :]
            nre = d0re * re - d0im * im + d1re * fre - d1im * fim
            nim = d0re * im + d0im * re + d1re * fim + d1im * fre
            re, im = nre, nim
        # batch-independent RX/RY + Ising block: one real (32,32) block matmul
        m = cs_ref[pl.ds(ROW_UMAT + 2 * DIM * layer, 2 * DIM), pl.ds(0, 2 * DIM)]
        cat = jnp.concatenate([re, im], axis=1)                 # (B, 32)
        o = jnp.dot(cat, m, preferred_element_type=f32)
        re, im = o[:, 0:DIM], o[:, DIM:2 * DIM]

    # ---- <Z_i> readout folded with the regressor: logits = prob @ (zmat wr^T) + br
    prob = re * re + im * im                                    # (B,16)
    w16 = cs_ref[pl.ds(ROW_W16, 1), pl.ds(0, DIM)]
    br = cs_ref[pl.ds(ROW_BR, 1), pl.ds(0, 1)]
    logit = jnp.sum(prob * w16, axis=-1, keepdims=True) + br
    out_ref[...] = jnp.tanh(logit) * 3.0


# ------------------------------ wrapper ---------------------------------------
def make_qnet_forward(design):
    const = build_static_constants(design)

    @jax.jit
    def forward(x_a, x_v, x_t, params):
        xa = jnp.transpose(x_a, (1, 0, 2)).astype(jnp.float32)   # (seq, batch, feat)
        xv = jnp.transpose(x_v, (1, 0, 2)).astype(jnp.float32)
        xt = jnp.transpose(x_t, (1, 0, 2)).astype(jnp.float32)
        x_cat = jnp.concatenate([xa, xv, xt], axis=-1).reshape(SEQ * BATCH, IN_TOT)

        layer_mats = build_layer_block_mats(params['q_rot'], params['q_enta'], const)
        slab = build_const_slab(params, const, layer_mats)

        out = pl.pallas_call(
            qnet_kernel,
            out_shape=jax.ShapeDtypeStruct((BATCH, 1), jnp.float32),
            in_specs=[pl.BlockSpec(memory_space=pltpu.MemorySpace.VMEM),
                      pl.BlockSpec(memory_space=pltpu.MemorySpace.VMEM)],
            out_specs=pl.BlockSpec(memory_space=pltpu.MemorySpace.VMEM),
        )(x_cat, slab)
        return out[:, 0]                                         # matches .squeeze(dim=1)

    return forward


# ------------------------------ parameters ------------------------------------
def init_params(key):
    ks = jax.random.split(key, 18)

    def lin(k, out_d, in_d):
        k1, k2 = jax.random.split(k)
        bound = 1.0 / np.sqrt(in_d)
        w = jax.random.uniform(k1, (out_d, in_d), jnp.float32, -bound, bound)
        b = jax.random.uniform(k2, (out_d,), jnp.float32, -bound, bound)
        return w, b

    params = {}
    for name, in_d, hid, i0 in [('a', A_IN, A_HID, 0),
                                ('v', V_IN, V_HID, 3),
                                ('t', T_IN, T_HID, 6)]:
        wih, bih = lin(ks[i0], hid, in_d)
        whh, bhh = lin(ks[i0 + 1], hid, hid)
        wpj, bpj = lin(ks[i0 + 2], hid, hid)
        params[name] = dict(wih=wih, whh=whh, b=bih + bhh, wp=wpj, bp=bpj)
    params['q_rot'] = PI * jax.random.uniform(ks[15], (N_QUBITS, N_LAYERS), jnp.float32)
    params['q_enta'] = PI * jax.random.uniform(ks[16], (N_QUBITS, N_LAYERS), jnp.float32)
    wr, br = lin(ks[17], 1, N_QUBITS)
    params['wr'], params['br'] = wr, br
    return params


# -------------------- pure-JAX reference (correctness check) ------------------
def qnet_reference(x_a, x_v, x_t, params, design):
    def rnn_last(x, p):
        h = jnp.zeros((x.shape[0], p['whh'].shape[0]), jnp.float32)
        for t in range(x.shape[1]):
            h = jnp.tanh(x[:, t] @ p['wih'].T + h @ p['whh'].T + p['b'])
        return h

    a_h = rnn_last(x_a, params['a'])
    v_h = rnn_last(x_v, params['v'])
    t_h = rnn_last(x_t, params['t'])
    a_o = jnp.maximum(a_h @ params['a']['wp'].T + params['a']['bp'], 0.0)
    v_o = jax.nn.sigmoid(v_h @ params['v']['wp'].T + params['v']['bp']) * PI
    t_o = jax.nn.sigmoid(t_h @ params['t']['wp'].T + params['t']['bp']) * PI
    x_p = jnp.concatenate([a_o, v_o, t_o], axis=1)               # (B, 12)

    I2 = jnp.eye(2, dtype=jnp.complex64)
    X2 = jnp.array([[0, 1], [1, 0]], jnp.complex64)
    Y2 = jnp.array([[0, -1j], [1j, 0]], jnp.complex64)
    Z2 = jnp.array([[1, 0], [0, -1]], jnp.complex64)
    I16 = jnp.eye(DIM, dtype=jnp.complex64)

    def embed1(U2, wire):
        M = jnp.ones((1, 1), jnp.complex64)
        for w in range(N_QUBITS):
            M = jnp.kron(M, U2 if w == wire else I2)
        return M

    psi = jnp.zeros((BATCH, DIM), jnp.complex64).at[:, 0].set(1.0)
    q_rot, q_enta = params['q_rot'], params['q_enta']

    for layer in range(N_LAYERS):
        for i in range(N_QUBITS):
            phi, th, om = x_p[:, 3 * i], x_p[:, 3 * i + 1], x_p[:, 3 * i + 2]
            hs, hd = 0.5 * (phi + om), 0.5 * (phi - om)
            ct, st = jnp.cos(0.5 * th), jnp.sin(0.5 * th)
            u2 = jnp.stack(
                [jnp.stack([jnp.exp(-1j * hs) * ct, -jnp.exp(1j * hd) * st], -1),
                 jnp.stack([jnp.exp(-1j * hd) * st, jnp.exp(1j * hs) * ct], -1)], -2)
            u16 = jax.vmap(lambda u: embed1(u, i))(u2)           # (B, 16, 16)
            psi = jnp.einsum('bij,bj->bi', u16, psi)
        for j in range(N_QUBITS):
            t = q_rot[j, layer]
            g2 = X2 if design[f'rot{layer}{j}'] == 'Rx' else Y2
            u16 = embed1(jnp.cos(t / 2) * I2 - 1j * jnp.sin(t / 2) * g2, j)
            psi = psi @ u16.T
            gate, wires = design[f'enta{layer}{j}']
            if wires[0] != wires[1]:
                te = q_enta[j, layer]
                p2 = X2 if gate == 'IsingXX' else Z2
                p16 = embed1(p2, wires[0]) @ embed1(p2, wires[1])
                u16 = jnp.cos(te / 2) * I16 - 1j * jnp.sin(te / 2) * p16
                psi = psi @ u16.T

    prob = jnp.abs(psi) ** 2
    bit = np.zeros((N_QUBITS, DIM), np.float32)
    for q in range(N_QUBITS):
        bit[q] = (np.arange(DIM) >> (N_QUBITS - 1 - q)) & 1
    zmat = jnp.asarray(1.0 - 2.0 * bit.T)
    exp_z = prob @ zmat                                          # (B, 4)
    out = jnp.tanh(exp_z @ params['wr'].T + params['br']) * 3.0
    return out[:, 0]


if __name__ == "__main__":
    key = jax.random.PRNGKey(0)
    k_params, ka, kv, kt = jax.random.split(key, 4)
    params = init_params(k_params)
    design = make_design()

    x_a = jax.random.normal(ka, (BATCH, SEQ, A_IN), jnp.float32)
    x_v = jax.random.normal(kv, (BATCH, SEQ, V_IN), jnp.float32)
    x_t = jax.random.normal(kt, (BATCH, SEQ, T_IN), jnp.float32)

    forward = make_qnet_forward(design)
    out = jax.block_until_ready(forward(x_a, x_v, x_t, params))
    ref = jax.block_until_ready(qnet_reference(x_a, x_v, x_t, params, design))

    assert out.shape == (BATCH,)
    assert bool(jnp.all(jnp.isfinite(out)))
    assert bool(jnp.all(jnp.abs(out) <= 3.0))
    err = float(jnp.max(jnp.abs(out - ref)))
    assert err < 2e-3, f"mismatch vs pure-JAX reference: {err}"
    print("KERNEL_OK")
</pallas_src>

<mosaic_0001>
module attributes {stable_mosaic.version = 11 : i64} {
  func.func @qnet_kernel(%arg0: memref<16x18xf32, #tpu.memory_space<vmem>>, %arg1: memref<200x128xf32, #tpu.memory_space<vmem>>, %arg2: memref<2x1xf32, #tpu.memory_space<vmem>>) attributes {dimension_semantics = [], scalar_prefetch = 0 : i64, scratch_operands = 0 : i64, tpu.core_type = #tpu.core_type<tc>} {
    %c0 = arith.constant 0 : index
    %c0_0 = arith.constant 0 : index
    %0 = vector.load %arg1[%c0, %c0_0] : memref<200x128xf32, #tpu.memory_space<vmem>>, vector<18x12xf32>
    %c24 = arith.constant 24 : index
    %c0_1 = arith.constant 0 : index
    %1 = vector.load %arg1[%c24, %c0_1] : memref<200x128xf32, #tpu.memory_space<vmem>>, vector<12x12xf32>
    %c40 = arith.constant 40 : index
    %c0_2 = arith.constant 0 : index
    %2 = vector.load %arg1[%c40, %c0_2] : memref<200x128xf32, #tpu.memory_space<vmem>>, vector<12x12xf32>
    %c56 = arith.constant 56 : index
    %c0_3 = arith.constant 0 : index
    %3 = vector.load %arg1[%c56, %c0_3] : memref<200x128xf32, #tpu.memory_space<vmem>>, vector<1x12xf32>
    %c57 = arith.constant 57 : index
    %c0_4 = arith.constant 0 : index
    %4 = vector.load %arg1[%c57, %c0_4] : memref<200x128xf32, #tpu.memory_space<vmem>>, vector<1x12xf32>
    %c0_5 = arith.constant 0 : index
    %c0_6 = arith.constant 0 : index
    %5 = vector.load %arg0[%c0_5, %c0_6] : memref<16x18xf32, #tpu.memory_space<vmem>>, vector<16x18xf32>
    %cst = arith.constant dense<0.000000e+00> : vector<16x12xf32>
    %6 = tpu.matmul %5, %0, %cst {dimension_numbers = #tpu.dot_dimension_numbers<[1], [0], [0], [1], [0, 0, 1, 1], [], []>, precision = #tpu.contract_precision<fp32>} : vector<16x18xf32>, vector<18x12xf32>, vector<16x12xf32> -> vector<16x12xf32>
    %7 = vector.broadcast %3 : vector<1x12xf32> to vector<16x12xf32>
    %8 = arith.addf %6, %7 : vector<16x12xf32>
    %cst_7 = arith.constant 0.000000e+00 : f32
    %9 = vector.broadcast %cst_7 : f32 to vector<2x12xf32>
    %10 = vector.extract_strided_slice %8 {offsets = [0, 0], sizes = [2, 12], strides = [1, 1]} : vector<16x12xf32> to vector<2x12xf32>
    %cst_8 = arith.constant dense<0.000000e+00> : vector<2x12xf32>
    %11 = tpu.matmul %9, %1, %cst_8 {dimension_numbers = #tpu.dot_dimension_numbers<[1], [0], [0], [1], [0, 0, 1, 1], [], []>, precision = #tpu.contract_precision<fp32>} : vector<2x12xf32>, vector<12x12xf32>, vector<2x12xf32> -> vector<2x12xf32>
    %12 = arith.addf %10, %11 : vector<2x12xf32>
    %13 = math.tanh %12 : vector<2x12xf32>
    %14 = vector.extract_strided_slice %8 {offsets = [2, 0], sizes = [2, 12], strides = [1, 1]} : vector<16x12xf32> to vector<2x12xf32>
    %cst_9 = arith.constant dense<0.000000e+00> : vector<2x12xf32>
    %15 = tpu.matmul %13, %1, %cst_9 {dimension_numbers = #tpu.dot_dimension_numbers<[1], [0], [0], [1], [0, 0, 1, 1], [], []>, precision = #tpu.contract_precision<fp32>} : vector<2x12xf32>, vector<12x12xf32>, vector<2x12xf32> -> vector<2x12xf32>
    %16 = arith.addf %14, %15 : vector<2x12xf32>
    %17 = math.tanh %16 : vector<2x12xf32>
    %18 = vector.extract_strided_slice %8 {offsets = [4, 0], sizes = [2, 12], strides = [1, 1]} : vector<16x12xf32> to vector<2x12xf32>
    %cst_10 = arith.constant dense<0.000000e+00> : vector<2x12xf32>
    %19 = tpu.matmul %17, %1, %cst_10 {dimension_numbers = #tpu.dot_dimension_numbers<[1], [0], [0], [1], [0, 0, 1, 1], [], []>, precision = #tpu.contract_precision<fp32>} : vector<2x12xf32>, vector<12x12xf32>, vector<2x12xf32> -> vector<2x12xf32>
    %20 = arith.addf %18, %19 : vector<2x12xf32>
    %21 = math.tanh %20 : vector<2x12xf32>
    %22 = vector.extract_strided_slice %8 {offsets = [6, 0], sizes = [2, 12], strides = [1, 1]} : vector<16x12xf32> to vector<2x12xf32>
    %cst_11 = arith.constant dense<0.000000e+00> : vector<2x12xf32>
    %23 = tpu.matmul %21, %1, %cst_11 {dimension_numbers = #tpu.dot_dimension_numbers<[1], [0], [0], [1], [0, 0, 1, 1], [], []>, precision = #tpu.contract_precision<fp32>} : vector<2x12xf32>, vector<12x12xf32>, vector<2x12xf32> -> vector<2x12xf32>
    %24 = arith.addf %22, %23 : vector<2x12xf32>
    %25 = math.tanh %24 : vector<2x12xf32>
    %26 = vector.extract_strided_slice %8 {offsets = [8, 0], sizes = [2, 12], strides = [1, 1]} : vector<16x12xf32> to vector<2x12xf32>
    %cst_12 = arith.constant dense<0.000000e+00> : vector<2x12xf32>
    %27 = tpu.matmul %25, %1, %cst_12 {dimension_numbers = #tpu.dot_dimension_numbers<[1], [0], [0], [1], [0, 0, 1, 1], [], []>, precision = #tpu.contract_precision<fp32>} : vector<2x12xf32>, vector<12x12xf32>, vector<2x12xf32> -> vector<2x12xf32>
    %28 = arith.addf %26, %27 : vector<2x12xf32>
    %29 = math.tanh %28 : vector<2x12xf32>
    %30 = vector.extract_strided_slice %8 {offsets = [10, 0], sizes = [2, 12], strides = [1, 1]} : vector<16x12xf32> to vector<2x12xf32>
    %cst_13 = arith.constant dense<0.000000e+00> : vector<2x12xf32>
    %31 = tpu.matmul %29, %1, %cst_13 {dimension_numbers = #tpu.dot_dimension_numbers<[1], [0], [0], [1], [0, 0, 1, 1], [], []>, precision = #tpu.contract_precision<fp32>} : vector<2x12xf32>, vector<12x12xf32>, vector<2x12xf32> -> vector<2x12xf32>
    %32 = arith.addf %30, %31 : vector<2x12xf32>
    %33 = math.tanh %32 : vector<2x12xf32>
    %34 = vector.extract_strided_slice %8 {offsets = [12, 0], sizes = [2, 12], strides = [1, 1]} : vector<16x12xf32> to vector<2x12xf32>
    %cst_14 = arith.constant dense<0.000000e+00> : vector<2x12xf32>
    %35 = tpu.matmul %33, %1, %cst_14 {dimension_numbers = #tpu.dot_dimension_numbers<[1], [0], [0], [1], [0, 0, 1, 1], [], []>, precision = #tpu.contract_precision<fp32>} : vector<2x12xf32>, vector<12x12xf32>, vector<2x12xf32> -> vector<2x12xf32>
    %36 = arith.addf %34, %35 : vector<2x12xf32>
    %37 = math.tanh %36 : vector<2x12xf32>
    %38 = vector.extract_strided_slice %8 {offsets = [14, 0], sizes = [2, 12], strides = [1, 1]} : vector<16x12xf32> to vector<2x12xf32>
    %cst_15 = arith.constant dense<0.000000e+00> : vector<2x12xf32>
    %39 = tpu.matmul %37, %1, %cst_15 {dimension_numbers = #tpu.dot_dimension_numbers<[1], [0], [0], [1], [0, 0, 1, 1], [], []>, precision = #tpu.contract_precision<fp32>} : vector<2x12xf32>, vector<12x12xf32>, vector<2x12xf32> -> vector<2x12xf32>
    %40 = arith.addf %38, %39 : vector<2x12xf32>
    %41 = math.tanh %40 : vector<2x12xf32>
    %cst_16 = arith.constant dense<0.000000e+00> : vector<2x12xf32>
    %42 = tpu.matmul %41, %2, %cst_16 {dimension_numbers = #tpu.dot_dimension_numbers<[1], [0], [0], [1], [0, 0, 1, 1], [], []>, precision = #tpu.contract_precision<fp32>} : vector<2x12xf32>, vector<12x12xf32>, vector<2x12xf32> -> vector<2x12xf32>
    %43 = vector.broadcast %4 : vector<1x12xf32> to vector<2x12xf32>
    %44 = arith.addf %42, %43 : vector<2x12xf32>
    %45 = tpu.iota {dimensions = array<i32: 1>} : vector<2x12xi32>
    %c4_i32 = arith.constant 4 : i32
    %46 = vector.broadcast %c4_i32 : i32 to vector<2x12xi32>
    %47 = arith.cmpi slt, %45, %46 : vector<2x12xi32>
    %cst_17 = arith.constant 0.000000e+00 : f32
    %48 = vector.broadcast %cst_17 : f32 to vector<2x12xf32>
    %49 = arith.maximumf %44, %48 : vector<2x12xf32>
    %cst_18 = arith.constant 0.000000e+00 : f32
    %50 = vector.broadcast %cst_18 : f32 to vector<2x12xf32>
    %51 = arith.subf %50, %44 : vector<2x12xf32>
    %52 = math.exp %51 : vector<2x12xf32>
    %cst_19 = arith.constant 1.000000e+00 : f32
    %53 = vector.broadcast %cst_19 : f32 to vector<2x12xf32>
    %54 = arith.addf %53, %52 : vector<2x12xf32>
    %cst_20 = arith.constant 3.14159274 : f32
    %55 = vector.broadcast %cst_20 : f32 to vector<2x12xf32>
    %56 = arith.divf %55, %54 : vector<2x12xf32>
    %57 = arith.select %47, %49, %56 : vector<2x12xi1>, vector<2x12xf32>
    %58 = vector.extract_strided_slice %57 {offsets = [0, 0], sizes = [2, 1], strides = [1, 1]} : vector<2x12xf32> to vector<2x1xf32>
    %59 = vector.extract_strided_slice %57 {offsets = [0, 1], sizes = [2, 1], strides = [1, 1]} : vector<2x12xf32> to vector<2x1xf32>
    %60 = vector.extract_strided_slice %57 {offsets = [0, 2], sizes = [2, 1], strides = [1, 1]} : vector<2x12xf32> to vector<2x1xf32>
    %61 = arith.addf %58, %60 : vector<2x1xf32>
    %cst_21 = arith.constant 5.000000e-01 : f32
    %62 = vector.broadcast %cst_21 : f32 to vector<2x1xf32>
    %63 = arith.mulf %62, %61 : vector<2x1xf32>
    %64 = arith.subf %58, %60 : vector<2x1xf32>
    %cst_22 = arith.constant 5.000000e-01 : f32
    %65 = vector.broadcast %cst_22 : f32 to vector<2x1xf32>
    %66 = arith.mulf %65, %64 : vector<2x1xf32>
    %cst_23 = arith.constant 5.000000e-01 : f32
    %67 = vector.broadcast %cst_23 : f32 to vector<2x1xf32>
    %68 = arith.mulf %67, %59 : vector<2x1xf32>
    %69 = math.cos %68 : vector<2x1xf32>
    %cst_24 = arith.constant 5.000000e-01 : f32
    %70 = vector.broadcast %cst_24 : f32 to vector<2x1xf32>
    %71 = arith.mulf %70, %59 : vector<2x1xf32>
    %72 = math.sin %71 : vector<2x1xf32>
    %73 = math.cos %63 : vector<2x1xf32>
    %74 = arith.mulf %73, %69 : vector<2x1xf32>
    %75 = math.sin %63 : vector<2x1xf32>
    %cst_25 = arith.constant 0.000000e+00 : f32
    %76 = vector.broadcast %cst_25 : f32 to vector<2x1xf32>
    %77 = arith.subf %76, %75 : vector<2x1xf32>
    %78 = arith.mulf %77, %69 : vector<2x1xf32>
    %79 = math.cos %66 : vector<2x1xf32>
    %cst_26 = arith.constant 0.000000e+00 : f32
    %80 = vector.broadcast %cst_26 : f32 to vector<2x1xf32>
    %81 = arith.subf %80, %79 : vector<2x1xf32>
    %82 = arith.mulf %81, %72 : vector<2x1xf32>
    %83 = math.sin %66 : vector<2x1xf32>
    %cst_27 = arith.constant 0.000000e+00 : f32
    %84 = vector.broadcast %cst_27 : f32 to vector<2x1xf32>
    %85 = arith.subf %84, %83 : vector<2x1xf32>
    %86 = arith.mulf %85, %72 : vector<2x1xf32>
    %87 = math.cos %66 : vector<2x1xf32>
    %88 = arith.mulf %87, %72 : vector<2x1xf32>
    %89 = math.sin %66 : vector<2x1xf32>
    %cst_28 = arith.constant 0.000000e+00 : f32
    %90 = vector.broadcast %cst_28 : f32 to vector<2x1xf32>
    %91 = arith.subf %90, %89 : vector<2x1xf32>
    %92 = arith.mulf %91, %72 : vector<2x1xf32>
    %93 = math.cos %63 : vector<2x1xf32>
    %94 = arith.mulf %93, %69 : vector<2x1xf32>
    %95 = math.sin %63 : vector<2x1xf32>
    %96 = arith.mulf %95, %69 : vector<2x1xf32>
    %c192 = arith.constant 192 : index
    %c0_29 = arith.constant 0 : index
    %97 = vector.load %arg1[%c192, %c0_29] : memref<200x128xf32, #tpu.memory_space<vmem>>, vector<1x16xf32>
    %cst_30 = arith.constant 1.000000e+00 : f32
    %98 = vector.broadcast %cst_30 : f32 to vector<1x16xf32>
    %99 = arith.subf %98, %97 : vector<1x16xf32>
    %100 = vector.broadcast %97 : vector<1x16xf32> to vector<2x16xf32>
    %101 = vector.broadcast %94 : vector<2x1xf32> to vector<2x16xf32>
    %102 = arith.mulf %100, %101 : vector<2x16xf32>
    %103 = vector.broadcast %99 : vector<1x16xf32> to vector<2x16xf32>
    %104 = vector.broadcast %74 : vector<2x1xf32> to vector<2x16xf32>
    %105 = arith.mulf %103, %104 : vector<2x16xf32>
    %106 = arith.addf %102, %105 : vector<2x16xf32>
    %107 = vector.broadcast %97 : vector<1x16xf32> to vector<2x16xf32>
    %108 = vector.broadcast %96 : vector<2x1xf32> to vector<2x16xf32>
    %109 = arith.mulf %107, %108 : vector<2x16xf32>
    %110 = vector.broadcast %99 : vector<1x16xf32> to vector<2x16xf32>
    %111 = vector.broadcast %78 : vector<2x1xf32> to vector<2x16xf32>
    %112 = arith.mulf %110, %111 : vector<2x16xf32>
    %113 = arith.addf %109, %112 : vector<2x16xf32>
    %114 = vector.broadcast %97 : vector<1x16xf32> to vector<2x16xf32>
    %115 = vector.broadcast %88 : vector<2x1xf32> to vector<2x16xf32>
    %116 = arith.mulf %114, %115 : vector<2x16xf32>
    %117 = vector.broadcast %99 : vector<1x16xf32> to vector<2x16xf32>
    %118 = vector.broadcast %82 : vector<2x1xf32> to vector<2x16xf32>
    %119 = arith.mulf %117, %118 : vector<2x16xf32>
    %120 = arith.addf %116, %119 : vector<2x16xf32>
    %121 = vector.broadcast %97 : vector<1x16xf32> to vector<2x16xf32>
    %122 = vector.broadcast %92 : vector<2x1xf32> to vector<2x16xf32>
    %123 = arith.mulf %121, %122 : vector<2x16xf32>
    %124 = vector.broadcast %99 : vector<1x16xf32> to vector<2x16xf32>
    %125 = vector.broadcast %86 : vector<2x1xf32> to vector<2x16xf32>
    %126 = arith.mulf %124, %125 : vector<2x16xf32>
    %127 = arith.addf %123, %126 : vector<2x16xf32>
    %c64 = arith.constant 64 : index
    %c0_31 = arith.constant 0 : index
    %128 = vector.load %arg1[%c64, %c0_31] : memref<200x128xf32, #tpu.memory_space<vmem>>, vector<16x16xf32>
    %129 = vector.extract_strided_slice %57 {offsets = [0, 3], sizes = [2, 1], strides = [1, 1]} : vector<2x12xf32> to vector<2x1xf32>
    %130 = vector.extract_strided_slice %57 {offsets = [0, 4], sizes = [2, 1], strides = [1, 1]} : vector<2x12xf32> to vector<2x1xf32>
    %131 = vector.extract_strided_slice %57 {offsets = [0, 5], sizes = [2, 1], strides = [1, 1]} : vector<2x12xf32> to vector<2x1xf32>
    %132 = arith.addf %129, %131 : vector<2x1xf32>
    %cst_32 = arith.constant 5.000000e-01 : f32
    %133 = vector.broadcast %cst_32 : f32 to vector<2x1xf32>
    %134 = arith.mulf %133, %132 : vector<2x1xf32>
    %135 = arith.subf %129, %131 : vector<2x1xf32>
    %cst_33 = arith.constant 5.000000e-01 : f32
    %136 = vector.broadcast %cst_33 : f32 to vector<2x1xf32>
    %137 = arith.mulf %136, %135 : vector<2x1xf32>
    %cst_34 = arith.constant 5.000000e-01 : f32
    %138 = vector.broadcast %cst_34 : f32 to vector<2x1xf32>
    %139 = arith.mulf %138, %130 : vector<2x1xf32>
    %140 = math.cos %139 : vector<2x1xf32>
    %cst_35 = arith.constant 5.000000e-01 : f32
    %141 = vector.broadcast %cst_35 : f32 to vector<2x1xf32>
    %142 = arith.mulf %141, %130 : vector<2x1xf32>
    %143 = math.sin %142 : vector<2x1xf32>
    %144 = math.cos %134 : vector<2x1xf32>
    %145 = arith.mulf %144, %140 : vector<2x1xf32>
    %146 = math.sin %134 : vector<2x1xf32>
    %cst_36 = arith.constant 0.000000e+00 : f32
    %147 = vector.broadcast %cst_36 : f32 to vector<2x1xf32>
    %148 = arith.subf %147, %146 : vector<2x1xf32>
    %149 = arith.mulf %148, %140 : vector<2x1xf32>
    %150 = math.cos %137 : vector<2x1xf32>
    %cst_37 = arith.constant 0.000000e+00 : f32
    %151 = vector.broadcast %cst_37 : f32 to vector<2x1xf32>
    %152 = arith.subf %151, %150 : vector<2x1xf32>
    %153 = arith.mulf %152, %143 : vector<2x1xf32>
    %154 = math.sin %137 : vector<2x1xf32>
    %cst_38 = arith.constant 0.000000e+00 : f32
    %155 = vector.broadcast %cst_38 : f32 to vector<2x1xf32>
    %156 = arith.subf %155, %154 : vector<2x1xf32>
    %157 = arith.mulf %156, %143 : vector<2x1xf32>
    %158 = math.cos %137 : vector<2x1xf32>
    %159 = arith.mulf %158, %143 : vector<2x1xf32>
    %160 = math.sin %137 : vector<2x1xf32>
    %cst_39 = arith.constant 0.000000e+00 : f32
    %161 = vector.broadcast %cst_39 : f32 to vector<2x1xf32>
    %162 = arith.subf %161, %160 : vector<2x1xf32>
    %163 = arith.mulf %162, %143 : vector<2x1xf32>
    %164 = math.cos %134 : vector<2x1xf32>
    %165 = arith.mulf %164, %140 : vector<2x1xf32>
    %166 = math.sin %134 : vector<2x1xf32>
    %167 = arith.mulf %166, %140 : vector<2x1xf32>
    %c193 = arith.constant 193 : index
    %c0_40 = arith.constant 0 : index
    %168 = vector.load %arg1[%c193, %c0_40] : memref<200x128xf32, #tpu.memory_space<vmem>>, vector<1x16xf32>
    %cst_41 = arith.constant 1.000000e+00 : f32
    %169 = vector.broadcast %cst_41 : f32 to vector<1x16xf32>
    %170 = arith.subf %169, %168 : vector<1x16xf32>
    %171 = vector.broadcast %168 : vector<1x16xf32> to vector<2x16xf32>
    %172 = vector.broadcast %165 : vector<2x1xf32> to vector<2x16xf32>
    %173 = arith.mulf %171, %172 : vector<2x16xf32>
    %174 = vector.broadcast %170 : vector<1x16xf32> to vector<2x16xf32>
    %175 = vector.broadcast %145 : vector<2x1xf32> to vector<2x16xf32>
    %176 = arith.mulf %174, %175 : vector<2x16xf32>
    %177 = arith.addf %173, %176 : vector<2x16xf32>
    %178 = vector.broadcast %168 : vector<1x16xf32> to vector<2x16xf32>
    %179 = vector.broadcast %167 : vector<2x1xf32> to vector<2x16xf32>
    %180 = arith.mulf %178, %179 : vector<2x16xf32>
    %181 = vector.broadcast %170 : vector<1x16xf32> to vector<2x16xf32>
    %182 = vector.broadcast %149 : vector<2x1xf32> to vector<2x16xf32>
    %183 = arith.mulf %181, %182 : vector<2x16xf32>
    %184 = arith.addf %180, %183 : vector<2x16xf32>
    %185 = vector.broadcast %168 : vector<1x16xf32> to vector<2x16xf32>
    %186 = vector.broadcast %159 : vector<2x1xf32> to vector<2x16xf32>
    %187 = arith.mulf %185, %186 : vector<2x16xf32>
    %188 = vector.broadcast %170 : vector<1x16xf32> to vector<2x16xf32>
    %189 = vector.broadcast %153 : vector<2x1xf32> to vector<2x16xf32>
    %190 = arith.mulf %188, %189 : vector<2x16xf32>
    %191 = arith.addf %187, %190 : vector<2x16xf32>
    %192 = vector.broadcast %168 : vector<1x16xf32> to vector<2x16xf32>
    %193 = vector.broadcast %163 : vector<2x1xf32> to vector<2x16xf32>
    %194 = arith.mulf %192, %193 : vector<2x16xf32>
    %195 = vector.broadcast %170 : vector<1x16xf32> to vector<2x16xf32>
    %196 = vector.broadcast %157 : vector<2x1xf32> to vector<2x16xf32>
    %197 = arith.mulf %195, %196 : vector<2x16xf32>
    %198 = arith.addf %194, %197 : vector<2x16xf32>
    %c80 = arith.constant 80 : index
    %c0_42 = arith.constant 0 : index
    %199 = vector.load %arg1[%c80, %c0_42] : memref<200x128xf32, #tpu.memory_space<vmem>>, vector<16x16xf32>
    %200 = vector.extract_strided_slice %57 {offsets = [0, 6], sizes = [2, 1], strides = [1, 1]} : vector<2x12xf32> to vector<2x1xf32>
    %201 = vector.extract_strided_slice %57 {offsets = [0, 7], sizes = [2, 1], strides = [1, 1]} : vector<2x12xf32> to vector<2x1xf32>
    %202 = vector.extract_strided_slice %57 {offsets = [0, 8], sizes = [2, 1], strides = [1, 1]} : vector<2x12xf32> to vector<2x1xf32>
    %203 = arith.addf %200, %202 : vector<2x1xf32>
    %cst_43 = arith.constant 5.000000e-01 : f32
    %204 = vector.broadcast %cst_43 : f32 to vector<2x1xf32>
    %205 = arith.mulf %204, %203 : vector<2x1xf32>
    %206 = arith.subf %200, %202 : vector<2x1xf32>
    %cst_44 = arith.constant 5.000000e-01 : f32
    %207 = vector.broadcast %cst_44 : f32 to vector<2x1xf32>
    %208 = arith.mulf %207, %206 : vector<2x1xf32>
    %cst_45 = arith.constant 5.000000e-01 : f32
    %209 = vector.broadcast %cst_45 : f32 to vector<2x1xf32>
    %210 = arith.mulf %209, %201 : vector<2x1xf32>
    %211 = math.cos %210 : vector<2x1xf32>
    %cst_46 = arith.constant 5.000000e-01 : f32
    %212 = vector.broadcast %cst_46 : f32 to vector<2x1xf32>
    %213 = arith.mulf %212, %201 : vector<2x1xf32>
    %214 = math.sin %213 : vector<2x1xf32>
    %215 = math.cos %205 : vector<2x1xf32>
    %216 = arith.mulf %215, %211 : vector<2x1xf32>
    %217 = math.sin %205 : vector<2x1xf32>
    %cst_47 = arith.constant 0.000000e+00 : f32
    %218 = vector.broadcast %cst_47 : f32 to vector<2x1xf32>
    %219 = arith.subf %218, %217 : vector<2x1xf32>
    %220 = arith.mulf %219, %211 : vector<2x1xf32>
    %221 = math.cos %208 : vector<2x1xf32>
    %cst_48 = arith.constant 0.000000e+00 : f32
    %222 = vector.broadcast %cst_48 : f32 to vector<2x1xf32>
    %223 = arith.subf %222, %221 : vector<2x1xf32>
    %224 = arith.mulf %223, %214 : vector<2x1xf32>
    %225 = math.sin %208 : vector<2x1xf32>
    %cst_49 = arith.constant 0.000000e+00 : f32
    %226 = vector.broadcast %cst_49 : f32 to vector<2x1xf32>
    %227 = arith.subf %226, %225 : vector<2x1xf32>
    %228 = arith.mulf %227, %214 : vector<2x1xf32>
    %229 = math.cos %208 : vector<2x1xf32>
    %230 = arith.mulf %229, %214 : vector<2x1xf32>
    %231 = math.sin %208 : vector<2x1xf32>
    %cst_50 = arith.constant 0.000000e+00 : f32
    %232 = vector.broadcast %cst_50 : f32 to vector<2x1xf32>
    %233 = arith.subf %232, %231 : vector<2x1xf32>
    %234 = arith.mulf %233, %214 : vector<2x1xf32>
    %235 = math.cos %205 : vector<2x1xf32>
    %236 = arith.mulf %235, %211 : vector<2x1xf32>
    %237 = math.sin %205 : vector<2x1xf32>
    %238 = arith.mulf %237, %211 : vector<2x1xf32>
    %c194 = arith.constant 194 : index
    %c0_51 = arith.constant 0 : index
    %239 = vector.load %arg1[%c194, %c0_51] : memref<200x128xf32, #tpu.memory_space<vmem>>, vector<1x16xf32>
    %cst_52 = arith.constant 1.000000e+00 : f32
    %240 = vector.broadcast %cst_52 : f32 to vector<1x16xf32>
    %241 = arith.subf %240, %239 : vector<1x16xf32>
    %242 = vector.broadcast %239 : vector<1x16xf32> to vector<2x16xf32>
    %243 = vector.broadcast %236 : vector<2x1xf32> to vector<2x16xf32>
    %244 = arith.mulf %242, %243 : vector<2x16xf32>
    %245 = vector.broadcast %241 : vector<1x16xf32> to vector<2x16xf32>
    %246 = vector.broadcast %216 : vector<2x1xf32> to vector<2x16xf32>
    %247 = arith.mulf %245, %246 : vector<2x16xf32>
    %248 = arith.addf %244, %247 : vector<2x16xf32>
    %249 = vector.broadcast %239 : vector<1x16xf32> to vector<2x16xf32>
    %250 = vector.broadcast %238 : vector<2x1xf32> to vector<2x16xf32>
    %251 = arith.mulf %249, %250 : vector<2x16xf32>
    %252 = vector.broadcast %241 : vector<1x16xf32> to vector<2x16xf32>
    %253 = vector.broadcast %220 : vector<2x1xf32> to vector<2x16xf32>
    %254 = arith.mulf %252, %253 : vector<2x16xf32>
    %255 = arith.addf %251, %254 : vector<2x16xf32>
    %256 = vector.broadcast %239 : vector<1x16xf32> to vector<2x16xf32>
    %257 = vector.broadcast %230 : vector<2x1xf32> to vector<2x16xf32>
    %258 = arith.mulf %256, %257 : vector<2x16xf32>
    %259 = vector.broadcast %241 : vector<1x16xf32> to vector<2x16xf32>
    %260 = vector.broadcast %224 : vector<2x1xf32> to vector<2x16xf32>
    %261 = arith.mulf %259, %260 : vector<2x16xf32>
    %262 = arith.addf %258, %261 : vector<2x16xf32>
    %263 = vector.broadcast %239 : vector<1x16xf32> to vector<2x16xf32>
    %264 = vector.broadcast %234 : vector<2x1xf32> to vector<2x16xf32>
    %265 = arith.mulf %263, %264 : vector<2x16xf32>
    %266 = vector.broadcast %241 : vector<1x16xf32> to vector<2x16xf32>
    %267 = vector.broadcast %228 : vector<2x1xf32> to vector<2x16xf32>
    %268 = arith.mulf %266, %267 : vector<2x16xf32>
    %269 = arith.addf %265, %268 : vector<2x16xf32>
    %c96 = arith.constant 96 : index
    %c0_53 = arith.constant 0 : index
    %270 = vector.load %arg1[%c96, %c0_53] : memref<200x128xf32, #tpu.memory_space<vmem>>, vector<16x16xf32>
    %271 = vector.extract_strided_slice %57 {offsets = [0, 9], sizes = [2, 1], strides = [1, 1]} : vector<2x12xf32> to vector<2x1xf32>
    %272 = vector.extract_strided_slice %57 {offsets = [0, 10], sizes = [2, 1], strides = [1, 1]} : vector<2x12xf32> to vector<2x1xf32>
    %273 = vector.extract_strided_slice %57 {offsets = [0, 11], sizes = [2, 1], strides = [1, 1]} : vector<2x12xf32> to vector<2x1xf32>
    %274 = arith.addf %271, %273 : vector<2x1xf32>
    %cst_54 = arith.constant 5.000000e-01 : f32
    %275 = vector.broadcast %cst_54 : f32 to vector<2x1xf32>
    %276 = arith.mulf %275, %274 : vector<2x1xf32>
    %277 = arith.subf %271, %273 : vector<2x1xf32>
    %cst_55 = arith.constant 5.000000e-01 : f32
    %278 = vector.broadcast %cst_55 : f32 to vector<2x1xf32>
    %279 = arith.mulf %278, %277 : vector<2x1xf32>
    %cst_56 = arith.constant 5.000000e-01 : f32
    %280 = vector.broadcast %cst_56 : f32 to vector<2x1xf32>
    %281 = arith.mulf %280, %272 : vector<2x1xf32>
    %282 = math.cos %281 : vector<2x1xf32>
    %cst_57 = arith.constant 5.000000e-01 : f32
    %283 = vector.broadcast %cst_57 : f32 to vector<2x1xf32>
    %284 = arith.mulf %283, %272 : vector<2x1xf32>
    %285 = math.sin %284 : vector<2x1xf32>
    %286 = math.cos %276 : vector<2x1xf32>
    %287 = arith.mulf %286, %282 : vector<2x1xf32>
    %288 = math.sin %276 : vector<2x1xf32>
    %cst_58 = arith.constant 0.000000e+00 : f32
    %289 = vector.broadcast %cst_58 : f32 to vector<2x1xf32>
    %290 = arith.subf %289, %288 : vector<2x1xf32>
    %291 = arith.mulf %290, %282 : vector<2x1xf32>
    %292 = math.cos %279 : vector<2x1xf32>
    %cst_59 = arith.constant 0.000000e+00 : f32
    %293 = vector.broadcast %cst_59 : f32 to vector<2x1xf32>
    %294 = arith.subf %293, %292 : vector<2x1xf32>
    %295 = arith.mulf %294, %285 : vector<2x1xf32>
    %296 = math.sin %279 : vector<2x1xf32>
    %cst_60 = arith.constant 0.000000e+00 : f32
    %297 = vector.broadcast %cst_60 : f32 to vector<2x1xf32>
    %298 = arith.subf %297, %296 : vector<2x1xf32>
    %299 = arith.mulf %298, %285 : vector<2x1xf32>
    %300 = math.cos %279 : vector<2x1xf32>
    %301 = arith.mulf %300, %285 : vector<2x1xf32>
    %302 = math.sin %279 : vector<2x1xf32>
    %cst_61 = arith.constant 0.000000e+00 : f32
    %303 = vector.broadcast %cst_61 : f32 to vector<2x1xf32>
    %304 = arith.subf %303, %302 : vector<2x1xf32>
    %305 = arith.mulf %304, %285 : vector<2x1xf32>
    %306 = math.cos %276 : vector<2x1xf32>
    %307 = arith.mulf %306, %282 : vector<2x1xf32>
    %308 = math.sin %276 : vector<2x1xf32>
    %309 = arith.mulf %308, %282 : vector<2x1xf32>
    %c195 = arith.constant 195 : index
    %c0_62 = arith.constant 0 : index
    %310 = vector.load %arg1[%c195, %c0_62] : memref<200x128xf32, #tpu.memory_space<vmem>>, vector<1x16xf32>
    %cst_63 = arith.constant 1.000000e+00 : f32
    %311 = vector.broadcast %cst_63 : f32 to vector<1x16xf32>
    %312 = arith.subf %311, %310 : vector<1x16xf32>
    %313 = vector.broadcast %310 : vector<1x16xf32> to vector<2x16xf32>
    %314 = vector.broadcast %307 : vector<2x1xf32> to vector<2x16xf32>
    %315 = arith.mulf %313, %314 : vector<2x16xf32>
    %316 = vector.broadcast %312 : vector<1x16xf32> to vector<2x16xf32>
    %317 = vector.broadcast %287 : vector<2x1xf32> to vector<2x16xf32>
    %318 = arith.mulf %316, %317 : vector<2x16xf32>
    %319 = arith.addf %315, %318 : vector<2x16xf32>
    %320 = vector.broadcast %310 : vector<1x16xf32> to vector<2x16xf32>
    %321 = vector.broadcast %309 : vector<2x1xf32> to vector<2x16xf32>
    %322 = arith.mulf %320, %321 : vector<2x16xf32>
    %323 = vector.broadcast %312 : vector<1x16xf32> to vector<2x16xf32>
    %324 = vector.broadcast %291 : vector<2x1xf32> to vector<2x16xf32>
    %325 = arith.mulf %323, %324 : vector<2x16xf32>
    %326 = arith.addf %322, %325 : vector<2x16xf32>
    %327 = vector.broadcast %310 : vector<1x16xf32> to vector<2x16xf32>
    %328 = vector.broadcast %301 : vector<2x1xf32> to vector<2x16xf32>
    %329 = arith.mulf %327, %328 : vector<2x16xf32>
    %330 = vector.broadcast %312 : vector<1x16xf32> to vector<2x16xf32>
    %331 = vector.broadcast %295 : vector<2x1xf32> to vector<2x16xf32>
    %332 = arith.mulf %330, %331 : vector<2x16xf32>
    %333 = arith.addf %329, %332 : vector<2x16xf32>
    %334 = vector.broadcast %310 : vector<1x16xf32> to vector<2x16xf32>
    %335 = vector.broadcast %305 : vector<2x1xf32> to vector<2x16xf32>
    %336 = arith.mulf %334, %335 : vector<2x16xf32>
    %337 = vector.broadcast %312 : vector<1x16xf32> to vector<2x16xf32>
    %338 = vector.broadcast %299 : vector<2x1xf32> to vector<2x16xf32>
    %339 = arith.mulf %337, %338 : vector<2x16xf32>
    %340 = arith.addf %336, %339 : vector<2x16xf32>
    %c112 = arith.constant 112 : index
    %c0_64 = arith.constant 0 : index
    %341 = vector.load %arg1[%c112, %c0_64] : memref<200x128xf32, #tpu.memory_space<vmem>>, vector<16x16xf32>
    %342 = tpu.iota {dimensions = array<i32: 1>} : vector<2x16xi32>
    %c0_i32 = arith.constant 0 : i32
    %343 = vector.broadcast %c0_i32 : i32 to vector<2x16xi32>
    %344 = arith.cmpi eq, %342, %343 : vector<2x16xi32>
    %345 = arith.extui %344 : vector<2x16xi1> to vector<2x16xi32>
    %346 = arith.sitofp %345 : vector<2x16xi32> to vector<2x16xf32>
    %cst_65 = arith.constant 0.000000e+00 : f32
    %347 = vector.broadcast %cst_65 : f32 to vector<2x16xf32>
    %348 = tpu.concatenate %346, %347 in 0 : vector<2x16xf32>, vector<2x16xf32> -> vector<4x16xf32>
    %cst_66 = arith.constant dense<0.000000e+00> : vector<4x16xf32>
    %349 = tpu.matmul %348, %128, %cst_66 {dimension_numbers = #tpu.dot_dimension_numbers<[1], [0], [0], [1], [0, 0, 1, 1], [], []>, precision = #tpu.contract_precision<fp32>} : vector<4x16xf32>, vector<16x16xf32>, vector<4x16xf32> -> vector<4x16xf32>
    %350 = vector.extract_strided_slice %349 {offsets = [0, 0], sizes = [2, 16], strides = [1, 1]} : vector<4x16xf32> to vector<2x16xf32>
    %351 = vector.extract_strided_slice %349 {offsets = [2, 0], sizes = [2, 16], strides = [1, 1]} : vector<4x16xf32> to vector<2x16xf32>
    %352 = arith.mulf %106, %346 : vector<2x16xf32>
    %353 = arith.mulf %113, %347 : vector<2x16xf32>
    %354 = arith.subf %352, %353 : vector<2x16xf32>
    %355 = arith.mulf %120, %350 : vector<2x16xf32>
    %356 = arith.addf %354, %355 : vector<2x16xf32>
    %357 = arith.mulf %127, %351 : vector<2x16xf32>
    %358 = arith.subf %356, %357 : vector<2x16xf32>
    %359 = arith.mulf %106, %347 : vector<2x16xf32>
    %360 = arith.mulf %113, %346 : vector<2x16xf32>
    %361 = arith.addf %359, %360 : vector<2x16xf32>
    %362 = arith.mulf %120, %351 : vector<2x16xf32>
    %363 = arith.addf %361, %362 : vector<2x16xf32>
    %364 = arith.mulf %127, %350 : vector<2x16xf32>
    %365 = arith.addf %363, %364 : vector<2x16xf32>
    %366 = tpu.concatenate %358, %365 in 0 : vector<2x16xf32>, vector<2x16xf32> -> vector<4x16xf32>
    %cst_67 = arith.constant dense<0.000000e+00> : vector<4x16xf32>
    %367 = tpu.matmul %366, %199, %cst_67 {dimension_numbers = #tpu.dot_dimension_numbers<[1], [0], [0], [1], [0, 0, 1, 1], [], []>, precision = #tpu.contract_precision<fp32>} : vector<4x16xf32>, vector<16x16xf32>, vector<4x16xf32> -> vector<4x16xf32>
    %368 = vector.extract_strided_slice %367 {offsets = [0, 0], sizes = [2, 16], strides = [1, 1]} : vector<4x16xf32> to vector<2x16xf32>
    %369 = vector.extract_strided_slice %367 {offsets = [2, 0], sizes = [2, 16], strides = [1, 1]} : vector<4x16xf32> to vector<2x16xf32>
    %370 = arith.mulf %177, %358 : vector<2x16xf32>
    %371 = arith.mulf %184, %365 : vector<2x16xf32>
    %372 = arith.subf %370, %371 : vector<2x16xf32>
    %373 = arith.mulf %191, %368 : vector<2x16xf32>
    %374 = arith.addf %372, %373 : vector<2x16xf32>
    %375 = arith.mulf %198, %369 : vector<2x16xf32>
    %376 = arith.subf %374, %375 : vector<2x16xf32>
    %377 = arith.mulf %177, %365 : vector<2x16xf32>
    %378 = arith.mulf %184, %358 : vector<2x16xf32>
    %379 = arith.addf %377, %378 : vector<2x16xf32>
    %380 = arith.mulf %191, %369 : vector<2x16xf32>
    %381 = arith.addf %379, %380 : vector<2x16xf32>
    %382 = arith.mulf %198, %368 : vector<2x16xf32>
    %383 = arith.addf %381, %382 : vector<2x16xf32>
    %384 = tpu.concatenate %376, %383 in 0 : vector<2x16xf32>, vector<2x16xf32> -> vector<4x16xf32>
    %cst_68 = arith.constant dense<0.000000e+00> : vector<4x16xf32>
    %385 = tpu.matmul %384, %270, %cst_68 {dimension_numbers = #tpu.dot_dimension_numbers<[1], [0], [0], [1], [0, 0, 1, 1], [], []>, precision = #tpu.contract_precision<fp32>} : vector<4x16xf32>, vector<16x16xf32>, vector<4x16xf32> -> vector<4x16xf32>
    %386 = vector.extract_strided_slice %385 {offsets = [0, 0], sizes = [2, 16], strides = [1, 1]} : vector<4x16xf32> to vector<2x16xf32>
    %387 = vector.extract_strided_slice %385 {offsets = [2, 0], sizes = [2, 16], strides = [1, 1]} : vector<4x16xf32> to vector<2x16xf32>
    %388 = arith.mulf %248, %376 : vector<2x16xf32>
    %389 = arith.mulf %255, %383 : vector<2x16xf32>
    %390 = arith.subf %388, %389 : vector<2x16xf32>
    %391 = arith.mulf %262, %386 : vector<2x16xf32>
    %392 = arith.addf %390, %391 : vector<2x16xf32>
    %393 = arith.mulf %269, %387 : vector<2x16xf32>
    %394 = arith.subf %392, %393 : vector<2x16xf32>
    %395 = arith.mulf %248, %383 : vector<2x16xf32>
    %396 = arith.mulf %255, %376 : vector<2x16xf32>
    %397 = arith.addf %395, %396 : vector<2x16xf32>
    %398 = arith.mulf %262, %387 : vector<2x16xf32>
    %399 = arith.addf %397, %398 : vector<2x16xf32>
    %400 = arith.mulf %269, %386 : vector<2x16xf32>
    %401 = arith.addf %399, %400 : vector<2x16xf32>
    %402 = tpu.concatenate %394, %401 in 0 : vector<2x16xf32>, vector<2x16xf32> -> vector<4x16xf32>
    %cst_69 = arith.constant dense<0.000000e+00> : vector<4x16xf32>
    %403 = tpu.matmul %402, %341, %cst_69 {dimension_numbers = #tpu.dot_dimension_numbers<[1], [0], [0], [1], [0, 0, 1, 1], [], []>, precision = #tpu.contract_precision<fp32>} : vector<4x16xf32>, vector<16x16xf32>, vector<4x16xf32> -> vector<4x16xf32>
    %404 = vector.extract_strided_slice %403 {offsets = [0, 0], sizes = [2, 16], strides = [1, 1]} : vector<4x16xf32> to vector<2x16xf32>
    %405 = vector.extract_strided_slice %403 {offsets = [2, 0], sizes = [2, 16], strides = [1, 1]} : vector<4x16xf32> to vector<2x16xf32>
    %406 = arith.mulf %319, %394 : vector<2x16xf32>
    %407 = arith.mulf %326, %401 : vector<2x16xf32>
    %408 = arith.subf %406, %407 : vector<2x16xf32>
    %409 = arith.mulf %333, %404 : vector<2x16xf32>
    %410 = arith.addf %408, %409 : vector<2x16xf32>
    %411 = arith.mulf %340, %405 : vector<2x16xf32>
    %412 = arith.subf %410, %411 : vector<2x16xf32>
    %413 = arith.mulf %319, %401 : vector<2x16xf32>
    %414 = arith.mulf %326, %394 : vector<2x16xf32>
    %415 = arith.addf %413, %414 : vector<2x16xf32>
    %416 = arith.mulf %333, %405 : vector<2x16xf32>
    %417 = arith.addf %415, %416 : vector<2x16xf32>
    %418 = arith.mulf %340, %404 : vector<2x16xf32>
    %419 = arith.addf %417, %418 : vector<2x16xf32>
    %c128 = arith.constant 128 : index
    %c0_70 = arith.constant 0 : index
    %420 = vector.load %arg1[%c128, %c0_70] : memref<200x128xf32, #tpu.memory_space<vmem>>, vector<32x32xf32>
    %421 = tpu.concatenate %412, %419 in 1 : vector<2x16xf32>, vector<2x16xf32> -> vector<2x32xf32>
    %cst_71 = arith.constant dense<0.000000e+00> : vector<2x32xf32>
    %422 = tpu.matmul %421, %420, %cst_71 {dimension_numbers = #tpu.dot_dimension_numbers<[1], [0], [0], [1], [0, 0, 1, 1], [], []>, precision = #tpu.contract_precision<fp32>} : vector<2x32xf32>, vector<32x32xf32>, vector<2x32xf32> -> vector<2x32xf32>
    %423 = vector.extract_strided_slice %422 {offsets = [0, 0], sizes = [2, 16], strides = [1, 1]} : vector<2x32xf32> to vector<2x16xf32>
    %424 = vector.extract_strided_slice %422 {offsets = [0, 16], sizes = [2, 16], strides = [1, 1]} : vector<2x32xf32> to vector<2x16xf32>
    %425 = tpu.concatenate %423, %424 in 0 : vector<2x16xf32>, vector<2x16xf32> -> vector<4x16xf32>
    %cst_72 = arith.constant dense<0.000000e+00> : vector<4x16xf32>
    %426 = tpu.matmul %425, %128, %cst_72 {dimension_numbers = #tpu.dot_dimension_numbers<[1], [0], [0], [1], [0, 0, 1, 1], [], []>, precision = #tpu.contract_precision<fp32>} : vector<4x16xf32>, vector<16x16xf32>, vector<4x16xf32> -> vector<4x16xf32>
    %427 = vector.extract_strided_slice %426 {offsets = [0, 0], sizes = [2, 16], strides = [1, 1]} : vector<4x16xf32> to vector<2x16xf32>
    %428 = vector.extract_strided_slice %426 {offsets = [2, 0], sizes = [2, 16], strides = [1, 1]} : vector<4x16xf32> to vector<2x16xf32>
    %429 = arith.mulf %106, %423 : vector<2x16xf32>
    %430 = arith.mulf %113, %424 : vector<2x16xf32>
    %431 = arith.subf %429, %430 : vector<2x16xf32>
    %432 = arith.mulf %120, %427 : vector<2x16xf32>
    %433 = arith.addf %431, %432 : vector<2x16xf32>
    %434 = arith.mulf %127, %428 : vector<2x16xf32>
    %435 = arith.subf %433, %434 : vector<2x16xf32>
    %436 = arith.mulf %106, %424 : vector<2x16xf32>
    %437 = arith.mulf %113, %423 : vector<2x16xf32>
    %438 = arith.addf %436, %437 : vector<2x16xf32>
    %439 = arith.mulf %120, %428 : vector<2x16xf32>
    %440 = arith.addf %438, %439 : vector<2x16xf32>
    %441 = arith.mulf %127, %427 : vector<2x16xf32>
    %442 = arith.addf %440, %441 : vector<2x16xf32>
    %443 = tpu.concatenate %435, %442 in 0 : vector<2x16xf32>, vector<2x16xf32> -> vector<4x16xf32>
    %cst_73 = arith.constant dense<0.000000e+00> : vector<4x16xf32>
    %444 = tpu.matmul %443, %199, %cst_73 {dimension_numbers = #tpu.dot_dimension_numbers<[1], [0], [0], [1], [0, 0, 1, 1], [], []>, precision = #tpu.contract_precision<fp32>} : vector<4x16xf32>, vector<16x16xf32>, vector<4x16xf32> -> vector<4x16xf32>
    %445 = vector.extract_strided_slice %444 {offsets = [0, 0], sizes = [2, 16], strides = [1, 1]} : vector<4x16xf32> to vector<2x16xf32>
    %446 = vector.extract_strided_slice %444 {offsets = [2, 0], sizes = [2, 16], strides = [1, 1]} : vector<4x16xf32> to vector<2x16xf32>
    %447 = arith.mulf %177, %435 : vector<2x16xf32>
    %448 = arith.mulf %184, %442 : vector<2x16xf32>
    %449 = arith.subf %447, %448 : vector<2x16xf32>
    %450 = arith.mulf %191, %445 : vector<2x16xf32>
    %451 = arith.addf %449, %450 : vector<2x16xf32>
    %452 = arith.mulf %198, %446 : vector<2x16xf32>
    %453 = arith.subf %451, %452 : vector<2x16xf32>
    %454 = arith.mulf %177, %442 : vector<2x16xf32>
    %455 = arith.mulf %184, %435 : vector<2x16xf32>
    %456 = arith.addf %454, %455 : vector<2x16xf32>
    %457 = arith.mulf %191, %446 : vector<2x16xf32>
    %458 = arith.addf %456, %457 : vector<2x16xf32>
    %459 = arith.mulf %198, %445 : vector<2x16xf32>
    %460 = arith.addf %458, %459 : vector<2x16xf32>
    %461 = tpu.concatenate %453, %460 in 0 : vector<2x16xf32>, vector<2x16xf32> -> vector<4x16xf32>
    %cst_74 = arith.constant dense<0.000000e+00> : vector<4x16xf32>
    %462 = tpu.matmul %461, %270, %cst_74 {dimension_numbers = #tpu.dot_dimension_numbers<[1], [0], [0], [1], [0, 0, 1, 1], [], []>, precision = #tpu.contract_precision<fp32>} : vector<4x16xf32>, vector<16x16xf32>, vector<4x16xf32> -> vector<4x16xf32>
    %463 = vector.extract_strided_slice %462 {offsets = [0, 0], sizes = [2, 16], strides = [1, 1]} : vector<4x16xf32> to vector<2x16xf32>
    %464 = vector.extract_strided_slice %462 {offsets = [2, 0], sizes = [2, 16], strides = [1, 1]} : vector<4x16xf32> to vector<2x16xf32>
    %465 = arith.mulf %248, %453 : vector<2x16xf32>
    %466 = arith.mulf %255, %460 : vector<2x16xf32>
    %467 = arith.subf %465, %466 : vector<2x16xf32>
    %468 = arith.mulf %262, %463 : vector<2x16xf32>
    %469 = arith.addf %467, %468 : vector<2x16xf32>
    %470 = arith.mulf %269, %464 : vector<2x16xf32>
    %471 = arith.subf %469, %470 : vector<2x16xf32>
    %472 = arith.mulf %248, %460 : vector<2x16xf32>
    %473 = arith.mulf %255, %453 : vector<2x16xf32>
    %474 = arith.addf %472, %473 : vector<2x16xf32>
    %475 = arith.mulf %262, %464 : vector<2x16xf32>
    %476 = arith.addf %474, %475 : vector<2x16xf32>
    %477 = arith.mulf %269, %463 : vector<2x16xf32>
    %478 = arith.addf %476, %477 : vector<2x16xf32>
    %479 = tpu.concatenate %471, %478 in 0 : vector<2x16xf32>, vector<2x16xf32> -> vector<4x16xf32>
    %cst_75 = arith.constant dense<0.000000e+00> : vector<4x16xf32>
    %480 = tpu.matmul %479, %341, %cst_75 {dimension_numbers = #tpu.dot_dimension_numbers<[1], [0], [0], [1], [0, 0, 1, 1], [], []>, precision = #tpu.contract_precision<fp32>} : vector<4x16xf32>, vector<16x16xf32>, vector<4x16xf32> -> vector<4x16xf32>
    %481 = vector.extract_strided_slice %480 {offsets = [0, 0], sizes = [2, 16], strides = [1, 1]} : vector<4x16xf32> to vector<2x16xf32>
    %482 = vector.extract_strided_slice %480 {offsets = [2, 0], sizes = [2, 16], strides = [1, 1]} : vector<4x16xf32> to vector<2x16xf32>
    %483 = arith.mulf %319, %471 : vector<2x16xf32>
    %484 = arith.mulf %326, %478 : vector<2x16xf32>
    %485 = arith.subf %483, %484 : vector<2x16xf32>
    %486 = arith.mulf %333, %481 : vector<2x16xf32>
    %487 = arith.addf %485, %486 : vector<2x16xf32>
    %488 = arith.mulf %340, %482 : vector<2x16xf32>
    %489 = arith.subf %487, %488 : vector<2x16xf32>
    %490 = arith.mulf %319, %478 : vector<2x16xf32>
    %491 = arith.mulf %326, %471 : vector<2x16xf32>
    %492 = arith.addf %490, %491 : vector<2x16xf32>
    %493 = arith.mulf %333, %482 : vector<2x16xf32>
    %494 = arith.addf %492, %493 : vector<2x16xf32>
    %495 = arith.mulf %340, %481 : vector<2x16xf32>
    %496 = arith.addf %494, %495 : vector<2x16xf32>
    %c160 = arith.constant 160 : index
    %c0_76 = arith.constant 0 : index
    %497 = vector.load %arg1[%c160, %c0_76] : memref<200x128xf32, #tpu.memory_space<vmem>>, vector<32x32xf32>
    %498 = tpu.concatenate %489, %496 in 1 : vector<2x16xf32>, vector<2x16xf32> -> vector<2x32xf32>
    %cst_77 = arith.constant dense<0.000000e+00> : vector<2x32xf32>
    %499 = tpu.matmul %498, %497, %cst_77 {dimension_numbers = #tpu.dot_dimension_numbers<[1], [0], [0], [1], [0, 0, 1, 1], [], []>, precision = #tpu.contract_precision<fp32>} : vector<2x32xf32>, vector<32x32xf32>, vector<2x32xf32> -> vector<2x32xf32>
    %500 = vector.extract_strided_slice %499 {offsets = [0, 0], sizes = [2, 16], strides = [1, 1]} : vector<2x32xf32> to vector<2x16xf32>
    %501 = vector.extract_strided_slice %499 {offsets = [0, 16], sizes = [2, 16], strides = [1, 1]} : vector<2x32xf32> to vector<2x16xf32>
    %502 = arith.mulf %500, %500 : vector<2x16xf32>
    %503 = arith.mulf %501, %501 : vector<2x16xf32>
    %504 = arith.addf %502, %503 : vector<2x16xf32>
    %c196 = arith.constant 196 : index
    %c0_78 = arith.constant 0 : index
    %505 = vector.load %arg1[%c196, %c0_78] : memref<200x128xf32, #tpu.memory_space<vmem>>, vector<1x16xf32>
    %c197 = arith.constant 197 : index
    %c0_79 = arith.constant 0 : index
    %506 = vector.load %arg1[%c197, %c0_79] : memref<200x128xf32, #tpu.memory_space<vmem>>, vector<1x1xf32>
    %507 = vector.broadcast %505 : vector<1x16xf32> to vector<2x16xf32>
    %508 = arith.mulf %504, %507 : vector<2x16xf32>
    %cst_80 = arith.constant dense<0.000000e+00> : vector<2xf32>
    %509 = vector.multi_reduction <add>, %508, %cst_80 [1] : vector<2x16xf32> to vector<2xf32>
    %510 = vector.shape_cast %509 : vector<2xf32> to vector<2x1xf32>
    %511 = vector.broadcast %506 : vector<1x1xf32> to vector<2x1xf32>
    %512 = arith.addf %510, %511 : vector<2x1xf32>
    %513 = math.tanh %512 : vector<2x1xf32>
    %cst_81 = arith.constant 3.000000e+00 : f32
    %514 = vector.broadcast %cst_81 : f32 to vector<2x1xf32>
    %515 = arith.mulf %513, %514 : vector<2x1xf32>
    %c0_82 = arith.constant 0 : index
    %c0_83 = arith.constant 0 : index
    %516 = vector.load %arg2[%c0_82, %c0_83] : memref<2x1xf32, #tpu.memory_space<vmem>>, vector<2x1xf32>
    tpu.vector_store %arg2[%c0_82, %c0_83], %515 {strides = array<i32>} : memref<2x1xf32, #tpu.memory_space<vmem>>, vector<2x1xf32>,
    return
  }
}

</mosaic_0001>

<llo_original>
// kernel: forward.1
$region0: #{forward.1}
  #allocation0 [shape = 'u32[]', space=smem, size = 0x4, offset = 0x4, fixed_abs, tag = 'smem constant byte address 0x4 - core index']
  #allocation1 [shape = 'u32[144,128]{1,0:T(1,128)}', space=vmem, size = 0x12000, scoped, tag = 'internal scratch']
  %s0 = inlined_call_operand.vmem [shape: f32[16,18], index: 0, kind: input, shape index: {}]
  %s1 = inlined_call_operand.vmem [shape: f32[200,128], index: 1, kind: input, shape index: {}]
  %s2 = inlined_call_operand.vmem [shape: f32[2,1], index: 2, kind: output, shape index: {}]
  %s3 = sld [smem:[#allocation0]]
  $region18: #{forward.1} parent=0
    _
  %s5 = ssub.s32 1, %s3
  %s6 = scalar_select 0, %s5, %s3
  // Predicated region
  $region2: #{forward.1} parent=0 // pred_check
    _
  $region3: #{forward.1} parent=0 // pred_check_branch
    %8 = sbr.rel (0) target = $region5
  $region4: #{forward.1} parent=0 // pred_region
    _
  $region5: #{forward.1} parent=0 // pred_fallthru
    _
  // Predicated region
  $region6: #{forward.1} parent=0 // pred_check
    _
  $region7: #{forward.1} parent=0 // pred_check_branch
    %10 = sbr.rel (0) target = $region9
  $region8: #{forward.1} parent=0 // pred_region
    _
  $region9: #{forward.1} parent=0 // pred_fallthru
    _
  %v11 = vld [vmem:[%s1] sm:$0xff]
  %v12 = vld [vmem:[%s1 + $0x8] sm:$0xff]
  %v13 = vld [vmem:[%s1 + $0x10] sm:$0x3]
  %v14 = vld [vmem:[%s1 + $0x18] sm:$0xff]
  %v15 = vld [vmem:[%s1 + $0x20] sm:$0xf]
  %v16 = vld [vmem:[%s1 + $0x28] sm:$0xff]
  %v17 = vld [vmem:[%s1 + $0x30] sm:$0xf]
  %v18 = vld [vmem:[%s1 + $0x38] sm:$0x1]
  %v19 = vld [vmem:[%s1 + $0x39] sm:$0x1]
  %v20 = vld [vmem:[%s0] sm:$0xff]
  %v21 = vld [vmem:[%s0 + $0x8] sm:$0xff]
  %v22 = vlaneseq
  %v23 = vshrl.u32 %v22, 7
  %v24 = vsub.s32 0, %v23
  %v25 = vrot.slane %v18, %v24
  %vm26 = vcmask 146432
  %v28 = vsel %vm26, %v20, 0
  %v31 = vsel %vm26, %v21, 0
  %vm33 = vcmask 1041408
  %v35 = vsel %vm33, %v13, 0
  %37 = vmatprep.subr.mxu0 0.0
  %v38 = vand.u32 %v11, 4294901760
  %39 = vmatpush1.msra.mxu0 %v38
  %40 = vmatprep.subr.mxu0 0.0
  %v41 = vand.u32 %v12, 4294901760
  %42 = vmatpush1.msra.mxu0 %v41
  %43 = vmatprep.subr.mxu0 0.0
  %v44 = vand.u32 %v35, 4294901760
  %45 = vmatpush1.msra.mxu0 %v44
  %46 = vmatprep.subr.mxu0 0.0
  %47 = vmatpush1.msra.mxu0 0.0
  %48 = vmatprep.subr.mxu0 0.0
  %49 = vmatpush1.msra.mxu0 0.0
  %50 = vmatprep.subr.mxu0 0.0
  %51 = vmatpush1.msra.mxu0 0.0
  %52 = vmatprep.subr.mxu0 0.0
  %53 = vmatpush1.msra.mxu0 0.0
  %54 = vmatprep.subr.mxu0 0.0
  %55 = vmatpush1.msra.mxu0 0.0
  %56 = vmatprep.subr.mxu0 0.0
  %57 = vmatpush1.msra.mxu0 0.0
  %58 = vmatprep.subr.mxu0 0.0
  %59 = vmatpush1.msra.mxu0 0.0
  %60 = vmatprep.subr.mxu0 0.0
  %61 = vmatpush1.msra.mxu0 0.0
  %62 = vmatprep.subr.mxu0 0.0
  %63 = vmatpush1.msra.mxu0 0.0
  %64 = vmatprep.subr.mxu0 0.0
  %65 = vmatpush1.msra.mxu0 0.0
  %66 = vmatprep.subr.mxu0 0.0
  %67 = vmatpush1.msra.mxu0 0.0
  %68 = vmatprep.subr.mxu0 0.0
  %69 = vmatpush1.msra.mxu0 0.0
  %70 = vmatprep.subr.mxu0 0.0
  %71 = vmatpush1.msra.mxu0 0.0
  %72 = vmatprep.subr.mxu0 0.0
  %73 = vmatpush1.msra.mxu0 0.0
  %74 = vmatprep.subr.mxu0 0.0
  %75 = vmatpush1.msra.mxu0 0.0
  %76 = vmatprep.subr.mxu0 0.0
  %77 = vmatpush1.msra.mxu0 0.0
  %78 = vmatprep.subr.mxu0 0.0
  %79 = vmatpush1.msra.mxu0 0.0
  %80 = vmatprep.subr.mxu0 0.0
  %81 = vmatpush1.msra.mxu0 0.0
  %82 = vmatprep.subr.mxu0 0.0
  %83 = vmatpush1.msra.mxu0 0.0
  %84 = vmatprep.subr.mxu0 0.0
  %85 = vmatpush1.msra.mxu0 0.0
  %86 = vmatprep.subr.mxu0 0.0
  %87 = vmatpush1.msra.mxu0 0.0
  %88 = vmatprep.subr.mxu0 0.0
  %89 = vmatpush1.msra.mxu0 0.0
  %90 = vmatprep.subr.mxu0 0.0
  %91 = vmatpush1.msra.mxu0 0.0
  %92 = vmatprep.subr.mxu0 0.0
  %93 = vmatpush1.msra.mxu0 0.0
  %94 = vmatprep.subr.mxu0 0.0
  %95 = vmatpush1.msra.mxu0 0.0
  %96 = vmatprep.subr.mxu0 0.0
  %97 = vmatpush1.msra.mxu0 0.0
  %98 = vmatprep.subr.mxu0 0.0
  %99 = vmatpush1.msra.mxu0 0.0
  %100 = vmatprep.subr.mxu0 0.0
  %101 = vmatpush1.msra.mxu0 0.0
  %102 = vmatprep.subr.mxu0 0.0
  %103 = vmatpush1.msra.mxu0 0.0
  %104 = vmatprep.mubr.f32.mxu0 0.0
  %v105 = vand.u32 %v28, 4294901760
  %v106 = vsub.f32 %v28, %v105
  %v107 = vand.u32 %v106, 4294901760
  %v108 = vsub.f32 %v106, %v107
  %v109 = vand.u32 %v108, 4294901760
  %110 = vmatmul.mubr.f32.gmra.mrb[0].mxu0 %v109
  %v111 = vpop.f32.mrb[0].mxu0
  %v112 = vadd.f32 %v25, %v111
  %v113 = vpop.f32.mrb[0].mxu0
  %114 = vmatprep.mubr.f32.mxu0 0.0
  %v115 = vand.u32 %v31, 4294901760
  %v116 = vsub.f32 %v31, %v115
  %v117 = vand.u32 %v116, 4294901760
  %v118 = vsub.f32 %v116, %v117
  %v119 = vand.u32 %v118, 4294901760
  %120 = vmatmul.mubr.f32.gmra.mrb[0].mxu0 %v119
  %v121 = vpop.f32.mrb[0].mxu0
  %v122 = vadd.f32 %v25, %v121
  %v123 = vpop.f32.mrb[0].mxu0
  %124 = vdwg.mxu0
  %125 = vmatprep.subr.mxu0 0.0
  %v126 = vand.u32 %v11, 4294901760
  %v127 = vsub.f32 %v11, %v126
  %v128 = vand.u32 %v127, 4294901760
  %v129 = vsub.f32 %v127, %v128
  %v130 = vand.u32 %v129, 4294901760
  %131 = vmatpush1.msra.mxu0 %v130
  %132 = vmatprep.subr.mxu0 0.0
  %v133 = vand.u32 %v12, 4294901760
  %v134 = vsub.f32 %v12, %v133
  %v135 = vand.u32 %v134, 4294901760
  %v136 = vsub.f32 %v134, %v135
  %v137 = vand.u32 %v136, 4294901760
  %138 = vmatpush1.msra.mxu0 %v137
  %139 = vmatprep.subr.mxu0 0.0
  %v140 = vand.u32 %v35, 4294901760
  %v141 = vsub.f32 %v35, %v140
  %v142 = vand.u32 %v141, 4294901760
  %v143 = vsub.f32 %v141, %v142
  %v144 = vand.u32 %v143, 4294901760
  %145 = vmatpush1.msra.mxu0 %v144
  %146 = vmatprep.subr.mxu0 0.0
  %147 = vmatpush1.msra.mxu0 0.0
  %148 = vmatprep.subr.mxu0 0.0
  %149 = vmatpush1.msra.mxu0 0.0
  %150 = vmatprep.subr.mxu0 0.0
  %151 = vmatpush1.msra.mxu0 0.0
  %152 = vmatprep.subr.mxu0 0.0
  %153 = vmatpush1.msra.mxu0 0.0
  %154 = vmatprep.subr.mxu0 0.0
  %155 = vmatpush1.msra.mxu0 0.0
  %156 = vmatprep.subr.mxu0 0.0
  %157 = vmatpush1.msra.mxu0 0.0
  %158 = vmatprep.subr.mxu0 0.0
  %159 = vmatpush1.msra.mxu0 0.0
  %160 = vmatprep.subr.mxu0 0.0
  %161 = vmatpush1.msra.mxu0 0.0
  %162 = vmatprep.subr.mxu0 0.0
  %163 = vmatpush1.msra.mxu0 0.0
  %164 = vmatprep.subr.mxu0 0.0
  %165 = vmatpush1.msra.mxu0 0.0
  %166 = vmatprep.subr.mxu0 0.0
  %167 = vmatpush1.msra.mxu0 0.0
  %168 = vmatprep.subr.mxu0 0.0
  %169 = vmatpush1.msra.mxu0 0.0
  %170 = vmatprep.subr.mxu0 0.0
  %171 = vmatpush1.msra.mxu0 0.0
  %172 = vmatprep.subr.mxu0 0.0
  %173 = vmatpush1.msra.mxu0 0.0
  %174 = vmatprep.subr.mxu0 0.0
  %175 = vmatpush1.msra.mxu0 0.0
  %176 = vmatprep.subr.mxu0 0.0
  %177 = vmatpush1.msra.mxu0 0.0
  %178 = vmatprep.subr.mxu0 0.0
  %179 = vmatpush1.msra.mxu0 0.0
  %180 = vmatprep.subr.mxu0 0.0
  %181 = vmatpush1.msra.mxu0 0.0
  %182 = vmatprep.subr.mxu0 0.0
  %183 = vmatpush1.msra.mxu0 0.0
  %184 = vmatprep.subr.mxu0 0.0
  %185 = vmatpush1.msra.mxu0 0.0
  %186 = vmatprep.subr.mxu0 0.0
  %187 = vmatpush1.msra.mxu0 0.0
  %188 = vmatprep.subr.mxu0 0.0
  %189 = vmatpush1.msra.mxu0 0.0
  %190 = vmatprep.subr.mxu0 0.0
  %191 = vmatpush1.msra.mxu0 0.0
  %192 = vmatprep.subr.mxu0 0.0
  %193 = vmatpush1.msra.mxu0 0.0
  %194 = vmatprep.subr.mxu0 0.0
  %195 = vmatpush1.msra.mxu0 0.0
  %196 = vmatprep.subr.mxu0 0.0
  %197 = vmatpush1.msra.mxu0 0.0
  %198 = vmatprep.subr.mxu0 0.0
  %199 = vmatpush1.msra.mxu0 0.0
  %200 = vmatprep.subr.mxu0 0.0
  %201 = vmatpush1.msra.mxu0 0.0
  %202 = vmatprep.subr.mxu0 0.0
  %203 = vmatpush1.msra.mxu0 0.0
  %204 = vmatprep.mubr.f32.mxu0 0.0
  %v205 = vand.u32 %v28, 4294901760
  %206 = vmatmul.mubr.f32.gmra.mrb[0].mxu0 %v205
  %v207 = vpop.f32.mrb[0].mxu0
  %v208 = vadd.f32 %v112, %v207
  %v209 = vpop.f32.mrb[0].mxu0
  %210 = vmatprep.mubr.f32.mxu0 0.0
  %v211 = vand.u32 %v31, 4294901760
  %212 = vmatmul.mubr.f32.gmra.mrb[0].mxu0 %v211
  %v213 = vpop.f32.mrb[0].mxu0
  %v214 = vadd.f32 %v122, %v213
  %v215 = vpop.f32.mrb[0].mxu0
  %216 = vdwg.mxu0
  %217 = vmatprep.subr.mxu0 0.0
  %v218 = vand.u32 %v11, 4294901760
  %v219 = vsub.f32 %v11, %v218
  %220 = vmatpush1.msra.mxu0 %v219
  %221 = vmatprep.subr.mxu0 0.0
  %v222 = vand.u32 %v12, 4294901760
  %v223 = vsub.f32 %v12, %v222
  %224 = vmatpush1.msra.mxu0 %v223
  %225 = vmatprep.subr.mxu0 0.0
  %v226 = vand.u32 %v35, 4294901760
  %v227 = vsub.f32 %v35, %v226
  %228 = vmatpush1.msra.mxu0 %v227
  %229 = vmatprep.subr.mxu0 0.0
  %230 = vmatpush1.msra.mxu0 0.0
  %231 = vmatprep.subr.mxu0 0.0
  %232 = vmatpush1.msra.mxu0 0.0
  %233 = vmatprep.subr.mxu0 0.0
  %234 = vmatpush1.msra.mxu0 0.0
  %235 = vmatprep.subr.mxu0 0.0
  %236 = vmatpush1.msra.mxu0 0.0
  %237 = vmatprep.subr.mxu0 0.0
  %238 = vmatpush1.msra.mxu0 0.0
  %239 = vmatprep.subr.mxu0 0.0
  %240 = vmatpush1.msra.mxu0 0.0
  %241 = vmatprep.subr.mxu0 0.0
  %242 = vmatpush1.msra.mxu0 0.0
  %243 = vmatprep.subr.mxu0 0.0
  %244 = vmatpush1.msra.mxu0 0.0
  %245 = vmatprep.subr.mxu0 0.0
  %246 = vmatpush1.msra.mxu0 0.0
  %247 = vmatprep.subr.mxu0 0.0
  %248 = vmatpush1.msra.mxu0 0.0
  %249 = vmatprep.subr.mxu0 0.0
  %250 = vmatpush1.msra.mxu0 0.0
  %251 = vmatprep.subr.mxu0 0.0
  %252 = vmatpush1.msra.mxu0 0.0
  %253 = vmatprep.subr.mxu0 0.0
  %254 = vmatpush1.msra.mxu0 0.0
  %255 = vmatprep.subr.mxu0 0.0
  %256 = vmatpush1.msra.mxu0 0.0
  %257 = vmatprep.subr.mxu0 0.0
  %258 = vmatpush1.msra.mxu0 0.0
  %259 = vmatprep.subr.mxu0 0.0
  %260 = vmatpush1.msra.mxu0 0.0
  %261 = vmatprep.subr.mxu0 0.0
  %262 = vmatpush1.msra.mxu0 0.0
  %263 = vmatprep.subr.mxu0 0.0
  %264 = vmatpush1.msra.mxu0 0.0
  %265 = vmatprep.subr.mxu0 0.0
  %266 = vmatpush1.msra.mxu0 0.0
  %267 = vmatprep.subr.mxu0 0.0
  %268 = vmatpush1.msra.mxu0 0.0
  %269 = vmatprep.subr.mxu0 0.0
  %270 = vmatpush1.msra.mxu0 0.0
  %271 = vmatprep.subr.mxu0 0.0
  %272 = vmatpush1.msra.mxu0 0.0
  %273 = vmatprep.subr.mxu0 0.0
  %274 = vmatpush1.msra.mxu0 0.0
  %275 = vmatprep.subr.mxu0 0.0
  %276 = vmatpush1.msra.mxu0 0.0
  %277 = vmatprep.subr.mxu0 0.0
  %278 = vmatpush1.msra.mxu0 0.0
  %279 = vmatprep.subr.mxu0 0.0
  %280 = vmatpush1.msra.mxu0 0.0
  %281 = vmatprep.subr.mxu0 0.0
  %282 = vmatpush1.msra.mxu0 0.0
  %283 = vmatprep.subr.mxu0 0.0
  %284 = vmatpush1.msra.mxu0 0.0
  %285 = vmatprep.subr.mxu0 0.0
  %286 = vmatpush1.msra.mxu0 0.0
  %287 = vmatprep.mubr.f32.mxu0 0.0
  %v288 = vand.u32 %v28, 4294901760
  %v289 = vsub.f32 %v28, %v288
  %290 = vmatmul.mubr.f32.gmra.mrb[0].mxu0 %v289
  %v291 = vpop.f32.mrb[0].mxu0
  %v292 = vadd.f32 %v208, %v291
  %v293 = vpop.f32.mrb[0].mxu0
  %294 = vmatprep.mubr.f32.mxu0 0.0
  %v295 = vand.u32 %v31, 4294901760
  %v296 = vsub.f32 %v31, %v295
  %297 = vmatmul.mubr.f32.gmra.mrb[0].mxu0 %v296
  %v298 = vpop.f32.mrb[0].mxu0
  %v299 = vadd.f32 %v214, %v298
  %v300 = vpop.f32.mrb[0].mxu0
  %301 = vdwg.mxu0
  %302 = vmatprep.subr.mxu0 0.0
  %v303 = vand.u32 %v11, 4294901760
  %304 = vmatpush1.msra.mxu0 %v303
  %305 = vmatprep.subr.mxu0 0.0
  %v306 = vand.u32 %v12, 4294901760
  %307 = vmatpush1.msra.mxu0 %v306
  %308 = vmatprep.subr.mxu0 0.0
  %v309 = vand.u32 %v35, 4294901760
  %310 = vmatpush1.msra.mxu0 %v309
  %311 = vmatprep.subr.mxu0 0.0
  %312 = vmatpush1.msra.mxu0 0.0
  %313 = vmatprep.subr.mxu0 0.0
  %314 = vmatpush1.msra.mxu0 0.0
  %315 = vmatprep.subr.mxu0 0.0
  %316 = vmatpush1.msra.mxu0 0.0
  %317 = vmatprep.subr.mxu0 0.0
  %318 = vmatpush1.msra.mxu0 0.0
  %319 = vmatprep.subr.mxu0 0.0
  %320 = vmatpush1.msra.mxu0 0.0
  %321 = vmatprep.subr.mxu0 0.0
  %322 = vmatpush1.msra.mxu0 0.0
  %323 = vmatprep.subr.mxu0 0.0
  %324 = vmatpush1.msra.mxu0 0.0
  %325 = vmatprep.subr.mxu0 0.0
  %326 = vmatpush1.msra.mxu0 0.0
  %327 = vmatprep.subr.mxu0 0.0
  %328 = vmatpush1.msra.mxu0 0.0
  %329 = vmatprep.subr.mxu0 0.0
  %330 = vmatpush1.msra.mxu0 0.0
  %331 = vmatprep.subr.mxu0 0.0
  %332 = vmatpush1.msra.mxu0 0.0
  %333 = vmatprep.subr.mxu0 0.0
  %334 = vmatpush1.msra.mxu0 0.0
  %335 = vmatprep.subr.mxu0 0.0
  %336 = vmatpush1.msra.mxu0 0.0
  %337 = vmatprep.subr.mxu0 0.0
  %338 = vmatpush1.msra.mxu0 0.0
  %339 = vmatprep.subr.mxu0 0.0
  %340 = vmatpush1.msra.mxu0 0.0
  %341 = vmatprep.subr.mxu0 0.0
  %342 = vmatpush1.msra.mxu0 0.0
  %343 = vmatprep.subr.mxu0 0.0
  %344 = vmatpush1.msra.mxu0 0.0
  %345 = vmatprep.subr.mxu0 0.0
  %346 = vmatpush1.msra.mxu0 0.0
  %347 = vmatprep.subr.mxu0 0.0
  %348 = vmatpush1.msra.mxu0 0.0
  %349 = vmatprep.subr.mxu0 0.0
  %350 = vmatpush1.msra.mxu0 0.0
  %351 = vmatprep.subr.mxu0 0.0
  %352 = vmatpush1.msra.mxu0 0.0
  %353 = vmatprep.subr.mxu0 0.0
  %354 = vmatpush1.msra.mxu0 0.0
  %355 = vmatprep.subr.mxu0 0.0
  %356 = vmatpush1.msra.mxu0 0.0
  %357 = vmatprep.subr.mxu0 0.0
  %358 = vmatpush1.msra.mxu0 0.0
  %359 = vmatprep.subr.mxu0 0.0
  %360 = vmatpush1.msra.mxu0 0.0
  %361 = vmatprep.subr.mxu0 0.0
  %362 = vmatpush1.msra.mxu0 0.0
  %363 = vmatprep.subr.mxu0 0.0
  %364 = vmatpush1.msra.mxu0 0.0
  %365 = vmatprep.subr.mxu0 0.0
  %366 = vmatpush1.msra.mxu0 0.0
  %367 = vmatprep.subr.mxu0 0.0
  %368 = vmatpush1.msra.mxu0 0.0
  %369 = vmatprep.mubr.f32.mxu0 0.0
  %v370 = vand.u32 %v28, 4294901760
  %v371 = vsub.f32 %v28, %v370
  %v372 = vand.u32 %v371, 4294901760
  %373 = vmatmul.mubr.f32.gmra.mrb[0].mxu0 %v372
  %v374 = vpop.f32.mrb[0].mxu0
  %v375 = vadd.f32 %v292, %v374
  %v376 = vpop.f32.mrb[0].mxu0
  %377 = vmatprep.mubr.f32.mxu0 0.0
  %v378 = vand.u32 %v31, 4294901760
  %v379 = vsub.f32 %v31, %v378
  %v380 = vand.u32 %v379, 4294901760
  %381 = vmatmul.mubr.f32.gmra.mrb[0].mxu0 %v380
  %v382 = vpop.f32.mrb[0].mxu0
  %v383 = vadd.f32 %v299, %v382
  %v384 = vpop.f32.mrb[0].mxu0
  %385 = vdwg.mxu0
  %386 = vmatprep.subr.mxu0 0.0
  %v387 = vand.u32 %v11, 4294901760
  %v388 = vsub.f32 %v11, %v387
  %v389 = vand.u32 %v388, 4294901760
  %390 = vmatpush1.msra.mxu0 %v389
  %391 = vmatprep.subr.mxu0 0.0
  %v392 = vand.u32 %v12, 4294901760
  %v393 = vsub.f32 %v12, %v392
  %v394 = vand.u32 %v393, 4294901760
  %395 = vmatpush1.msra.mxu0 %v394
  %396 = vmatprep.subr.mxu0 0.0
  %v397 = vand.u32 %v35, 4294901760
  %v398 = vsub.f32 %v35, %v397
  %v399 = vand.u32 %v398, 4294901760
  %400 = vmatpush1.msra.mxu0 %v399
  %401 = vmatprep.subr.mxu0 0.0
  %402 = vmatpush1.msra.mxu0 0.0
  %403 = vmatprep.subr.mxu0 0.0
  %404 = vmatpush1.msra.mxu0 0.0
  %405 = vmatprep.subr.mxu0 0.0
  %406 = vmatpush1.msra.mxu0 0.0
  %407 = vmatprep.subr.mxu0 0.0
  %408 = vmatpush1.msra.mxu0 0.0
  %409 = vmatprep.subr.mxu0 0.0
  %410 = vmatpush1.msra.mxu0 0.0
  %411 = vmatprep.subr.mxu0 0.0
  %412 = vmatpush1.msra.mxu0 0.0
  %413 = vmatprep.subr.mxu0 0.0
  %414 = vmatpush1.msra.mxu0 0.0
  %415 = vmatprep.subr.mxu0 0.0
  %416 = vmatpush1.msra.mxu0 0.0
  %417 = vmatprep.subr.mxu0 0.0
  %418 = vmatpush1.msra.mxu0 0.0
  %419 = vmatprep.subr.mxu0 0.0
  %420 = vmatpush1.msra.mxu0 0.0
  %421 = vmatprep.subr.mxu0 0.0
  %422 = vmatpush1.msra.mxu0 0.0
  %423 = vmatprep.subr.mxu0 0.0
  %424 = vmatpush1.msra.mxu0 0.0
  %425 = vmatprep.subr.mxu0 0.0
  %426 = vmatpush1.msra.mxu0 0.0
  %427 = vmatprep.subr.mxu0 0.0
  %428 = vmatpush1.msra.mxu0 0.0
  %429 = vmatprep.subr.mxu0 0.0
  %430 = vmatpush1.msra.mxu0 0.0
  %431 = vmatprep.subr.mxu0 0.0
  %432 = vmatpush1.msra.mxu0 0.0
  %433 = vmatprep.subr.mxu0 0.0
  %434 = vmatpush1.msra.mxu0 0.0
  %435 = vmatprep.subr.mxu0 0.0
  %436 = vmatpush1.msra.mxu0 0.0
  %437 = vmatprep.subr.mxu0 0.0
  %438 = vmatpush1.msra.mxu0 0.0
  %439 = vmatprep.subr.mxu0 0.0
  %440 = vmatpush1.msra.mxu0 0.0
  %441 = vmatprep.subr.mxu0 0.0
  %442 = vmatpush1.msra.mxu0 0.0
  %443 = vmatprep.subr.mxu0 0.0
  %444 = vmatpush1.msra.mxu0 0.0
  %445 = vmatprep.subr.mxu0 0.0
  %446 = vmatpush1.msra.mxu0 0.0
  %447 = vmatprep.subr.mxu0 0.0
  %448 = vmatpush1.msra.mxu0 0.0
  %449 = vmatprep.subr.mxu0 0.0
  %450 = vmatpush1.msra.mxu0 0.0
  %451 = vmatprep.subr.mxu0 0.0
  %452 = vmatpush1.msra.mxu0 0.0
  %453 = vmatprep.subr.mxu0 0.0
  %454 = vmatpush1.msra.mxu0 0.0
  %455 = vmatprep.subr.mxu0 0.0
  %456 = vmatpush1.msra.mxu0 0.0
  %457 = vmatprep.subr.mxu0 0.0
  %458 = vmatpush1.msra.mxu0 0.0
  %459 = vmatprep.mubr.f32.mxu0 0.0
  %v460 = vand.u32 %v28, 4294901760
  %461 = vmatmul.mubr.f32.gmra.mrb[0].mxu0 %v460
  %v462 = vpop.f32.mrb[0].mxu0
  %v463 = vadd.f32 %v375, %v462
  %v464 = vpop.f32.mrb[0].mxu0
  %465 = vmatprep.mubr.f32.mxu0 0.0
  %v466 = vand.u32 %v31, 4294901760
  %467 = vmatmul.mubr.f32.gmra.mrb[0].mxu0 %v466
  %v468 = vpop.f32.mrb[0].mxu0
  %v469 = vadd.f32 %v383, %v468
  %v470 = vpop.f32.mrb[0].mxu0
  %471 = vdwg.mxu0
  %472 = vmatprep.subr.mxu0 0.0
  %v473 = vand.u32 %v11, 4294901760
  %474 = vmatpush1.msra.mxu0 %v473
  %475 = vmatprep.subr.mxu0 0.0
  %v476 = vand.u32 %v12, 4294901760
  %477 = vmatpush1.msra.mxu0 %v476
  %478 = vmatprep.subr.mxu0 0.0
  %v479 = vand.u32 %v35, 4294901760
  %480 = vmatpush1.msra.mxu0 %v479
  %481 = vmatprep.subr.mxu0 0.0
  %482 = vmatpush1.msra.mxu0 0.0
  %483 = vmatprep.subr.mxu0 0.0
  %484 = vmatpush1.msra.mxu0 0.0
  %485 = vmatprep.subr.mxu0 0.0
  %486 = vmatpush1.msra.mxu0 0.0
  %487 = vmatprep.subr.mxu0 0.0
  %488 = vmatpush1.msra.mxu0 0.0
  %489 = vmatprep.subr.mxu0 0.0
  %490 = vmatpush1.msra.mxu0 0.0
  %491 = vmatprep.subr.mxu0 0.0
  %492 = vmatpush1.msra.mxu0 0.0
  %493 = vmatprep.subr.mxu0 0.0
  %494 = vmatpush1.msra.mxu0 0.0
  %495 = vmatprep.subr.mxu0 0.0
  %496 = vmatpush1.msra.mxu0 0.0
  %497 = vmatprep.subr.mxu0 0.0
  %498 = vmatpush1.msra.mxu0 0.0
  %499 = vmatprep.subr.mxu0 0.0
  %500 = vmatpush1.msra.mxu0 0.0
  %501 = vmatprep.subr.mxu0 0.0
  %502 = vmatpush1.msra.mxu0 0.0
  %503 = vmatprep.subr.mxu0 0.0
  %504 = vmatpush1.msra.mxu0 0.0
  %505 = vmatprep.subr.mxu0 0.0
  %506 = vmatpush1.msra.mxu0 0.0
  %507 = vmatprep.subr.mxu0 0.0
  %508 = vmatpush1.msra.mxu0 0.0
  %509 = vmatprep.subr.mxu0 0.0
  %510 = vmatpush1.msra.mxu0 0.0
  %511 = vmatprep.subr.mxu0 0.0
  %512 = vmatpush1.msra.mxu0 0.0
  %513 = vmatprep.subr.mxu0 0.0
  %514 = vmatpush1.msra.mxu0 0.0
  %515 = vmatprep.subr.mxu0 0.0
  %516 = vmatpush1.msra.mxu0 0.0
  %517 = vmatprep.subr.mxu0 0.0
  %518 = vmatpush1.msra.mxu0 0.0
  %519 = vmatprep.subr.mxu0 0.0
  %520 = vmatpush1.msra.mxu0 0.0
  %521 = vmatprep.subr.mxu0 0.0
  %522 = vmatpush1.msra.mxu0 0.0
  %523 = vmatprep.subr.mxu0 0.0
  %524 = vmatpush1.msra.mxu0 0.0
  %525 = vmatprep.subr.mxu0 0.0
  %526 = vmatpush1.msra.mxu0 0.0
  %527 = vmatprep.subr.mxu0 0.0
  %528 = vmatpush1.msra.mxu0 0.0
  %529 = vmatprep.subr.mxu0 0.0
  %530 = vmatpush1.msra.mxu0 0.0
  %531 = vmatprep.subr.mxu0 0.0
  %532 = vmatpush1.msra.mxu0 0.0
  %533 = vmatprep.subr.mxu0 0.0
  %534 = vmatpush1.msra.mxu0 0.0
  %535 = vmatprep.subr.mxu0 0.0
  %536 = vmatpush1.msra.mxu0 0.0
  %537 = vmatprep.subr.mxu0 0.0
  %538 = vmatpush1.msra.mxu0 0.0
  %539 = vmatprep.mubr.f32.mxu0 0.0
  %v540 = vand.u32 %v28, 4294901760
  %541 = vmatmul.mubr.f32.gmra.mrb[0].mxu0 %v540
  %v542 = vpop.f32.mrb[0].mxu0
  %v543 = vadd.f32 %v463, %v542
  %v544 = vpop.f32.mrb[0].mxu0
  %545 = vmatprep.mubr.f32.mxu0 0.0
  %v546 = vand.u32 %v31, 4294901760
  %547 = vmatmul.mubr.f32.gmra.mrb[0].mxu0 %v546
  %v548 = vpop.f32.mrb[0].mxu0
  %v549 = vadd.f32 %v469, %v548
  %v550 = vpop.f32.mrb[0].mxu0
  %551 = vdwg.mxu0
  %vm552 = vcmask 97280
  %v554 = vsel %vm552, 0.0, 0
  %vm556 = vcmask 1043456
  %v558 = vsel %vm556, %v15, 0
  %560 = vmatprep.subr.mxu0 0.0
  %v561 = vand.u32 %v14, 4294901760
  %562 = vmatpush1.msra.mxu0 %v561
  %563 = vmatprep.subr.mxu0 0.0
  %v564 = vand.u32 %v558, 4294901760
  %565 = vmatpush1.msra.mxu0 %v564
  %566 = vmatprep.subr.mxu0 0.0
  %567 = vmatpush1.msra.mxu0 0.0
  %568 = vmatprep.subr.mxu0 0.0
  %569 = vmatpush1.msra.mxu0 0.0
  %570 = vmatprep.subr.mxu0 0.0
  %571 = vmatpush1.msra.mxu0 0.0
  %572 = vmatprep.subr.mxu0 0.0
  %573 = vmatpush1.msra.mxu0 0.0
  %574 = vmatprep.subr.mxu0 0.0
  %575 = vmatpush1.msra.mxu0 0.0
  %576 = vmatprep.subr.mxu0 0.0
  %577 = vmatpush1.msra.mxu0 0.0
  %578 = vmatprep.subr.mxu0 0.0
  %579 = vmatpush1.msra.mxu0 0.0
  %580 = vmatprep.subr.mxu0 0.0
  %581 = vmatpush1.msra.mxu0 0.0
  %582 = vmatprep.subr.mxu0 0.0
  %583 = vmatpush1.msra.mxu0 0.0
  %584 = vmatprep.subr.mxu0 0.0
  %585 = vmatpush1.msra.mxu0 0.0
  %586 = vmatprep.subr.mxu0 0.0
  %587 = vmatpush1.msra.mxu0 0.0
  %588 = vmatprep.subr.mxu0 0.0
  %589 = vmatpush1.msra.mxu0 0.0
  %590 = vmatprep.subr.mxu0 0.0
  %591 = vmatpush1.msra.mxu0 0.0
  %592 = vmatprep.subr.mxu0 0.0
  %593 = vmatpush1.msra.mxu0 0.0
  %594 = vmatprep.subr.mxu0 0.0
  %595 = vmatpush1.msra.mxu0 0.0
  %596 = vmatprep.subr.mxu0 0.0
  %597 = vmatpush1.msra.mxu0 0.0
  %598 = vmatprep.subr.mxu0 0.0
  %599 = vmatpush1.msra.mxu0 0.0
  %600 = vmatprep.subr.mxu0 0.0
  %601 = vmatpush1.msra.mxu0 0.0
  %602 = vmatprep.subr.mxu0 0.0
  %603 = vmatpush1.msra.mxu0 0.0
  %604 = vmatprep.subr.mxu0 0.0
  %605 = vmatpush1.msra.mxu0 0.0
  %606 = vmatprep.subr.mxu0 0.0
  %607 = vmatpush1.msra.mxu0 0.0
  %608 = vmatprep.subr.mxu0 0.0
  %609 = vmatpush1.msra.mxu0 0.0
  %610 = vmatprep.subr.mxu0 0.0
  %611 = vmatpush1.msra.mxu0 0.0
  %612 = vmatprep.subr.mxu0 0.0
  %613 = vmatpush1.msra.mxu0 0.0
  %614 = vmatprep.subr.mxu0 0.0
  %615 = vmatpush1.msra.mxu0 0.0
  %616 = vmatprep.subr.mxu0 0.0
  %617 = vmatpush1.msra.mxu0 0.0
  %618 = vmatprep.subr.mxu0 0.0
  %619 = vmatpush1.msra.mxu0 0.0
  %620 = vmatprep.subr.mxu0 0.0
  %621 = vmatpush1.msra.mxu0 0.0
  %622 = vmatprep.subr.mxu0 0.0
  %623 = vmatpush1.msra.mxu0 0.0
  %624 = vmatprep.subr.mxu0 0.0
  %625 = vmatpush1.msra.mxu0 0.0
  %626 = vmatprep.mubr.f32.mxu0 0.0
  %v627 = vand.u32 %v554, 4294901760
  %v628 = vsub.f32 %v554, %v627
  %v629 = vand.u32 %v628, 4294901760
  %v630 = vsub.f32 %v628, %v629
  %v631 = vand.u32 %v630, 4294901760
  %632 = vmatmul.mubr.f32.gmra.mrb[0].mxu0 %v631
  %v633 = vpop.f32.mrb[0].mxu0
  %v634 = vadd.f32 0.0, %v633
  %v635 = vpop.f32.mrb[0].mxu0
  %636 = vdwg.mxu0
  %637 = vmatprep.subr.mxu0 0.0
  %v638 = vand.u32 %v14, 4294901760
  %v639 = vsub.f32 %v14, %v638
  %v640 = vand.u32 %v639, 4294901760
  %v641 = vsub.f32 %v639, %v640
  %v642 = vand.u32 %v641, 4294901760
  %643 = vmatpush1.msra.mxu0 %v642
  %644 = vmatprep.subr.mxu0 0.0
  %v645 = vand.u32 %v558, 4294901760
  %v646 = vsub.f32 %v558, %v645
  %v647 = vand.u32 %v646, 4294901760
  %v648 = vsub.f32 %v646, %v647
  %v649 = vand.u32 %v648, 4294901760
  %650 = vmatpush1.msra.mxu0 %v649
  %651 = vmatprep.subr.mxu0 0.0
  %652 = vmatpush1.msra.mxu0 0.0
  %653 = vmatprep.subr.mxu0 0.0
  %654 = vmatpush1.msra.mxu0 0.0
  %655 = vmatprep.subr.mxu0 0.0
  %656 = vmatpush1.msra.mxu0 0.0
  %657 = vmatprep.subr.mxu0 0.0
  %658 = vmatpush1.msra.mxu0 0.0
  %659 = vmatprep.subr.mxu0 0.0
  %660 = vmatpush1.msra.mxu0 0.0
  %661 = vmatprep.subr.mxu0 0.0
  %662 = vmatpush1.msra.mxu0 0.0
  %663 = vmatprep.subr.mxu0 0.0
  %664 = vmatpush1.msra.mxu0 0.0
  %665 = vmatprep.subr.mxu0 0.0
  %666 = vmatpush1.msra.mxu0 0.0
  %667 = vmatprep.subr.mxu0 0.0
  %668 = vmatpush1.msra.mxu0 0.0
  %669 = vmatprep.subr.mxu0 0.0
  %670 = vmatpush1.msra.mxu0 0.0
  %671 = vmatprep.subr.mxu0 0.0
  %672 = vmatpush1.msra.mxu0 0.0
  %673 = vmatprep.subr.mxu0 0.0
  %674 = vmatpush1.msra.mxu0 0.0
  %675 = vmatprep.subr.mxu0 0.0
  %676 = vmatpush1.msra.mxu0 0.0
  %677 = vmatprep.subr.mxu0 0.0
  %678 = vmatpush1.msra.mxu0 0.0
  %679 = vmatprep.subr.mxu0 0.0
  %680 = vmatpush1.msra.mxu0 0.0
  %681 = vmatprep.subr.mxu0 0.0
  %682 = vmatpush1.msra.mxu0 0.0
  %683 = vmatprep.subr.mxu0 0.0
  %684 = vmatpush1.msra.mxu0 0.0
  %685 = vmatprep.subr.mxu0 0.0
  %686 = vmatpush1.msra.mxu0 0.0
  %687 = vmatprep.subr.mxu0 0.0
  %688 = vmatpush1.msra.mxu0 0.0
  %689 = vmatprep.subr.mxu0 0.0
  %690 = vmatpush1.msra.mxu0 0.0
  %691 = vmatprep.subr.mxu0 0.0
  %692 = vmatpush1.msra.mxu0 0.0
  %693 = vmatprep.subr.mxu0 0.0
  %694 = vmatpush1.msra.mxu0 0.0
  %695 = vmatprep.subr.mxu0 0.0
  %696 = vmatpush1.msra.mxu0 0.0
  %697 = vmatprep.subr.mxu0 0.0
  %698 = vmatpush1.msra.mxu0 0.0
  %699 = vmatprep.subr.mxu0 0.0
  %700 = vmatpush1.msra.mxu0 0.0
  %701 = vmatprep.subr.mxu0 0.0
  %702 = vmatpush1.msra.mxu0 0.0
  %703 = vmatprep.subr.mxu0 0.0
  %704 = vmatpush1.msra.mxu0 0.0
  %705 = vmatprep.subr.mxu0 0.0
  %706 = vmatpush1.msra.mxu0 0.0
  %707 = vmatprep.subr.mxu0 0.0
  %708 = vmatpush1.msra.mxu0 0.0
  %709 = vmatprep.subr.mxu0 0.0
  %710 = vmatpush1.msra.mxu0 0.0
  %711 = vmatprep.mubr.f32.mxu0 0.0
  %v712 = vand.u32 %v554, 4294901760
  %713 = vmatmul.mubr.f32.gmra.mrb[0].mxu0 %v712
  %v714 = vpop.f32.mrb[0].mxu0
  %v715 = vadd.f32 %v634, %v714
  %v716 = vpop.f32.mrb[0].mxu0
  %717 = vdwg.mxu0
  %718 = vmatprep.subr.mxu0 0.0
  %v719 = vand.u32 %v14, 4294901760
  %v720 = vsub.f32 %v14, %v719
  %721 = vmatpush1.msra.mxu0 %v720
  %722 = vmatprep.subr.mxu0 0.0
  %v723 = vand.u32 %v558, 4294901760
  %v724 = vsub.f32 %v558, %v723
  %725 = vmatpush1.msra.mxu0 %v724
  %726 = vmatprep.subr.mxu0 0.0
  %727 = vmatpush1.msra.mxu0 0.0
  %728 = vmatprep.subr.mxu0 0.0
  %729 = vmatpush1.msra.mxu0 0.0
  %730 = vmatprep.subr.mxu0 0.0
  %731 = vmatpush1.msra.mxu0 0.0
  %732 = vmatprep.subr.mxu0 0.0
  %733 = vmatpush1.msra.mxu0 0.0
  %734 = vmatprep.subr.mxu0 0.0
  %735 = vmatpush1.msra.mxu0 0.0
  %736 = vmatprep.subr.mxu0 0.0
  %737 = vmatpush1.msra.mxu0 0.0
  %738 = vmatprep.subr.mxu0 0.0
  %739 = vmatpush1.msra.mxu0 0.0
  %740 = vmatprep.subr.mxu0 0.0
  %741 = vmatpush1.msra.mxu0 0.0
  %742 = vmatprep.subr.mxu0 0.0
  %743 = vmatpush1.msra.mxu0 0.0
  %744 = vmatprep.subr.mxu0 0.0
  %745 = vmatpush1.msra.mxu0 0.0
  %746 = vmatprep.subr.mxu0 0.0
  %747 = vmatpush1.msra.mxu0 0.0
  %748 = vmatprep.subr.mxu0 0.0
  %749 = vmatpush1.msra.mxu0 0.0
  %750 = vmatprep.subr.mxu0 0.0
  %751 = vmatpush1.msra.mxu0 0.0
  %752 = vmatprep.subr.mxu0 0.0
  %753 = vmatpush1.msra.mxu0 0.0
  %754 = vmatprep.subr.mxu0 0.0
  %755 = vmatpush1.msra.mxu0 0.0
  %756 = vmatprep.subr.mxu0 0.0
  %757 = vmatpush1.msra.mxu0 0.0
  %758 = vmatprep.subr.mxu0 0.0
  %759 = vmatpush1.msra.mxu0 0.0
  %760 = vmatprep.subr.mxu0 0.0
  %761 = vmatpush1.msra.mxu0 0.0
  %762 = vmatprep.subr.mxu0 0.0
  %763 = vmatpush1.msra.mxu0 0.0
  %764 = vmatprep.subr.mxu0 0.0
  %765 = vmatpush1.msra.mxu0 0.0
  %766 = vmatprep.subr.mxu0 0.0
  %767 = vmatpush1.msra.mxu0 0.0
  %768 = vmatprep.subr.mxu0 0.0
  %769 = vmatpush1.msra.mxu0 0.0
  %770 = vmatprep.subr.mxu0 0.0
  %771 = vmatpush1.msra.mxu0 0.0
  %772 = vmatprep.subr.mxu0 0.0
  %773 = vmatpush1.msra.mxu0 0.0
  %774 = vmatprep.subr.mxu0 0.0
  %775 = vmatpush1.msra.mxu0 0.0
  %776 = vmatprep.subr.mxu0 0.0
  %777 = vmatpush1.msra.mxu0 0.0
  %778 = vmatprep.subr.mxu0 0.0
  %779 = vmatpush1.msra.mxu0 0.0
  %780 = vmatprep.subr.mxu0 0.0
  %781 = vmatpush1.msra.mxu0 0.0
  %782 = vmatprep.subr.mxu0 0.0
  %783 = vmatpush1.msra.mxu0 0.0
  %784 = vmatprep.subr.mxu0 0.0
  %785 = vmatpush1.msra.mxu0 0.0
  %786 = vmatprep.mubr.f32.mxu0 0.0
  %v787 = vand.u32 %v554, 4294901760
  %v788 = vsub.f32 %v554, %v787
  %789 = vmatmul.mubr.f32.gmra.mrb[0].mxu0 %v788
  %v790 = vpop.f32.mrb[0].mxu0
  %v791 = vadd.f32 %v715, %v790
  %v792 = vpop.f32.mrb[0].mxu0
  %793 = vdwg.mxu0
  %794 = vmatprep.subr.mxu0 0.0
  %v795 = vand.u32 %v14, 4294901760
  %796 = vmatpush1.msra.mxu0 %v795
  %797 = vmatprep.subr.mxu0 0.0
  %v798 = vand.u32 %v558, 4294901760
  %799 = vmatpush1.msra.mxu0 %v798
  %800 = vmatprep.subr.mxu0 0.0
  %801 = vmatpush1.msra.mxu0 0.0
  %802 = vmatprep.subr.mxu0 0.0
  %803 = vmatpush1.msra.mxu0 0.0
  %804 = vmatprep.subr.mxu0 0.0
  %805 = vmatpush1.msra.mxu0 0.0
  %806 = vmatprep.subr.mxu0 0.0
  %807 = vmatpush1.msra.mxu0 0.0
  %808 = vmatprep.subr.mxu0 0.0
  %809 = vmatpush1.msra.mxu0 0.0
  %810 = vmatprep.subr.mxu0 0.0
  %811 = vmatpush1.msra.mxu0 0.0
  %812 = vmatprep.subr.mxu0 0.0
  %813 = vmatpush1.msra.mxu0 0.0
  %814 = vmatprep.subr.mxu0 0.0
  %815 = vmatpush1.msra.mxu0 0.0
  %816 = vmatprep.subr.mxu0 0.0
  %817 = vmatpush1.msra.mxu0 0.0
  %818 = vmatprep.subr.mxu0 0.0
  %819 = vmatpush1.msra.mxu0 0.0
  %820 = vmatprep.subr.mxu0 0.0
  %821 = vmatpush1.msra.mxu0 0.0
  %822 = vmatprep.subr.mxu0 0.0
  %823 = vmatpush1.msra.mxu0 0.0
  %824 = vmatprep.subr.mxu0 0.0
  %825 = vmatpush1.msra.mxu0 0.0
  %826 = vmatprep.subr.mxu0 0.0
  %827 = vmatpush1.msra.mxu0 0.0
  %828 = vmatprep.subr.mxu0 0.0
  %829 = vmatpush1.msra.mxu0 0.0
  %830 = vmatprep.subr.mxu0 0.0
  %831 = vmatpush1.msra.mxu0 0.0
  %832 = vmatprep.subr.mxu0 0.0
  %833 = vmatpush1.msra.mxu0 0.0
  %834 = vmatprep.subr.mxu0 0.0
  %835 = vmatpush1.msra.mxu0 0.0
  %836 = vmatprep.subr.mxu0 0.0
  %837 = vmatpush1.msra.mxu0 0.0
  %838 = vmatprep.subr.mxu0 0.0
  %839 = vmatpush1.msra.mxu0 0.0
  %840 = vmatprep.subr.mxu0 0.0
  %841 = vmatpush1.msra.mxu0 0.0
  %842 = vmatprep.subr.mxu0 0.0
  %843 = vmatpush1.msra.mxu0 0.0
  %844 = vmatprep.subr.mxu0 0.0
  %845 = vmatpush1.msra.mxu0 0.0
  %846 = vmatprep.subr.mxu0 0.0
  %847 = vmatpush1.msra.mxu0 0.0
  %848 = vmatprep.subr.mxu0 0.0
  %849 = vmatpush1.msra.mxu0 0.0
  %850 = vmatprep.subr.mxu0 0.0
  %851 = vmatpush1.msra.mxu0 0.0
  %852 = vmatprep.subr.mxu0 0.0
  %853 = vmatpush1.msra.mxu0 0.0
  %854 = vmatprep.subr.mxu0 0.0
  %855 = vmatpush1.msra.mxu0 0.0
  %856 = vmatprep.subr.mxu0 0.0
  %857 = vmatpush1.msra.mxu0 0.0
  %858 = vmatprep.subr.mxu0 0.0
  %859 = vmatpush1.msra.mxu0 0.0
  %860 = vmatprep.mubr.f32.mxu0 0.0
  %v861 = vand.u32 %v554, 4294901760
  %v862 = vsub.f32 %v554, %v861
  %v863 = vand.u32 %v862, 4294901760
  %864 = vmatmul.mubr.f32.gmra.mrb[0].mxu0 %v863
  %v865 = vpop.f32.mrb[0].mxu0
  %v866 = vadd.f32 %v791, %v865
  %v867 = vpop.f32.mrb[0].mxu0
  %868 = vdwg.mxu0
  %869 = vmatprep.subr.mxu0 0.0
  %v870 = vand.u32 %v14, 4294901760
  %v871 = vsub.f32 %v14, %v870
  %v872 = vand.u32 %v871, 4294901760
  %873 = vmatpush1.msra.mxu0 %v872
  %874 = vmatprep.subr.mxu0 0.0
  %v875 = vand.u32 %v558, 4294901760
  %v876 = vsub.f32 %v558, %v875
  %v877 = vand.u32 %v876, 4294901760
  %878 = vmatpush1.msra.mxu0 %v877
  %879 = vmatprep.subr.mxu0 0.0
  %880 = vmatpush1.msra.mxu0 0.0
  %881 = vmatprep.subr.mxu0 0.0
  %882 = vmatpush1.msra.mxu0 0.0
  %883 = vmatprep.subr.mxu0 0.0
  %884 = vmatpush1.msra.mxu0 0.0
  %885 = vmatprep.subr.mxu0 0.0
  %886 = vmatpush1.msra.mxu0 0.0
  %887 = vmatprep.subr.mxu0 0.0
  %888 = vmatpush1.msra.mxu0 0.0
  %889 = vmatprep.subr.mxu0 0.0
  %890 = vmatpush1.msra.mxu0 0.0
  %891 = vmatprep.subr.mxu0 0.0
  %892 = vmatpush1.msra.mxu0 0.0
  %893 = vmatprep.subr.mxu0 0.0
  %894 = vmatpush1.msra.mxu0 0.0
  %895 = vmatprep.subr.mxu0 0.0
  %896 = vmatpush1.msra.mxu0 0.0
  %897 = vmatprep.subr.mxu0 0.0
  %898 = vmatpush1.msra.mxu0 0.0
  %899 = vmatprep.subr.mxu0 0.0
  %900 = vmatpush1.msra.mxu0 0.0
  %901 = vmatprep.subr.mxu0 0.0
  %902 = vmatpush1.msra.mxu0 0.0
  %903 = vmatprep.subr.mxu0 0.0
  %904 = vmatpush1.msra.mxu0 0.0
  %905 = vmatprep.subr.mxu0 0.0
  %906 = vmatpush1.msra.mxu0 0.0
  %907 = vmatprep.subr.mxu0 0.0
  %908 = vmatpush1.msra.mxu0 0.0
  %909 = vmatprep.subr.mxu0 0.0
  %910 = vmatpush1.msra.mxu0 0.0
  %911 = vmatprep.subr.mxu0 0.0
  %912 = vmatpush1.msra.mxu0 0.0
  %913 = vmatprep.subr.mxu0 0.0
  %914 = vmatpush1.msra.mxu0 0.0
  %915 = vmatprep.subr.mxu0 0.0
  %916 = vmatpush1.msra.mxu0 0.0
  %917 = vmatprep.subr.mxu0 0.0
  %918 = vmatpush1.msra.mxu0 0.0
  %919 = vmatprep.subr.mxu0 0.0
  %920 = vmatpush1.msra.mxu0 0.0
  %921 = vmatprep.subr.mxu0 0.0
  %922 = vmatpush1.msra.mxu0 0.0
  %923 = vmatprep.subr.mxu0 0.0
  %924 = vmatpush1.msra.mxu0 0.0
  %925 = vmatprep.subr.mxu0 0.0
  %926 = vmatpush1.msra.mxu0 0.0
  %927 = vmatprep.subr.mxu0 0.0
  %928 = vmatpush1.msra.mxu0 0.0
  %929 = vmatprep.subr.mxu0 0.0
  %930 = vmatpush1.msra.mxu0 0.0
  %931 = vmatprep.subr.mxu0 0.0
  %932 = vmatpush1.msra.mxu0 0.0
  %933 = vmatprep.subr.mxu0 0.0
  %934 = vmatpush1.msra.mxu0 0.0
  %935 = vmatprep.subr.mxu0 0.0
  %936 = vmatpush1.msra.mxu0 0.0
  %937 = vmatprep.subr.mxu0 0.0
  %938 = vmatpush1.msra.mxu0 0.0
  %939 = vmatprep.mubr.f32.mxu0 0.0
  %v940 = vand.u32 %v554, 4294901760
  %941 = vmatmul.mubr.f32.gmra.mrb[0].mxu0 %v940
  %v942 = vpop.f32.mrb[0].mxu0
  %v943 = vadd.f32 %v866, %v942
  %v944 = vpop.f32.mrb[0].mxu0
  %945 = vdwg.mxu0
  %946 = vmatprep.subr.mxu0 0.0
  %v947 = vand.u32 %v14, 4294901760
  %948 = vmatpush1.msra.mxu0 %v947
  %949 = vmatprep.subr.mxu0 0.0
  %v950 = vand.u32 %v558, 4294901760
  %951 = vmatpush1.msra.mxu0 %v950
  %952 = vmatprep.subr.mxu0 0.0
  %953 = vmatpush1.msra.mxu0 0.0
  %954 = vmatprep.subr.mxu0 0.0
  %955 = vmatpush1.msra.mxu0 0.0
  %956 = vmatprep.subr.mxu0 0.0
  %957 = vmatpush1.msra.mxu0 0.0
  %958 = vmatprep.subr.mxu0 0.0
  %959 = vmatpush1.msra.mxu0 0.0
  %960 = vmatprep.subr.mxu0 0.0
  %961 = vmatpush1.msra.mxu0 0.0
  %962 = vmatprep.subr.mxu0 0.0
  %963 = vmatpush1.msra.mxu0 0.0
  %964 = vmatprep.subr.mxu0 0.0
  %965 = vmatpush1.msra.mxu0 0.0
  %966 = vmatprep.subr.mxu0 0.0
  %967 = vmatpush1.msra.mxu0 0.0
  %968 = vmatprep.subr.mxu0 0.0
  %969 = vmatpush1.msra.mxu0 0.0
  %970 = vmatprep.subr.mxu0 0.0
  %971 = vmatpush1.msra.mxu0 0.0
  %972 = vmatprep.subr.mxu0 0.0
  %973 = vmatpush1.msra.mxu0 0.0
  %974 = vmatprep.subr.mxu0 0.0
  %975 = vmatpush1.msra.mxu0 0.0
  %976 = vmatprep.subr.mxu0 0.0
  %977 = vmatpush1.msra.mxu0 0.0
  %978 = vmatprep.subr.mxu0 0.0
  %979 = vmatpush1.msra.mxu0 0.0
  %980 = vmatprep.subr.mxu0 0.0
  %981 = vmatpush1.msra.mxu0 0.0
  %982 = vmatprep.subr.mxu0 0.0
  %983 = vmatpush1.msra.mxu0 0.0
  %984 = vmatprep.subr.mxu0 0.0
  %985 = vmatpush1.msra.mxu0 0.0
  %986 = vmatprep.subr.mxu0 0.0
  %987 = vmatpush1.msra.mxu0 0.0
  %988 = vmatprep.subr.mxu0 0.0
  %989 = vmatpush1.msra.mxu0 0.0
  %990 = vmatprep.subr.mxu0 0.0
  %991 = vmatpush1.msra.mxu0 0.0
  %992 = vmatprep.subr.mxu0 0.0
  %993 = vmatpush1.msra.mxu0 0.0
  %994 = vmatprep.subr.mxu0 0.0
  %995 = vmatpush1.msra.mxu0 0.0
  %996 = vmatprep.subr.mxu0 0.0
  %997 = vmatpush1.msra.mxu0 0.0
  %998 = vmatprep.subr.mxu0 0.0
  %999 = vmatpush1.msra.mxu0 0.0
  %1000 = vmatprep.subr.mxu0 0.0
  %1001 = vmatpush1.msra.mxu0 0.0
  %1002 = vmatprep.subr.mxu0 0.0
  %1003 = vmatpush1.msra.mxu0 0.0
  %1004 = vmatprep.subr.mxu0 0.0
  %1005 = vmatpush1.msra.mxu0 0.0
  %1006 = vmatprep.subr.mxu0 0.0
  %1007 = vmatpush1.msra.mxu0 0.0
  %1008 = vmatprep.subr.mxu0 0.0
  %1009 = vmatpush1.msra.mxu0 0.0
  %1010 = vmatprep.subr.mxu0 0.0
  %1011 = vmatpush1.msra.mxu0 0.0
  %1012 = vmatprep.mubr.f32.mxu0 0.0
  %v1013 = vand.u32 %v554, 4294901760
  %1014 = vmatmul.mubr.f32.gmra.mrb[0].mxu0 %v1013
  %v1015 = vpop.f32.mrb[0].mxu0
  %v1016 = vadd.f32 %v943, %v1015
  %v1017 = vpop.f32.mrb[0].mxu0
  %1018 = vdwg.mxu0
  %v1019 = vadd.f32 %v543, %v1016
  %v1020 = vtanh.pop %v1019
  %v1022 = vsel %vm552, %v1020, 0
  %1024 = vmatprep.subr.mxu0 0.0
  %v1025 = vand.u32 %v14, 4294901760
  %1026 = vmatpush1.msra.mxu0 %v1025
  %1027 = vmatprep.subr.mxu0 0.0
  %v1028 = vand.u32 %v558, 4294901760
  %1029 = vmatpush1.msra.mxu0 %v1028
  %1030 = vmatprep.subr.mxu0 0.0
  %1031 = vmatpush1.msra.mxu0 0.0
  %1032 = vmatprep.subr.mxu0 0.0
  %1033 = vmatpush1.msra.mxu0 0.0
  %1034 = vmatprep.subr.mxu0 0.0
  %1035 = vmatpush1.msra.mxu0 0.0
  %1036 = vmatprep.subr.mxu0 0.0
  %1037 = vmatpush1.msra.mxu0 0.0
  %1038 = vmatprep.subr.mxu0 0.0
  %1039 = vmatpush1.msra.mxu0 0.0
  %1040 = vmatprep.subr.mxu0 0.0
  %1041 = vmatpush1.msra.mxu0 0.0
  %1042 = vmatprep.subr.mxu0 0.0
  %1043 = vmatpush1.msra.mxu0 0.0
  %1044 = vmatprep.subr.mxu0 0.0
  %1045 = vmatpush1.msra.mxu0 0.0
  %1046 = vmatprep.subr.mxu0 0.0
  %1047 = vmatpush1.msra.mxu0 0.0
  %1048 = vmatprep.subr.mxu0 0.0
  %1049 = vmatpush1.msra.mxu0 0.0
  %1050 = vmatprep.subr.mxu0 0.0
  %1051 = vmatpush1.msra.mxu0 0.0
  %1052 = vmatprep.subr.mxu0 0.0
  %1053 = vmatpush1.msra.mxu0 0.0
  %1054 = vmatprep.subr.mxu0 0.0
  %1055 = vmatpush1.msra.mxu0 0.0
  %1056 = vmatprep.subr.mxu0 0.0
  %1057 = vmatpush1.msra.mxu0 0.0
  %1058 = vmatprep.subr.mxu0 0.0
  %1059 = vmatpush1.msra.mxu0 0.0
  %1060 = vmatprep.subr.mxu0 0.0
  %1061 = vmatpush1.msra.mxu0 0.0
  %1062 = vmatprep.subr.mxu0 0.0
  %1063 = vmatpush1.msra.mxu0 0.0
  %1064 = vmatprep.subr.mxu0 0.0
  %1065 = vmatpush1.msra.mxu0 0.0
  %1066 = vmatprep.subr.mxu0 0.0
  %1067 = vmatpush1.msra.mxu0 0.0
  %1068 = vmatprep.subr.mxu0 0.0
  %1069 = vmatpush1.msra.mxu0 0.0
  %1070 = vmatprep.subr.mxu0 0.0
  %1071 = vmatpush1.msra.mxu0 0.0
  %1072 = vmatprep.subr.mxu0 0.0
  %1073 = vmatpush1.msra.mxu0 0.0
  %1074 = vmatprep.subr.mxu0 0.0
  %1075 = vmatpush1.msra.mxu0 0.0
  %1076 = vmatprep.subr.mxu0 0.0
  %1077 = vmatpush1.msra.mxu0 0.0
  %1078 = vmatprep.subr.mxu0 0.0
  %1079 = vmatpush1.msra.mxu0 0.0
  %1080 = vmatprep.subr.mxu0 0.0
  %1081 = vmatpush1.msra.mxu0 0.0
  %1082 = vmatprep.subr.mxu0 0.0
  %1083 = vmatpush1.msra.mxu0 0.0
  %1084 = vmatprep.subr.mxu0 0.0
  %1085 = vmatpush1.msra.mxu0 0.0
  %1086 = vmatprep.subr.mxu0 0.0
  %1087 = vmatpush1.msra.mxu0 0.0
  %1088 = vmatprep.subr.mxu0 0.0
  %1089 = vmatpush1.msra.mxu0 0.0
  %1090 = vmatprep.mubr.f32.mxu0 0.0
  %v1091 = vand.u32 %v1022, 4294901760
  %v1092 = vsub.f32 %v1022, %v1091
  %v1093 = vand.u32 %v1092, 4294901760
  %v1094 = vsub.f32 %v1092, %v1093
  %v1095 = vand.u32 %v1094, 4294901760
  %1096 = vmatmul.mubr.f32.gmra.mrb[0].mxu0 %v1095
  %v1097 = vpop.f32.mrb[0].mxu0
  %v1098 = vadd.f32 0.0, %v1097
  %v1099 = vpop.f32.mrb[0].mxu0
  %1100 = vdwg.mxu0
  %1101 = vmatprep.subr.mxu0 0.0
  %v1102 = vand.u32 %v14, 4294901760
  %v1103 = vsub.f32 %v14, %v1102
  %v1104 = vand.u32 %v1103, 4294901760
  %v1105 = vsub.f32 %v1103, %v1104
  %v1106 = vand.u32 %v1105, 4294901760
  %1107 = vmatpush1.msra.mxu0 %v1106
  %1108 = vmatprep.subr.mxu0 0.0
  %v1109 = vand.u32 %v558, 4294901760
  %v1110 = vsub.f32 %v558, %v1109
  %v1111 = vand.u32 %v1110, 4294901760
  %v1112 = vsub.f32 %v1110, %v1111
  %v1113 = vand.u32 %v1112, 4294901760
  %1114 = vmatpush1.msra.mxu0 %v1113
  %1115 = vmatprep.subr.mxu0 0.0
  %1116 = vmatpush1.msra.mxu0 0.0
  %1117 = vmatprep.subr.mxu0 0.0
  %1118 = vmatpush1.msra.mxu0 0.0
  %1119 = vmatprep.subr.mxu0 0.0
  %1120 = vmatpush1.msra.mxu0 0.0
  %1121 = vmatprep.subr.mxu0 0.0
  %1122 = vmatpush1.msra.mxu0 0.0
  %1123 = vmatprep.subr.mxu0 0.0
  %1124 = vmatpush1.msra.mxu0 0.0
  %1125 = vmatprep.subr.mxu0 0.0
  %1126 = vmatpush1.msra.mxu0 0.0
  %1127 = vmatprep.subr.mxu0 0.0
  %1128 = vmatpush1.msra.mxu0 0.0
  %1129 = vmatprep.subr.mxu0 0.0
  %1130 = vmatpush1.msra.mxu0 0.0
  %1131 = vmatprep.subr.mxu0 0.0
  %1132 = vmatpush1.msra.mxu0 0.0
  %1133 = vmatprep.subr.mxu0 0.0
  %1134 = vmatpush1.msra.mxu0 0.0
  %1135 = vmatprep.subr.mxu0 0.0
  %1136 = vmatpush1.msra.mxu0 0.0
  %1137 = vmatprep.subr.mxu0 0.0
  %1138 = vmatpush1.msra.mxu0 0.0
  %1139 = vmatprep.subr.mxu0 0.0
  %1140 = vmatpush1.msra.mxu0 0.0
  %1141 = vmatprep.subr.mxu0 0.0
  %1142 = vmatpush1.msra.mxu0 0.0
  %1143 = vmatprep.subr.mxu0 0.0
  %1144 = vmatpush1.msra.mxu0 0.0
  %1145 = vmatprep.subr.mxu0 0.0
  %1146 = vmatpush1.msra.mxu0 0.0
  %1147 = vmatprep.subr.mxu0 0.0
  %1148 = vmatpush1.msra.mxu0 0.0
  %1149 = vmatprep.subr.mxu0 0.0
  %1150 = vmatpush1.msra.mxu0 0.0
  %1151 = vmatprep.subr.mxu0 0.0
  %1152 = vmatpush1.msra.mxu0 0.0
  %1153 = vmatprep.subr.mxu0 0.0
  %1154 = vmatpush1.msra.mxu0 0.0
  %1155 = vmatprep.subr.mxu0 0.0
  %1156 = vmatpush1.msra.mxu0 0.0
  %1157 = vmatprep.subr.mxu0 0.0
  %1158 = vmatpush1.msra.mxu0 0.0
  %1159 = vmatprep.subr.mxu0 0.0
  %1160 = vmatpush1.msra.mxu0 0.0
  %1161 = vmatprep.subr.mxu0 0.0
  %1162 = vmatpush1.msra.mxu0 0.0
  %1163 = vmatprep.subr.mxu0 0.0
  %1164 = vmatpush1.msra.mxu0 0.0
  %1165 = vmatprep.subr.mxu0 0.0
  %1166 = vmatpush1.msra.mxu0 0.0
  %1167 = vmatprep.subr.mxu0 0.0
  %1168 = vmatpush1.msra.mxu0 0.0
  %1169 = vmatprep.subr.mxu0 0.0
  %1170 = vmatpush1.msra.mxu0 0.0
  %1171 = vmatprep.subr.mxu0 0.0
  %1172 = vmatpush1.msra.mxu0 0.0
  %1173 = vmatprep.subr.mxu0 0.0
  %1174 = vmatpush1.msra.mxu0 0.0
  %1175 = vmatprep.mubr.f32.mxu0 0.0
  %v1176 = vand.u32 %v1022, 4294901760
  %1177 = vmatmul.mubr.f32.gmra.mrb[0].mxu0 %v1176
  %v1178 = vpop.f32.mrb[0].mxu0
  %v1179 = vadd.f32 %v1098, %v1178
  %v1180 = vpop.f32.mrb[0].mxu0
  %1181 = vdwg.mxu0
  %1182 = vmatprep.subr.mxu0 0.0
  %v1183 = vand.u32 %v14, 4294901760
  %v1184 = vsub.f32 %v14, %v1183
  %1185 = vmatpush1.msra.mxu0 %v1184
  %1186 = vmatprep.subr.mxu0 0.0
  %v1187 = vand.u32 %v558, 4294901760
  %v1188 = vsub.f32 %v558, %v1187
  %1189 = vmatpush1.msra.mxu0 %v1188
  %1190 = vmatprep.subr.mxu0 0.0
  %1191 = vmatpush1.msra.mxu0 0.0
  %1192 = vmatprep.subr.mxu0 0.0
  %1193 = vmatpush1.msra.mxu0 0.0
  %1194 = vmatprep.subr.mxu0 0.0
  %1195 = vmatpush1.msra.mxu0 0.0
  %1196 = vmatprep.subr.mxu0 0.0
  %1197 = vmatpush1.msra.mxu0 0.0
  %1198 = vmatprep.subr.mxu0 0.0
  %1199 = vmatpush1.msra.mxu0 0.0
  %1200 = vmatprep.subr.mxu0 0.0
  %1201 = vmatpush1.msra.mxu0 0.0
  %1202 = vmatprep.subr.mxu0 0.0
  %1203 = vmatpush1.msra.mxu0 0.0
  %1204 = vmatprep.subr.mxu0 0.0
  %1205 = vmatpush1.msra.mxu0 0.0
  %1206 = vmatprep.subr.mxu0 0.0
  %1207 = vmatpush1.msra.mxu0 0.0
  %1208 = vmatprep.subr.mxu0 0.0
  %1209 = vmatpush1.msra.mxu0 0.0
  %1210 = vmatprep.subr.mxu0 0.0
  %1211 = vmatpush1.msra.mxu0 0.0
  %1212 = vmatprep.subr.mxu0 0.0
  %1213 = vmatpush1.msra.mxu0 0.0
  %1214 = vmatprep.subr.mxu0 0.0
  %1215 = vmatpush1.msra.mxu0 0.0
  %1216 = vmatprep.subr.mxu0 0.0
  %1217 = vmatpush1.msra.mxu0 0.0
  %1218 = vmatprep.subr.mxu0 0.0
  %1219 = vmatpush1.msra.mxu0 0.0
  %1220 = vmatprep.subr.mxu0 0.0
  %1221 = vmatpush1.msra.mxu0 0.0
  %1222 = vmatprep.subr.mxu0 0.0
  %1223 = vmatpush1.msra.mxu0 0.0
  %1224 = vmatprep.subr.mxu0 0.0
  %1225 = vmatpush1.msra.mxu0 0.0
  %1226 = vmatprep.subr.mxu0 0.0
  %1227 = vmatpush1.msra.mxu0 0.0
  %1228 = vmatprep.subr.mxu0 0.0
  %1229 = vmatpush1.msra.mxu0 0.0
  %1230 = vmatprep.subr.mxu0 0.0
  %1231 = vmatpush1.msra.mxu0 0.0
  %1232 = vmatprep.subr.mxu0 0.0
  %1233 = vmatpush1.msra.mxu0 0.0
  %1234 = vmatprep.subr.mxu0 0.0
  %1235 = vmatpush1.msra.mxu0 0.0
  %1236 = vmatprep.subr.mxu0 0.0
  %1237 = vmatpush1.msra.mxu0 0.0
  %1238 = vmatprep.subr.mxu0 0.0
  %1239 = vmatpush1.msra.mxu0 0.0
  %1240 = vmatprep.subr.mxu0 0.0
  %1241 = vmatpush1.msra.mxu0 0.0
  %1242 = vmatprep.subr.mxu0 0.0
  %1243 = vmatpush1.msra.mxu0 0.0
  %1244 = vmatprep.subr.mxu0 0.0
  %1245 = vmatpush1.msra.mxu0 0.0
  %1246 = vmatprep.subr.mxu0 0.0
  %1247 = vmatpush1.msra.mxu0 0.0
  %1248 = vmatprep.subr.mxu0 0.0
  %1249 = vmatpush1.msra.mxu0 0.0
  %1250 = vmatprep.mubr.f32.mxu0 0.0
  %v1251 = vand.u32 %v1022, 4294901760
  %v1252 = vsub.f32 %v1022, %v1251
  %1253 = vmatmul.mubr.f32.gmra.mrb[0].mxu0 %v1252
  %v1254 = vpop.f32.mrb[0].mxu0
  %v1255 = vadd.f32 %v1179, %v1254
  %v1256 = vpop.f32.mrb[0].mxu0
  %1257 = vdwg.mxu0
  %1258 = vmatprep.subr.mxu0 0.0
  %v1259 = vand.u32 %v14, 4294901760
  %1260 = vmatpush1.msra.mxu0 %v1259
  %1261 = vmatprep.subr.mxu0 0.0
  %v1262 = vand.u32 %v558, 4294901760
  %1263 = vmatpush1.msra.mxu0 %v1262
  %1264 = vmatprep.subr.mxu0 0.0
  %1265 = vmatpush1.msra.mxu0 0.0
  %1266 = vmatprep.subr.mxu0 0.0
  %1267 = vmatpush1.msra.mxu0 0.0
  %1268 = vmatprep.subr.mxu0 0.0
  %1269 = vmatpush1.msra.mxu0 0.0
  %1270 = vmatprep.subr.mxu0 0.0
  %1271 = vmatpush1.msra.mxu0 0.0
  %1272 = vmatprep.subr.mxu0 0.0
  %1273 = vmatpush1.msra.mxu0 0.0
  %1274 = vmatprep.subr.mxu0 0.0
  %1275 = vmatpush1.msra.mxu0 0.0
  %1276 = vmatprep.subr.mxu0 0.0
  %1277 = vmatpush1.msra.mxu0 0.0
  %1278 = vmatprep.subr.mxu0 0.0
  %1279 = vmatpush1.msra.mxu0 0.0
  %1280 = vmatprep.subr.mxu0 0.0
  %1281 = vmatpush1.msra.mxu0 0.0
  %1282 = vmatprep.subr.mxu0 0.0
  %1283 = vmatpush1.msra.mxu0 0.0
  %1284 = vmatprep.subr.mxu0 0.0
  %1285 = vmatpush1.msra.mxu0 0.0
  %1286 = vmatprep.subr.mxu0 0.0
  %1287 = vmatpush1.msra.mxu0 0.0
  %1288 = vmatprep.subr.mxu0 0.0
  %1289 = vmatpush1.msra.mxu0 0.0
  %1290 = vmatprep.subr.mxu0 0.0
  %1291 = vmatpush1.msra.mxu0 0.0
  %1292 = vmatprep.subr.mxu0 0.0
  %1293 = vmatpush1.msra.mxu0 0.0
  %1294 = vmatprep.subr.mxu0 0.0
  %1295 = vmatpush1.msra.mxu0 0.0
  %1296 = vmatprep.subr.mxu0 0.0
  %1297 = vmatpush1.msra.mxu0 0.0
  %1298 = vmatprep.subr.mxu0 0.0
  %1299 = vmatpush1.msra.mxu0 0.0
  %1300 = vmatprep.subr.mxu0 0.0
  %1301 = vmatpush1.msra.mxu0 0.0
  %1302 = vmatprep.subr.mxu0 0.0
  %1303 = vmatpush1.msra.mxu0 0.0
  %1304 = vmatprep.subr.mxu0 0.0
  %1305 = vmatpush1.msra.mxu0 0.0
  %1306 = vmatprep.subr.mxu0 0.0
  %1307 = vmatpush1.msra.mxu0 0.0
  %1308 = vmatprep.subr.mxu0 0.0
  %1309 = vmatpush1.msra.mxu0 0.0
  %1310 = vmatprep.subr.mxu0 0.0
  %1311 = vmatpush1.msra.mxu0 0.0
  %1312 = vmatprep.subr.mxu0 0.0
  %1313 = vmatpush1.msra.mxu0 0.0
  %1314 = vmatprep.subr.mxu0 0.0
  %1315 = vmatpush1.msra.mxu0 0.0
  %1316 = vmatprep.subr.mxu0 0.0
  %1317 = vmatpush1.msra.mxu0 0.0
  %1318 = vmatprep.subr.mxu0 0.0
  %1319 = vmatpush1.msra.mxu0 0.0
  %1320 = vmatprep.subr.mxu0 0.0
  %1321 = vmatpush1.msra.mxu0 0.0
  %1322 = vmatprep.subr.mxu0 0.0
  %1323 = vmatpush1.msra.mxu0 0.0
  %1324 = vmatprep.mubr.f32.mxu0 0.0
  %v1325 = vand.u32 %v1022, 4294901760
  %v1326 = vsub.f32 %v1022, %v1325
  %v1327 = vand.u32 %v1326, 4294901760
  %1328 = vmatmul.mubr.f32.gmra.mrb[0].mxu0 %v1327
  %v1329 = vpop.f32.mrb[0].mxu0
  %v1330 = vadd.f32 %v1255, %v1329
  %v1331 = vpop.f32.mrb[0].mxu0
  %1332 = vdwg.mxu0
  %1333 = vmatprep.subr.mxu0 0.0
  %v1334 = vand.u32 %v14, 4294901760
  %v1335 = vsub.f32 %v14, %v1334
  %v1336 = vand.u32 %v1335, 4294901760
  %1337 = vmatpush1.msra.mxu0 %v1336
  %1338 = vmatprep.subr.mxu0 0.0
  %v1339 = vand.u32 %v558, 4294901760
  %v1340 = vsub.f32 %v558, %v1339
  %v1341 = vand.u32 %v1340, 4294901760
  %1342 = vmatpush1.msra.mxu0 %v1341
  %1343 = vmatprep.subr.mxu0 0.0
  %1344 = vmatpush1.msra.mxu0 0.0
  %1345 = vmatprep.subr.mxu0 0.0
  %1346 = vmatpush1.msra.mxu0 0.0
  %1347 = vmatprep.subr.mxu0 0.0
  %1348 = vmatpush1.msra.mxu0 0.0
  %1349 = vmatprep.subr.mxu0 0.0
  %1350 = vmatpush1.msra.mxu0 0.0
  %1351 = vmatprep.subr.mxu0 0.0
  %1352 = vmatpush1.msra.mxu0 0.0
  %1353 = vmatprep.subr.mxu0 0.0
  %1354 = vmatpush1.msra.mxu0 0.0
  %1355 = vmatprep.subr.mxu0 0.0
  %1356 = vmatpush1.msra.mxu0 0.0
  %1357 = vmatprep.subr.mxu0 0.0
  %1358 = vmatpush1.msra.mxu0 0.0
  %1359 = vmatprep.subr.mxu0 0.0
  %1360 = vmatpush1.msra.mxu0 0.0
  %1361 = vmatprep.subr.mxu0 0.0
  %1362 = vmatpush1.msra.mxu0 0.0
  %1363 = vmatprep.subr.mxu0 0.0
  %1364 = vmatpush1.msra.mxu0 0.0
  %1365 = vmatprep.subr.mxu0 0.0
  %1366 = vmatpush1.msra.mxu0 0.0
  %1367 = vmatprep.subr.mxu0 0.0
  %1368 = vmatpush1.msra.mxu0 0.0
  %1369 = vmatprep.subr.mxu0 0.0
  %1370 = vmatpush1.msra.mxu0 0.0
  %1371 = vmatprep.subr.mxu0 0.0
  %1372 = vmatpush1.msra.mxu0 0.0
  %1373 = vmatprep.subr.mxu0 0.0
  %1374 = vmatpush1.msra.mxu0 0.0
  %1375 = vmatprep.subr.mxu0 0.0
  %1376 = vmatpush1.msra.mxu0 0.0
  %1377 = vmatprep.subr.mxu0 0.0
  %1378 = vmatpush1.msra.mxu0 0.0
  %1379 = vmatprep.subr.mxu0 0.0
  %1380 = vmatpush1.msra.mxu0 0.0
  %1381 = vmatprep.subr.mxu0 0.0
  %1382 = vmatpush1.msra.mxu0 0.0
  %1383 = vmatprep.subr.mxu0 0.0
  %1384 = vmatpush1.msra.mxu0 0.0
  %1385 = vmatprep.subr.mxu0 0.0
  %1386 = vmatpush1.msra.mxu0 0.0
  %1387 = vmatprep.subr.mxu0 0.0
  %1388 = vmatpush1.msra.mxu0 0.0
  %1389 = vmatprep.subr.mxu0 0.0
  %1390 = vmatpush1.msra.mxu0 0.0
  %1391 = vmatprep.subr.mxu0 0.0
  %1392 = vmatpush1.msra.mxu0 0.0
  %1393 = vmatprep.subr.mxu0 0.0
  %1394 = vmatpush1.msra.mxu0 0.0
  %1395 = vmatprep.subr.mxu0 0.0
  %1396 = vmatpush1.msra.mxu0 0.0
  %1397 = vmatprep.subr.mxu0 0.0
  %1398 = vmatpush1.msra.mxu0 0.0
  %1399 = vmatprep.subr.mxu0 0.0
  %1400 = vmatpush1.msra.mxu0 0.0
  %1401 = vmatprep.subr.mxu0 0.0
  %1402 = vmatpush1.msra.mxu0 0.0
  %1403 = vmatprep.mubr.f32.mxu0 0.0
  %v1404 = vand.u32 %v1022, 4294901760
  %1405 = vmatmul.mubr.f32.gmra.mrb[0].mxu0 %v1404
  %v1406 = vpop.f32.mrb[0].mxu0
  %v1407 = vadd.f32 %v1330, %v1406
  %v1408 = vpop.f32.mrb[0].mxu0
  %1409 = vdwg.mxu0
  %1410 = vmatprep.subr.mxu0 0.0
  %v1411 = vand.u32 %v14, 4294901760
  %1412 = vmatpush1.msra.mxu0 %v1411
  %1413 = vmatprep.subr.mxu0 0.0
  %v1414 = vand.u32 %v558, 4294901760
  %1415 = vmatpush1.msra.mxu0 %v1414
  %1416 = vmatprep.subr.mxu0 0.0
  %1417 = vmatpush1.msra.mxu0 0.0
  %1418 = vmatprep.subr.mxu0 0.0
  %1419 = vmatpush1.msra.mxu0 0.0
  %1420 = vmatprep.subr.mxu0 0.0
  %1421 = vmatpush1.msra.mxu0 0.0
  %1422 = vmatprep.subr.mxu0 0.0
  %1423 = vmatpush1.msra.mxu0 0.0
  %1424 = vmatprep.subr.mxu0 0.0
  %1425 = vmatpush1.msra.mxu0 0.0
  %1426 = vmatprep.subr.mxu0 0.0
  %1427 = vmatpush1.msra.mxu0 0.0
  %1428 = vmatprep.subr.mxu0 0.0
  %1429 = vmatpush1.msra.mxu0 0.0
  %1430 = vmatprep.subr.mxu0 0.0
  %1431 = vmatpush1.msra.mxu0 0.0
  %1432 = vmatprep.subr.mxu0 0.0
  %1433 = vmatpush1.msra.mxu0 0.0
  %1434 = vmatprep.subr.mxu0 0.0
  %1435 = vmatpush1.msra.mxu0 0.0
  %1436 = vmatprep.subr.mxu0 0.0
  %1437 = vmatpush1.msra.mxu0 0.0
  %1438 = vmatprep.subr.mxu0 0.0
  %1439 = vmatpush1.msra.mxu0 0.0
  %1440 = vmatprep.subr.mxu0 0.0
  %1441 = vmatpush1.msra.mxu0 0.0
  %1442 = vmatprep.subr.mxu0 0.0
  %1443 = vmatpush1.msra.mxu0 0.0
  %1444 = vmatprep.subr.mxu0 0.0
  %1445 = vmatpush1.msra.mxu0 0.0
  %1446 = vmatprep.subr.mxu0 0.0
  %1447 = vmatpush1.msra.mxu0 0.0
  %1448 = vmatprep.subr.mxu0 0.0
  %1449 = vmatpush1.msra.mxu0 0.0
  %1450 = vmatprep.subr.mxu0 0.0
  %1451 = vmatpush1.msra.mxu0 0.0
  %1452 = vmatprep.subr.mxu0 0.0
  %1453 = vmatpush1.msra.mxu0 0.0
  %1454 = vmatprep.subr.mxu0 0.0
  %1455 = vmatpush1.msra.mxu0 0.0
  %1456 = vmatprep.subr.mxu0 0.0
  %1457 = vmatpush1.msra.mxu0 0.0
  %1458 = vmatprep.subr.mxu0 0.0
  %1459 = vmatpush1.msra.mxu0 0.0
  %1460 = vmatprep.subr.mxu0 0.0
  %1461 = vmatpush1.msra.mxu0 0.0
  %1462 = vmatprep.subr.mxu0 0.0
  %1463 = vmatpush1.msra.mxu0 0.0
  %1464 = vmatprep.subr.mxu0 0.0
  %1465 = vmatpush1.msra.mxu0 0.0
  %1466 = vmatprep.subr.mxu0 0.0
  %1467 = vmatpush1.msra.mxu0 0.0
  %1468 = vmatprep.subr.mxu0 0.0
  %1469 = vmatpush1.msra.mxu0 0.0
  %1470 = vmatprep.subr.mxu0 0.0
  %1471 = vmatpush1.msra.mxu0 0.0
  %1472 = vmatprep.subr.mxu0 0.0
  %1473 = vmatpush1.msra.mxu0 0.0
  %1474 = vmatprep.subr.mxu0 0.0
  %1475 = vmatpush1.msra.mxu0 0.0
  %1476 = vmatprep.mubr.f32.mxu0 0.0
  %v1477 = vand.u32 %v1022, 4294901760
  %1478 = vmatmul.mubr.f32.gmra.mrb[0].mxu0 %v1477
  %v1479 = vpop.f32.mrb[0].mxu0
  %v1480 = vadd.f32 %v1407, %v1479
  %v1481 = vpop.f32.mrb[0].mxu0
  %1482 = vdwg.mxu0
  %v1484 = vrot.slane %v1480, 6
  %v1486 = vadd.f32 %v543, %v1484
  %v1487 = vtanh.pop %v1486
  %v1489 = vrot.slane %v1487, 2
  %v1490 = vsel %vm552, %v1489, 0
  %1492 = vmatprep.subr.mxu0 0.0
  %v1493 = vand.u32 %v14, 4294901760
  %1494 = vmatpush1.msra.mxu0 %v1493
  %1495 = vmatprep.subr.mxu0 0.0
  %v1496 = vand.u32 %v558, 4294901760
  %1497 = vmatpush1.msra.mxu0 %v1496
  %1498 = vmatprep.subr.mxu0 0.0
  %1499 = vmatpush1.msra.mxu0 0.0
  %1500 = vmatprep.subr.mxu0 0.0
  %1501 = vmatpush1.msra.mxu0 0.0
  %1502 = vmatprep.subr.mxu0 0.0
  %1503 = vmatpush1.msra.mxu0 0.0
  %1504 = vmatprep.subr.mxu0 0.0
  %1505 = vmatpush1.msra.mxu0 0.0
  %1506 = vmatprep.subr.mxu0 0.0
  %1507 = vmatpush1.msra.mxu0 0.0
  %1508 = vmatprep.subr.mxu0 0.0
  %1509 = vmatpush1.msra.mxu0 0.0
  %1510 = vmatprep.subr.mxu0 0.0
  %1511 = vmatpush1.msra.mxu0 0.0
  %1512 = vmatprep.subr.mxu0 0.0
  %1513 = vmatpush1.msra.mxu0 0.0
  %1514 = vmatprep.subr.mxu0 0.0
  %1515 = vmatpush1.msra.mxu0 0.0
  %1516 = vmatprep.subr.mxu0 0.0
  %1517 = vmatpush1.msra.mxu0 0.0
  %1518 = vmatprep.subr.mxu0 0.0
  %1519 = vmatpush1.msra.mxu0 0.0
  %1520 = vmatprep.subr.mxu0 0.0
  %1521 = vmatpush1.msra.mxu0 0.0
  %1522 = vmatprep.subr.mxu0 0.0
  %1523 = vmatpush1.msra.mxu0 0.0
  %1524 = vmatprep.subr.mxu0 0.0
  %1525 = vmatpush1.msra.mxu0 0.0
  %1526 = vmatprep.subr.mxu0 0.0
  %1527 = vmatpush1.msra.mxu0 0.0
  %1528 = vmatprep.subr.mxu0 0.0
  %1529 = vmatpush1.msra.mxu0 0.0
  %1530 = vmatprep.subr.mxu0 0.0
  %1531 = vmatpush1.msra.mxu0 0.0
  %1532 = vmatprep.subr.mxu0 0.0
  %1533 = vmatpush1.msra.mxu0 0.0
  %1534 = vmatprep.subr.mxu0 0.0
  %1535 = vmatpush1.msra.mxu0 0.0
  %1536 = vmatprep.subr.mxu0 0.0
  %1537 = vmatpush1.msra.mxu0 0.0
  %1538 = vmatprep.subr.mxu0 0.0
  %1539 = vmatpush1.msra.mxu0 0.0
  %1540 = vmatprep.subr.mxu0 0.0
  %1541 = vmatpush1.msra.mxu0 0.0
  %1542 = vmatprep.subr.mxu0 0.0
  %1543 = vmatpush1.msra.mxu0 0.0
  %1544 = vmatprep.subr.mxu0 0.0
  %1545 = vmatpush1.msra.mxu0 0.0
  %1546 = vmatprep.subr.mxu0 0.0
  %1547 = vmatpush1.msra.mxu0 0.0
  %1548 = vmatprep.subr.mxu0 0.0
  %1549 = vmatpush1.msra.mxu0 0.0
  %1550 = vmatprep.subr.mxu0 0.0
  %1551 = vmatpush1.msra.mxu0 0.0
  %1552 = vmatprep.subr.mxu0 0.0
  %1553 = vmatpush1.msra.mxu0 0.0
  %1554 = vmatprep.subr.mxu0 0.0
  %1555 = vmatpush1.msra.mxu0 0.0
  %1556 = vmatprep.subr.mxu0 0.0
  %1557 = vmatpush1.msra.mxu0 0.0
  %1558 = vmatprep.mubr.f32.mxu0 0.0
  %v1559 = vand.u32 %v1490, 4294901760
  %v1560 = vsub.f32 %v1490, %v1559
  %v1561 = vand.u32 %v1560, 4294901760
  %v1562 = vsub.f32 %v1560, %v1561
  %v1563 = vand.u32 %v1562, 4294901760
  %1564 = vmatmul.mubr.f32.gmra.mrb[0].mxu0 %v1563
  %v1565 = vpop.f32.mrb[0].mxu0
  %v1566 = vadd.f32 0.0, %v1565
  %v1567 = vpop.f32.mrb[0].mxu0
  %1568 = vdwg.mxu0
  %1569 = vmatprep.subr.mxu0 0.0
  %v1570 = vand.u32 %v14, 4294901760
  %v1571 = vsub.f32 %v14, %v1570
  %v1572 = vand.u32 %v1571, 4294901760
  %v1573 = vsub.f32 %v1571, %v1572
  %v1574 = vand.u32 %v1573, 4294901760
  %1575 = vmatpush1.msra.mxu0 %v1574
  %1576 = vmatprep.subr.mxu0 0.0
  %v1577 = vand.u32 %v558, 4294901760
  %v1578 = vsub.f32 %v558, %v1577
  %v1579 = vand.u32 %v1578, 4294901760
  %v1580 = vsub.f32 %v1578, %v1579
  %v1581 = vand.u32 %v1580, 4294901760
  %1582 = vmatpush1.msra.mxu0 %v1581
  %1583 = vmatprep.subr.mxu0 0.0
  %1584 = vmatpush1.msra.mxu0 0.0
  %1585 = vmatprep.subr.mxu0 0.0
  %1586 = vmatpush1.msra.mxu0 0.0
  %1587 = vmatprep.subr.mxu0 0.0
  %1588 = vmatpush1.msra.mxu0 0.0
  %1589 = vmatprep.subr.mxu0 0.0
  %1590 = vmatpush1.msra.mxu0 0.0
  %1591 = vmatprep.subr.mxu0 0.0
  %1592 = vmatpush1.msra.mxu0 0.0
  %1593 = vmatprep.subr.mxu0 0.0
  %1594 = vmatpush1.msra.mxu0 0.0
  %1595 = vmatprep.subr.mxu0 0.0
  %1596 = vmatpush1.msra.mxu0 0.0
  %1597 = vmatprep.subr.mxu0 0.0
  %1598 = vmatpush1.msra.mxu0 0.0
  %1599 = vmatprep.subr.mxu0 0.0
  %1600 = vmatpush1.msra.mxu0 0.0
  %1601 = vmatprep.subr.mxu0 0.0
  %1602 = vmatpush1.msra.mxu0 0.0
  %1603 = vmatprep.subr.mxu0 0.0
  %1604 = vmatpush1.msra.mxu0 0.0
  %1605 = vmatprep.subr.mxu0 0.0
  %1606 = vmatpush1.msra.mxu0 0.0
  %1607 = vmatprep.subr.mxu0 0.0
  %1608 = vmatpush1.msra.mxu0 0.0
  %1609 = vmatprep.subr.mxu0 0.0
  %1610 = vmatpush1.msra.mxu0 0.0
  %1611 = vmatprep.subr.mxu0 0.0
  %1612 = vmatpush1.msra.mxu0 0.0
  %1613 = vmatprep.subr.mxu0 0.0
  %1614 = vmatpush1.msra.mxu0 0.0
  %1615 = vmatprep.subr.mxu0 0.0
  %1616 = vmatpush1.msra.mxu0 0.0
  %1617 = vmatprep.subr.mxu0 0.0
  %1618 = vmatpush1.msra.mxu0 0.0
  %1619 = vmatprep.subr.mxu0 0.0
  %1620 = vmatpush1.msra.mxu0 0.0
  %1621 = vmatprep.subr.mxu0 0.0
  %1622 = vmatpush1.msra.mxu0 0.0
  %1623 = vmatprep.subr.mxu0 0.0
  %1624 = vmatpush1.msra.mxu0 0.0
  %1625 = vmatprep.subr.mxu0 0.0
  %1626 = vmatpush1.msra.mxu0 0.0
  %1627 = vmatprep.subr.mxu0 0.0
  %1628 = vmatpush1.msra.mxu0 0.0
  %1629 = vmatprep.subr.mxu0 0.0
  %1630 = vmatpush1.msra.mxu0 0.0
  %1631 = vmatprep.subr.mxu0 0.0
  %1632 = vmatpush1.msra.mxu0 0.0
  %1633 = vmatprep.subr.mxu0 0.0
  %1634 = vmatpush1.msra.mxu0 0.0
  %1635 = vmatprep.subr.mxu0 0.0
  %1636 = vmatpush1.msra.mxu0 0.0
  %1637 = vmatprep.subr.mxu0 0.0
  %1638 = vmatpush1.msra.mxu0 0.0
  %1639 = vmatprep.subr.mxu0 0.0
  %1640 = vmatpush1.msra.mxu0 0.0
  %1641 = vmatprep.subr.mxu0 0.0
  %1642 = vmatpush1.msra.mxu0 0.0
  %1643 = vmatprep.mubr.f32.mxu0 0.0
  %v1644 = vand.u32 %v1490, 4294901760
  %1645 = vmatmul.mubr.f32.gmra.mrb[0].mxu0 %v1644
  %v1646 = vpop.f32.mrb[0].mxu0
  %v1647 = vadd.f32 %v1566, %v1646
  %v1648 = vpop.f32.mrb[0].mxu0
  %1649 = vdwg.mxu0
  %1650 = vmatprep.subr.mxu0 0.0
  %v1651 = vand.u32 %v14, 4294901760
  %v1652 = vsub.f32 %v14, %v1651
  %1653 = vmatpush1.msra.mxu0 %v1652
  %1654 = vmatprep.subr.mxu0 0.0
  %v1655 = vand.u32 %v558, 4294901760
  %v1656 = vsub.f32 %v558, %v1655
  %1657 = vmatpush1.msra.mxu0 %v1656
  %1658 = vmatprep.subr.mxu0 0.0
  %1659 = vmatpush1.msra.mxu0 0.0
  %1660 = vmatprep.subr.mxu0 0.0
  %1661 = vmatpush1.msra.mxu0 0.0
  %1662 = vmatprep.subr.mxu0 0.0
  %1663 = vmatpush1.msra.mxu0 0.0
  %1664 = vmatprep.subr.mxu0 0.0
  %1665 = vmatpush1.msra.mxu0 0.0
  %1666 = vmatprep.subr.mxu0 0.0
  %1667 = vmatpush1.msra.mxu0 0.0
  %1668 = vmatprep.subr.mxu0 0.0
  %1669 = vmatpush1.msra.mxu0 0.0
  %1670 = vmatprep.subr.mxu0 0.0
  %1671 = vmatpush1.msra.mxu0 0.0
  %1672 = vmatprep.subr.mxu0 0.0
  %1673 = vmatpush1.msra.mxu0 0.0
  %1674 = vmatprep.subr.mxu0 0.0
  %1675 = vmatpush1.msra.mxu0 0.0
  %1676 = vmatprep.subr.mxu0 0.0
  %1677 = vmatpush1.msra.mxu0 0.0
  %1678 = vmatprep.subr.mxu0 0.0
  %1679 = vmatpush1.msra.mxu0 0.0
  %1680 = vmatprep.subr.mxu0 0.0
  %1681 = vmatpush1.msra.mxu0 0.0
  %1682 = vmatprep.subr.mxu0 0.0
  %1683 = vmatpush1.msra.mxu0 0.0
  %1684 = vmatprep.subr.mxu0 0.0
  %1685 = vmatpush1.msra.mxu0 0.0
  %1686 = vmatprep.subr.mxu0 0.0
  %1687 = vmatpush1.msra.mxu0 0.0
  %1688 = vmatprep.subr.mxu0 0.0
  %1689 = vmatpush1.msra.mxu0 0.0
  %1690 = vmatprep.subr.mxu0 0.0
  %1691 = vmatpush1.msra.mxu0 0.0
  %1692 = vmatprep.subr.mxu0 0.0
  %1693 = vmatpush1.msra.mxu0 0.0
  %1694 = vmatprep.subr.mxu0 0.0
  %1695 = vmatpush1.msra.mxu0 0.0
  %1696 = vmatprep.subr.mxu0 0.0
  %1697 = vmatpush1.msra.mxu0 0.0
  %1698 = vmatprep.subr.mxu0 0.0
  %1699 = vmatpush1.msra.mxu0 0.0
  %1700 = vmatprep.subr.mxu0 0.0
  %1701 = vmatpush1.msra.mxu0 0.0
  %1702 = vmatprep.subr.mxu0 0.0
  %1703 = vmatpush1.msra.mxu0 0.0
  %1704 = vmatprep.subr.mxu0 0.0
  %1705 = vmatpush1.msra.mxu0 0.0
  %1706 = vmatprep.subr.mxu0 0.0
  %1707 = vmatpush1.msra.mxu0 0.0
  %1708 = vmatprep.subr.mxu0 0.0
  %1709 = vmatpush1.msra.mxu0 0.0
  %1710 = vmatprep.subr.mxu0 0.0
  %1711 = vmatpush1.msra.mxu0 0.0
  %1712 = vmatprep.subr.mxu0 0.0
  %1713 = vmatpush1.msra.mxu0 0.0
  %1714 = vmatprep.subr.mxu0 0.0
  %1715 = vmatpush1.msra.mxu0 0.0
  %1716 = vmatprep.subr.mxu0 0.0
  %1717 = vmatpush1.msra.mxu0 0.0
  %1718 = vmatprep.mubr.f32.mxu0 0.0
  %v1719 = vand.u32 %v1490, 4294901760
  %v1720 = vsub.f32 %v1490, %v1719
  %1721 = vmatmul.mubr.f32.gmra.mrb[0].mxu0 %v1720
  %v1722 = vpop.f32.mrb[0].mxu0
  %v1723 = vadd.f32 %v1647, %v1722
  %v1724 = vpop.f32.mrb[0].mxu0
  %1725 = vdwg.mxu0
  %1726 = vmatprep.subr.mxu0 0.0
  %v1727 = vand.u32 %v14, 4294901760
  %1728 = vmatpush1.msra.mxu0 %v1727
  %1729 = vmatprep.subr.mxu0 0.0
  %v1730 = vand.u32 %v558, 4294901760
  %1731 = vmatpush1.msra.mxu0 %v1730
  %1732 = vmatprep.subr.mxu0 0.0
  %1733 = vmatpush1.msra.mxu0 0.0
  %1734 = vmatprep.subr.mxu0 0.0
  %1735 = vmatpush1.msra.mxu0 0.0
  %1736 = vmatprep.subr.mxu0 0.0
  %1737 = vmatpush1.msra.mxu0 0.0
  %1738 = vmatprep.subr.mxu0 0.0
  %1739 = vmatpush1.msra.mxu0 0.0
  %1740 = vmatprep.subr.mxu0 0.0
  %1741 = vmatpush1.msra.mxu0 0.0
  %1742 = vmatprep.subr.mxu0 0.0
  %1743 = vmatpush1.msra.mxu0 0.0
  %1744 = vmatprep.subr.mxu0 0.0
  %1745 = vmatpush1.msra.mxu0 0.0
  %1746 = vmatprep.subr.mxu0 0.0
  %1747 = vmatpush1.msra.mxu0 0.0
  %1748 = vmatprep.subr.mxu0 0.0
  %1749 = vmatpush1.msra.mxu0 0.0
  %1750 = vmatprep.subr.mxu0 0.0
  %1751 = vmatpush1.msra.mxu0 0.0
  %1752 = vmatprep.subr.mxu0 0.0
  %1753 = vmatpush1.msra.mxu0 0.0
  %1754 = vmatprep.subr.mxu0 0.0
  %1755 = vmatpush1.msra.mxu0 0.0
  %1756 = vmatprep.subr.mxu0 0.0
  %1757 = vmatpush1.msra.mxu0 0.0
  %1758 = vmatprep.subr.mxu0 0.0
  %1759 = vmatpush1.msra.mxu0 0.0
  %1760 = vmatprep.subr.mxu0 0.0
  %1761 = vmatpush1.msra.mxu0 0.0
  %1762 = vmatprep.subr.mxu0 0.0
  %1763 = vmatpush1.msra.mxu0 0.0
  %1764 = vmatprep.subr.mxu0 0.0
  %1765 = vmatpush1.msra.mxu0 0.0
  %1766 = vmatprep.subr.mxu0 0.0
  %1767 = vmatpush1.msra.mxu0 0.0
  %1768 = vmatprep.subr.mxu0 0.0
  %1769 = vmatpush1.msra.mxu0 0.0
  %1770 = vmatprep.subr.mxu0 0.0
  %1771 = vmatpush1.msra.mxu0 0.0
  %1772 = vmatprep.subr.mxu0 0.0
  %1773 = vmatpush1.msra.mxu0 0.0
  %1774 = vmatprep.subr.mxu0 0.0
  %1775 = vmatpush1.msra.mxu0 0.0
  %1776 = vmatprep.subr.mxu0 0.0
  %1777 = vmatpush1.msra.mxu0 0.0
  %1778 = vmatprep.subr.mxu0 0.0
  %1779 = vmatpush1.msra.mxu0 0.0
  %1780 = vmatprep.subr.mxu0 0.0
  %1781 = vmatpush1.msra.mxu0 0.0
  %1782 = vmatprep.subr.mxu0 0.0
  %1783 = vmatpush1.msra.mxu0 0.0
  %1784 = vmatprep.subr.mxu0 0.0
  %1785 = vmatpush1.msra.mxu0 0.0
  %1786 = vmatprep.subr.mxu0 0.0
  %1787 = vmatpush1.msra.mxu0 0.0
  %1788 = vmatprep.subr.mxu0 0.0
  %1789 = vmatpush1.msra.mxu0 0.0
  %1790 = vmatprep.subr.mxu0 0.0
  %1791 = vmatpush1.msra.mxu0 0.0
  %1792 = vmatprep.mubr.f32.mxu0 0.0
  %v1793 = vand.u32 %v1490, 4294901760
  %v1794 = vsub.f32 %v1490, %v1793
  %v1795 = vand.u32 %v1794, 4294901760
  %1796 = vmatmul.mubr.f32.gmra.mrb[0].mxu0 %v1795
  %v1797 = vpop.f32.mrb[0].mxu0
  %v1798 = vadd.f32 %v1723, %v1797
  %v1799 = vpop.f32.mrb[0].mxu0
  %1800 = vdwg.mxu0
  %1801 = vmatprep.subr.mxu0 0.0
  %v1802 = vand.u32 %v14, 4294901760
  %v1803 = vsub.f32 %v14, %v1802
  %v1804 = vand.u32 %v1803, 4294901760
  %1805 = vmatpush1.msra.mxu0 %v1804
  %1806 = vmatprep.subr.mxu0 0.0
  %v1807 = vand.u32 %v558, 4294901760
  %v1808 = vsub.f32 %v558, %v1807
  %v1809 = vand.u32 %v1808, 4294901760
  %1810 = vmatpush1.msra.mxu0 %v1809
  %1811 = vmatprep.subr.mxu0 0.0
  %1812 = vmatpush1.msra.mxu0 0.0
  %1813 = vmatprep.subr.mxu0 0.0
  %1814 = vmatpush1.msra.mxu0 0.0
  %1815 = vmatprep.subr.mxu0 0.0
  %1816 = vmatpush1.msra.mxu0 0.0
  %1817 = vmatprep.subr.mxu0 0.0
  %1818 = vmatpush1.msra.mxu0 0.0
  %1819 = vmatprep.subr.mxu0 0.0
  %1820 = vmatpush1.msra.mxu0 0.0
  %1821 = vmatprep.subr.mxu0 0.0
  %1822 = vmatpush1.msra.mxu0 0.0
  %1823 = vmatprep.subr.mxu0 0.0
  %1824 = vmatpush1.msra.mxu0 0.0
  %1825 = vmatprep.subr.mxu0 0.0
  %1826 = vmatpush1.msra.mxu0 0.0
  %1827 = vmatprep.subr.mxu0 0.0
  %1828 = vmatpush1.msra.mxu0 0.0
  %1829 = vmatprep.subr.mxu0 0.0
  %1830 = vmatpush1.msra.mxu0 0.0
  %1831 = vmatprep.subr.mxu0 0.0
  %1832 = vmatpush1.msra.mxu0 0.0
  %1833 = vmatprep.subr.mxu0 0.0
  %1834 = vmatpush1.msra.mxu0 0.0
  %1835 = vmatprep.subr.mxu0 0.0
  %1836 = vmatpush1.msra.mxu0 0.0
  %1837 = vmatprep.subr.mxu0 0.0
  %1838 = vmatpush1.msra.mxu0 0.0
  %1839 = vmatprep.subr.mxu0 0.0
  %1840 = vmatpush1.msra.mxu0 0.0
  %1841 = vmatprep.subr.mxu0 0.0
  %1842 = vmatpush1.msra.mxu0 0.0
  %1843 = vmatprep.subr.mxu0 0.0
  %1844 = vmatpush1.msra.mxu0 0.0
  %1845 = vmatprep.subr.mxu0 0.0
  %1846 = vmatpush1.msra.mxu0 0.0
  %1847 = vmatprep.subr.mxu0 0.0
  %1848 = vmatpush1.msra.mxu0 0.0
  %1849 = vmatprep.subr.mxu0 0.0
  %1850 = vmatpush1.msra.mxu0 0.0
  %1851 = vmatprep.subr.mxu0 0.0
  %1852 = vmatpush1.msra.mxu0 0.0
  %1853 = vmatprep.subr.mxu0 0.0
  %1854 = vmatpush1.msra.mxu0 0.0
  %1855 = vmatprep.subr.mxu0 0.0
  %1856 = vmatpush1.msra.mxu0 0.0
  %1857 = vmatprep.subr.mxu0 0.0
  %1858 = vmatpush1.msra.mxu0 0.0
  %1859 = vmatprep.subr.mxu0 0.0
  %1860 = vmatpush1.msra.mxu0 0.0
  %1861 = vmatprep.subr.mxu0 0.0
  %1862 = vmatpush1.msra.mxu0 0.0
  %1863 = vmatprep.subr.mxu0 0.0
  %1864 = vmatpush1.msra.mxu0 0.0
  %1865 = vmatprep.subr.mxu0 0.0
  %1866 = vmatpush1.msra.mxu0 0.0
  %1867 = vmatprep.subr.mxu0 0.0
  %1868 = vmatpush1.msra.mxu0 0.0
  %1869 = vmatprep.subr.mxu0 0.0
  %1870 = vmatpush1.msra.mxu0 0.0
  %1871 = vmatprep.mubr.f32.mxu0 0.0
  %v1872 = vand.u32 %v1490, 4294901760
  %1873 = vmatmul.mubr.f32.gmra.mrb[0].mxu0 %v1872
  %v1874 = vpop.f32.mrb[0].mxu0
  %v1875 = vadd.f32 %v1798, %v1874
  %v1876 = vpop.f32.mrb[0].mxu0
  %1877 = vdwg.mxu0
  %1878 = vmatprep.subr.mxu0 0.0
  %v1879 = vand.u32 %v14, 4294901760
  %1880 = vmatpush1.msra.mxu0 %v1879
  %1881 = vmatprep.subr.mxu0 0.0
  %v1882 = vand.u32 %v558, 4294901760
  %1883 = vmatpush1.msra.mxu0 %v1882
  %1884 = vmatprep.subr.mxu0 0.0
  %1885 = vmatpush1.msra.mxu0 0.0
  %1886 = vmatprep.subr.mxu0 0.0
  %1887 = vmatpush1.msra.mxu0 0.0
  %1888 = vmatprep.subr.mxu0 0.0
  %1889 = vmatpush1.msra.mxu0 0.0
  %1890 = vmatprep.subr.mxu0 0.0
  %1891 = vmatpush1.msra.mxu0 0.0
  %1892 = vmatprep.subr.mxu0 0.0
  %1893 = vmatpush1.msra.mxu0 0.0
  %1894 = vmatprep.subr.mxu0 0.0
  %1895 = vmatpush1.msra.mxu0 0.0
  %1896 = vmatprep.subr.mxu0 0.0
  %1897 = vmatpush1.msra.mxu0 0.0
  %1898 = vmatprep.subr.mxu0 0.0
  %1899 = vmatpush1.msra.mxu0 0.0
  %1900 = vmatprep.subr.mxu0 0.0
  %1901 = vmatpush1.msra.mxu0 0.0
  %1902 = vmatprep.subr.mxu0 0.0
  %1903 = vmatpush1.msra.mxu0 0.0
  %1904 = vmatprep.subr.mxu0 0.0
  %1905 = vmatpush1.msra.mxu0 0.0
  %1906 = vmatprep.subr.mxu0 0.0
  %1907 = vmatpush1.msra.mxu0 0.0
  %1908 = vmatprep.subr.mxu0 0.0
  %1909 = vmatpush1.msra.mxu0 0.0
  %1910 = vmatprep.subr.mxu0 0.0
  %1911 = vmatpush1.msra.mxu0 0.0
  %1912 = vmatprep.subr.mxu0 0.0
  %1913 = vmatpush1.msra.mxu0 0.0
  %1914 = vmatprep.subr.mxu0 0.0
  %1915 = vmatpush1.msra.mxu0 0.0
  %1916 = vmatprep.subr.mxu0 0.0
  %1917 = vmatpush1.msra.mxu0 0.0
  %1918 = vmatprep.subr.mxu0 0.0
  %1919 = vmatpush1.msra.mxu0 0.0
  %1920 = vmatprep.subr.mxu0 0.0
  %1921 = vmatpush1.msra.mxu0 0.0
  %1922 = vmatprep.subr.mxu0 0.0
  %1923 = vmatpush1.msra.mxu0 0.0
  %1924 = vmatprep.subr.mxu0 0.0
  %1925 = vmatpush1.msra.mxu0 0.0
  %1926 = vmatprep.subr.mxu0 0.0
  %1927 = vmatpush1.msra.mxu0 0.0
  %1928 = vmatprep.subr.mxu0 0.0
  %1929 = vmatpush1.msra.mxu0 0.0
  %1930 = vmatprep.subr.mxu0 0.0
  %1931 = vmatpush1.msra.mxu0 0.0
  %1932 = vmatprep.subr.mxu0 0.0
  %1933 = vmatpush1.msra.mxu0 0.0
  %1934 = vmatprep.subr.mxu0 0.0
  %1935 = vmatpush1.msra.mxu0 0.0
  %1936 = vmatprep.subr.mxu0 0.0
  %1937 = vmatpush1.msra.mxu0 0.0
  %1938 = vmatprep.subr.mxu0 0.0
  %1939 = vmatpush1.msra.mxu0 0.0
  %1940 = vmatprep.subr.mxu0 0.0
  %1941 = vmatpush1.msra.mxu0 0.0
  %1942 = vmatprep.subr.mxu0 0.0
  %1943 = vmatpush1.msra.mxu0 0.0
  %1944 = vmatprep.mubr.f32.mxu0 0.0
  %v1945 = vand.u32 %v1490, 4294901760
  %1946 = vmatmul.mubr.f32.gmra.mrb[0].mxu0 %v1945
  %v1947 = vpop.f32.mrb[0].mxu0
  %v1948 = vadd.f32 %v1875, %v1947
  %v1949 = vpop.f32.mrb[0].mxu0
  %1950 = vdwg.mxu0
  %v1952 = vrot.slane %v1948, 4
  %v1954 = vadd.f32 %v543, %v1952
  %v1955 = vtanh.pop %v1954
  %v1957 = vrot.slane %v1955, 4
  %v1958 = vsel %vm552, %v1957, 0
  %1960 = vmatprep.subr.mxu0 0.0
  %v1961 = vand.u32 %v14, 4294901760
  %1962 = vmatpush1.msra.mxu0 %v1961
  %1963 = vmatprep.subr.mxu0 0.0
  %v1964 = vand.u32 %v558, 4294901760
  %1965 = vmatpush1.msra.mxu0 %v1964
  %1966 = vmatprep.subr.mxu0 0.0
  %1967 = vmatpush1.msra.mxu0 0.0
  %1968 = vmatprep.subr.mxu0 0.0
  %1969 = vmatpush1.msra.mxu0 0.0
  %1970 = vmatprep.subr.mxu0 0.0
  %1971 = vmatpush1.msra.mxu0 0.0
  %1972 = vmatprep.subr.mxu0 0.0
  %1973 = vmatpush1.msra.mxu0 0.0
  %1974 = vmatprep.subr.mxu0 0.0
  %1975 = vmatpush1.msra.mxu0 0.0
  %1976 = vmatprep.subr.mxu0 0.0
  %1977 = vmatpush1.msra.mxu0 0.0
  %1978 = vmatprep.subr.mxu0 0.0
  %1979 = vmatpush1.msra.mxu0 0.0
  %1980 = vmatprep.subr.mxu0 0.0
  %1981 = vmatpush1.msra.mxu0 0.0
  %1982 = vmatprep.subr.mxu0 0.0
  %1983 = vmatpush1.msra.mxu0 0.0
  %1984 = vmatprep.subr.mxu0 0.0
  %1985 = vmatpush1.msra.mxu0 0.0
  %1986 = vmatprep.subr.mxu0 0.0
  %1987 = vmatpush1.msra.mxu0 0.0
  %1988 = vmatprep.subr.mxu0 0.0
  %1989 = vmatpush1.msra.mxu0 0.0
  %1990 = vmatprep.subr.mxu0 0.0
  %1991 = vmatpush1.msra.mxu0 0.0
  %1992 = vmatprep.subr.mxu0 0.0
  %1993 = vmatpush1.msra.mxu0 0.0
  %1994 = vmatprep.subr.mxu0 0.0
  %1995 = vmatpush1.msra.mxu0 0.0
  %1996 = vmatprep.subr.mxu0 0.0
  %1997 = vmatpush1.msra.mxu0 0.0
  %1998 = vmatprep.subr.mxu0 0.0
  %1999 = vmatpush1.msra.mxu0 0.0
  %2000 = vmatprep.subr.mxu0 0.0
  %2001 = vmatpush1.msra.mxu0 0.0
  %2002 = vmatprep.subr.mxu0 0.0
  %2003 = vmatpush1.msra.mxu0 0.0
  %2004 = vmatprep.subr.mxu0 0.0
  %2005 = vmatpush1.msra.mxu0 0.0
  %2006 = vmatprep.subr.mxu0 0.0
  %2007 = vmatpush1.msra.mxu0 0.0
  %2008 = vmatprep.subr.mxu0 0.0
  %2009 = vmatpush1.msra.mxu0 0.0
  %2010 = vmatprep.subr.mxu0 0.0
  %2011 = vmatpush1.msra.mxu0 0.0
  %2012 = vmatprep.subr.mxu0 0.0
  %2013 = vmatpush1.msra.mxu0 0.0
  %2014 = vmatprep.subr.mxu0 0.0
  %2015 = vmatpush1.msra.mxu0 0.0
  %2016 = vmatprep.subr.mxu0 0.0
  %2017 = vmatpush1.msra.mxu0 0.0
  %2018 = vmatprep.subr.mxu0 0.0
  %2019 = vmatpush1.msra.mxu0 0.0
  %2020 = vmatprep.subr.mxu0 0.0
  %2021 = vmatpush1.msra.mxu0 0.0
  %2022 = vmatprep.subr.mxu0 0.0
  %2023 = vmatpush1.msra.mxu0 0.0
  %2024 = vmatprep.subr.mxu0 0.0
  %2025 = vmatpush1.msra.mxu0 0.0
  %2026 = vmatprep.mubr.f32.mxu0 0.0
  %v2027 = vand.u32 %v1958, 4294901760
  %v2028 = vsub.f32 %v1958, %v2027
  %v2029 = vand.u32 %v2028, 4294901760
  %v2030 = vsub.f32 %v2028, %v2029
  %v2031 = vand.u32 %v2030, 4294901760
  %2032 = vmatmul.mubr.f32.gmra.mrb[0].mxu0 %v2031
  %v2033 = vpop.f32.mrb[0].mxu0
  %v2034 = vadd.f32 0.0, %v2033
  %v2035 = vpop.f32.mrb[0].mxu0
  %2036 = vdwg.mxu0
  %2037 = vmatprep.subr.mxu0 0.0
  %v2038 = vand.u32 %v14, 4294901760
  %v2039 = vsub.f32 %v14, %v2038
  %v2040 = vand.u32 %v2039, 4294901760
  %v2041 = vsub.f32 %v2039, %v2040
  %v2042 = vand.u32 %v2041, 4294901760
  %2043 = vmatpush1.msra.mxu0 %v2042
  %2044 = vmatprep.subr.mxu0 0.0
  %v2045 = vand.u32 %v558, 4294901760
  %v2046 = vsub.f32 %v558, %v2045
  %v2047 = vand.u32 %v2046, 4294901760
  %v2048 = vsub.f32 %v2046, %v2047
  %v2049 = vand.u32 %v2048, 4294901760
  %2050 = vmatpush1.msra.mxu0 %v2049
  %2051 = vmatprep.subr.mxu0 0.0
  %2052 = vmatpush1.msra.mxu0 0.0
  %2053 = vmatprep.subr.mxu0 0.0
  %2054 = vmatpush1.msra.mxu0 0.0
  %2055 = vmatprep.subr.mxu0 0.0
  %2056 = vmatpush1.msra.mxu0 0.0
  %2057 = vmatprep.subr.mxu0 0.0
  %2058 = vmatpush1.msra.mxu0 0.0
  %2059 = vmatprep.subr.mxu0 0.0
  %2060 = vmatpush1.msra.mxu0 0.0
  %2061 = vmatprep.subr.mxu0 0.0
  %2062 = vmatpush1.msra.mxu0 0.0
  %2063 = vmatprep.subr.mxu0 0.0
  %2064 = vmatpush1.msra.mxu0 0.0
  %2065 = vmatprep.subr.mxu0 0.0
  %2066 = vmatpush1.msra.mxu0 0.0
  %2067 = vmatprep.subr.mxu0 0.0
  %2068 = vmatpush1.msra.mxu0 0.0
  %2069 = vmatprep.subr.mxu0 0.0
  %2070 = vmatpush1.msra.mxu0 0.0
  %2071 = vmatprep.subr.mxu0 0.0
  %2072 = vmatpush1.msra.mxu0 0.0
  %2073 = vmatprep.subr.mxu0 0.0
  %2074 = vmatpush1.msra.mxu0 0.0
  %2075 = vmatprep.subr.mxu0 0.0
  %2076 = vmatpush1.msra.mxu0 0.0
  %2077 = vmatprep.subr.mxu0 0.0
  %2078 = vmatpush1.msra.mxu0 0.0
  %2079 = vmatprep.subr.mxu0 0.0
  %2080 = vmatpush1.msra.mxu0 0.0
  %2081 = vmatprep.subr.mxu0 0.0
  %2082 = vmatpush1.msra.mxu0 0.0
  %2083 = vmatprep.subr.mxu0 0.0
  %2084 = vmatpush1.msra.mxu0 0.0
  %2085 = vmatprep.subr.mxu0 0.0
  %2086 = vmatpush1.msra.mxu0 0.0
  %2087 = vmatprep.subr.mxu0 0.0
  %2088 = vmatpush1.msra.mxu0 0.0
  %2089 = vmatprep.subr.mxu0 0.0
  %2090 = vmatpush1.msra.mxu0 0.0
  %2091 = vmatprep.subr.mxu0 0.0
  %2092 = vmatpush1.msra.mxu0 0.0
  %2093 = vmatprep.subr.mxu0 0.0
  %2094 = vmatpush1.msra.mxu0 0.0
  %2095 = vmatprep.subr.mxu0 0.0
  %2096 = vmatpush1.msra.mxu0 0.0
  %2097 = vmatprep.subr.mxu0 0.0
  %2098 = vmatpush1.msra.mxu0 0.0
  %2099 = vmatprep.subr.mxu0 0.0
  %2100 = vmatpush1.msra.mxu0 0.0
  %2101 = vmatprep.subr.mxu0 0.0
  %2102 = vmatpush1.msra.mxu0 0.0
  %2103 = vmatprep.subr.mxu0 0.0
  %2104 = vmatpush1.msra.mxu0 0.0
  %2105 = vmatprep.subr.mxu0 0.0
  %2106 = vmatpush1.msra.mxu0 0.0
  %2107 = vmatprep.subr.mxu0 0.0
  %2108 = vmatpush1.msra.mxu0 0.0
  %2109 = vmatprep.subr.mxu0 0.0
  %2110 = vmatpush1.msra.mxu0 0.0
  %2111 = vmatprep.mubr.f32.mxu0 0.0
  %v2112 = vand.u32 %v1958, 4294901760
  %2113 = vmatmul.mubr.f32.gmra.mrb[0].mxu0 %v2112
  %v2114 = vpop.f32.mrb[0].mxu0
  %v2115 = vadd.f32 %v2034, %v2114
  %v2116 = vpop.f32.mrb[0].mxu0
  %2117 = vdwg.mxu0
  %2118 = vmatprep.subr.mxu0 0.0
  %v2119 = vand.u32 %v14, 4294901760
  %v2120 = vsub.f32 %v14, %v2119
  %2121 = vmatpush1.msra.mxu0 %v2120
  %2122 = vmatprep.subr.mxu0 0.0
  %v2123 = vand.u32 %v558, 4294901760
  %v2124 = vsub.f32 %v558, %v2123
  %2125 = vmatpush1.msra.mxu0 %v2124
  %2126 = vmatprep.subr.mxu0 0.0
  %2127 = vmatpush1.msra.mxu0 0.0
  %2128 = vmatprep.subr.mxu0 0.0
  %2129 = vmatpush1.msra.mxu0 0.0
  %2130 = vmatprep.subr.mxu0 0.0
  %2131 = vmatpush1.msra.mxu0 0.0
  %2132 = vmatprep.subr.mxu0 0.0
  %2133 = vmatpush1.msra.mxu0 0.0
  %2134 = vmatprep.subr.mxu0 0.0
  %2135 = vmatpush1.msra.mxu0 0.0
  %2136 = vmatprep.subr.mxu0 0.0
  %2137 = vmatpush1.msra.mxu0 0.0
  %2138 = vmatprep.subr.mxu0 0.0
  %2139 = vmatpush1.msra.mxu0 0.0
  %2140 = vmatprep.subr.mxu0 0.0
  %2141 = vmatpush1.msra.mxu0 0.0
  %2142 = vmatprep.subr.mxu0 0.0
  %2143 = vmatpush1.msra.mxu0 0.0
  %2144 = vmatprep.subr.mxu0 0.0
  %2145 = vmatpush1.msra.mxu0 0.0
  %2146 = vmatprep.subr.mxu0 0.0
  %2147 = vmatpush1.msra.mxu0 0.0
  %2148 = vmatprep.subr.mxu0 0.0
  %2149 = vmatpush1.msra.mxu0 0.0
  %2150 = vmatprep.subr.mxu0 0.0
  %2151 = vmatpush1.msra.mxu0 0.0
  %2152 = vmatprep.subr.mxu0 0.0
  %2153 = vmatpush1.msra.mxu0 0.0
  %2154 = vmatprep.subr.mxu0 0.0
  %2155 = vmatpush1.msra.mxu0 0.0
  %2156 = vmatprep.subr.mxu0 0.0
  %2157 = vmatpush1.msra.mxu0 0.0
  %2158 = vmatprep.subr.mxu0 0.0
  %2159 = vmatpush1.msra.mxu0 0.0
  %2160 = vmatprep.subr.mxu0 0.0
  %2161 = vmatpush1.msra.mxu0 0.0
  %2162 = vmatprep.subr.mxu0 0.0
  %2163 = vmatpush1.msra.mxu0 0.0
  %2164 = vmatprep.subr.mxu0 0.0
  %2165 = vmatpush1.msra.mxu0 0.0
  %2166 = vmatprep.subr.mxu0 0.0
  %2167 = vmatpush1.msra.mxu0 0.0
  %2168 = vmatprep.subr.mxu0 0.0
  %2169 = vmatpush1.msra.mxu0 0.0
  %2170 = vmatprep.subr.mxu0 0.0
  %2171 = vmatpush1.msra.mxu0 0.0
  %2172 = vmatprep.subr.mxu0 0.0
  %2173 = vmatpush1.msra.mxu0 0.0
  %2174 = vmatprep.subr.mxu0 0.0
  %2175 = vmatpush1.msra.mxu0 0.0
  %2176 = vmatprep.subr.mxu0 0.0
  %2177 = vmatpush1.msra.mxu0 0.0
  %2178 = vmatprep.subr.mxu0 0.0
  %2179 = vmatpush1.msra.mxu0 0.0
  %2180 = vmatprep.subr.mxu0 0.0
  %2181 = vmatpush1.msra.mxu0 0.0
  %2182 = vmatprep.subr.mxu0 0.0
  %2183 = vmatpush1.msra.mxu0 0.0
  %2184 = vmatprep.subr.mxu0 0.0
  %2185 = vmatpush1.msra.mxu0 0.0
  %2186 = vmatprep.mubr.f32.mxu0 0.0
  %v2187 = vand.u32 %v1958, 4294901760
  %v2188 = vsub.f32 %v1958, %v2187
  %2189 = vmatmul.mubr.f32.gmra.mrb[0].mxu0 %v2188
  %v2190 = vpop.f32.mrb[0].mxu0
  %v2191 = vadd.f32 %v2115, %v2190
  %v2192 = vpop.f32.mrb[0].mxu0
  %2193 = vdwg.mxu0
  %2194 = vmatprep.subr.mxu0 0.0
  %v2195 = vand.u32 %v14, 4294901760
  %2196 = vmatpush1.msra.mxu0 %v2195
  %2197 = vmatprep.subr.mxu0 0.0
  %v2198 = vand.u32 %v558, 4294901760
  %2199 = vmatpush1.msra.mxu0 %v2198
  %2200 = vmatprep.subr.mxu0 0.0
  %2201 = vmatpush1.msra.mxu0 0.0
  %2202 = vmatprep.subr.mxu0 0.0
  %2203 = vmatpush1.msra.mxu0 0.0
  %2204 = vmatprep.subr.mxu0 0.0
  %2205 = vmatpush1.msra.mxu0 0.0
  %2206 = vmatprep.subr.mxu0 0.0
  %2207 = vmatpush1.msra.mxu0 0.0
  %2208 = vmatprep.subr.mxu0 0.0
  %2209 = vmatpush1.msra.mxu0 0.0
  %2210 = vmatprep.subr.mxu0 0.0
  %2211 = vmatpush1.msra.mxu0 0.0
  %2212 = vmatprep.subr.mxu0 0.0
  %2213 = vmatpush1.msra.mxu0 0.0
  %2214 = vmatprep.subr.mxu0 0.0
  %2215 = vmatpush1.msra.mxu0 0.0
  %2216 = vmatprep.subr.mxu0 0.0
  %2217 = vmatpush1.msra.mxu0 0.0
  %2218 = vmatprep.subr.mxu0 0.0
  %2219 = vmatpush1.msra.mxu0 0.0
  %2220 = vmatprep.subr.mxu0 0.0
  %2221 = vmatpush1.msra.mxu0 0.0
  %2222 = vmatprep.subr.mxu0 0.0
  %2223 = vmatpush1.msra.mxu0 0.0
  %2224 = vmatprep.subr.mxu0 0.0
  %2225 = vmatpush1.msra.mxu0 0.0
  %2226 = vmatprep.subr.mxu0 0.0
  %2227 = vmatpush1.msra.mxu0 0.0
  %2228 = vmatprep.subr.mxu0 0.0
  %2229 = vmatpush1.msra.mxu0 0.0
  %2230 = vmatprep.subr.mxu0 0.0
  %2231 = vmatpush1.msra.mxu0 0.0
  %2232 = vmatprep.subr.mxu0 0.0
  %2233 = vmatpush1.msra.mxu0 0.0
  %2234 = vmatprep.subr.mxu0 0.0
  %2235 = vmatpush1.msra.mxu0 0.0
  %2236 = vmatprep.subr.mxu0 0.0
  %2237 = vmatpush1.msra.mxu0 0.0
  %2238 = vmatprep.subr.mxu0 0.0
  %2239 = vmatpush1.msra.mxu0 0.0
  %2240 = vmatprep.subr.mxu0 0.0
  %2241 = vmatpush1.msra.mxu0 0.0
  %2242 = vmatprep.subr.mxu0 0.0
  %2243 = vmatpush1.msra.mxu0 0.0
  %2244 = vmatprep.subr.mxu0 0.0
  %2245 = vmatpush1.msra.mxu0 0.0
  %2246 = vmatprep.subr.mxu0 0.0
  %2247 = vmatpush1.msra.mxu0 0.0
  %2248 = vmatprep.subr.mxu0 0.0
  %2249 = vmatpush1.msra.mxu0 0.0
  %2250 = vmatprep.subr.mxu0 0.0
  %2251 = vmatpush1.msra.mxu0 0.0
  %2252 = vmatprep.subr.mxu0 0.0
  %2253 = vmatpush1.msra.mxu0 0.0
  %2254 = vmatprep.subr.mxu0 0.0
  %2255 = vmatpush1.msra.mxu0 0.0
  %2256 = vmatprep.subr.mxu0 0.0
  %2257 = vmatpush1.msra.mxu0 0.0
  %2258 = vmatprep.subr.mxu0 0.0
  %2259 = vmatpush1.msra.mxu0 0.0
  %2260 = vmatprep.mubr.f32.mxu0 0.0
  %v2261 = vand.u32 %v1958, 4294901760
  %v2262 = vsub.f32 %v1958, %v2261
  %v2263 = vand.u32 %v2262, 4294901760
  %2264 = vmatmul.mubr.f32.gmra.mrb[0].mxu0 %v2263
  %v2265 = vpop.f32.mrb[0].mxu0
  %v2266 = vadd.f32 %v2191, %v2265
  %v2267 = vpop.f32.mrb[0].mxu0
  %2268 = vdwg.mxu0
  %2269 = vmatprep.subr.mxu0 0.0
  %v2270 = vand.u32 %v14, 4294901760
  %v2271 = vsub.f32 %v14, %v2270
  %v2272 = vand.u32 %v2271, 4294901760
  %2273 = vmatpush1.msra.mxu0 %v2272
  %2274 = vmatprep.subr.mxu0 0.0
  %v2275 = vand.u32 %v558, 4294901760
  %v2276 = vsub.f32 %v558, %v2275
  %v2277 = vand.u32 %v2276, 4294901760
  %2278 = vmatpush1.msra.mxu0 %v2277
  %2279 = vmatprep.subr.mxu0 0.0
  %2280 = vmatpush1.msra.mxu0 0.0
  %2281 = vmatprep.subr.mxu0 0.0
  %2282 = vmatpush1.msra.mxu0 0.0
  %2283 = vmatprep.subr.mxu0 0.0
  %2284 = vmatpush1.msra.mxu0 0.0
  %2285 = vmatprep.subr.mxu0 0.0
  %2286 = vmatpush1.msra.mxu0 0.0
  %2287 = vmatprep.subr.mxu0 0.0
  %2288 = vmatpush1.msra.mxu0 0.0
  %2289 = vmatprep.subr.mxu0 0.0
  %2290 = vmatpush1.msra.mxu0 0.0
  %2291 = vmatprep.subr.mxu0 0.0
  %2292 = vmatpush1.msra.mxu0 0.0
  %2293 = vmatprep.subr.mxu0 0.0
  %2294 = vmatpush1.msra.mxu0 0.0
  %2295 = vmatprep.subr.mxu0 0.0
  %2296 = vmatpush1.msra.mxu0 0.0
  %2297 = vmatprep.subr.mxu0 0.0
  %2298 = vmatpush1.msra.mxu0 0.0
  %2299 = vmatprep.subr.mxu0 0.0
  %2300 = vmatpush1.msra.mxu0 0.0
  %2301 = vmatprep.subr.mxu0 0.0
  %2302 = vmatpush1.msra.mxu0 0.0
  %2303 = vmatprep.subr.mxu0 0.0
  %2304 = vmatpush1.msra.mxu0 0.0
  %2305 = vmatprep.subr.mxu0 0.0
  %2306 = vmatpush1.msra.mxu0 0.0
  %2307 = vmatprep.subr.mxu0 0.0
  %2308 = vmatpush1.msra.mxu0 0.0
  %2309 = vmatprep.subr.mxu0 0.0
  %2310 = vmatpush1.msra.mxu0 0.0
  %2311 = vmatprep.subr.mxu0 0.0
  %2312 = vmatpush1.msra.mxu0 0.0
  %2313 = vmatprep.subr.mxu0 0.0
  %2314 = vmatpush1.msra.mxu0 0.0
  %2315 = vmatprep.subr.mxu0 0.0
  %2316 = vmatpush1.msra.mxu0 0.0
  %2317 = vmatprep.subr.mxu0 0.0
  %2318 = vmatpush1.msra.mxu0 0.0
  %2319 = vmatprep.subr.mxu0 0.0
  %2320 = vmatpush1.msra.mxu0 0.0
  %2321 = vmatprep.subr.mxu0 0.0
  %2322 = vmatpush1.msra.mxu0 0.0
  %2323 = vmatprep.subr.mxu0 0.0
  %2324 = vmatpush1.msra.mxu0 0.0
  %2325 = vmatprep.subr.mxu0 0.0
  %2326 = vmatpush1.msra.mxu0 0.0
  %2327 = vmatprep.subr.mxu0 0.0
  %2328 = vmatpush1.msra.mxu0 0.0
  %2329 = vmatprep.subr.mxu0 0.0
  %2330 = vmatpush1.msra.mxu0 0.0
  %2331 = vmatprep.subr.mxu0 0.0
  %2332 = vmatpush1.msra.mxu0 0.0
  %2333 = vmatprep.subr.mxu0 0.0
  %2334 = vmatpush1.msra.mxu0 0.0
  %2335 = vmatprep.subr.mxu0 0.0
  %2336 = vmatpush1.msra.mxu0 0.0
  %2337 = vmatprep.subr.mxu0 0.0
  %2338 = vmatpush1.msra.mxu0 0.0
  %2339 = vmatprep.mubr.f32.mxu0 0.0
  %v2340 = vand.u32 %v1958, 4294901760
  %2341 = vmatmul.mubr.f32.gmra.mrb[0].mxu0 %v2340
  %v2342 = vpop.f32.mrb[0].mxu0
  %v2343 = vadd.f32 %v2266, %v2342
  %v2344 = vpop.f32.mrb[0].mxu0
  %2345 = vdwg.mxu0
  %2346 = vmatprep.subr.mxu0 0.0
  %v2347 = vand.u32 %v14, 4294901760
  %2348 = vmatpush1.msra.mxu0 %v2347
  %2349 = vmatprep.subr.mxu0 0.0
  %v2350 = vand.u32 %v558, 4294901760
  %2351 = vmatpush1.msra.mxu0 %v2350
  %2352 = vmatprep.subr.mxu0 0.0
  %2353 = vmatpush1.msra.mxu0 0.0
  %2354 = vmatprep.subr.mxu0 0.0
  %2355 = vmatpush1.msra.mxu0 0.0
  %2356 = vmatprep.subr.mxu0 0.0
  %2357 = vmatpush1.msra.mxu0 0.0
  %2358 = vmatprep.subr.mxu0 0.0
  %2359 = vmatpush1.msra.mxu0 0.0
  %2360 = vmatprep.subr.mxu0 0.0
  %2361 = vmatpush1.msra.mxu0 0.0
  %2362 = vmatprep.subr.mxu0 0.0
  %2363 = vmatpush1.msra.mxu0 0.0
  %2364 = vmatprep.subr.mxu0 0.0
  %2365 = vmatpush1.msra.mxu0 0.0
  %2366 = vmatprep.subr.mxu0 0.0
  %2367 = vmatpush1.msra.mxu0 0.0
  %2368 = vmatprep.subr.mxu0 0.0
  %2369 = vmatpush1.msra.mxu0 0.0
  %2370 = vmatprep.subr.mxu0 0.0
  %2371 = vmatpush1.msra.mxu0 0.0
  %2372 = vmatprep.subr.mxu0 0.0
  %2373 = vmatpush1.msra.mxu0 0.0
  %2374 = vmatprep.subr.mxu0 0.0
  %2375 = vmatpush1.msra.mxu0 0.0
  %2376 = vmatprep.subr.mxu0 0.0
  %2377 = vmatpush1.msra.mxu0 0.0
  %2378 = vmatprep.subr.mxu0 0.0
  %2379 = vmatpush1.msra.mxu0 0.0
  %2380 = vmatprep.subr.mxu0 0.0
  %2381 = vmatpush1.msra.mxu0 0.0
  %2382 = vmatprep.subr.mxu0 0.0
  %2383 = vmatpush1.msra.mxu0 0.0
  %2384 = vmatprep.subr.mxu0 0.0
  %2385 = vmatpush1.msra.mxu0 0.0
  %2386 = vmatprep.subr.mxu0 0.0
  %2387 = vmatpush1.msra.mxu0 0.0
  %2388 = vmatprep.subr.mxu0 0.0
  %2389 = vmatpush1.msra.mxu0 0.0
  %2390 = vmatprep.subr.mxu0 0.0
  %2391 = vmatpush1.msra.mxu0 0.0
  %2392 = vmatprep.subr.mxu0 0.0
  %2393 = vmatpush1.msra.mxu0 0.0
  %2394 = vmatprep.subr.mxu0 0.0
  %2395 = vmatpush1.msra.mxu0 0.0
  %2396 = vmatprep.subr.mxu0 0.0
  %2397 = vmatpush1.msra.mxu0 0.0
  %2398 = vmatprep.subr.mxu0 0.0
  %2399 = vmatpush1.msra.mxu0 0.0
  %2400 = vmatprep.subr.mxu0 0.0
  %2401 = vmatpush1.msra.mxu0 0.0
  %2402 = vmatprep.subr.mxu0 0.0
  %2403 = vmatpush1.msra.mxu0 0.0
  %2404 = vmatprep.subr.mxu0 0.0
  %2405 = vmatpush1.msra.mxu0 0.0
  %2406 = vmatprep.subr.mxu0 0.0
  %2407 = vmatpush1.msra.mxu0 0.0
  %2408 = vmatprep.subr.mxu0 0.0
  %2409 = vmatpush1.msra.mxu0 0.0
  %2410 = vmatprep.subr.mxu0 0.0
  %2411 = vmatpush1.msra.mxu0 0.0
  %2412 = vmatprep.mubr.f32.mxu0 0.0
  %v2413 = vand.u32 %v1958, 4294901760
  %2414 = vmatmul.mubr.f32.gmra.mrb[0].mxu0 %v2413
  %v2415 = vpop.f32.mrb[0].mxu0
  %v2416 = vadd.f32 %v2343, %v2415
  %v2417 = vpop.f32.mrb[0].mxu0
  %2418 = vdwg.mxu0
  %v2420 = vrot.slane %v2416, 2
  %v2422 = vadd.f32 %v543, %v2420
  %v2423 = vtanh.pop %v2422
  %v2425 = vrot.slane %v2423, 6
  %v2426 = vsel %vm552, %v2425, 0
  %2428 = vmatprep.subr.mxu0 0.0
  %v2429 = vand.u32 %v14, 4294901760
  %2430 = vmatpush1.msra.mxu0 %v2429
  %2431 = vmatprep.subr.mxu0 0.0
  %v2432 = vand.u32 %v558, 4294901760
  %2433 = vmatpush1.msra.mxu0 %v2432
  %2434 = vmatprep.subr.mxu0 0.0
  %2435 = vmatpush1.msra.mxu0 0.0
  %2436 = vmatprep.subr.mxu0 0.0
  %2437 = vmatpush1.msra.mxu0 0.0
  %2438 = vmatprep.subr.mxu0 0.0
  %2439 = vmatpush1.msra.mxu0 0.0
  %2440 = vmatprep.subr.mxu0 0.0
  %2441 = vmatpush1.msra.mxu0 0.0
  %2442 = vmatprep.subr.mxu0 0.0
  %2443 = vmatpush1.msra.mxu0 0.0
  %2444 = vmatprep.subr.mxu0 0.0
  %2445 = vmatpush1.msra.mxu0 0.0
  %2446 = vmatprep.subr.mxu0 0.0
  %2447 = vmatpush1.msra.mxu0 0.0
  %2448 = vmatprep.subr.mxu0 0.0
  %2449 = vmatpush1.msra.mxu0 0.0
  %2450 = vmatprep.subr.mxu0 0.0
  %2451 = vmatpush1.msra.mxu0 0.0
  %2452 = vmatprep.subr.mxu0 0.0
  %2453 = vmatpush1.msra.mxu0 0.0
  %2454 = vmatprep.subr.mxu0 0.0
  %2455 = vmatpush1.msra.mxu0 0.0
  %2456 = vmatprep.subr.mxu0 0.0
  %2457 = vmatpush1.msra.mxu0 0.0
  %2458 = vmatprep.subr.mxu0 0.0
  %2459 = vmatpush1.msra.mxu0 0.0
  %2460 = vmatprep.subr.mxu0 0.0
  %2461 = vmatpush1.msra.mxu0 0.0
  %2462 = vmatprep.subr.mxu0 0.0
  %2463 = vmatpush1.msra.mxu0 0.0
  %2464 = vmatprep.subr.mxu0 0.0
  %2465 = vmatpush1.msra.mxu0 0.0
  %2466 = vmatprep.subr.mxu0 0.0
  %2467 = vmatpush1.msra.mxu0 0.0
  %2468 = vmatprep.subr.mxu0 0.0
  %2469 = vmatpush1.msra.mxu0 0.0
  %2470 = vmatprep.subr.mxu0 0.0
  %2471 = vmatpush1.msra.mxu0 0.0
  %2472 = vmatprep.subr.mxu0 0.0
  %2473 = vmatpush1.msra.mxu0 0.0
  %2474 = vmatprep.subr.mxu0 0.0
  %2475 = vmatpush1.msra.mxu0 0.0
  %2476 = vmatprep.subr.mxu0 0.0
  %2477 = vmatpush1.msra.mxu0 0.0
  %2478 = vmatprep.subr.mxu0 0.0
  %2479 = vmatpush1.msra.mxu0 0.0
  %2480 = vmatprep.subr.mxu0 0.0
  %2481 = vmatpush1.msra.mxu0 0.0
  %2482 = vmatprep.subr.mxu0 0.0
  %2483 = vmatpush1.msra.mxu0 0.0
  %2484 = vmatprep.subr.mxu0 0.0
  %2485 = vmatpush1.msra.mxu0 0.0
  %2486 = vmatprep.subr.mxu0 0.0
  %2487 = vmatpush1.msra.mxu0 0.0
  %2488 = vmatprep.subr.mxu0 0.0
  %2489 = vmatpush1.msra.mxu0 0.0
  %2490 = vmatprep.subr.mxu0 0.0
  %2491 = vmatpush1.msra.mxu0 0.0
  %2492 = vmatprep.subr.mxu0 0.0
  %2493 = vmatpush1.msra.mxu0 0.0
  %2494 = vmatprep.mubr.f32.mxu0 0.0
  %v2495 = vand.u32 %v2426, 4294901760
  %v2496 = vsub.f32 %v2426, %v2495
  %v2497 = vand.u32 %v2496, 4294901760
  %v2498 = vsub.f32 %v2496, %v2497
  %v2499 = vand.u32 %v2498, 4294901760
  %2500 = vmatmul.mubr.f32.gmra.mrb[0].mxu0 %v2499
  %v2501 = vpop.f32.mrb[0].mxu0
  %v2502 = vadd.f32 0.0, %v2501
  %v2503 = vpop.f32.mrb[0].mxu0
  %2504 = vdwg.mxu0
  %2505 = vmatprep.subr.mxu0 0.0
  %v2506 = vand.u32 %v14, 4294901760
  %v2507 = vsub.f32 %v14, %v2506
  %v2508 = vand.u32 %v2507, 4294901760
  %v2509 = vsub.f32 %v2507, %v2508
  %v2510 = vand.u32 %v2509, 4294901760
  %2511 = vmatpush1.msra.mxu0 %v2510
  %2512 = vmatprep.subr.mxu0 0.0
  %v2513 = vand.u32 %v558, 4294901760
  %v2514 = vsub.f32 %v558, %v2513
  %v2515 = vand.u32 %v2514, 4294901760
  %v2516 = vsub.f32 %v2514, %v2515
  %v2517 = vand.u32 %v2516, 4294901760
  %2518 = vmatpush1.msra.mxu0 %v2517
  %2519 = vmatprep.subr.mxu0 0.0
  %2520 = vmatpush1.msra.mxu0 0.0
  %2521 = vmatprep.subr.mxu0 0.0
  %2522 = vmatpush1.msra.mxu0 0.0
  %2523 = vmatprep.subr.mxu0 0.0
  %2524 = vmatpush1.msra.mxu0 0.0
  %2525 = vmatprep.subr.mxu0 0.0
  %2526 = vmatpush1.msra.mxu0 0.0
  %2527 = vmatprep.subr.mxu0 0.0
  %2528 = vmatpush1.msra.mxu0 0.0
  %2529 = vmatprep.subr.mxu0 0.0
  %2530 = vmatpush1.msra.mxu0 0.0
  %2531 = vmatprep.subr.mxu0 0.0
  %2532 = vmatpush1.msra.mxu0 0.0
  %2533 = vmatprep.subr.mxu0 0.0
  %2534 = vmatpush1.msra.mxu0 0.0
  %2535 = vmatprep.subr.mxu0 0.0
  %2536 = vmatpush1.msra.mxu0 0.0
  %2537 = vmatprep.subr.mxu0 0.0
  %2538 = vmatpush1.msra.mxu0 0.0
  %2539 = vmatprep.subr.mxu0 0.0
  %2540 = vmatpush1.msra.mxu0 0.0
  %2541 = vmatprep.subr.mxu0 0.0
  %2542 = vmatpush1.msra.mxu0 0.0
  %2543 = vmatprep.subr.mxu0 0.0
  %2544 = vmatpush1.msra.mxu0 0.0
  %2545 = vmatprep.subr.mxu0 0.0
  %2546 = vmatpush1.msra.mxu0 0.0
  %2547 = vmatprep.subr.mxu0 0.0
  %2548 = vmatpush1.msra.mxu0 0.0
  %2549 = vmatprep.subr.mxu0 0.0
  %2550 = vmatpush1.msra.mxu0 0.0
  %2551 = vmatprep.subr.mxu0 0.0
  %2552 = vmatpush1.msra.mxu0 0.0
  %2553 = vmatprep.subr.mxu0 0.0
  %2554 = vmatpush1.msra.mxu0 0.0
  %2555 = vmatprep.subr.mxu0 0.0
  %2556 = vmatpush1.msra.mxu0 0.0
  %2557 = vmatprep.subr.mxu0 0.0
  %2558 = vmatpush1.msra.mxu0 0.0
  %2559 = vmatprep.subr.mxu0 0.0
  %2560 = vmatpush1.msra.mxu0 0.0
  %2561 = vmatprep.subr.mxu0 0.0
  %2562 = vmatpush1.msra.mxu0 0.0
  %2563 = vmatprep.subr.mxu0 0.0
  %2564 = vmatpush1.msra.mxu0 0.0
  %2565 = vmatprep.subr.mxu0 0.0
  %2566 = vmatpush1.msra.mxu0 0.0
  %2567 = vmatprep.subr.mxu0 0.0
  %2568 = vmatpush1.msra.mxu0 0.0
  %2569 = vmatprep.subr.mxu0 0.0
  %2570 = vmatpush1.msra.mxu0 0.0
  %2571 = vmatprep.subr.mxu0 0.0
  %2572 = vmatpush1.msra.mxu0 0.0
  %2573 = vmatprep.subr.mxu0 0.0
  %2574 = vmatpush1.msra.mxu0 0.0
  %2575 = vmatprep.subr.mxu0 0.0
  %2576 = vmatpush1.msra.mxu0 0.0
  %2577 = vmatprep.subr.mxu0 0.0
  %2578 = vmatpush1.msra.mxu0 0.0
  %2579 = vmatprep.mubr.f32.mxu0 0.0
  %v2580 = vand.u32 %v2426, 4294901760
  %2581 = vmatmul.mubr.f32.gmra.mrb[0].mxu0 %v2580
  %v2582 = vpop.f32.mrb[0].mxu0
  %v2583 = vadd.f32 %v2502, %v2582
  %v2584 = vpop.f32.mrb[0].mxu0
  %2585 = vdwg.mxu0
  %2586 = vmatprep.subr.mxu0 0.0
  %v2587 = vand.u32 %v14, 4294901760
  %v2588 = vsub.f32 %v14, %v2587
  %2589 = vmatpush1.msra.mxu0 %v2588
  %2590 = vmatprep.subr.mxu0 0.0
  %v2591 = vand.u32 %v558, 4294901760
  %v2592 = vsub.f32 %v558, %v2591
  %2593 = vmatpush1.msra.mxu0 %v2592
  %2594 = vmatprep.subr.mxu0 0.0
  %2595 = vmatpush1.msra.mxu0 0.0
  %2596 = vmatprep.subr.mxu0 0.0
  %2597 = vmatpush1.msra.mxu0 0.0
  %2598 = vmatprep.subr.mxu0 0.0
  %2599 = vmatpush1.msra.mxu0 0.0
  %2600 = vmatprep.subr.mxu0 0.0
  %2601 = vmatpush1.msra.mxu0 0.0
  %2602 = vmatprep.subr.mxu0 0.0
  %2603 = vmatpush1.msra.mxu0 0.0
  %2604 = vmatprep.subr.mxu0 0.0
  %2605 = vmatpush1.msra.mxu0 0.0
  %2606 = vmatprep.subr.mxu0 0.0
  %2607 = vmatpush1.msra.mxu0 0.0
  %2608 = vmatprep.subr.mxu0 0.0
  %2609 = vmatpush1.msra.mxu0 0.0
  %2610 = vmatprep.subr.mxu0 0.0
  %2611 = vmatpush1.msra.mxu0 0.0
  %2612 = vmatprep.subr.mxu0 0.0
  %2613 = vmatpush1.msra.mxu0 0.0
  %2614 = vmatprep.subr.mxu0 0.0
  %2615 = vmatpush1.msra.mxu0 0.0
  %2616 = vmatprep.subr.mxu0 0.0
  %2617 = vmatpush1.msra.mxu0 0.0
  %2618 = vmatprep.subr.mxu0 0.0
  %2619 = vmatpush1.msra.mxu0 0.0
  %2620 = vmatprep.subr.mxu0 0.0
  %2621 = vmatpush1.msra.mxu0 0.0
  %2622 = vmatprep.subr.mxu0 0.0
  %2623 = vmatpush1.msra.mxu0 0.0
  %2624 = vmatprep.subr.mxu0 0.0
  %2625 = vmatpush1.msra.mxu0 0.0
  %2626 = vmatprep.subr.mxu0 0.0
  %2627 = vmatpush1.msra.mxu0 0.0
  %2628 = vmatprep.subr.mxu0 0.0
  %2629 = vmatpush1.msra.mxu0 0.0
  %2630 = vmatprep.subr.mxu0 0.0
  %2631 = vmatpush1.msra.mxu0 0.0
  %2632 = vmatprep.subr.mxu0 0.0
  %2633 = vmatpush1.msra.mxu0 0.0
  %2634 = vmatprep.subr.mxu0 0.0
  %2635 = vmatpush1.msra.mxu0 0.0
  %2636 = vmatprep.subr.mxu0 0.0
  %2637 = vmatpush1.msra.mxu0 0.0
  %2638 = vmatprep.subr.mxu0 0.0
  %2639 = vmatpush1.msra.mxu0 0.0
  %2640 = vmatprep.subr.mxu0 0.0
  %2641 = vmatpush1.msra.mxu0 0.0
  %2642 = vmatprep.subr.mxu0 0.0
  %2643 = vmatpush1.msra.mxu0 0.0
  %2644 = vmatprep.subr.mxu0 0.0
  %2645 = vmatpush1.msra.mxu0 0.0
  %2646 = vmatprep.subr.mxu0 0.0
  %2647 = vmatpush1.msra.mxu0 0.0
  %2648 = vmatprep.subr.mxu0 0.0
  %2649 = vmatpush1.msra.mxu0 0.0
  %2650 = vmatprep.subr.mxu0 0.0
  %2651 = vmatpush1.msra.mxu0 0.0
  %2652 = vmatprep.subr.mxu0 0.0
  %2653 = vmatpush1.msra.mxu0 0.0
  %2654 = vmatprep.mubr.f32.mxu0 0.0
  %v2655 = vand.u32 %v2426, 4294901760
  %v2656 = vsub.f32 %v2426, %v2655
  %2657 = vmatmul.mubr.f32.gmra.mrb[0].mxu0 %v2656
  %v2658 = vpop.f32.mrb[0].mxu0
  %v2659 = vadd.f32 %v2583, %v2658
  %v2660 = vpop.f32.mrb[0].mxu0
  %2661 = vdwg.mxu0
  %2662 = vmatprep.subr.mxu0 0.0
  %v2663 = vand.u32 %v14, 4294901760
  %2664 = vmatpush1.msra.mxu0 %v2663
  %2665 = vmatprep.subr.mxu0 0.0
  %v2666 = vand.u32 %v558, 4294901760
  %2667 = vmatpush1.msra.mxu0 %v2666
  %2668 = vmatprep.subr.mxu0 0.0
  %2669 = vmatpush1.msra.mxu0 0.0
  %2670 = vmatprep.subr.mxu0 0.0
  %2671 = vmatpush1.msra.mxu0 0.0
  %2672 = vmatprep.subr.mxu0 0.0
  %2673 = vmatpush1.msra.mxu0 0.0
  %2674 = vmatprep.subr.mxu0 0.0
  %2675 = vmatpush1.msra.mxu0 0.0
  %2676 = vmatprep.subr.mxu0 0.0
  %2677 = vmatpush1.msra.mxu0 0.0
  %2678 = vmatprep.subr.mxu0 0.0
  %2679 = vmatpush1.msra.mxu0 0.0
  %2680 = vmatprep.subr.mxu0 0.0
  %2681 = vmatpush1.msra.mxu0 0.0
  %2682 = vmatprep.subr.mxu0 0.0
  %2683 = vmatpush1.msra.mxu0 0.0
  %2684 = vmatprep.subr.mxu0 0.0
  %2685 = vmatpush1.msra.mxu0 0.0
  %2686 = vmatprep.subr.mxu0 0.0
  %2687 = vmatpush1.msra.mxu0 0.0
  %2688 = vmatprep.subr.mxu0 0.0
  %2689 = vmatpush1.msra.mxu0 0.0
  %2690 = vmatprep.subr.mxu0 0.0
  %2691 = vmatpush1.msra.mxu0 0.0
  %2692 = vmatprep.subr.mxu0 0.0
  %2693 = vmatpush1.msra.mxu0 0.0
  %2694 = vmatprep.subr.mxu0 0.0
  %2695 = vmatpush1.msra.mxu0 0.0
  %2696 = vmatprep.subr.mxu0 0.0
  %2697 = vmatpush1.msra.mxu0 0.0
  %2698 = vmatprep.subr.mxu0 0.0
  %2699 = vmatpush1.msra.mxu0 0.0
  %2700 = vmatprep.subr.mxu0 0.0
  %2701 = vmatpush1.msra.mxu0 0.0
  %2702 = vmatprep.subr.mxu0 0.0
  %2703 = vmatpush1.msra.mxu0 0.0
  %2704 = vmatprep.subr.mxu0 0.0
  %2705 = vmatpush1.msra.mxu0 0.0
  %2706 = vmatprep.subr.mxu0 0.0
  %2707 = vmatpush1.msra.mxu0 0.0
  %2708 = vmatprep.subr.mxu0 0.0
  %2709 = vmatpush1.msra.mxu0 0.0
  %2710 = vmatprep.subr.mxu0 0.0
  %2711 = vmatpush1.msra.mxu0 0.0
  %2712 = vmatprep.subr.mxu0 0.0
  %2713 = vmatpush1.msra.mxu0 0.0
  %2714 = vmatprep.subr.mxu0 0.0
  %2715 = vmatpush1.msra.mxu0 0.0
  %2716 = vmatprep.subr.mxu0 0.0
  %2717 = vmatpush1.msra.mxu0 0.0
  %2718 = vmatprep.subr.mxu0 0.0
  %2719 = vmatpush1.msra.mxu0 0.0
  %2720 = vmatprep.subr.mxu0 0.0
  %2721 = vmatpush1.msra.mxu0 0.0
  %2722 = vmatprep.subr.mxu0 0.0
  %2723 = vmatpush1.msra.mxu0 0.0
  %2724 = vmatprep.subr.mxu0 0.0
  %2725 = vmatpush1.msra.mxu0 0.0
  %2726 = vmatprep.subr.mxu0 0.0
  %2727 = vmatpush1.msra.mxu0 0.0
  %2728 = vmatprep.mubr.f32.mxu0 0.0
  %v2729 = vand.u32 %v2426, 4294901760
  %v2730 = vsub.f32 %v2426, %v2729
  %v2731 = vand.u32 %v2730, 4294901760
  %2732 = vmatmul.mubr.f32.gmra.mrb[0].mxu0 %v2731
  %v2733 = vpop.f32.mrb[0].mxu0
  %v2734 = vadd.f32 %v2659, %v2733
  %v2735 = vpop.f32.mrb[0].mxu0
  %2736 = vdwg.mxu0
  %2737 = vmatprep.subr.mxu0 0.0
  %v2738 = vand.u32 %v14, 4294901760
  %v2739 = vsub.f32 %v14, %v2738
  %v2740 = vand.u32 %v2739, 4294901760
  %2741 = vmatpush1.msra.mxu0 %v2740
  %2742 = vmatprep.subr.mxu0 0.0
  %v2743 = vand.u32 %v558, 4294901760
  %v2744 = vsub.f32 %v558, %v2743
  %v2745 = vand.u32 %v2744, 4294901760
  %2746 = vmatpush1.msra.mxu0 %v2745
  %2747 = vmatprep.subr.mxu0 0.0
  %2748 = vmatpush1.msra.mxu0 0.0
  %2749 = vmatprep.subr.mxu0 0.0
  %2750 = vmatpush1.msra.mxu0 0.0
  %2751 = vmatprep.subr.mxu0 0.0
  %2752 = vmatpush1.msra.mxu0 0.0
  %2753 = vmatprep.subr.mxu0 0.0
  %2754 = vmatpush1.msra.mxu0 0.0
  %2755 = vmatprep.subr.mxu0 0.0
  %2756 = vmatpush1.msra.mxu0 0.0
  %2757 = vmatprep.subr.mxu0 0.0
  %2758 = vmatpush1.msra.mxu0 0.0
  %2759 = vmatprep.subr.mxu0 0.0
  %2760 = vmatpush1.msra.mxu0 0.0
  %2761 = vmatprep.subr.mxu0 0.0
  %2762 = vmatpush1.msra.mxu0 0.0
  %2763 = vmatprep.subr.mxu0 0.0
  %2764 = vmatpush1.msra.mxu0 0.0
  %2765 = vmatprep.subr.mxu0 0.0
  %2766 = vmatpush1.msra.mxu0 0.0
  %2767 = vmatprep.subr.mxu0 0.0
  %2768 = vmatpush1.msra.mxu0 0.0
  %2769 = vmatprep.subr.mxu0 0.0
  %2770 = vmatpush1.msra.mxu0 0.0
  %2771 = vmatprep.subr.mxu0 0.0
  %2772 = vmatpush1.msra.mxu0 0.0
  %2773 = vmatprep.subr.mxu0 0.0
  %2774 = vmatpush1.msra.mxu0 0.0
  %2775 = vmatprep.subr.mxu0 0.0
  %2776 = vmatpush1.msra.mxu0 0.0
  %2777 = vmatprep.subr.mxu0 0.0
  %2778 = vmatpush1.msra.mxu0 0.0
  %2779 = vmatprep.subr.mxu0 0.0
  %2780 = vmatpush1.msra.mxu0 0.0
  %2781 = vmatprep.subr.mxu0 0.0
  %2782 = vmatpush1.msra.mxu0 0.0
  %2783 = vmatprep.subr.mxu0 0.0
  %2784 = vmatpush1.msra.mxu0 0.0
  %2785 = vmatprep.subr.mxu0 0.0
  %2786 = vmatpush1.msra.mxu0 0.0
  %2787 = vmatprep.subr.mxu0 0.0
  %2788 = vmatpush1.msra.mxu0 0.0
  %2789 = vmatprep.subr.mxu0 0.0
  %2790 = vmatpush1.msra.mxu0 0.0
  %2791 = vmatprep.subr.mxu0 0.0
  %2792 = vmatpush1.msra.mxu0 0.0
  %2793 = vmatprep.subr.mxu0 0.0
  %2794 = vmatpush1.msra.mxu0 0.0
  %2795 = vmatprep.subr.mxu0 0.0
  %2796 = vmatpush1.msra.mxu0 0.0
  %2797 = vmatprep.subr.mxu0 0.0
  %2798 = vmatpush1.msra.mxu0 0.0
  %2799 = vmatprep.subr.mxu0 0.0
  %2800 = vmatpush1.msra.mxu0 0.0
  %2801 = vmatprep.subr.mxu0 0.0
  %2802 = vmatpush1.msra.mxu0 0.0
  %2803 = vmatprep.subr.mxu0 0.0
  %2804 = vmatpush1.msra.mxu0 0.0
  %2805 = vmatprep.subr.mxu0 0.0
  %2806 = vmatpush1.msra.mxu0 0.0
  %2807 = vmatprep.mubr.f32.mxu0 0.0
  %v2808 = vand.u32 %v2426, 4294901760
  %2809 = vmatmul.mubr.f32.gmra.mrb[0].mxu0 %v2808
  %v2810 = vpop.f32.mrb[0].mxu0
  %v2811 = vadd.f32 %v2734, %v2810
  %v2812 = vpop.f32.mrb[0].mxu0
  %2813 = vdwg.mxu0
  %2814 = vmatprep.subr.mxu0 0.0
  %v2815 = vand.u32 %v14, 4294901760
  %2816 = vmatpush1.msra.mxu0 %v2815
  %2817 = vmatprep.subr.mxu0 0.0
  %v2818 = vand.u32 %v558, 4294901760
  %2819 = vmatpush1.msra.mxu0 %v2818
  %2820 = vmatprep.subr.mxu0 0.0
  %2821 = vmatpush1.msra.mxu0 0.0
  %2822 = vmatprep.subr.mxu0 0.0
  %2823 = vmatpush1.msra.mxu0 0.0
  %2824 = vmatprep.subr.mxu0 0.0
  %2825 = vmatpush1.msra.mxu0 0.0
  %2826 = vmatprep.subr.mxu0 0.0
  %2827 = vmatpush1.msra.mxu0 0.0
  %2828 = vmatprep.subr.mxu0 0.0
  %2829 = vmatpush1.msra.mxu0 0.0
  %2830 = vmatprep.subr.mxu0 0.0
  %2831 = vmatpush1.msra.mxu0 0.0
  %2832 = vmatprep.subr.mxu0 0.0
  %2833 = vmatpush1.msra.mxu0 0.0
  %2834 = vmatprep.subr.mxu0 0.0
  %2835 = vmatpush1.msra.mxu0 0.0
  %2836 = vmatprep.subr.mxu0 0.0
  %2837 = vmatpush1.msra.mxu0 0.0
  %2838 = vmatprep.subr.mxu0 0.0
  %2839 = vmatpush1.msra.mxu0 0.0
  %2840 = vmatprep.subr.mxu0 0.0
  %2841 = vmatpush1.msra.mxu0 0.0
  %2842 = vmatprep.subr.mxu0 0.0
  %2843 = vmatpush1.msra.mxu0 0.0
  %2844 = vmatprep.subr.mxu0 0.0
  %2845 = vmatpush1.msra.mxu0 0.0
  %2846 = vmatprep.subr.mxu0 0.0
  %2847 = vmatpush1.msra.mxu0 0.0
  %2848 = vmatprep.subr.mxu0 0.0
  %2849 = vmatpush1.msra.mxu0 0.0
  %2850 = vmatprep.subr.mxu0 0.0
  %2851 = vmatpush1.msra.mxu0 0.0
  %2852 = vmatprep.subr.mxu0 0.0
  %2853 = vmatpush1.msra.mxu0 0.0
  %2854 = vmatprep.subr.mxu0 0.0
  %2855 = vmatpush1.msra.mxu0 0.0
  %2856 = vmatprep.subr.mxu0 0.0
  %2857 = vmatpush1.msra.mxu0 0.0
  %2858 = vmatprep.subr.mxu0 0.0
  %2859 = vmatpush1.msra.mxu0 0.0
  %2860 = vmatprep.subr.mxu0 0.0
  %2861 = vmatpush1.msra.mxu0 0.0
  %2862 = vmatprep.subr.mxu0 0.0
  %2863 = vmatpush1.msra.mxu0 0.0
  %2864 = vmatprep.subr.mxu0 0.0
  %2865 = vmatpush1.msra.mxu0 0.0
  %2866 = vmatprep.subr.mxu0 0.0
  %2867 = vmatpush1.msra.mxu0 0.0
  %2868 = vmatprep.subr.mxu0 0.0
  %2869 = vmatpush1.msra.mxu0 0.0
  %2870 = vmatprep.subr.mxu0 0.0
  %2871 = vmatpush1.msra.mxu0 0.0
  %2872 = vmatprep.subr.mxu0 0.0
  %2873 = vmatpush1.msra.mxu0 0.0
  %2874 = vmatprep.subr.mxu0 0.0
  %2875 = vmatpush1.msra.mxu0 0.0
  %2876 = vmatprep.subr.mxu0 0.0
  %2877 = vmatpush1.msra.mxu0 0.0
  %2878 = vmatprep.subr.mxu0 0.0
  %2879 = vmatpush1.msra.mxu0 0.0
  %2880 = vmatprep.mubr.f32.mxu0 0.0
  %v2881 = vand.u32 %v2426, 4294901760
  %2882 = vmatmul.mubr.f32.gmra.mrb[0].mxu0 %v2881
  %v2883 = vpop.f32.mrb[0].mxu0
  %v2884 = vadd.f32 %v2811, %v2883
  %v2885 = vpop.f32.mrb[0].mxu0
  %2886 = vdwg.mxu0
  %v2887 = vadd.f32 %v549, %v2884
  %v2888 = vtanh.pop %v2887
  %v2890 = vsel %vm552, %v2888, 0
  %2892 = vmatprep.subr.mxu0 0.0
  %v2893 = vand.u32 %v14, 4294901760
  %2894 = vmatpush1.msra.mxu0 %v2893
  %2895 = vmatprep.subr.mxu0 0.0
  %v2896 = vand.u32 %v558, 4294901760
  %2897 = vmatpush1.msra.mxu0 %v2896
  %2898 = vmatprep.subr.mxu0 0.0
  %2899 = vmatpush1.msra.mxu0 0.0
  %2900 = vmatprep.subr.mxu0 0.0
  %2901 = vmatpush1.msra.mxu0 0.0
  %2902 = vmatprep.subr.mxu0 0.0
  %2903 = vmatpush1.msra.mxu0 0.0
  %2904 = vmatprep.subr.mxu0 0.0
  %2905 = vmatpush1.msra.mxu0 0.0
  %2906 = vmatprep.subr.mxu0 0.0
  %2907 = vmatpush1.msra.mxu0 0.0
  %2908 = vmatprep.subr.mxu0 0.0
  %2909 = vmatpush1.msra.mxu0 0.0
  %2910 = vmatprep.subr.mxu0 0.0
  %2911 = vmatpush1.msra.mxu0 0.0
  %2912 = vmatprep.subr.mxu0 0.0
  %2913 = vmatpush1.msra.mxu0 0.0
  %2914 = vmatprep.subr.mxu0 0.0
  %2915 = vmatpush1.msra.mxu0 0.0
  %2916 = vmatprep.subr.mxu0 0.0
  %2917 = vmatpush1.msra.mxu0 0.0
  %2918 = vmatprep.subr.mxu0 0.0
  %2919 = vmatpush1.msra.mxu0 0.0
  %2920 = vmatprep.subr.mxu0 0.0
  %2921 = vmatpush1.msra.mxu0 0.0
  %2922 = vmatprep.subr.mxu0 0.0
  %2923 = vmatpush1.msra.mxu0 0.0
  %2924 = vmatprep.subr.mxu0 0.0
  %2925 = vmatpush1.msra.mxu0 0.0
  %2926 = vmatprep.subr.mxu0 0.0
  %2927 = vmatpush1.msra.mxu0 0.0
  %2928 = vmatprep.subr.mxu0 0.0
  %2929 = vmatpush1.msra.mxu0 0.0
  %2930 = vmatprep.subr.mxu0 0.0
  %2931 = vmatpush1.msra.mxu0 0.0
  %2932 = vmatprep.subr.mxu0 0.0
  %2933 = vmatpush1.msra.mxu0 0.0
  %2934 = vmatprep.subr.mxu0 0.0
  %2935 = vmatpush1.msra.mxu0 0.0
  %2936 = vmatprep.subr.mxu0 0.0
  %2937 = vmatpush1.msra.mxu0 0.0
  %2938 = vmatprep.subr.mxu0 0.0
  %2939 = vmatpush1.msra.mxu0 0.0
  %2940 = vmatprep.subr.mxu0 0.0
  %2941 = vmatpush1.msra.mxu0 0.0
  %2942 = vmatprep.subr.mxu0 0.0
  %2943 = vmatpush1.msra.mxu0 0.0
  %2944 = vmatprep.subr.mxu0 0.0
  %2945 = vmatpush1.msra.mxu0 0.0
  %2946 = vmatprep.subr.mxu0 0.0
  %2947 = vmatpush1.msra.mxu0 0.0
  %2948 = vmatprep.subr.mxu0 0.0
  %2949 = vmatpush1.msra.mxu0 0.0
  %2950 = vmatprep.subr.mxu0 0.0
  %2951 = vmatpush1.msra.mxu0 0.0
  %2952 = vmatprep.subr.mxu0 0.0
  %2953 = vmatpush1.msra.mxu0 0.0
  %2954 = vmatprep.subr.mxu0 0.0
  %2955 = vmatpush1.msra.mxu0 0.0
  %2956 = vmatprep.subr.mxu0 0.0
  %2957 = vmatpush1.msra.mxu0 0.0
  %2958 = vmatprep.mubr.f32.mxu0 0.0
  %v2959 = vand.u32 %v2890, 4294901760
  %v2960 = vsub.f32 %v2890, %v2959
  %v2961 = vand.u32 %v2960, 4294901760
  %v2962 = vsub.f32 %v2960, %v2961
  %v2963 = vand.u32 %v2962, 4294901760
  %2964 = vmatmul.mubr.f32.gmra.mrb[0].mxu0 %v2963
  %v2965 = vpop.f32.mrb[0].mxu0
  %v2966 = vadd.f32 0.0, %v2965
  %v2967 = vpop.f32.mrb[0].mxu0
  %2968 = vdwg.mxu0
  %2969 = vmatprep.subr.mxu0 0.0
  %v2970 = vand.u32 %v14, 4294901760
  %v2971 = vsub.f32 %v14, %v2970
  %v2972 = vand.u32 %v2971, 4294901760
  %v2973 = vsub.f32 %v2971, %v2972
  %v2974 = vand.u32 %v2973, 4294901760
  %2975 = vmatpush1.msra.mxu0 %v2974
  %2976 = vmatprep.subr.mxu0 0.0
  %v2977 = vand.u32 %v558, 4294901760
  %v2978 = vsub.f32 %v558, %v2977
  %v2979 = vand.u32 %v2978, 4294901760
  %v2980 = vsub.f32 %v2978, %v2979
  %v2981 = vand.u32 %v2980, 4294901760
  %2982 = vmatpush1.msra.mxu0 %v2981
  %2983 = vmatprep.subr.mxu0 0.0
  %2984 = vmatpush1.msra.mxu0 0.0
  %2985 = vmatprep.subr.mxu0 0.0
  %2986 = vmatpush1.msra.mxu0 0.0
  %2987 = vmatprep.subr.mxu0 0.0
  %2988 = vmatpush1.msra.mxu0 0.0
  %2989 = vmatprep.subr.mxu0 0.0
  %2990 = vmatpush1.msra.mxu0 0.0
  %2991 = vmatprep.subr.mxu0 0.0
  %2992 = vmatpush1.msra.mxu0 0.0
  %2993 = vmatprep.subr.mxu0 0.0
  %2994 = vmatpush1.msra.mxu0 0.0
  %2995 = vmatprep.subr.mxu0 0.0
  %2996 = vmatpush1.msra.mxu0 0.0
  %2997 = vmatprep.subr.mxu0 0.0
  %2998 = vmatpush1.msra.mxu0 0.0
  %2999 = vmatprep.subr.mxu0 0.0
  %3000 = vmatpush1.msra.mxu0 0.0
  %3001 = vmatprep.subr.mxu0 0.0
  %3002 = vmatpush1.msra.mxu0 0.0
  %3003 = vmatprep.subr.mxu0 0.0
  %3004 = vmatpush1.msra.mxu0 0.0
  %3005 = vmatprep.subr.mxu0 0.0
  %3006 = vmatpush1.msra.mxu0 0.0
  %3007 = vmatprep.subr.mxu0 0.0
  %3008 = vmatpush1.msra.mxu0 0.0
  %3009 = vmatprep.subr.mxu0 0.0
  %3010 = vmatpush1.msra.mxu0 0.0
  %3011 = vmatprep.subr.mxu0 0.0
  %3012 = vmatpush1.msra.mxu0 0.0
  %3013 = vmatprep.subr.mxu0 0.0
  %3014 = vmatpush1.msra.mxu0 0.0
  %3015 = vmatprep.subr.mxu0 0.0
  %3016 = vmatpush1.msra.mxu0 0.0
  %3017 = vmatprep.subr.mxu0 0.0
  %3018 = vmatpush1.msra.mxu0 0.0
  %3019 = vmatprep.subr.mxu0 0.0
  %3020 = vmatpush1.msra.mxu0 0.0
  %3021 = vmatprep.subr.mxu0 0.0
  %3022 = vmatpush1.msra.mxu0 0.0
  %3023 = vmatprep.subr.mxu0 0.0
  %3024 = vmatpush1.msra.mxu0 0.0
  %3025 = vmatprep.subr.mxu0 0.0
  %3026 = vmatpush1.msra.mxu0 0.0
  %3027 = vmatprep.subr.mxu0 0.0
  %3028 = vmatpush1.msra.mxu0 0.0
  %3029 = vmatprep.subr.mxu0 0.0
  %3030 = vmatpush1.msra.mxu0 0.0
  %3031 = vmatprep.subr.mxu0 0.0
  %3032 = vmatpush1.msra.mxu0 0.0
  %3033 = vmatprep.subr.mxu0 0.0
  %3034 = vmatpush1.msra.mxu0 0.0
  %3035 = vmatprep.subr.mxu0 0.0
  %3036 = vmatpush1.msra.mxu0 0.0
  %3037 = vmatprep.subr.mxu0 0.0
  %3038 = vmatpush1.msra.mxu0 0.0
  %3039 = vmatprep.subr.mxu0 0.0
  %3040 = vmatpush1.msra.mxu0 0.0
  %3041 = vmatprep.subr.mxu0 0.0
  %3042 = vmatpush1.msra.mxu0 0.0
  %3043 = vmatprep.mubr.f32.mxu0 0.0
  %v3044 = vand.u32 %v2890, 4294901760
  %3045 = vmatmul.mubr.f32.gmra.mrb[0].mxu0 %v3044
  %v3046 = vpop.f32.mrb[0].mxu0
  %v3047 = vadd.f32 %v2966, %v3046
  %v3048 = vpop.f32.mrb[0].mxu0
  %3049 = vdwg.mxu0
  %3050 = vmatprep.subr.mxu0 0.0
  %v3051 = vand.u32 %v14, 4294901760
  %v3052 = vsub.f32 %v14, %v3051
  %3053 = vmatpush1.msra.mxu0 %v3052
  %3054 = vmatprep.subr.mxu0 0.0
  %v3055 = vand.u32 %v558, 4294901760
  %v3056 = vsub.f32 %v558, %v3055
  %3057 = vmatpush1.msra.mxu0 %v3056
  %3058 = vmatprep.subr.mxu0 0.0
  %3059 = vmatpush1.msra.mxu0 0.0
  %3060 = vmatprep.subr.mxu0 0.0
  %3061 = vmatpush1.msra.mxu0 0.0
  %3062 = vmatprep.subr.mxu0 0.0
  %3063 = vmatpush1.msra.mxu0 0.0
  %3064 = vmatprep.subr.mxu0 0.0
  %3065 = vmatpush1.msra.mxu0 0.0
  %3066 = vmatprep.subr.mxu0 0.0
  %3067 = vmatpush1.msra.mxu0 0.0
  %3068 = vmatprep.subr.mxu0 0.0
  %3069 = vmatpush1.msra.mxu0 0.0
  %3070 = vmatprep.subr.mxu0 0.0
  %3071 = vmatpush1.msra.mxu0 0.0
  %3072 = vmatprep.subr.mxu0 0.0
  %3073 = vmatpush1.msra.mxu0 0.0
  %3074 = vmatprep.subr.mxu0 0.0
  %3075 = vmatpush1.msra.mxu0 0.0
  %3076 = vmatprep.subr.mxu0 0.0
  %3077 = vmatpush1.msra.mxu0 0.0
  %3078 = vmatprep.subr.mxu0 0.0
  %3079 = vmatpush1.msra.mxu0 0.0
  %3080 = vmatprep.subr.mxu0 0.0
  %3081 = vmatpush1.msra.mxu0 0.0
  %3082 = vmatprep.subr.mxu0 0.0
  %3083 = vmatpush1.msra.mxu0 0.0
  %3084 = vmatprep.subr.mxu0 0.0
  %3085 = vmatpush1.msra.mxu0 0.0
  %3086 = vmatprep.subr.mxu0 0.0
  %3087 = vmatpush1.msra.mxu0 0.0
  %3088 = vmatprep.subr.mxu0 0.0
  %3089 = vmatpush1.msra.mxu0 0.0
  %3090 = vmatprep.subr.mxu0 0.0
  %3091 = vmatpush1.msra.mxu0 0.0
  %3092 = vmatprep.subr.mxu0 0.0
  %3093 = vmatpush1.msra.mxu0 0.0
  %3094 = vmatprep.subr.mxu0 0.0
  %3095 = vmatpush1.msra.mxu0 0.0
  %3096 = vmatprep.subr.mxu0 0.0
  %3097 = vmatpush1.msra.mxu0 0.0
  %3098 = vmatprep.subr.mxu0 0.0
  %3099 = vmatpush1.msra.mxu0 0.0
  %3100 = vmatprep.subr.mxu0 0.0
  %3101 = vmatpush1.msra.mxu0 0.0
  %3102 = vmatprep.subr.mxu0 0.0
  %3103 = vmatpush1.msra.mxu0 0.0
  %3104 = vmatprep.subr.mxu0 0.0
  %3105 = vmatpush1.msra.mxu0 0.0
  %3106 = vmatprep.subr.mxu0 0.0
  %3107 = vmatpush1.msra.mxu0 0.0
  %3108 = vmatprep.subr.mxu0 0.0
  %3109 = vmatpush1.msra.mxu0 0.0
  %3110 = vmatprep.subr.mxu0 0.0
  %3111 = vmatpush1.msra.mxu0 0.0
  %3112 = vmatprep.subr.mxu0 0.0
  %3113 = vmatpush1.msra.mxu0 0.0
  %3114 = vmatprep.subr.mxu0 0.0
  %3115 = vmatpush1.msra.mxu0 0.0
  %3116 = vmatprep.subr.mxu0 0.0
  %3117 = vmatpush1.msra.mxu0 0.0
  %3118 = vmatprep.mubr.f32.mxu0 0.0
  %v3119 = vand.u32 %v2890, 4294901760
  %v3120 = vsub.f32 %v2890, %v3119
  %3121 = vmatmul.mubr.f32.gmra.mrb[0].mxu0 %v3120
  %v3122 = vpop.f32.mrb[0].mxu0
  %v3123 = vadd.f32 %v3047, %v3122
  %v3124 = vpop.f32.mrb[0].mxu0
  %3125 = vdwg.mxu0
  %3126 = vmatprep.subr.mxu0 0.0
  %v3127 = vand.u32 %v14, 4294901760
  %3128 = vmatpush1.msra.mxu0 %v3127
  %3129 = vmatprep.subr.mxu0 0.0
  %v3130 = vand.u32 %v558, 4294901760
  %3131 = vmatpush1.msra.mxu0 %v3130
  %3132 = vmatprep.subr.mxu0 0.0
  %3133 = vmatpush1.msra.mxu0 0.0
  %3134 = vmatprep.subr.mxu0 0.0
  %3135 = vmatpush1.msra.mxu0 0.0
  %3136 = vmatprep.subr.mxu0 0.0
  %3137 = vmatpush1.msra.mxu0 0.0
  %3138 = vmatprep.subr.mxu0 0.0
  %3139 = vmatpush1.msra.mxu0 0.0
  %3140 = vmatprep.subr.mxu0 0.0
  %3141 = vmatpush1.msra.mxu0 0.0
  %3142 = vmatprep.subr.mxu0 0.0
  %3143 = vmatpush1.msra.mxu0 0.0
  %3144 = vmatprep.subr.mxu0 0.0
  %3145 = vmatpush1.msra.mxu0 0.0
  %3146 = vmatprep.subr.mxu0 0.0
  %3147 = vmatpush1.msra.mxu0 0.0
  %3148 = vmatprep.subr.mxu0 0.0
  %3149 = vmatpush1.msra.mxu0 0.0
  %3150 = vmatprep.subr.mxu0 0.0
  %3151 = vmatpush1.msra.mxu0 0.0
  %3152 = vmatprep.subr.mxu0 0.0
  %3153 = vmatpush1.msra.mxu0 0.0
  %3154 = vmatprep.subr.mxu0 0.0
  %3155 = vmatpush1.msra.mxu0 0.0
  %3156 = vmatprep.subr.mxu0 0.0
  %3157 = vmatpush1.msra.mxu0 0.0
  %3158 = vmatprep.subr.mxu0 0.0
  %3159 = vmatpush1.msra.mxu0 0.0
  %3160 = vmatprep.subr.mxu0 0.0
  %3161 = vmatpush1.msra.mxu0 0.0
  %3162 = vmatprep.subr.mxu0 0.0
  %3163 = vmatpush1.msra.mxu0 0.0
  %3164 = vmatprep.subr.mxu0 0.0
  %3165 = vmatpush1.msra.mxu0 0.0
  %3166 = vmatprep.subr.mxu0 0.0
  %3167 = vmatpush1.msra.mxu0 0.0
  %3168 = vmatprep.subr.mxu0 0.0
  %3169 = vmatpush1.msra.mxu0 0.0
  %3170 = vmatprep.subr.mxu0 0.0
  %3171 = vmatpush1.msra.mxu0 0.0
  %3172 = vmatprep.subr.mxu0 0.0
  %3173 = vmatpush1.msra.mxu0 0.0
  %3174 = vmatprep.subr.mxu0 0.0
  %3175 = vmatpush1.msra.mxu0 0.0
  %3176 = vmatprep.subr.mxu0 0.0
  %3177 = vmatpush1.msra.mxu0 0.0
  %3178 = vmatprep.subr.mxu0 0.0
  %3179 = vmatpush1.msra.mxu0 0.0
  %3180 = vmatprep.subr.mxu0 0.0
  %3181 = vmatpush1.msra.mxu0 0.0
  %3182 = vmatprep.subr.mxu0 0.0
  %3183 = vmatpush1.msra.mxu0 0.0
  %3184 = vmatprep.subr.mxu0 0.0
  %3185 = vmatpush1.msra.mxu0 0.0
  %3186 = vmatprep.subr.mxu0 0.0
  %3187 = vmatpush1.msra.mxu0 0.0
  %3188 = vmatprep.subr.mxu0 0.0
  %3189 = vmatpush1.msra.mxu0 0.0
  %3190 = vmatprep.subr.mxu0 0.0
  %3191 = vmatpush1.msra.mxu0 0.0
  %3192 = vmatprep.mubr.f32.mxu0 0.0
  %v3193 = vand.u32 %v2890, 4294901760
  %v3194 = vsub.f32 %v2890, %v3193
  %v3195 = vand.u32 %v3194, 4294901760
  %3196 = vmatmul.mubr.f32.gmra.mrb[0].mxu0 %v3195
  %v3197 = vpop.f32.mrb[0].mxu0
  %v3198 = vadd.f32 %v3123, %v3197
  %v3199 = vpop.f32.mrb[0].mxu0
  %3200 = vdwg.mxu0
  %3201 = vmatprep.subr.mxu0 0.0
  %v3202 = vand.u32 %v14, 4294901760
  %v3203 = vsub.f32 %v14, %v3202
  %v3204 = vand.u32 %v3203, 4294901760
  %3205 = vmatpush1.msra.mxu0 %v3204
  %3206 = vmatprep.subr.mxu0 0.0
  %v3207 = vand.u32 %v558, 4294901760
  %v3208 = vsub.f32 %v558, %v3207
  %v3209 = vand.u32 %v3208, 4294901760
  %3210 = vmatpush1.msra.mxu0 %v3209
  %3211 = vmatprep.subr.mxu0 0.0
  %3212 = vmatpush1.msra.mxu0 0.0
  %3213 = vmatprep.subr.mxu0 0.0
  %3214 = vmatpush1.msra.mxu0 0.0
  %3215 = vmatprep.subr.mxu0 0.0
  %3216 = vmatpush1.msra.mxu0 0.0
  %3217 = vmatprep.subr.mxu0 0.0
  %3218 = vmatpush1.msra.mxu0 0.0
  %3219 = vmatprep.subr.mxu0 0.0
  %3220 = vmatpush1.msra.mxu0 0.0
  %3221 = vmatprep.subr.mxu0 0.0
  %3222 = vmatpush1.msra.mxu0 0.0
  %3223 = vmatprep.subr.mxu0 0.0
  %3224 = vmatpush1.msra.mxu0 0.0
  %3225 = vmatprep.subr.mxu0 0.0
  %3226 = vmatpush1.msra.mxu0 0.0
  %3227 = vmatprep.subr.mxu0 0.0
  %3228 = vmatpush1.msra.mxu0 0.0
  %3229 = vmatprep.subr.mxu0 0.0
  %3230 = vmatpush1.msra.mxu0 0.0
  %3231 = vmatprep.subr.mxu0 0.0
  %3232 = vmatpush1.msra.mxu0 0.0
  %3233 = vmatprep.subr.mxu0 0.0
  %3234 = vmatpush1.msra.mxu0 0.0
  %3235 = vmatprep.subr.mxu0 0.0
  %3236 = vmatpush1.msra.mxu0 0.0
  %3237 = vmatprep.subr.mxu0 0.0
  %3238 = vmatpush1.msra.mxu0 0.0
  %3239 = vmatprep.subr.mxu0 0.0
  %3240 = vmatpush1.msra.mxu0 0.0
  %3241 = vmatprep.subr.mxu0 0.0
  %3242 = vmatpush1.msra.mxu0 0.0
  %3243 = vmatprep.subr.mxu0 0.0
  %3244 = vmatpush1.msra.mxu0 0.0
  %3245 = vmatprep.subr.mxu0 0.0
  %3246 = vmatpush1.msra.mxu0 0.0
  %3247 = vmatprep.subr.mxu0 0.0
  %3248 = vmatpush1.msra.mxu0 0.0
  %3249 = vmatprep.subr.mxu0 0.0
  %3250 = vmatpush1.msra.mxu0 0.0
  %3251 = vmatprep.subr.mxu0 0.0
  %3252 = vmatpush1.msra.mxu0 0.0
  %3253 = vmatprep.subr.mxu0 0.0
  %3254 = vmatpush1.msra.mxu0 0.0
  %3255 = vmatprep.subr.mxu0 0.0
  %3256 = vmatpush1.msra.mxu0 0.0
  %3257 = vmatprep.subr.mxu0 0.0
  %3258 = vmatpush1.msra.mxu0 0.0
  %3259 = vmatprep.subr.mxu0 0.0
  %3260 = vmatpush1.msra.mxu0 0.0
  %3261 = vmatprep.subr.mxu0 0.0
  %3262 = vmatpush1.msra.mxu0 0.0
  %3263 = vmatprep.subr.mxu0 0.0
  %3264 = vmatpush1.msra.mxu0 0.0
  %3265 = vmatprep.subr.mxu0 0.0
  %3266 = vmatpush1.msra.mxu0 0.0
  %3267 = vmatprep.subr.mxu0 0.0
  %3268 = vmatpush1.msra.mxu0 0.0
  %3269 = vmatprep.subr.mxu0 0.0
  %3270 = vmatpush1.msra.mxu0 0.0
  %3271 = vmatprep.mubr.f32.mxu0 0.0
  %v3272 = vand.u32 %v2890, 4294901760
  %3273 = vmatmul.mubr.f32.gmra.mrb[0].mxu0 %v3272
  %v3274 = vpop.f32.mrb[0].mxu0
  %v3275 = vadd.f32 %v3198, %v3274
  %v3276 = vpop.f32.mrb[0].mxu0
  %3277 = vdwg.mxu0
  %3278 = vmatprep.subr.mxu0 0.0
  %v3279 = vand.u32 %v14, 4294901760
  %3280 = vmatpush1.msra.mxu0 %v3279
  %3281 = vmatprep.subr.mxu0 0.0
  %v3282 = vand.u32 %v558, 4294901760
  %3283 = vmatpush1.msra.mxu0 %v3282
  %3284 = vmatprep.subr.mxu0 0.0
  %3285 = vmatpush1.msra.mxu0 0.0
  %3286 = vmatprep.subr.mxu0 0.0
  %3287 = vmatpush1.msra.mxu0 0.0
  %3288 = vmatprep.subr.mxu0 0.0
  %3289 = vmatpush1.msra.mxu0 0.0
  %3290 = vmatprep.subr.mxu0 0.0
  %3291 = vmatpush1.msra.mxu0 0.0
  %3292 = vmatprep.subr.mxu0 0.0
  %3293 = vmatpush1.msra.mxu0 0.0
  %3294 = vmatprep.subr.mxu0 0.0
  %3295 = vmatpush1.msra.mxu0 0.0
  %3296 = vmatprep.subr.mxu0 0.0
  %3297 = vmatpush1.msra.mxu0 0.0
  %3298 = vmatprep.subr.mxu0 0.0
  %3299 = vmatpush1.msra.mxu0 0.0
  %3300 = vmatprep.subr.mxu0 0.0
  %3301 = vmatpush1.msra.mxu0 0.0
  %3302 = vmatprep.subr.mxu0 0.0
  %3303 = vmatpush1.msra.mxu0 0.0
  %3304 = vmatprep.subr.mxu0 0.0
  %3305 = vmatpush1.msra.mxu0 0.0
  %3306 = vmatprep.subr.mxu0 0.0
  %3307 = vmatpush1.msra.mxu0 0.0
  %3308 = vmatprep.subr.mxu0 0.0
  %3309 = vmatpush1.msra.mxu0 0.0
  %3310 = vmatprep.subr.mxu0 0.0
  %3311 = vmatpush1.msra.mxu0 0.0
  %3312 = vmatprep.subr.mxu0 0.0
  %3313 = vmatpush1.msra.mxu0 0.0
  %3314 = vmatprep.subr.mxu0 0.0
  %3315 = vmatpush1.msra.mxu0 0.0
  %3316 = vmatprep.subr.mxu0 0.0
  %3317 = vmatpush1.msra.mxu0 0.0
  %3318 = vmatprep.subr.mxu0 0.0
  %3319 = vmatpush1.msra.mxu0 0.0
  %3320 = vmatprep.subr.mxu0 0.0
  %3321 = vmatpush1.msra.mxu0 0.0
  %3322 = vmatprep.subr.mxu0 0.0
  %3323 = vmatpush1.msra.mxu0 0.0
  %3324 = vmatprep.subr.mxu0 0.0
  %3325 = vmatpush1.msra.mxu0 0.0
  %3326 = vmatprep.subr.mxu0 0.0
  %3327 = vmatpush1.msra.mxu0 0.0
  %3328 = vmatprep.subr.mxu0 0.0
  %3329 = vmatpush1.msra.mxu0 0.0
  %3330 = vmatprep.subr.mxu0 0.0
  %3331 = vmatpush1.msra.mxu0 0.0
  %3332 = vmatprep.subr.mxu0 0.0
  %3333 = vmatpush1.msra.mxu0 0.0
  %3334 = vmatprep.subr.mxu0 0.0
  %3335 = vmatpush1.msra.mxu0 0.0
  %3336 = vmatprep.subr.mxu0 0.0
  %3337 = vmatpush1.msra.mxu0 0.0
  %3338 = vmatprep.subr.mxu0 0.0
  %3339 = vmatpush1.msra.mxu0 0.0
  %3340 = vmatprep.subr.mxu0 0.0
  %3341 = vmatpush1.msra.mxu0 0.0
  %3342 = vmatprep.subr.mxu0 0.0
  %3343 = vmatpush1.msra.mxu0 0.0
  %3344 = vmatprep.mubr.f32.mxu0 0.0
  %v3345 = vand.u32 %v2890, 4294901760
  %3346 = vmatmul.mubr.f32.gmra.mrb[0].mxu0 %v3345
  %v3347 = vpop.f32.mrb[0].mxu0
  %v3348 = vadd.f32 %v3275, %v3347
  %v3349 = vpop.f32.mrb[0].mxu0
  %3350 = vdwg.mxu0
  %v3352 = vrot.slane %v3348, 6
  %v3354 = vadd.f32 %v549, %v3352
  %v3355 = vtanh.pop %v3354
  %v3357 = vrot.slane %v3355, 2
  %v3358 = vsel %vm552, %v3357, 0
  %3360 = vmatprep.subr.mxu0 0.0
  %v3361 = vand.u32 %v14, 4294901760
  %3362 = vmatpush1.msra.mxu0 %v3361
  %3363 = vmatprep.subr.mxu0 0.0
  %v3364 = vand.u32 %v558, 4294901760
  %3365 = vmatpush1.msra.mxu0 %v3364
  %3366 = vmatprep.subr.mxu0 0.0
  %3367 = vmatpush1.msra.mxu0 0.0
  %3368 = vmatprep.subr.mxu0 0.0
  %3369 = vmatpush1.msra.mxu0 0.0
  %3370 = vmatprep.subr.mxu0 0.0
  %3371 = vmatpush1.msra.mxu0 0.0
  %3372 = vmatprep.subr.mxu0 0.0
  %3373 = vmatpush1.msra.mxu0 0.0
  %3374 = vmatprep.subr.mxu0 0.0
  %3375 = vmatpush1.msra.mxu0 0.0
  %3376 = vmatprep.subr.mxu0 0.0
  %3377 = vmatpush1.msra.mxu0 0.0
  %3378 = vmatprep.subr.mxu0 0.0
  %3379 = vmatpush1.msra.mxu0 0.0
  %3380 = vmatprep.subr.mxu0 0.0
  %3381 = vmatpush1.msra.mxu0 0.0
  %3382 = vmatprep.subr.mxu0 0.0
  %3383 = vmatpush1.msra.mxu0 0.0
  %3384 = vmatprep.subr.mxu0 0.0
  %3385 = vmatpush1.msra.mxu0 0.0
  %3386 = vmatprep.subr.mxu0 0.0
  %3387 = vmatpush1.msra.mxu0 0.0
  %3388 = vmatprep.subr.mxu0 0.0
  %3389 = vmatpush1.msra.mxu0 0.0
  %3390 = vmatprep.subr.mxu0 0.0
  %3391 = vmatpush1.msra.mxu0 0.0
  %3392 = vmatprep.subr.mxu0 0.0
  %3393 = vmatpush1.msra.mxu0 0.0
  %3394 = vmatprep.subr.mxu0 0.0
  %3395 = vmatpush1.msra.mxu0 0.0
  %3396 = vmatprep.subr.mxu0 0.0
  %3397 = vmatpush1.msra.mxu0 0.0
  %3398 = vmatprep.subr.mxu0 0.0
  %3399 = vmatpush1.msra.mxu0 0.0
  %3400 = vmatprep.subr.mxu0 0.0
  %3401 = vmatpush1.msra.mxu0 0.0
  %3402 = vmatprep.subr.mxu0 0.0
  %3403 = vmatpush1.msra.mxu0 0.0
  %3404 = vmatprep.subr.mxu0 0.0
  %3405 = vmatpush1.msra.mxu0 0.0
  %3406 = vmatprep.subr.mxu0 0.0
  %3407 = vmatpush1.msra.mxu0 0.0
  %3408 = vmatprep.subr.mxu0 0.0
  %3409 = vmatpush1.msra.mxu0 0.0
  %3410 = vmatprep.subr.mxu0 0.0
  %3411 = vmatpush1.msra.mxu0 0.0
  %3412 = vmatprep.subr.mxu0 0.0
  %3413 = vmatpush1.msra.mxu0 0.0
  %3414 = vmatprep.subr.mxu0 0.0
  %3415 = vmatpush1.msra.mxu0 0.0
  %3416 = vmatprep.subr.mxu0 0.0
  %3417 = vmatpush1.msra.mxu0 0.0
  %3418 = vmatprep.subr.mxu0 0.0
  %3419 = vmatpush1.msra.mxu0 0.0
  %3420 = vmatprep.subr.mxu0 0.0
  %3421 = vmatpush1.msra.mxu0 0.0
  %3422 = vmatprep.subr.mxu0 0.0
  %3423 = vmatpush1.msra.mxu0 0.0
  %3424 = vmatprep.subr.mxu0 0.0
  %3425 = vmatpush1.msra.mxu0 0.0
  %3426 = vmatprep.mubr.f32.mxu0 0.0
  %v3427 = vand.u32 %v3358, 4294901760
  %v3428 = vsub.f32 %v3358, %v3427
  %v3429 = vand.u32 %v3428, 4294901760
  %v3430 = vsub.f32 %v3428, %v3429
  %v3431 = vand.u32 %v3430, 4294901760
  %3432 = vmatmul.mubr.f32.gmra.mrb[0].mxu0 %v3431
  %v3433 = vpop.f32.mrb[0].mxu0
  %v3434 = vadd.f32 0.0, %v3433
  %v3435 = vpop.f32.mrb[0].mxu0
  %3436 = vdwg.mxu0
  %3437 = vmatprep.subr.mxu0 0.0
  %v3438 = vand.u32 %v14, 4294901760
  %v3439 = vsub.f32 %v14, %v3438
  %v3440 = vand.u32 %v3439, 4294901760
  %v3441 = vsub.f32 %v3439, %v3440
  %v3442 = vand.u32 %v3441, 4294901760
  %3443 = vmatpush1.msra.mxu0 %v3442
  %3444 = vmatprep.subr.mxu0 0.0
  %v3445 = vand.u32 %v558, 4294901760
  %v3446 = vsub.f32 %v558, %v3445
  %v3447 = vand.u32 %v3446, 4294901760
  %v3448 = vsub.f32 %v3446, %v3447
  %v3449 = vand.u32 %v3448, 4294901760
  %3450 = vmatpush1.msra.mxu0 %v3449
  %3451 = vmatprep.subr.mxu0 0.0
  %3452 = vmatpush1.msra.mxu0 0.0
  %3453 = vmatprep.subr.mxu0 0.0
  %3454 = vmatpush1.msra.mxu0 0.0
  %3455 = vmatprep.subr.mxu0 0.0
  %3456 = vmatpush1.msra.mxu0 0.0
  %3457 = vmatprep.subr.mxu0 0.0
  %3458 = vmatpush1.msra.mxu0 0.0
  %3459 = vmatprep.subr.mxu0 0.0
  %3460 = vmatpush1.msra.mxu0 0.0
  %3461 = vmatprep.subr.mxu0 0.0
  %3462 = vmatpush1.msra.mxu0 0.0
  %3463 = vmatprep.subr.mxu0 0.0
  %3464 = vmatpush1.msra.mxu0 0.0
  %3465 = vmatprep.subr.mxu0 0.0
  %3466 = vmatpush1.msra.mxu0 0.0
  %3467 = vmatprep.subr.mxu0 0.0
  %3468 = vmatpush1.msra.mxu0 0.0
  %3469 = vmatprep.subr.mxu0 0.0
  %3470 = vmatpush1.msra.mxu0 0.0
  %3471 = vmatprep.subr.mxu0 0.0
  %3472 = vmatpush1.msra.mxu0 0.0
  %3473 = vmatprep.subr.mxu0 0.0
  %3474 = vmatpush1.msra.mxu0 0.0
  %3475 = vmatprep.subr.mxu0 0.0
  %3476 = vmatpush1.msra.mxu0 0.0
  %3477 = vmatprep.subr.mxu0 0.0
  %3478 = vmatpush1.msra.mxu0 0.0
  %3479 = vmatprep.subr.mxu0 0.0
  %3480 = vmatpush1.msra.mxu0 0.0
  %3481 = vmatprep.subr.mxu0 0.0
  %3482 = vmatpush1.msra.mxu0 0.0
  %3483 = vmatprep.subr.mxu0 0.0
  %3484 = vmatpush1.msra.mxu0 0.0
  %3485 = vmatprep.subr.mxu0 0.0
  %3486 = vmatpush1.msra.mxu0 0.0
  %3487 = vmatprep.subr.mxu0 0.0
  %3488 = vmatpush1.msra.mxu0 0.0
  %3489 = vmatprep.subr.mxu0 0.0
  %3490 = vmatpush1.msra.mxu0 0.0
  %3491 = vmatprep.subr.mxu0 0.0
  %3492 = vmatpush1.msra.mxu0 0.0
  %3493 = vmatprep.subr.mxu0 0.0
  %3494 = vmatpush1.msra.mxu0 0.0
  %3495 = vmatprep.subr.mxu0 0.0
  %3496 = vmatpush1.msra.mxu0 0.0
  %3497 = vmatprep.subr.mxu0 0.0
  %3498 = vmatpush1.msra.mxu0 0.0
  %3499 = vmatprep.subr.mxu0 0.0
  %3500 = vmatpush1.msra.mxu0 0.0
  %3501 = vmatprep.subr.mxu0 0.0
  %3502 = vmatpush1.msra.mxu0 0.0
  %3503 = vmatprep.subr.mxu0 0.0
  %3504 = vmatpush1.msra.mxu0 0.0
  %3505 = vmatprep.subr.mxu0 0.0
  %3506 = vmatpush1.msra.mxu0 0.0
  %3507 = vmatprep.subr.mxu0 0.0
  %3508 = vmatpush1.msra.mxu0 0.0
  %3509 = vmatprep.subr.mxu0 0.0
  %3510 = vmatpush1.msra.mxu0 0.0
  %3511 = vmatprep.mubr.f32.mxu0 0.0
  %v3512 = vand.u32 %v3358, 4294901760
  %3513 = vmatmul.mubr.f32.gmra.mrb[0].mxu0 %v3512
  %v3514 = vpop.f32.mrb[0].mxu0
  %v3515 = vadd.f32 %v3434, %v3514
  %v3516 = vpop.f32.mrb[0].mxu0
  %3517 = vdwg.mxu0
  %3518 = vmatprep.subr.mxu0 0.0
  %v3519 = vand.u32 %v14, 4294901760
  %v3520 = vsub.f32 %v14, %v3519
  %3521 = vmatpush1.msra.mxu0 %v3520
  %3522 = vmatprep.subr.mxu0 0.0
  %v3523 = vand.u32 %v558, 4294901760
  %v3524 = vsub.f32 %v558, %v3523
  %3525 = vmatpush1.msra.mxu0 %v3524
  %3526 = vmatprep.subr.mxu0 0.0
  %3527 = vmatpush1.msra.mxu0 0.0
  %3528 = vmatprep.subr.mxu0 0.0
  %3529 = vmatpush1.msra.mxu0 0.0
  %3530 = vmatprep.subr.mxu0 0.0
  %3531 = vmatpush1.msra.mxu0 0.0
  %3532 = vmatprep.subr.mxu0 0.0
  %3533 = vmatpush1.msra.mxu0 0.0
  %3534 = vmatprep.subr.mxu0 0.0
  %3535 = vmatpush1.msra.mxu0 0.0
  %3536 = vmatprep.subr.mxu0 0.0
  %3537 = vmatpush1.msra.mxu0 0.0
  %3538 = vmatprep.subr.mxu0 0.0
  %3539 = vmatpush1.msra.mxu0 0.0
  %3540 = vmatprep.subr.mxu0 0.0
  %3541 = vmatpush1.msra.mxu0 0.0
  %3542 = vmatprep.subr.mxu0 0.0
  %3543 = vmatpush1.msra.mxu0 0.0
  %3544 = vmatprep.subr.mxu0 0.0
  %3545 = vmatpush1.msra.mxu0 0.0
  %3546 = vmatprep.subr.mxu0 0.0
  %3547 = vmatpush1.msra.mxu0 0.0
  %3548 = vmatprep.subr.mxu0 0.0
  %3549 = vmatpush1.msra.mxu0 0.0
  %3550 = vmatprep.subr.mxu0 0.0
  %3551 = vmatpush1.msra.mxu0 0.0
  %3552 = vmatprep.subr.mxu0 0.0
  %3553 = vmatpush1.msra.mxu0 0.0
  %3554 = vmatprep.subr.mxu0 0.0
  %3555 = vmatpush1.msra.mxu0 0.0
  %3556 = vmatprep.subr.mxu0 0.0
  %3557 = vmatpush1.msra.mxu0 0.0
  %3558 = vmatprep.subr.mxu0 0.0
  %3559 = vmatpush1.msra.mxu0 0.0
  %3560 = vmatprep.subr.mxu0 0.0
  %3561 = vmatpush1.msra.mxu0 0.0
  %3562 = vmatprep.subr.mxu0 0.0
  %3563 = vmatpush1.msra.mxu0 0.0
  %3564 = vmatprep.subr.mxu0 0.0
  %3565 = vmatpush1.msra.mxu0 0.0
  %3566 = vmatprep.subr.mxu0 0.0
  %3567 = vmatpush1.msra.mxu0 0.0
  %3568 = vmatprep.subr.mxu0 0.0
  %3569 = vmatpush1.msra.mxu0 0.0
  %3570 = vmatprep.subr.mxu0 0.0
  %3571 = vmatpush1.msra.mxu0 0.0
  %3572 = vmatprep.subr.mxu0 0.0
  %3573 = vmatpush1.msra.mxu0 0.0
  %3574 = vmatprep.subr.mxu0 0.0
  %3575 = vmatpush1.msra.mxu0 0.0
  %3576 = vmatprep.subr.mxu0 0.0
  %3577 = vmatpush1.msra.mxu0 0.0
  %3578 = vmatprep.subr.mxu0 0.0
  %3579 = vmatpush1.msra.mxu0 0.0
  %3580 = vmatprep.subr.mxu0 0.0
  %3581 = vmatpush1.msra.mxu0 0.0
  %3582 = vmatprep.subr.mxu0 0.0
  %3583 = vmatpush1.msra.mxu0 0.0
  %3584 = vmatprep.subr.mxu0 0.0
  %3585 = vmatpush1.msra.mxu0 0.0
  %3586 = vmatprep.mubr.f32.mxu0 0.0
  %v3587 = vand.u32 %v3358, 4294901760
  %v3588 = vsub.f32 %v3358, %v3587
  %3589 = vmatmul.mubr.f32.gmra.mrb[0].mxu0 %v3588
  %v3590 = vpop.f32.mrb[0].mxu0
  %v3591 = vadd.f32 %v3515, %v3590
  %v3592 = vpop.f32.mrb[0].mxu0
  %3593 = vdwg.mxu0
  %3594 = vmatprep.subr.mxu0 0.0
  %v3595 = vand.u32 %v14, 4294901760
  %3596 = vmatpush1.msra.mxu0 %v3595
  %3597 = vmatprep.subr.mxu0 0.0
  %v3598 = vand.u32 %v558, 4294901760
  %3599 = vmatpush1.msra.mxu0 %v3598
  %3600 = vmatprep.subr.mxu0 0.0
  %3601 = vmatpush1.msra.mxu0 0.0
  %3602 = vmatprep.subr.mxu0 0.0
  %3603 = vmatpush1.msra.mxu0 0.0
  %3604 = vmatprep.subr.mxu0 0.0
  %3605 = vmatpush1.msra.mxu0 0.0
  %3606 = vmatprep.subr.mxu0 0.0
  %3607 = vmatpush1.msra.mxu0 0.0
  %3608 = vmatprep.subr.mxu0 0.0
  %3609 = vmatpush1.msra.mxu0 0.0
  %3610 = vmatprep.subr.mxu0 0.0
  %3611 = vmatpush1.msra.mxu0 0.0
  %3612 = vmatprep.subr.mxu0 0.0
  %3613 = vmatpush1.msra.mxu0 0.0
  %3614 = vmatprep.subr.mxu0 0.0
  %3615 = vmatpush1.msra.mxu0 0.0
  %3616 = vmatprep.subr.mxu0 0.0
  %3617 = vmatpush1.msra.mxu0 0.0
  %3618 = vmatprep.subr.mxu0 0.0
  %3619 = vmatpush1.msra.mxu0 0.0
  %3620 = vmatprep.subr.mxu0 0.0
  %3621 = vmatpush1.msra.mxu0 0.0
  %3622 = vmatprep.subr.mxu0 0.0
  %3623 = vmatpush1.msra.mxu0 0.0
  %3624 = vmatprep.subr.mxu0 0.0
  %3625 = vmatpush1.msra.mxu0 0.0
  %3626 = vmatprep.subr.mxu0 0.0
  %3627 = vmatpush1.msra.mxu0 0.0
  %3628 = vmatprep.subr.mxu0 0.0
  %3629 = vmatpush1.msra.mxu0 0.0
  %3630 = vmatprep.subr.mxu0 0.0
  %3631 = vmatpush1.msra.mxu0 0.0
  %3632 = vmatprep.subr.mxu0 0.0
  %3633 = vmatpush1.msra.mxu0 0.0
  %3634 = vmatprep.subr.mxu0 0.0
  %3635 = vmatpush1.msra.mxu0 0.0
  %3636 = vmatprep.subr.mxu0 0.0
  %3637 = vmatpush1.msra.mxu0 0.0
  %3638 = vmatprep.subr.mxu0 0.0
  %3639 = vmatpush1.msra.mxu0 0.0
  %3640 = vmatprep.subr.mxu0 0.0
  %3641 = vmatpush1.msra.mxu0 0.0
  %3642 = vmatprep.subr.mxu0 0.0
  %3643 = vmatpush1.msra.mxu0 0.0
  %3644 = vmatprep.subr.mxu0 0.0
  %3645 = vmatpush1.msra.mxu0 0.0
  %3646 = vmatprep.subr.mxu0 0.0
  %3647 = vmatpush1.msra.mxu0 0.0
  %3648 = vmatprep.subr.mxu0 0.0
  %3649 = vmatpush1.msra.mxu0 0.0
  %3650 = vmatprep.subr.mxu0 0.0
  %3651 = vmatpush1.msra.mxu0 0.0
  %3652 = vmatprep.subr.mxu0 0.0
  %3653 = vmatpush1.msra.mxu0 0.0
  %3654 = vmatprep.subr.mxu0 0.0
  %3655 = vmatpush1.msra.mxu0 0.0
  %3656 = vmatprep.subr.mxu0 0.0
  %3657 = vmatpush1.msra.mxu0 0.0
  %3658 = vmatprep.subr.mxu0 0.0
  %3659 = vmatpush1.msra.mxu0 0.0
  %3660 = vmatprep.mubr.f32.mxu0 0.0
  %v3661 = vand.u32 %v3358, 4294901760
  %v3662 = vsub.f32 %v3358, %v3661
  %v3663 = vand.u32 %v3662, 4294901760
  %3664 = vmatmul.mubr.f32.gmra.mrb[0].mxu0 %v3663
  %v3665 = vpop.f32.mrb[0].mxu0
  %v3666 = vadd.f32 %v3591, %v3665
  %v3667 = vpop.f32.mrb[0].mxu0
  %3668 = vdwg.mxu0
  %3669 = vmatprep.subr.mxu0 0.0
  %v3670 = vand.u32 %v14, 4294901760
  %v3671 = vsub.f32 %v14, %v3670
  %v3672 = vand.u32 %v3671, 4294901760
  %3673 = vmatpush1.msra.mxu0 %v3672
  %3674 = vmatprep.subr.mxu0 0.0
  %v3675 = vand.u32 %v558, 4294901760
  %v3676 = vsub.f32 %v558, %v3675
  %v3677 = vand.u32 %v3676, 4294901760
  %3678 = vmatpush1.msra.mxu0 %v3677
  %3679 = vmatprep.subr.mxu0 0.0
  %3680 = vmatpush1.msra.mxu0 0.0
  %3681 = vmatprep.subr.mxu0 0.0
  %3682 = vmatpush1.msra.mxu0 0.0
  %3683 = vmatprep.subr.mxu0 0.0
  %3684 = vmatpush1.msra.mxu0 0.0
  %3685 = vmatprep.subr.mxu0 0.0
  %3686 = vmatpush1.msra.mxu0 0.0
  %3687 = vmatprep.subr.mxu0 0.0
  %3688 = vmatpush1.msra.mxu0 0.0
  %3689 = vmatprep.subr.mxu0 0.0
  %3690 = vmatpush1.msra.mxu0 0.0
  %3691 = vmatprep.subr.mxu0 0.0
  %3692 = vmatpush1.msra.mxu0 0.0
  %3693 = vmatprep.subr.mxu0 0.0
  %3694 = vmatpush1.msra.mxu0 0.0
  %3695 = vmatprep.subr.mxu0 0.0
  %3696 = vmatpush1.msra.mxu0 0.0
  %3697 = vmatprep.subr.mxu0 0.0
  %3698 = vmatpush1.msra.mxu0 0.0
  %3699 = vmatprep.subr.mxu0 0.0
  %3700 = vmatpush1.msra.mxu0 0.0
  %3701 = vmatprep.subr.mxu0 0.0
  %3702 = vmatpush1.msra.mxu0 0.0
  %3703 = vmatprep.subr.mxu0 0.0
  %3704 = vmatpush1.msra.mxu0 0.0
  %3705 = vmatprep.subr.mxu0 0.0
  %3706 = vmatpush1.msra.mxu0 0.0
  %3707 = vmatprep.subr.mxu0 0.0
  %3708 = vmatpush1.msra.mxu0 0.0
  %3709 = vmatprep.subr.mxu0 0.0
  %3710 = vmatpush1.msra.mxu0 0.0
  %3711 = vmatprep.subr.mxu0 0.0
  %3712 = vmatpush1.msra.mxu0 0.0
  %3713 = vmatprep.subr.mxu0 0.0
  %3714 = vmatpush1.msra.mxu0 0.0
  %3715 = vmatprep.subr.mxu0 0.0
  %3716 = vmatpush1.msra.mxu0 0.0
  %3717 = vmatprep.subr.mxu0 0.0
  %3718 = vmatpush1.msra.mxu0 0.0
  %3719 = vmatprep.subr.mxu0 0.0
  %3720 = vmatpush1.msra.mxu0 0.0
  %3721 = vmatprep.subr.mxu0 0.0
  %3722 = vmatpush1.msra.mxu0 0.0
  %3723 = vmatprep.subr.mxu0 0.0
  %3724 = vmatpush1.msra.mxu0 0.0
  %3725 = vmatprep.subr.mxu0 0.0
  %3726 = vmatpush1.msra.mxu0 0.0
  %3727 = vmatprep.subr.mxu0 0.0
  %3728 = vmatpush1.msra.mxu0 0.0
  %3729 = vmatprep.subr.mxu0 0.0
  %3730 = vmatpush1.msra.mxu0 0.0
  %3731 = vmatprep.subr.mxu0 0.0
  %3732 = vmatpush1.msra.mxu0 0.0
  %3733 = vmatprep.subr.mxu0 0.0
  %3734 = vmatpush1.msra.mxu0 0.0
  %3735 = vmatprep.subr.mxu0 0.0
  %3736 = vmatpush1.msra.mxu0 0.0
  %3737 = vmatprep.subr.mxu0 0.0
  %3738 = vmatpush1.msra.mxu0 0.0
  %3739 = vmatprep.mubr.f32.mxu0 0.0
  %v3740 = vand.u32 %v3358, 4294901760
  %3741 = vmatmul.mubr.f32.gmra.mrb[0].mxu0 %v3740
  %v3742 = vpop.f32.mrb[0].mxu0
  %v3743 = vadd.f32 %v3666, %v3742
  %v3744 = vpop.f32.mrb[0].mxu0
  %3745 = vdwg.mxu0
  %3746 = vmatprep.subr.mxu0 0.0
  %v3747 = vand.u32 %v14, 4294901760
  %3748 = vmatpush1.msra.mxu0 %v3747
  %3749 = vmatprep.subr.mxu0 0.0
  %v3750 = vand.u32 %v558, 4294901760
  %3751 = vmatpush1.msra.mxu0 %v3750
  %3752 = vmatprep.subr.mxu0 0.0
  %3753 = vmatpush1.msra.mxu0 0.0
  %3754 = vmatprep.subr.mxu0 0.0
  %3755 = vmatpush1.msra.mxu0 0.0
  %3756 = vmatprep.subr.mxu0 0.0
  %3757 = vmatpush1.msra.mxu0 0.0
  %3758 = vmatprep.subr.mxu0 0.0
  %3759 = vmatpush1.msra.mxu0 0.0
  %3760 = vmatprep.subr.mxu0 0.0
  %3761 = vmatpush1.msra.mxu0 0.0
  %3762 = vmatprep.subr.mxu0 0.0
  %3763 = vmatpush1.msra.mxu0 0.0
  %3764 = vmatprep.subr.mxu0 0.0
  %3765 = vmatpush1.msra.mxu0 0.0
  %3766 = vmatprep.subr.mxu0 0.0
  %3767 = vmatpush1.msra.mxu0 0.0
  %3768 = vmatprep.subr.mxu0 0.0
  %3769 = vmatpush1.msra.mxu0 0.0
  %3770 = vmatprep.subr.mxu0 0.0
  %3771 = vmatpush1.msra.mxu0 0.0
  %3772 = vmatprep.subr.mxu0 0.0
  %3773 = vmatpush1.msra.mxu0 0.0
  %3774 = vmatprep.subr.mxu0 0.0
  %3775 = vmatpush1.msra.mxu0 0.0
  %3776 = vmatprep.subr.mxu0 0.0
  %3777 = vmatpush1.msra.mxu0 0.0
  %3778 = vmatprep.subr.mxu0 0.0
  %3779 = vmatpush1.msra.mxu0 0.0
  %3780 = vmatprep.subr.mxu0 0.0
  %3781 = vmatpush1.msra.mxu0 0.0
  %3782 = vmatprep.subr.mxu0 0.0
  %3783 = vmatpush1.msra.mxu0 0.0
  %3784 = vmatprep.subr.mxu0 0.0
  %3785 = vmatpush1.msra.mxu0 0.0
  %3786 = vmatprep.subr.mxu0 0.0
  %3787 = vmatpush1.msra.mxu0 0.0
  %3788 = vmatprep.subr.mxu0 0.0
  %3789 = vmatpush1.msra.mxu0 0.0
  %3790 = vmatprep.subr.mxu0 0.0
  %3791 = vmatpush1.msra.mxu0 0.0
  %3792 = vmatprep.subr.mxu0 0.0
  %3793 = vmatpush1.msra.mxu0 0.0
  %3794 = vmatprep.subr.mxu0 0.0
  %3795 = vmatpush1.msra.mxu0 0.0
  %3796 = vmatprep.subr.mxu0 0.0
  %3797 = vmatpush1.msra.mxu0 0.0
  %3798 = vmatprep.subr.mxu0 0.0
  %3799 = vmatpush1.msra.mxu0 0.0
  %3800 = vmatprep.subr.mxu0 0.0
  %3801 = vmatpush1.msra.mxu0 0.0
  %3802 = vmatprep.subr.mxu0 0.0
  %3803 = vmatpush1.msra.mxu0 0.0
  %3804 = vmatprep.subr.mxu0 0.0
  %3805 = vmatpush1.msra.mxu0 0.0
  %3806 = vmatprep.subr.mxu0 0.0
  %3807 = vmatpush1.msra.mxu0 0.0
  %3808 = vmatprep.subr.mxu0 0.0
  %3809 = vmatpush1.msra.mxu0 0.0
  %3810 = vmatprep.subr.mxu0 0.0
  %3811 = vmatpush1.msra.mxu0 0.0
  %3812 = vmatprep.mubr.f32.mxu0 0.0
  %v3813 = vand.u32 %v3358, 4294901760
  %3814 = vmatmul.mubr.f32.gmra.mrb[0].mxu0 %v3813
  %v3815 = vpop.f32.mrb[0].mxu0
  %v3816 = vadd.f32 %v3743, %v3815
  %v3817 = vpop.f32.mrb[0].mxu0
  %3818 = vdwg.mxu0
  %v3820 = vrot.slane %v3816, 4
  %v3822 = vadd.f32 %v549, %v3820
  %v3823 = vtanh.pop %v3822
  %v3825 = vrot.slane %v3823, 4
  %v3826 = vsel %vm552, %v3825, 0
  %3828 = vmatprep.subr.mxu0 0.0
  %v3829 = vand.u32 %v14, 4294901760
  %3830 = vmatpush1.msra.mxu0 %v3829
  %3831 = vmatprep.subr.mxu0 0.0
  %v3832 = vand.u32 %v558, 4294901760
  %3833 = vmatpush1.msra.mxu0 %v3832
  %3834 = vmatprep.subr.mxu0 0.0
  %3835 = vmatpush1.msra.mxu0 0.0
  %3836 = vmatprep.subr.mxu0 0.0
  %3837 = vmatpush1.msra.mxu0 0.0
  %3838 = vmatprep.subr.mxu0 0.0
  %3839 = vmatpush1.msra.mxu0 0.0
  %3840 = vmatprep.subr.mxu0 0.0
  %3841 = vmatpush1.msra.mxu0 0.0
  %3842 = vmatprep.subr.mxu0 0.0
  %3843 = vmatpush1.msra.mxu0 0.0
  %3844 = vmatprep.subr.mxu0 0.0
  %3845 = vmatpush1.msra.mxu0 0.0
  %3846 = vmatprep.subr.mxu0 0.0
  %3847 = vmatpush1.msra.mxu0 0.0
  %3848 = vmatprep.subr.mxu0 0.0
  %3849 = vmatpush1.msra.mxu0 0.0
  %3850 = vmatprep.subr.mxu0 0.0
  %3851 = vmatpush1.msra.mxu0 0.0
  %3852 = vmatprep.subr.mxu0 0.0
  %3853 = vmatpush1.msra.mxu0 0.0
  %3854 = vmatprep.subr.mxu0 0.0
  %3855 = vmatpush1.msra.mxu0 0.0
  %3856 = vmatprep.subr.mxu0 0.0
  %3857 = vmatpush1.msra.mxu0 0.0
  %3858 = vmatprep.subr.mxu0 0.0
  %3859 = vmatpush1.msra.mxu0 0.0
  %3860 = vmatprep.subr.mxu0 0.0
  %3861 = vmatpush1.msra.mxu0 0.0
  %3862 = vmatprep.subr.mxu0 0.0
  %3863 = vmatpush1.msra.mxu0 0.0
  %3864 = vmatprep.subr.mxu0 0.0
  %3865 = vmatpush1.msra.mxu0 0.0
  %3866 = vmatprep.subr.mxu0 0.0
  %3867 = vmatpush1.msra.mxu0 0.0
  %3868 = vmatprep.subr.mxu0 0.0
  %3869 = vmatpush1.msra.mxu0 0.0
  %3870 = vmatprep.subr.mxu0 0.0
  %3871 = vmatpush1.msra.mxu0 0.0
  %3872 = vmatprep.subr.mxu0 0.0
  %3873 = vmatpush1.msra.mxu0 0.0
  %3874 = vmatprep.subr.mxu0 0.0
  %3875 = vmatpush1.msra.mxu0 0.0
  %3876 = vmatprep.subr.mxu0 0.0
  %3877 = vmatpush1.msra.mxu0 0.0
  %3878 = vmatprep.subr.mxu0 0.0
  %3879 = vmatpush1.msra.mxu0 0.0
  %3880 = vmatprep.subr.mxu0 0.0
  %3881 = vmatpush1.msra.mxu0 0.0
  %3882 = vmatprep.subr.mxu0 0.0
  %3883 = vmatpush1.msra.mxu0 0.0
  %3884 = vmatprep.subr.mxu0 0.0
  %3885 = vmatpush1.msra.mxu0 0.0
  %3886 = vmatprep.subr.mxu0 0.0
  %3887 = vmatpush1.msra.mxu0 0.0
  %3888 = vmatprep.subr.mxu0 0.0
  %3889 = vmatpush1.msra.mxu0 0.0
  %3890 = vmatprep.subr.mxu0 0.0
  %3891 = vmatpush1.msra.mxu0 0.0
  %3892 = vmatprep.subr.mxu0 0.0
  %3893 = vmatpush1.msra.mxu0 0.0
  %3894 = vmatprep.mubr.f32.mxu0 0.0
  %v3895 = vand.u32 %v3826, 4294901760
  %v3896 = vsub.f32 %v3826, %v3895
  %v3897 = vand.u32 %v3896, 4294901760
  %v3898 = vsub.f32 %v3896, %v3897
  %v3899 = vand.u32 %v3898, 4294901760
  %3900 = vmatmul.mubr.f32.gmra.mrb[0].mxu0 %v3899
  %v3901 = vpop.f32.mrb[0].mxu0
  %v3902 = vadd.f32 0.0, %v3901
  %v3903 = vpop.f32.mrb[0].mxu0
  %3904 = vdwg.mxu0
  %3905 = vmatprep.subr.mxu0 0.0
  %v3906 = vand.u32 %v14, 4294901760
  %v3907 = vsub.f32 %v14, %v3906
  %v3908 = vand.u32 %v3907, 4294901760
  %v3909 = vsub.f32 %v3907, %v3908
  %v3910 = vand.u32 %v3909, 4294901760
  %3911 = vmatpush1.msra.mxu0 %v3910
  %3912 = vmatprep.subr.mxu0 0.0
  %v3913 = vand.u32 %v558, 4294901760
  %v3914 = vsub.f32 %v558, %v3913
  %v3915 = vand.u32 %v3914, 4294901760
  %v3916 = vsub.f32 %v3914, %v3915
  %v3917 = vand.u32 %v3916, 4294901760
  %3918 = vmatpush1.msra.mxu0 %v3917
  %3919 = vmatprep.subr.mxu0 0.0
  %3920 = vmatpush1.msra.mxu0 0.0
  %3921 = vmatprep.subr.mxu0 0.0
  %3922 = vmatpush1.msra.mxu0 0.0
  %3923 = vmatprep.subr.mxu0 0.0
  %3924 = vmatpush1.msra.mxu0 0.0
  %3925 = vmatprep.subr.mxu0 0.0
  %3926 = vmatpush1.msra.mxu0 0.0
  %3927 = vmatprep.subr.mxu0 0.0
  %3928 = vmatpush1.msra.mxu0 0.0
  %3929 = vmatprep.subr.mxu0 0.0
  %3930 = vmatpush1.msra.mxu0 0.0
  %3931 = vmatprep.subr.mxu0 0.0
  %3932 = vmatpush1.msra.mxu0 0.0
  %3933 = vmatprep.subr.mxu0 0.0
  %3934 = vmatpush1.msra.mxu0 0.0
  %3935 = vmatprep.subr.mxu0 0.0
  %3936 = vmatpush1.msra.mxu0 0.0
  %3937 = vmatprep.subr.mxu0 0.0
  %3938 = vmatpush1.msra.mxu0 0.0
  %3939 = vmatprep.subr.mxu0 0.0
  %3940 = vmatpush1.msra.mxu0 0.0
  %3941 = vmatprep.subr.mxu0 0.0
  %3942 = vmatpush1.msra.mxu0 0.0
  %3943 = vmatprep.subr.mxu0 0.0
  %3944 = vmatpush1.msra.mxu0 0.0
  %3945 = vmatprep.subr.mxu0 0.0
  %3946 = vmatpush1.msra.mxu0 0.0
  %3947 = vmatprep.subr.mxu0 0.0
  %3948 = vmatpush1.msra.mxu0 0.0
  %3949 = vmatprep.subr.mxu0 0.0
  %3950 = vmatpush1.msra.mxu0 0.0
  %3951 = vmatprep.subr.mxu0 0.0
  %3952 = vmatpush1.msra.mxu0 0.0
  %3953 = vmatprep.subr.mxu0 0.0
  %3954 = vmatpush1.msra.mxu0 0.0
  %3955 = vmatprep.subr.mxu0 0.0
  %3956 = vmatpush1.msra.mxu0 0.0
  %3957 = vmatprep.subr.mxu0 0.0
  %3958 = vmatpush1.msra.mxu0 0.0
  %3959 = vmatprep.subr.mxu0 0.0
  %3960 = vmatpush1.msra.mxu0 0.0
  %3961 = vmatprep.subr.mxu0 0.0
  %3962 = vmatpush1.msra.mxu0 0.0
  %3963 = vmatprep.subr.mxu0 0.0
  %3964 = vmatpush1.msra.mxu0 0.0
  %3965 = vmatprep.subr.mxu0 0.0
  %3966 = vmatpush1.msra.mxu0 0.0
  %3967 = vmatprep.subr.mxu0 0.0
  %3968 = vmatpush1.msra.mxu0 0.0
  %3969 = vmatprep.subr.mxu0 0.0
  %3970 = vmatpush1.msra.mxu0 0.0
  %3971 = vmatprep.subr.mxu0 0.0
  %3972 = vmatpush1.msra.mxu0 0.0
  %3973 = vmatprep.subr.mxu0 0.0
  %3974 = vmatpush1.msra.mxu0 0.0
  %3975 = vmatprep.subr.mxu0 0.0
  %3976 = vmatpush1.msra.mxu0 0.0
  %3977 = vmatprep.subr.mxu0 0.0
  %3978 = vmatpush1.msra.mxu0 0.0
  %3979 = vmatprep.mubr.f32.mxu0 0.0
  %v3980 = vand.u32 %v3826, 4294901760
  %3981 = vmatmul.mubr.f32.gmra.mrb[0].mxu0 %v3980
  %v3982 = vpop.f32.mrb[0].mxu0
  %v3983 = vadd.f32 %v3902, %v3982
  %v3984 = vpop.f32.mrb[0].mxu0
  %3985 = vdwg.mxu0
  %3986 = vmatprep.subr.mxu0 0.0
  %v3987 = vand.u32 %v14, 4294901760
  %v3988 = vsub.f32 %v14, %v3987
  %3989 = vmatpush1.msra.mxu0 %v3988
  %3990 = vmatprep.subr.mxu0 0.0
  %v3991 = vand.u32 %v558, 4294901760
  %v3992 = vsub.f32 %v558, %v3991
  %3993 = vmatpush1.msra.mxu0 %v3992
  %3994 = vmatprep.subr.mxu0 0.0
  %3995 = vmatpush1.msra.mxu0 0.0
  %3996 = vmatprep.subr.mxu0 0.0
  %3997 = vmatpush1.msra.mxu0 0.0
  %3998 = vmatprep.subr.mxu0 0.0
  %3999 = vmatpush1.msra.mxu0 0.0
  %4000 = vmatprep.subr.mxu0 0.0
  %4001 = vmatpush1.msra.mxu0 0.0
  %4002 = vmatprep.subr.mxu0 0.0
  %4003 = vmatpush1.msra.mxu0 0.0
  %4004 = vmatprep.subr.mxu0 0.0
  %4005 = vmatpush1.msra.mxu0 0.0
  %4006 = vmatprep.subr.mxu0 0.0
  %4007 = vmatpush1.msra.mxu0 0.0
  %4008 = vmatprep.subr.mxu0 0.0
  %4009 = vmatpush1.msra.mxu0 0.0
  %4010 = vmatprep.subr.mxu0 0.0
  %4011 = vmatpush1.msra.mxu0 0.0
  %4012 = vmatprep.subr.mxu0 0.0
  %4013 = vmatpush1.msra.mxu0 0.0
  %4014 = vmatprep.subr.mxu0 0.0
  %4015 = vmatpush1.msra.mxu0 0.0
  %4016 = vmatprep.subr.mxu0 0.0
  %4017 = vmatpush1.msra.mxu0 0.0
  %4018 = vmatprep.subr.mxu0 0.0
  %4019 = vmatpush1.msra.mxu0 0.0
  %4020 = vmatprep.subr.mxu0 0.0
  %4021 = vmatpush1.msra.mxu0 0.0
  %4022 = vmatprep.subr.mxu0 0.0
  %4023 = vmatpush1.msra.mxu0 0.0
  %4024 = vmatprep.subr.mxu0 0.0
  %4025 = vmatpush1.msra.mxu0 0.0
  %4026 = vmatprep.subr.mxu0 0.0
  %4027 = vmatpush1.msra.mxu0 0.0
  %4028 = vmatprep.subr.mxu0 0.0
  %4029 = vmatpush1.msra.mxu0 0.0
  %4030 = vmatprep.subr.mxu0 0.0
  %4031 = vmatpush1.msra.mxu0 0.0
  %4032 = vmatprep.subr.mxu0 0.0
  %4033 = vmatpush1.msra.mxu0 0.0
  %4034 = vmatprep.subr.mxu0 0.0
  %4035 = vmatpush1.msra.mxu0 0.0
  %4036 = vmatprep.subr.mxu0 0.0
  %4037 = vmatpush1.msra.mxu0 0.0
  %4038 = vmatprep.subr.mxu0 0.0
  %4039 = vmatpush1.msra.mxu0 0.0
  %4040 = vmatprep.subr.mxu0 0.0
  %4041 = vmatpush1.msra.mxu0 0.0
  %4042 = vmatprep.subr.mxu0 0.0
  %4043 = vmatpush1.msra.mxu0 0.0
  %4044 = vmatprep.subr.mxu0 0.0
  %4045 = vmatpush1.msra.mxu0 0.0
  %4046 = vmatprep.subr.mxu0 0.0
  %4047 = vmatpush1.msra.mxu0 0.0
  %4048 = vmatprep.subr.mxu0 0.0
  %4049 = vmatpush1.msra.mxu0 0.0
  %4050 = vmatprep.subr.mxu0 0.0
  %4051 = vmatpush1.msra.mxu0 0.0
  %4052 = vmatprep.subr.mxu0 0.0
  %4053 = vmatpush1.msra.mxu0 0.0
  %4054 = vmatprep.mubr.f32.mxu0 0.0
  %v4055 = vand.u32 %v3826, 4294901760
  %v4056 = vsub.f32 %v3826, %v4055
  %4057 = vmatmul.mubr.f32.gmra.mrb[0].mxu0 %v4056
  %v4058 = vpop.f32.mrb[0].mxu0
  %v4059 = vadd.f32 %v3983, %v4058
  %v4060 = vpop.f32.mrb[0].mxu0
  %4061 = vdwg.mxu0
  %4062 = vmatprep.subr.mxu0 0.0
  %v4063 = vand.u32 %v14, 4294901760
  %4064 = vmatpush1.msra.mxu0 %v4063
  %4065 = vmatprep.subr.mxu0 0.0
  %v4066 = vand.u32 %v558, 4294901760
  %4067 = vmatpush1.msra.mxu0 %v4066
  %4068 = vmatprep.subr.mxu0 0.0
  %4069 = vmatpush1.msra.mxu0 0.0
  %4070 = vmatprep.subr.mxu0 0.0
  %4071 = vmatpush1.msra.mxu0 0.0
  %4072 = vmatprep.subr.mxu0 0.0
  %4073 = vmatpush1.msra.mxu0 0.0
  %4074 = vmatprep.subr.mxu0 0.0
  %4075 = vmatpush1.msra.mxu0 0.0
  %4076 = vmatprep.subr.mxu0 0.0
  %4077 = vmatpush1.msra.mxu0 0.0
  %4078 = vmatprep.subr.mxu0 0.0
  %4079 = vmatpush1.msra.mxu0 0.0
  %4080 = vmatprep.subr.mxu0 0.0
  %4081 = vmatpush1.msra.mxu0 0.0
  %4082 = vmatprep.subr.mxu0 0.0
  %4083 = vmatpush1.msra.mxu0 0.0
  %4084 = vmatprep.subr.mxu0 0.0
  %4085 = vmatpush1.msra.mxu0 0.0
  %4086 = vmatprep.subr.mxu0 0.0
  %4087 = vmatpush1.msra.mxu0 0.0
  %4088 = vmatprep.subr.mxu0 0.0
  %4089 = vmatpush1.msra.mxu0 0.0
  %4090 = vmatprep.subr.mxu0 0.0
  %4091 = vmatpush1.msra.mxu0 0.0
  %4092 = vmatprep.subr.mxu0 0.0
  %4093 = vmatpush1.msra.mxu0 0.0
  %4094 = vmatprep.subr.mxu0 0.0
  %4095 = vmatpush1.msra.mxu0 0.0
  %4096 = vmatprep.subr.mxu0 0.0
  %4097 = vmatpush1.msra.mxu0 0.0
  %4098 = vmatprep.subr.mxu0 0.0
  %4099 = vmatpush1.msra.mxu0 0.0
  %4100 = vmatprep.subr.mxu0 0.0
  %4101 = vmatpush1.msra.mxu0 0.0
  %4102 = vmatprep.subr.mxu0 0.0
  %4103 = vmatpush1.msra.mxu0 0.0
  %4104 = vmatprep.subr.mxu0 0.0
  %4105 = vmatpush1.msra.mxu0 0.0
  %4106 = vmatprep.subr.mxu0 0.0
  %4107 = vmatpush1.msra.mxu0 0.0
  %4108 = vmatprep.subr.mxu0 0.0
  %4109 = vmatpush1.msra.mxu0 0.0
  %4110 = vmatprep.subr.mxu0 0.0
  %4111 = vmatpush1.msra.mxu0 0.0
  %4112 = vmatprep.subr.mxu0 0.0
  %4113 = vmatpush1.msra.mxu0 0.0
  %4114 = vmatprep.subr.mxu0 0.0
  %4115 = vmatpush1.msra.mxu0 0.0
  %4116 = vmatprep.subr.mxu0 0.0
  %4117 = vmatpush1.msra.mxu0 0.0
  %4118 = vmatprep.subr.mxu0 0.0
  %4119 = vmatpush1.msra.mxu0 0.0
  %4120 = vmatprep.subr.mxu0 0.0
  %4121 = vmatpush1.msra.mxu0 0.0
  %4122 = vmatprep.subr.mxu0 0.0
  %4123 = vmatpush1.msra.mxu0 0.0
  %4124 = vmatprep.subr.mxu0 0.0
  %4125 = vmatpush1.msra.mxu0 0.0
  %4126 = vmatprep.subr.mxu0 0.0
  %4127 = vmatpush1.msra.mxu0 0.0
  %4128 = vmatprep.mubr.f32.mxu0 0.0
  %v4129 = vand.u32 %v3826, 4294901760
  %v4130 = vsub.f32 %v3826, %v4129
  %v4131 = vand.u32 %v4130, 4294901760
  %4132 = vmatmul.mubr.f32.gmra.mrb[0].mxu0 %v4131
  %v4133 = vpop.f32.mrb[0].mxu0
  %v4134 = vadd.f32 %v4059, %v4133
  %v4135 = vpop.f32.mrb[0].mxu0
  %4136 = vdwg.mxu0
  %4137 = vmatprep.subr.mxu0 0.0
  %v4138 = vand.u32 %v14, 4294901760
  %v4139 = vsub.f32 %v14, %v4138
  %v4140 = vand.u32 %v4139, 4294901760
  %4141 = vmatpush1.msra.mxu0 %v4140
  %4142 = vmatprep.subr.mxu0 0.0
  %v4143 = vand.u32 %v558, 4294901760
  %v4144 = vsub.f32 %v558, %v4143
  %v4145 = vand.u32 %v4144, 4294901760
  %4146 = vmatpush1.msra.mxu0 %v4145
  %4147 = vmatprep.subr.mxu0 0.0
  %4148 = vmatpush1.msra.mxu0 0.0
  %4149 = vmatprep.subr.mxu0 0.0
  %4150 = vmatpush1.msra.mxu0 0.0
  %4151 = vmatprep.subr.mxu0 0.0
  %4152 = vmatpush1.msra.mxu0 0.0
  %4153 = vmatprep.subr.mxu0 0.0
  %4154 = vmatpush1.msra.mxu0 0.0
  %4155 = vmatprep.subr.mxu0 0.0
  %4156 = vmatpush1.msra.mxu0 0.0
  %4157 = vmatprep.subr.mxu0 0.0
  %4158 = vmatpush1.msra.mxu0 0.0
  %4159 = vmatprep.subr.mxu0 0.0
  %4160 = vmatpush1.msra.mxu0 0.0
  %4161 = vmatprep.subr.mxu0 0.0
  %4162 = vmatpush1.msra.mxu0 0.0
  %4163 = vmatprep.subr.mxu0 0.0
  %4164 = vmatpush1.msra.mxu0 0.0
  %4165 = vmatprep.subr.mxu0 0.0
  %4166 = vmatpush1.msra.mxu0 0.0
  %4167 = vmatprep.subr.mxu0 0.0
  %4168 = vmatpush1.msra.mxu0 0.0
  %4169 = vmatprep.subr.mxu0 0.0
  %4170 = vmatpush1.msra.mxu0 0.0
  %4171 = vmatprep.subr.mxu0 0.0
  %4172 = vmatpush1.msra.mxu0 0.0
  %4173 = vmatprep.subr.mxu0 0.0
  %4174 = vmatpush1.msra.mxu0 0.0
  %4175 = vmatprep.subr.mxu0 0.0
  %4176 = vmatpush1.msra.mxu0 0.0
  %4177 = vmatprep.subr.mxu0 0.0
  %4178 = vmatpush1.msra.mxu0 0.0
  %4179 = vmatprep.subr.mxu0 0.0
  %4180 = vmatpush1.msra.mxu0 0.0
  %4181 = vmatprep.subr.mxu0 0.0
  %4182 = vmatpush1.msra.mxu0 0.0
  %4183 = vmatprep.subr.mxu0 0.0
  %4184 = vmatpush1.msra.mxu0 0.0
  %4185 = vmatprep.subr.mxu0 0.0
  %4186 = vmatpush1.msra.mxu0 0.0
  %4187 = vmatprep.subr.mxu0 0.0
  %4188 = vmatpush1.msra.mxu0 0.0
  %4189 = vmatprep.subr.mxu0 0.0
  %4190 = vmatpush1.msra.mxu0 0.0
  %4191 = vmatprep.subr.mxu0 0.0
  %4192 = vmatpush1.msra.mxu0 0.0
  %4193 = vmatprep.subr.mxu0 0.0
  %4194 = vmatpush1.msra.mxu0 0.0
  %4195 = vmatprep.subr.mxu0 0.0
  %4196 = vmatpush1.msra.mxu0 0.0
  %4197 = vmatprep.subr.mxu0 0.0
  %4198 = vmatpush1.msra.mxu0 0.0
  %4199 = vmatprep.subr.mxu0 0.0
  %4200 = vmatpush1.msra.mxu0 0.0
  %4201 = vmatprep.subr.mxu0 0.0
  %4202 = vmatpush1.msra.mxu0 0.0
  %4203 = vmatprep.subr.mxu0 0.0
  %4204 = vmatpush1.msra.mxu0 0.0
  %4205 = vmatprep.subr.mxu0 0.0
  %4206 = vmatpush1.msra.mxu0 0.0
  %4207 = vmatprep.mubr.f32.mxu0 0.0
  %v4208 = vand.u32 %v3826, 4294901760
  %4209 = vmatmul.mubr.f32.gmra.mrb[0].mxu0 %v4208
  %v4210 = vpop.f32.mrb[0].mxu0
  %v4211 = vadd.f32 %v4134, %v4210
  %v4212 = vpop.f32.mrb[0].mxu0
  %4213 = vdwg.mxu0
  %4214 = vmatprep.subr.mxu0 0.0
  %v4215 = vand.u32 %v14, 4294901760
  %4216 = vmatpush1.msra.mxu0 %v4215
  %4217 = vmatprep.subr.mxu0 0.0
  %v4218 = vand.u32 %v558, 4294901760
  %4219 = vmatpush1.msra.mxu0 %v4218
  %4220 = vmatprep.subr.mxu0 0.0
  %4221 = vmatpush1.msra.mxu0 0.0
  %4222 = vmatprep.subr.mxu0 0.0
  %4223 = vmatpush1.msra.mxu0 0.0
  %4224 = vmatprep.subr.mxu0 0.0
  %4225 = vmatpush1.msra.mxu0 0.0
  %4226 = vmatprep.subr.mxu0 0.0
  %4227 = vmatpush1.msra.mxu0 0.0
  %4228 = vmatprep.subr.mxu0 0.0
  %4229 = vmatpush1.msra.mxu0 0.0
  %4230 = vmatprep.subr.mxu0 0.0
  %4231 = vmatpush1.msra.mxu0 0.0
  %4232 = vmatprep.subr.mxu0 0.0
  %4233 = vmatpush1.msra.mxu0 0.0
  %4234 = vmatprep.subr.mxu0 0.0
  %4235 = vmatpush1.msra.mxu0 0.0
  %4236 = vmatprep.subr.mxu0 0.0
  %4237 = vmatpush1.msra.mxu0 0.0
  %4238 = vmatprep.subr.mxu0 0.0
  %4239 = vmatpush1.msra.mxu0 0.0
  %4240 = vmatprep.subr.mxu0 0.0
  %4241 = vmatpush1.msra.mxu0 0.0
  %4242 = vmatprep.subr.mxu0 0.0
  %4243 = vmatpush1.msra.mxu0 0.0
  %4244 = vmatprep.subr.mxu0 0.0
  %4245 = vmatpush1.msra.mxu0 0.0
  %4246 = vmatprep.subr.mxu0 0.0
  %4247 = vmatpush1.msra.mxu0 0.0
  %4248 = vmatprep.subr.mxu0 0.0
  %4249 = vmatpush1.msra.mxu0 0.0
  %4250 = vmatprep.subr.mxu0 0.0
  %4251 = vmatpush1.msra.mxu0 0.0
  %4252 = vmatprep.subr.mxu0 0.0
  %4253 = vmatpush1.msra.mxu0 0.0
  %4254 = vmatprep.subr.mxu0 0.0
  %4255 = vmatpush1.msra.mxu0 0.0
  %4256 = vmatprep.subr.mxu0 0.0
  %4257 = vmatpush1.msra.mxu0 0.0
  %4258 = vmatprep.subr.mxu0 0.0
  %4259 = vmatpush1.msra.mxu0 0.0
  %4260 = vmatprep.subr.mxu0 0.0
  %4261 = vmatpush1.msra.mxu0 0.0
  %4262 = vmatprep.subr.mxu0 0.0
  %4263 = vmatpush1.msra.mxu0 0.0
  %4264 = vmatprep.subr.mxu0 0.0
  %4265 = vmatpush1.msra.mxu0 0.0
  %4266 = vmatprep.subr.mxu0 0.0
  %4267 = vmatpush1.msra.mxu0 0.0
  %4268 = vmatprep.subr.mxu0 0.0
  %4269 = vmatpush1.msra.mxu0 0.0
  %4270 = vmatprep.subr.mxu0 0.0
  %4271 = vmatpush1.msra.mxu0 0.0
  %4272 = vmatprep.subr.mxu0 0.0
  %4273 = vmatpush1.msra.mxu0 0.0
  %4274 = vmatprep.subr.mxu0 0.0
  %4275 = vmatpush1.msra.mxu0 0.0
  %4276 = vmatprep.subr.mxu0 0.0
  %4277 = vmatpush1.msra.mxu0 0.0
  %4278 = vmatprep.subr.mxu0 0.0
  %4279 = vmatpush1.msra.mxu0 0.0
  %4280 = vmatprep.mubr.f32.mxu0 0.0
  %v4281 = vand.u32 %v3826, 4294901760
  %4282 = vmatmul.mubr.f32.gmra.mrb[0].mxu0 %v4281
  %v4283 = vpop.f32.mrb[0].mxu0
  %v4284 = vadd.f32 %v4211, %v4283
  %v4285 = vpop.f32.mrb[0].mxu0
  %4286 = vdwg.mxu0
  %v4288 = vrot.slane %v4284, 2
  %v4290 = vadd.f32 %v549, %v4288
  %v4291 = vtanh.pop %v4290
  %v4292 = vlaneseq
  %v4293 = vshrl.u32 %v4292, 7
  %v4294 = vsub.s32 0, %v4293
  %v4295 = vrot.slane %v19, %v4294
  %v4297 = vrot.slane %v4291, 6
  %v4298 = vsel %vm552, %v4297, 0
  %v4301 = vsel %vm556, %v17, 0
  %4303 = vmatprep.subr.mxu0 0.0
  %v4304 = vand.u32 %v16, 4294901760
  %4305 = vmatpush1.msra.mxu0 %v4304
  %4306 = vmatprep.subr.mxu0 0.0
  %v4307 = vand.u32 %v4301, 4294901760
  %4308 = vmatpush1.msra.mxu0 %v4307
  %4309 = vmatprep.subr.mxu0 0.0
  %4310 = vmatpush1.msra.mxu0 0.0
  %4311 = vmatprep.subr.mxu0 0.0
  %4312 = vmatpush1.msra.mxu0 0.0
  %4313 = vmatprep.subr.mxu0 0.0
  %4314 = vmatpush1.msra.mxu0 0.0
  %4315 = vmatprep.subr.mxu0 0.0
  %4316 = vmatpush1.msra.mxu0 0.0
  %4317 = vmatprep.subr.mxu0 0.0
  %4318 = vmatpush1.msra.mxu0 0.0
  %4319 = vmatprep.subr.mxu0 0.0
  %4320 = vmatpush1.msra.mxu0 0.0
  %4321 = vmatprep.subr.mxu0 0.0
  %4322 = vmatpush1.msra.mxu0 0.0
  %4323 = vmatprep.subr.mxu0 0.0
  %4324 = vmatpush1.msra.mxu0 0.0
  %4325 = vmatprep.subr.mxu0 0.0
  %4326 = vmatpush1.msra.mxu0 0.0
  %4327 = vmatprep.subr.mxu0 0.0
  %4328 = vmatpush1.msra.mxu0 0.0
  %4329 = vmatprep.subr.mxu0 0.0
  %4330 = vmatpush1.msra.mxu0 0.0
  %4331 = vmatprep.subr.mxu0 0.0
  %4332 = vmatpush1.msra.mxu0 0.0
  %4333 = vmatprep.subr.mxu0 0.0
  %4334 = vmatpush1.msra.mxu0 0.0
  %4335 = vmatprep.subr.mxu0 0.0
  %4336 = vmatpush1.msra.mxu0 0.0
  %4337 = vmatprep.subr.mxu0 0.0
  %4338 = vmatpush1.msra.mxu0 0.0
  %4339 = vmatprep.subr.mxu0 0.0
  %4340 = vmatpush1.msra.mxu0 0.0
  %4341 = vmatprep.subr.mxu0 0.0
  %4342 = vmatpush1.msra.mxu0 0.0
  %4343 = vmatprep.subr.mxu0 0.0
  %4344 = vmatpush1.msra.mxu0 0.0
  %4345 = vmatprep.subr.mxu0 0.0
  %4346 = vmatpush1.msra.mxu0 0.0
  %4347 = vmatprep.subr.mxu0 0.0
  %4348 = vmatpush1.msra.mxu0 0.0
  %4349 = vmatprep.subr.mxu0 0.0
  %4350 = vmatpush1.msra.mxu0 0.0
  %4351 = vmatprep.subr.mxu0 0.0
  %4352 = vmatpush1.msra.mxu0 0.0
  %4353 = vmatprep.subr.mxu0 0.0
  %4354 = vmatpush1.msra.mxu0 0.0
  %4355 = vmatprep.subr.mxu0 0.0
  %4356 = vmatpush1.msra.mxu0 0.0
  %4357 = vmatprep.subr.mxu0 0.0
  %4358 = vmatpush1.msra.mxu0 0.0
  %4359 = vmatprep.subr.mxu0 0.0
  %4360 = vmatpush1.msra.mxu0 0.0
  %4361 = vmatprep.subr.mxu0 0.0
  %4362 = vmatpush1.msra.mxu0 0.0
  %4363 = vmatprep.subr.mxu0 0.0
  %4364 = vmatpush1.msra.mxu0 0.0
  %4365 = vmatprep.subr.mxu0 0.0
  %4366 = vmatpush1.msra.mxu0 0.0
  %4367 = vmatprep.subr.mxu0 0.0
  %4368 = vmatpush1.msra.mxu0 0.0
  %4369 = vmatprep.mubr.f32.mxu0 0.0
  %v4370 = vand.u32 %v4298, 4294901760
  %v4371 = vsub.f32 %v4298, %v4370
  %v4372 = vand.u32 %v4371, 4294901760
  %v4373 = vsub.f32 %v4371, %v4372
  %v4374 = vand.u32 %v4373, 4294901760
  %4375 = vmatmul.mubr.f32.gmra.mrb[0].mxu0 %v4374
  %v4376 = vpop.f32.mrb[0].mxu0
  %v4377 = vadd.f32 %v4295, %v4376
  %v4378 = vpop.f32.mrb[0].mxu0
  %4379 = vdwg.mxu0
  %4380 = vmatprep.subr.mxu0 0.0
  %v4381 = vand.u32 %v16, 4294901760
  %v4382 = vsub.f32 %v16, %v4381
  %v4383 = vand.u32 %v4382, 4294901760
  %v4384 = vsub.f32 %v4382, %v4383
  %v4385 = vand.u32 %v4384, 4294901760
  %4386 = vmatpush1.msra.mxu0 %v4385
  %4387 = vmatprep.subr.mxu0 0.0
  %v4388 = vand.u32 %v4301, 4294901760
  %v4389 = vsub.f32 %v4301, %v4388
  %v4390 = vand.u32 %v4389, 4294901760
  %v4391 = vsub.f32 %v4389, %v4390
  %v4392 = vand.u32 %v4391, 4294901760
  %4393 = vmatpush1.msra.mxu0 %v4392
  %4394 = vmatprep.subr.mxu0 0.0
  %4395 = vmatpush1.msra.mxu0 0.0
  %4396 = vmatprep.subr.mxu0 0.0
  %4397 = vmatpush1.msra.mxu0 0.0
  %4398 = vmatprep.subr.mxu0 0.0
  %4399 = vmatpush1.msra.mxu0 0.0
  %4400 = vmatprep.subr.mxu0 0.0
  %4401 = vmatpush1.msra.mxu0 0.0
  %4402 = vmatprep.subr.mxu0 0.0
  %4403 = vmatpush1.msra.mxu0 0.0
  %4404 = vmatprep.subr.mxu0 0.0
  %4405 = vmatpush1.msra.mxu0 0.0
  %4406 = vmatprep.subr.mxu0 0.0
  %4407 = vmatpush1.msra.mxu0 0.0
  %4408 = vmatprep.subr.mxu0 0.0
  %4409 = vmatpush1.msra.mxu0 0.0
  %4410 = vmatprep.subr.mxu0 0.0
  %4411 = vmatpush1.msra.mxu0 0.0
  %4412 = vmatprep.subr.mxu0 0.0
  %4413 = vmatpush1.msra.mxu0 0.0
  %4414 = vmatprep.subr.mxu0 0.0
  %4415 = vmatpush1.msra.mxu0 0.0
  %4416 = vmatprep.subr.mxu0 0.0
  %4417 = vmatpush1.msra.mxu0 0.0
  %4418 = vmatprep.subr.mxu0 0.0
  %4419 = vmatpush1.msra.mxu0 0.0
  %4420 = vmatprep.subr.mxu0 0.0
  %4421 = vmatpush1.msra.mxu0 0.0
  %4422 = vmatprep.subr.mxu0 0.0
  %4423 = vmatpush1.msra.mxu0 0.0
  %4424 = vmatprep.subr.mxu0 0.0
  %4425 = vmatpush1.msra.mxu0 0.0
  %4426 = vmatprep.subr.mxu0 0.0
  %4427 = vmatpush1.msra.mxu0 0.0
  %4428 = vmatprep.subr.mxu0 0.0
  %4429 = vmatpush1.msra.mxu0 0.0
  %4430 = vmatprep.subr.mxu0 0.0
  %4431 = vmatpush1.msra.mxu0 0.0
  %4432 = vmatprep.subr.mxu0 0.0
  %4433 = vmatpush1.msra.mxu0 0.0
  %4434 = vmatprep.subr.mxu0 0.0
  %4435 = vmatpush1.msra.mxu0 0.0
  %4436 = vmatprep.subr.mxu0 0.0
  %4437 = vmatpush1.msra.mxu0 0.0
  %4438 = vmatprep.subr.mxu0 0.0
  %4439 = vmatpush1.msra.mxu0 0.0
  %4440 = vmatprep.subr.mxu0 0.0
  %4441 = vmatpush1.msra.mxu0 0.0
  %4442 = vmatprep.subr.mxu0 0.0
  %4443 = vmatpush1.msra.mxu0 0.0
  %4444 = vmatprep.subr.mxu0 0.0
  %4445 = vmatpush1.msra.mxu0 0.0
  %4446 = vmatprep.subr.mxu0 0.0
  %4447 = vmatpush1.msra.mxu0 0.0
  %4448 = vmatprep.subr.mxu0 0.0
  %4449 = vmatpush1.msra.mxu0 0.0
  %4450 = vmatprep.subr.mxu0 0.0
  %4451 = vmatpush1.msra.mxu0 0.0
  %4452 = vmatprep.subr.mxu0 0.0
  %4453 = vmatpush1.msra.mxu0 0.0
  %4454 = vmatprep.mubr.f32.mxu0 0.0
  %v4455 = vand.u32 %v4298, 4294901760
  %4456 = vmatmul.mubr.f32.gmra.mrb[0].mxu0 %v4455
  %v4457 = vpop.f32.mrb[0].mxu0
  %v4458 = vadd.f32 %v4377, %v4457
  %v4459 = vpop.f32.mrb[0].mxu0
  %4460 = vdwg.mxu0
  %4461 = vmatprep.subr.mxu0 0.0
  %v4462 = vand.u32 %v16, 4294901760
  %v4463 = vsub.f32 %v16, %v4462
  %4464 = vmatpush1.msra.mxu0 %v4463
  %4465 = vmatprep.subr.mxu0 0.0
  %v4466 = vand.u32 %v4301, 4294901760
  %v4467 = vsub.f32 %v4301, %v4466
  %4468 = vmatpush1.msra.mxu0 %v4467
  %4469 = vmatprep.subr.mxu0 0.0
  %4470 = vmatpush1.msra.mxu0 0.0
  %4471 = vmatprep.subr.mxu0 0.0
  %4472 = vmatpush1.msra.mxu0 0.0
  %4473 = vmatprep.subr.mxu0 0.0
  %4474 = vmatpush1.msra.mxu0 0.0
  %4475 = vmatprep.subr.mxu0 0.0
  %4476 = vmatpush1.msra.mxu0 0.0
  %4477 = vmatprep.subr.mxu0 0.0
  %4478 = vmatpush1.msra.mxu0 0.0
  %4479 = vmatprep.subr.mxu0 0.0
  %4480 = vmatpush1.msra.mxu0 0.0
  %4481 = vmatprep.subr.mxu0 0.0
  %4482 = vmatpush1.msra.mxu0 0.0
  %4483 = vmatprep.subr.mxu0 0.0
  %4484 = vmatpush1.msra.mxu0 0.0
  %4485 = vmatprep.subr.mxu0 0.0
  %4486 = vmatpush1.msra.mxu0 0.0
  %4487 = vmatprep.subr.mxu0 0.0
  %4488 = vmatpush1.msra.mxu0 0.0
  %4489 = vmatprep.subr.mxu0 0.0
  %4490 = vmatpush1.msra.mxu0 0.0
  %4491 = vmatprep.subr.mxu0 0.0
  %4492 = vmatpush1.msra.mxu0 0.0
  %4493 = vmatprep.subr.mxu0 0.0
  %4494 = vmatpush1.msra.mxu0 0.0
  %4495 = vmatprep.subr.mxu0 0.0
  %4496 = vmatpush1.msra.mxu0 0.0
  %4497 = vmatprep.subr.mxu0 0.0
  %4498 = vmatpush1.msra.mxu0 0.0
  %4499 = vmatprep.subr.mxu0 0.0
  %4500 = vmatpush1.msra.mxu0 0.0
  %4501 = vmatprep.subr.mxu0 0.0
  %4502 = vmatpush1.msra.mxu0 0.0
  %4503 = vmatprep.subr.mxu0 0.0
  %4504 = vmatpush1.msra.mxu0 0.0
  %4505 = vmatprep.subr.mxu0 0.0
  %4506 = vmatpush1.msra.mxu0 0.0
  %4507 = vmatprep.subr.mxu0 0.0
  %4508 = vmatpush1.msra.mxu0 0.0
  %4509 = vmatprep.subr.mxu0 0.0
  %4510 = vmatpush1.msra.mxu0 0.0
  %4511 = vmatprep.subr.mxu0 0.0
  %4512 = vmatpush1.msra.mxu0 0.0
  %4513 = vmatprep.subr.mxu0 0.0
  %4514 = vmatpush1.msra.mxu0 0.0
  %4515 = vmatprep.subr.mxu0 0.0
  %4516 = vmatpush1.msra.mxu0 0.0
  %4517 = vmatprep.subr.mxu0 0.0
  %4518 = vmatpush1.msra.mxu0 0.0
  %4519 = vmatprep.subr.mxu0 0.0
  %4520 = vmatpush1.msra.mxu0 0.0
  %4521 = vmatprep.subr.mxu0 0.0
  %4522 = vmatpush1.msra.mxu0 0.0
  %4523 = vmatprep.subr.mxu0 0.0
  %4524 = vmatpush1.msra.mxu0 0.0
  %4525 = vmatprep.subr.mxu0 0.0
  %4526 = vmatpush1.msra.mxu0 0.0
  %4527 = vmatprep.subr.mxu0 0.0
  %4528 = vmatpush1.msra.mxu0 0.0
  %4529 = vmatprep.mubr.f32.mxu0 0.0
  %v4530 = vand.u32 %v4298, 4294901760
  %v4531 = vsub.f32 %v4298, %v4530
  %4532 = vmatmul.mubr.f32.gmra.mrb[0].mxu0 %v4531
  %v4533 = vpop.f32.mrb[0].mxu0
  %v4534 = vadd.f32 %v4458, %v4533
  %v4535 = vpop.f32.mrb[0].mxu0
  %4536 = vdwg.mxu0
  %4537 = vmatprep.subr.mxu0 0.0
  %v4538 = vand.u32 %v16, 4294901760
  %4539 = vmatpush1.msra.mxu0 %v4538
  %4540 = vmatprep.subr.mxu0 0.0
  %v4541 = vand.u32 %v4301, 4294901760
  %4542 = vmatpush1.msra.mxu0 %v4541
  %4543 = vmatprep.subr.mxu0 0.0
  %4544 = vmatpush1.msra.mxu0 0.0
  %4545 = vmatprep.subr.mxu0 0.0
  %4546 = vmatpush1.msra.mxu0 0.0
  %4547 = vmatprep.subr.mxu0 0.0
  %4548 = vmatpush1.msra.mxu0 0.0
  %4549 = vmatprep.subr.mxu0 0.0
  %4550 = vmatpush1.msra.mxu0 0.0
  %4551 = vmatprep.subr.mxu0 0.0
  %4552 = vmatpush1.msra.mxu0 0.0
  %4553 = vmatprep.subr.mxu0 0.0
  %4554 = vmatpush1.msra.mxu0 0.0
  %4555 = vmatprep.subr.mxu0 0.0
  %4556 = vmatpush1.msra.mxu0 0.0
  %4557 = vmatprep.subr.mxu0 0.0
  %4558 = vmatpush1.msra.mxu0 0.0
  %4559 = vmatprep.subr.mxu0 0.0
  %4560 = vmatpush1.msra.mxu0 0.0
  %4561 = vmatprep.subr.mxu0 0.0
  %4562 = vmatpush1.msra.mxu0 0.0
  %4563 = vmatprep.subr.mxu0 0.0
  %4564 = vmatpush1.msra.mxu0 0.0
  %4565 = vmatprep.subr.mxu0 0.0
  %4566 = vmatpush1.msra.mxu0 0.0
  %4567 = vmatprep.subr.mxu0 0.0
  %4568 = vmatpush1.msra.mxu0 0.0
  %4569 = vmatprep.subr.mxu0 0.0
  %4570 = vmatpush1.msra.mxu0 0.0
  %4571 = vmatprep.subr.mxu0 0.0
  %4572 = vmatpush1.msra.mxu0 0.0
  %4573 = vmatprep.subr.mxu0 0.0
  %4574 = vmatpush1.msra.mxu0 0.0
  %4575 = vmatprep.subr.mxu0 0.0
  %4576 = vmatpush1.msra.mxu0 0.0
  %4577 = vmatprep.subr.mxu0 0.0
  %4578 = vmatpush1.msra.mxu0 0.0
  %4579 = vmatprep.subr.mxu0 0.0
  %4580 = vmatpush1.msra.mxu0 0.0
  %4581 = vmatprep.subr.mxu0 0.0
  %4582 = vmatpush1.msra.mxu0 0.0
  %4583 = vmatprep.subr.mxu0 0.0
  %4584 = vmatpush1.msra.mxu0 0.0
  %4585 = vmatprep.subr.mxu0 0.0
  %4586 = vmatpush1.msra.mxu0 0.0
  %4587 = vmatprep.subr.mxu0 0.0
  %4588 = vmatpush1.msra.mxu0 0.0
  %4589 = vmatprep.subr.mxu0 0.0
  %4590 = vmatpush1.msra.mxu0 0.0
  %4591 = vmatprep.subr.mxu0 0.0
  %4592 = vmatpush1.msra.mxu0 0.0
  %4593 = vmatprep.subr.mxu0 0.0
  %4594 = vmatpush1.msra.mxu0 0.0
  %4595 = vmatprep.subr.mxu0 0.0
  %4596 = vmatpush1.msra.mxu0 0.0
  %4597 = vmatprep.subr.mxu0 0.0
  %4598 = vmatpush1.msra.mxu0 0.0
  %4599 = vmatprep.subr.mxu0 0.0
  %4600 = vmatpush1.msra.mxu0 0.0
  %4601 = vmatprep.subr.mxu0 0.0
  %4602 = vmatpush1.msra.mxu0 0.0
  %4603 = vmatprep.mubr.f32.mxu0 0.0
  %v4604 = vand.u32 %v4298, 4294901760
  %v4605 = vsub.f32 %v4298, %v4604
  %v4606 = vand.u32 %v4605, 4294901760
  %4607 = vmatmul.mubr.f32.gmra.mrb[0].mxu0 %v4606
  %v4608 = vpop.f32.mrb[0].mxu0
  %v4609 = vadd.f32 %v4534, %v4608
  %v4610 = vpop.f32.mrb[0].mxu0
  %4611 = vdwg.mxu0
  %4612 = vmatprep.subr.mxu0 0.0
  %v4613 = vand.u32 %v16, 4294901760
  %v4614 = vsub.f32 %v16, %v4613
  %v4615 = vand.u32 %v4614, 4294901760
  %4616 = vmatpush1.msra.mxu0 %v4615
  %4617 = vmatprep.subr.mxu0 0.0
  %v4618 = vand.u32 %v4301, 4294901760
  %v4619 = vsub.f32 %v4301, %v4618
  %v4620 = vand.u32 %v4619, 4294901760
  %4621 = vmatpush1.msra.mxu0 %v4620
  %4622 = vmatprep.subr.mxu0 0.0
  %4623 = vmatpush1.msra.mxu0 0.0
  %4624 = vmatprep.subr.mxu0 0.0
  %4625 = vmatpush1.msra.mxu0 0.0
  %4626 = vmatprep.subr.mxu0 0.0
  %4627 = vmatpush1.msra.mxu0 0.0
  %4628 = vmatprep.subr.mxu0 0.0
  %4629 = vmatpush1.msra.mxu0 0.0
  %4630 = vmatprep.subr.mxu0 0.0
  %4631 = vmatpush1.msra.mxu0 0.0
  %4632 = vmatprep.subr.mxu0 0.0
  %4633 = vmatpush1.msra.mxu0 0.0
  %4634 = vmatprep.subr.mxu0 0.0
  %4635 = vmatpush1.msra.mxu0 0.0
  %4636 = vmatprep.subr.mxu0 0.0
  %4637 = vmatpush1.msra.mxu0 0.0
  %4638 = vmatprep.subr.mxu0 0.0
  %4639 = vmatpush1.msra.mxu0 0.0
  %4640 = vmatprep.subr.mxu0 0.0
  %4641 = vmatpush1.msra.mxu0 0.0
  %4642 = vmatprep.subr.mxu0 0.0
  %4643 = vmatpush1.msra.mxu0 0.0
  %4644 = vmatprep.subr.mxu0 0.0
  %4645 = vmatpush1.msra.mxu0 0.0
  %4646 = vmatprep.subr.mxu0 0.0
  %4647 = vmatpush1.msra.mxu0 0.0
  %4648 = vmatprep.subr.mxu0 0.0
  %4649 = vmatpush1.msra.mxu0 0.0
  %4650 = vmatprep.subr.mxu0 0.0
  %4651 = vmatpush1.msra.mxu0 0.0
  %4652 = vmatprep.subr.mxu0 0.0
  %4653 = vmatpush1.msra.mxu0 0.0
  %4654 = vmatprep.subr.mxu0 0.0
  %4655 = vmatpush1.msra.mxu0 0.0
  %4656 = vmatprep.subr.mxu0 0.0
  %4657 = vmatpush1.msra.mxu0 0.0
  %4658 = vmatprep.subr.mxu0 0.0
  %4659 = vmatpush1.msra.mxu0 0.0
  %4660 = vmatprep.subr.mxu0 0.0
  %4661 = vmatpush1.msra.mxu0 0.0
  %4662 = vmatprep.subr.mxu0 0.0
  %4663 = vmatpush1.msra.mxu0 0.0
  %4664 = vmatprep.subr.mxu0 0.0
  %4665 = vmatpush1.msra.mxu0 0.0
  %4666 = vmatprep.subr.mxu0 0.0
  %4667 = vmatpush1.msra.mxu0 0.0
  %4668 = vmatprep.subr.mxu0 0.0
  %4669 = vmatpush1.msra.mxu0 0.0
  %4670 = vmatprep.subr.mxu0 0.0
  %4671 = vmatpush1.msra.mxu0 0.0
  %4672 = vmatprep.subr.mxu0 0.0
  %4673 = vmatpush1.msra.mxu0 0.0
  %4674 = vmatprep.subr.mxu0 0.0
  %4675 = vmatpush1.msra.mxu0 0.0
  %4676 = vmatprep.subr.mxu0 0.0
  %4677 = vmatpush1.msra.mxu0 0.0
  %4678 = vmatprep.subr.mxu0 0.0
  %4679 = vmatpush1.msra.mxu0 0.0
  %4680 = vmatprep.subr.mxu0 0.0
  %4681 = vmatpush1.msra.mxu0 0.0
  %4682 = vmatprep.mubr.f32.mxu0 0.0
  %v4683 = vand.u32 %v4298, 4294901760
  %4684 = vmatmul.mubr.f32.gmra.mrb[0].mxu0 %v4683
  %v4685 = vpop.f32.mrb[0].mxu0
  %v4686 = vadd.f32 %v4609, %v4685
  %v4687 = vpop.f32.mrb[0].mxu0
  %4688 = vdwg.mxu0
  %4689 = vmatprep.subr.mxu0 0.0
  %v4690 = vand.u32 %v16, 4294901760
  %4691 = vmatpush1.msra.mxu0 %v4690
  %4692 = vmatprep.subr.mxu0 0.0
  %v4693 = vand.u32 %v4301, 4294901760
  %4694 = vmatpush1.msra.mxu0 %v4693
  %4695 = vmatprep.subr.mxu0 0.0
  %4696 = vmatpush1.msra.mxu0 0.0
  %4697 = vmatprep.subr.mxu0 0.0
  %4698 = vmatpush1.msra.mxu0 0.0
  %4699 = vmatprep.subr.mxu0 0.0
  %4700 = vmatpush1.msra.mxu0 0.0
  %4701 = vmatprep.subr.mxu0 0.0
  %4702 = vmatpush1.msra.mxu0 0.0
  %4703 = vmatprep.subr.mxu0 0.0
  %4704 = vmatpush1.msra.mxu0 0.0
  %4705 = vmatprep.subr.mxu0 0.0
  %4706 = vmatpush1.msra.mxu0 0.0
  %4707 = vmatprep.subr.mxu0 0.0
  %4708 = vmatpush1.msra.mxu0 0.0
  %4709 = vmatprep.subr.mxu0 0.0
  %4710 = vmatpush1.msra.mxu0 0.0
  %4711 = vmatprep.subr.mxu0 0.0
  %4712 = vmatpush1.msra.mxu0 0.0
  %4713 = vmatprep.subr.mxu0 0.0
  %4714 = vmatpush1.msra.mxu0 0.0
  %4715 = vmatprep.subr.mxu0 0.0
  %4716 = vmatpush1.msra.mxu0 0.0
  %4717 = vmatprep.subr.mxu0 0.0
  %4718 = vmatpush1.msra.mxu0 0.0
  %4719 = vmatprep.subr.mxu0 0.0
  %4720 = vmatpush1.msra.mxu0 0.0
  %4721 = vmatprep.subr.mxu0 0.0
  %4722 = vmatpush1.msra.mxu0 0.0
  %4723 = vmatprep.subr.mxu0 0.0
  %4724 = vmatpush1.msra.mxu0 0.0
  %4725 = vmatprep.subr.mxu0 0.0
  %4726 = vmatpush1.msra.mxu0 0.0
  %4727 = vmatprep.subr.mxu0 0.0
  %4728 = vmatpush1.msra.mxu0 0.0
  %4729 = vmatprep.subr.mxu0 0.0
  %4730 = vmatpush1.msra.mxu0 0.0
  %4731 = vmatprep.subr.mxu0 0.0
  %4732 = vmatpush1.msra.mxu0 0.0
  %4733 = vmatprep.subr.mxu0 0.0
  %4734 = vmatpush1.msra.mxu0 0.0
  %4735 = vmatprep.subr.mxu0 0.0
  %4736 = vmatpush1.msra.mxu0 0.0
  %4737 = vmatprep.subr.mxu0 0.0
  %4738 = vmatpush1.msra.mxu0 0.0
  %4739 = vmatprep.subr.mxu0 0.0
  %4740 = vmatpush1.msra.mxu0 0.0
  %4741 = vmatprep.subr.mxu0 0.0
  %4742 = vmatpush1.msra.mxu0 0.0
  %4743 = vmatprep.subr.mxu0 0.0
  %4744 = vmatpush1.msra.mxu0 0.0
  %4745 = vmatprep.subr.mxu0 0.0
  %4746 = vmatpush1.msra.mxu0 0.0
  %4747 = vmatprep.subr.mxu0 0.0
  %4748 = vmatpush1.msra.mxu0 0.0
  %4749 = vmatprep.subr.mxu0 0.0
  %4750 = vmatpush1.msra.mxu0 0.0
  %4751 = vmatprep.subr.mxu0 0.0
  %4752 = vmatpush1.msra.mxu0 0.0
  %4753 = vmatprep.subr.mxu0 0.0
  %4754 = vmatpush1.msra.mxu0 0.0
  %4755 = vmatprep.mubr.f32.mxu0 0.0
  %v4756 = vand.u32 %v4298, 4294901760
  %4757 = vmatmul.mubr.f32.gmra.mrb[0].mxu0 %v4756
  %v4758 = vpop.f32.mrb[0].mxu0
  %v4759 = vadd.f32 %v4686, %v4758
  %v4760 = vpop.f32.mrb[0].mxu0
  %4761 = vdwg.mxu0
  %v4762 = vlaneseq
  %v4763 = vand.u32 %v4762, 127
  %vm4764 = vcmp.lt.s32.totalorder %v4763, 4
  %v4765 = vmax.f32 %v4759, 0.0
  %v4766 = vsub.f32 0.0, %v4759
  %v4767 = vmul.f32 %v4766, 1.442695
  %v4768 = vpow.pop %v4767
  %v4769 = vadd.f32 %v4768, 1.0
  %v4770 = vrcp.pop %v4769
  %v4771 = vmul.f32 3.1415927, %v4770
  %v4772 = vsel %vm4764, %v4765, %v4771
  %4774 = vrot.lane.b32.xlu0 %v4772, 126
  %v4775 = vpop.permute.xlu0 %4774
  %v4777 = vadd.f32 %v4772, %v4775
  %v4778 = vmul.f32 %v4777, 0.5
  %v4779 = vsub.f32 %v4772, %v4775
  %v4780 = vmul.f32 %v4779, 0.5
  %v4781 = vmul.f32 %v4772, 0.5
  %v4782 = vand.u32 2147483647, %v4781
  %vm4783 = vcmp.le.f32.partialorder %v4782, 0.7853982
  %vm4784 = vcmp.lt.s32.totalorder %v4781, 0
  %v4785 = vand.u32 %v4781, 2139095040
  %v4786 = vshrl.u32 %v4785, 23
  %v4787 = vsub.s32 %v4786, 127
  %v4788 = vand.u32 2147483647, %v4781
  %v4789 = vand.u32 %v4788, 8388607
  %v4790 = vor.u32 %v4789, 8388608
  %v4791 = vsub.s32 0, %v4790
  %v4792 = vadd.s32 %v4787, 1
  %vm4793 = vcmp.gt.s32.totalorder %v4792, 0
  %v4794 = vsel %vm4793, %v4792, 0
  %v4795 = vshrl.u32 %v4794, 5
  %v4796 = vand.u32 %v4794, 31
  %v4797 = vsub.s32 32, %v4796
  %v4798 = vshrl.u32 683565275, %v4797
  %v4799 = vshll.u32 683565275, %v4796
  %v4800 = vshrl.u32 2475754826, %v4797
  %v4801 = vor.u32 %v4799, %v4800
  %v4802 = vshll.u32 2475754826, %v4796
  %v4803 = vshrl.u32 2131351028, %v4797
  %v4804 = vor.u32 %v4802, %v4803
  %v4805 = vshll.u32 2131351028, %v4796
  %v4806 = vshrl.u32 2102212464, %v4797
  %v4807 = vor.u32 %v4805, %v4806
  %v4808 = vshll.u32 2102212464, %v4796
  %v4809 = vshrl.u32 920167782, %v4797
  %v4810 = vor.u32 %v4808, %v4809
  %v4811 = vshll.u32 920167782, %v4796
  %v4812 = vshrl.u32 1326507024, %v4797
  %v4813 = vor.u32 %v4811, %v4812
  %vm4814 = vcmp.lt.s32.totalorder %v4795, 1
  %vm4815 = vcmp.lt.s32.totalorder %v4795, 2
  %vm4816 = vcmp.lt.s32.totalorder %v4795, 3
  %vm4817 = vcmp.lt.s32.totalorder %v4795, 4
  %v4818 = vsel %vm4814, %v4798, %v4801
  %v4819 = vsel %vm4817, %v4807, 2102212464
  %v4820 = vsel %vm4816, %v4804, %v4819
  %v4821 = vsel %vm4815, %v4818, %v4820
  %v4822 = vsel %vm4814, %v4801, %v4804
  %v4823 = vsel %vm4817, %v4810, 920167782
  %v4824 = vsel %vm4816, %v4807, %v4823
  %v4825 = vsel %vm4815, %v4822, %v4824
  %v4826 = vsel %vm4814, %v4804, %v4807
  %v4827 = vsel %vm4817, %v4813, 1326507024
  %v4828 = vsel %vm4816, %v4810, %v4827
  %v4829 = vsel %vm4815, %v4826, %v4828
  %v4830 = vshll.u32 %v4790, 8
  %v4831 = vmul.u32.u64.compose %v4830, %v4829
  %v4832 = vextract.low.u32 %v4831
  %v4833 = vextract.high.u32 %v4831
  %v4834 = vmul.u32.u64.compose %v4830, %v4825
  %v4835 = vextract.low.u32 %v4834
  %v4836 = vextract.high.u32 %v4834
  %v4837 = vmul.u32 %v4830, %v4821
  %v4838 = vadd.s32 %v4833, %v4835
  %vm4839 = vc.u32 %v4833, %v4835
  %v4840 = vadd.s32 %v4836, 1
  %v4841 = vsel %vm4839, %v4840, %v4836
  %v4842 = vadd.s32 %v4837, %v4841
  %v4843 = vadd.s32 %v4842, 536870912
  %v4844 = vshrl.u32 %v4843, 30
  %v4845 = vshll.u32 %v4844, 30
  %v4846 = vsub.s32 %v4842, %v4845
  %vm4847 = vcmp.lt.s32.totalorder %v4846, 0
  %v4848 = vsub.s32 0, %v4846
  %v4849 = vsel %vm4847, %v4848, %v4846
  %v4850 = vclz %v4849
  %v4851 = vsub.s32 %v4850, 2
  %vm4852 = vcmp.gt.s32.totalorder 0, %v4851
  %v4853 = vsel %vm4852, 0, %v4851
  %v4854 = vsub.s32 32, %v4853
  %v4855 = vshll.u32 %v4846, %v4853
  %v4856 = vshrl.u32 %v4838, %v4854
  %v4857 = vor.u32 %v4855, %v4856
  %v4858 = vsub.s32 4294967266, %v4853
  %v4859 = vadd.s32 %v4858, 127
  %v4860 = vshll.u32 %v4859, 23
  %v4861 = vor.u32 4788187, %v4860
  %v4862 = vand.u32 2147483647, %v4861
  %v4864 = vcvt.s32.f32 %v4857
  %v4865 = vmul.f32 %v4864, %v4862
  %v4866 = vxor.u32 %v4865, 2147483648
  %v4867 = vsel %vm4784, %v4866, %v4865
  %v4868 = vsub.s32 4, %v4844
  %v4869 = vsel %vm4784, %v4868, %v4844
  %v4870 = vsel %vm4783, %v4781, %v4867
  %v4871 = vsel %vm4783, 0, %v4869
  %v4872 = vcosq.f32.pop %v4870
  %v4873 = vsinq.f32.pop %v4870
  %vm4874 = vweird.f32 %v4781
  %v4875 = vand.u32 %v4871, 3
  %vm4876 = vcmp.lt.s32.totalorder %v4875, 2
  %vm4877 = vcmp.eq.s32.totalorder %v4875, 0
  %v4878 = vxor.u32 %v4873, 2147483648
  %v4879 = vsel %vm4877, %v4872, %v4878
  %vm4880 = vcmp.eq.s32.totalorder %v4875, 2
  %v4881 = vxor.u32 %v4872, 2147483648
  %v4882 = vsel %vm4880, %v4881, %v4873
  %v4883 = vsel %vm4876, %v4879, %v4882
  %v4884 = vsel %vm4874, nan, %v4883
  %v4885 = vand.u32 2147483647, %v4781
  %vm4886 = vcmp.le.f32.partialorder %v4885, 0.7853982
  %vm4887 = vcmp.lt.s32.totalorder %v4781, 0
  %v4888 = vand.u32 %v4781, 2139095040
  %v4889 = vshrl.u32 %v4888, 23
  %v4890 = vsub.s32 %v4889, 127
  %v4891 = vand.u32 2147483647, %v4781
  %v4892 = vand.u32 %v4891, 8388607
  %v4893 = vor.u32 %v4892, 8388608
  %v4894 = vsub.s32 0, %v4893
  %v4895 = vadd.s32 %v4890, 1
  %vm4896 = vcmp.gt.s32.totalorder %v4895, 0
  %v4897 = vsel %vm4896, %v4895, 0
  %v4898 = vshrl.u32 %v4897, 5
  %v4899 = vand.u32 %v4897, 31
  %v4900 = vsub.s32 32, %v4899
  %v4901 = vshrl.u32 683565275, %v4900
  %v4902 = vshll.u32 683565275, %v4899
  %v4903 = vshrl.u32 2475754826, %v4900
  %v4904 = vor.u32 %v4902, %v4903
  %v4905 = vshll.u32 2475754826, %v4899
  %v4906 = vshrl.u32 2131351028, %v4900
  %v4907 = vor.u32 %v4905, %v4906
  %v4908 = vshll.u32 2131351028, %v4899
  %v4909 = vshrl.u32 2102212464, %v4900
  %v4910 = vor.u32 %v4908, %v4909
  %v4911 = vshll.u32 2102212464, %v4899
  %v4912 = vshrl.u32 920167782, %v4900
  %v4913 = vor.u32 %v4911, %v4912
  %v4914 = vshll.u32 920167782, %v4899
  %v4915 = vshrl.u32 1326507024, %v4900
  %v4916 = vor.u32 %v4914, %v4915
  %vm4917 = vcmp.lt.s32.totalorder %v4898, 1
  %vm4918 = vcmp.lt.s32.totalorder %v4898, 2
  %vm4919 = vcmp.lt.s32.totalorder %v4898, 3
  %vm4920 = vcmp.lt.s32.totalorder %v4898, 4
  %v4921 = vsel %vm4917, %v4901, %v4904
  %v4922 = vsel %vm4920, %v4910, 2102212464
  %v4923 = vsel %vm4919, %v4907, %v4922
  %v4924 = vsel %vm4918, %v4921, %v4923
  %v4925 = vsel %vm4917, %v4904, %v4907
  %v4926 = vsel %vm4920, %v4913, 920167782
  %v4927 = vsel %vm4919, %v4910, %v4926
  %v4928 = vsel %vm4918, %v4925, %v4927
  %v4929 = vsel %vm4917, %v4907, %v4910
  %v4930 = vsel %vm4920, %v4916, 1326507024
  %v4931 = vsel %vm4919, %v4913, %v4930
  %v4932 = vsel %vm4918, %v4929, %v4931
  %v4933 = vshll.u32 %v4893, 8
  %v4934 = vmul.u32.u64.compose %v4933, %v4932
  %v4935 = vextract.low.u32 %v4934
  %v4936 = vextract.high.u32 %v4934
  %v4937 = vmul.u32.u64.compose %v4933, %v4928
  %v4938 = vextract.low.u32 %v4937
  %v4939 = vextract.high.u32 %v4937
  %v4940 = vmul.u32 %v4933, %v4924
  %v4941 = vadd.s32 %v4936, %v4938
  %vm4942 = vc.u32 %v4936, %v4938
  %v4943 = vadd.s32 %v4939, 1
  %v4944 = vsel %vm4942, %v4943, %v4939
  %v4945 = vadd.s32 %v4940, %v4944
  %v4946 = vadd.s32 %v4945, 536870912
  %v4947 = vshrl.u32 %v4946, 30
  %v4948 = vshll.u32 %v4947, 30
  %v4949 = vsub.s32 %v4945, %v4948
  %vm4950 = vcmp.lt.s32.totalorder %v4949, 0
  %v4951 = vsub.s32 0, %v4949
  %v4952 = vsel %vm4950, %v4951, %v4949
  %v4953 = vclz %v4952
  %v4954 = vsub.s32 %v4953, 2
  %vm4955 = vcmp.gt.s32.totalorder 0, %v4954
  %v4956 = vsel %vm4955, 0, %v4954
  %v4957 = vsub.s32 32, %v4956
  %v4958 = vshll.u32 %v4949, %v4956
  %v4959 = vshrl.u32 %v4941, %v4957
  %v4960 = vor.u32 %v4958, %v4959
  %v4961 = vsub.s32 4294967266, %v4956
  %v4962 = vadd.s32 %v4961, 127
  %v4963 = vshll.u32 %v4962, 23
  %v4964 = vor.u32 4788187, %v4963
  %v4965 = vand.u32 2147483647, %v4964
  %v4967 = vcvt.s32.f32 %v4960
  %v4968 = vmul.f32 %v4967, %v4965
  %v4969 = vxor.u32 %v4968, 2147483648
  %v4970 = vsel %vm4887, %v4969, %v4968
  %v4971 = vsub.s32 4, %v4947
  %v4972 = vsel %vm4887, %v4971, %v4947
  %v4973 = vsel %vm4886, %v4781, %v4970
  %v4974 = vsel %vm4886, 0, %v4972
  %v4975 = vcosq.f32.pop %v4973
  %v4976 = vsinq.f32.pop %v4973
  %vm4977 = vweird.f32 %v4781
  %v4978 = vadd.s32 %v4974, 3
  %v4979 = vand.u32 %v4978, 3
  %vm4980 = vcmp.lt.s32.totalorder %v4979, 2
  %vm4981 = vcmp.eq.s32.totalorder %v4979, 0
  %v4982 = vxor.u32 %v4976, 2147483648
  %v4983 = vsel %vm4981, %v4975, %v4982
  %vm4984 = vcmp.eq.s32.totalorder %v4979, 2
  %v4985 = vxor.u32 %v4975, 2147483648
  %v4986 = vsel %vm4984, %v4985, %v4976
  %v4987 = vsel %vm4980, %v4983, %v4986
  %v4988 = vsel %vm4977, nan, %v4987
  %v4989 = vand.u32 2147483647, %v4778
  %vm4990 = vcmp.le.f32.partialorder %v4989, 0.7853982
  %vm4991 = vcmp.lt.s32.totalorder %v4778, 0
  %v4992 = vand.u32 %v4778, 2139095040
  %v4993 = vshrl.u32 %v4992, 23
  %v4994 = vsub.s32 %v4993, 127
  %v4995 = vand.u32 2147483647, %v4778
  %v4996 = vand.u32 %v4995, 8388607
  %v4997 = vor.u32 %v4996, 8388608
  %v4998 = vsub.s32 0, %v4997
  %v4999 = vadd.s32 %v4994, 1
  %vm5000 = vcmp.gt.s32.totalorder %v4999, 0
  %v5001 = vsel %vm5000, %v4999, 0
  %v5002 = vshrl.u32 %v5001, 5
  %v5003 = vand.u32 %v5001, 31
  %v5004 = vsub.s32 32, %v5003
  %v5005 = vshrl.u32 683565275, %v5004
  %v5006 = vshll.u32 683565275, %v5003
  %v5007 = vshrl.u32 2475754826, %v5004
  %v5008 = vor.u32 %v5006, %v5007
  %v5009 = vshll.u32 2475754826, %v5003
  %v5010 = vshrl.u32 2131351028, %v5004
  %v5011 = vor.u32 %v5009, %v5010
  %v5012 = vshll.u32 2131351028, %v5003
  %v5013 = vshrl.u32 2102212464, %v5004
  %v5014 = vor.u32 %v5012, %v5013
  %v5015 = vshll.u32 2102212464, %v5003
  %v5016 = vshrl.u32 920167782, %v5004
  %v5017 = vor.u32 %v5015, %v5016
  %v5018 = vshll.u32 920167782, %v5003
  %v5019 = vshrl.u32 1326507024, %v5004
  %v5020 = vor.u32 %v5018, %v5019
  %vm5021 = vcmp.lt.s32.totalorder %v5002, 1
  %vm5022 = vcmp.lt.s32.totalorder %v5002, 2
  %vm5023 = vcmp.lt.s32.totalorder %v5002, 3
  %vm5024 = vcmp.lt.s32.totalorder %v5002, 4
  %v5025 = vsel %vm5021, %v5005, %v5008
  %v5026 = vsel %vm5024, %v5014, 2102212464
  %v5027 = vsel %vm5023, %v5011, %v5026
  %v5028 = vsel %vm5022, %v5025, %v5027
  %v5029 = vsel %vm5021, %v5008, %v5011
  %v5030 = vsel %vm5024, %v5017, 920167782
  %v5031 = vsel %vm5023, %v5014, %v5030
  %v5032 = vsel %vm5022, %v5029, %v5031
  %v5033 = vsel %vm5021, %v5011, %v5014
  %v5034 = vsel %vm5024, %v5020, 1326507024
  %v5035 = vsel %vm5023, %v5017, %v5034
  %v5036 = vsel %vm5022, %v5033, %v5035
  %v5037 = vshll.u32 %v4997, 8
  %v5038 = vmul.u32.u64.compose %v5037, %v5036
  %v5039 = vextract.low.u32 %v5038
  %v5040 = vextract.high.u32 %v5038
  %v5041 = vmul.u32.u64.compose %v5037, %v5032
  %v5042 = vextract.low.u32 %v5041
  %v5043 = vextract.high.u32 %v5041
  %v5044 = vmul.u32 %v5037, %v5028
  %v5045 = vadd.s32 %v5040, %v5042
  %vm5046 = vc.u32 %v5040, %v5042
  %v5047 = vadd.s32 %v5043, 1
  %v5048 = vsel %vm5046, %v5047, %v5043
  %v5049 = vadd.s32 %v5044, %v5048
  %v5050 = vadd.s32 %v5049, 536870912
  %v5051 = vshrl.u32 %v5050, 30
  %v5052 = vshll.u32 %v5051, 30
  %v5053 = vsub.s32 %v5049, %v5052
  %vm5054 = vcmp.lt.s32.totalorder %v5053, 0
  %v5055 = vsub.s32 0, %v5053
  %v5056 = vsel %vm5054, %v5055, %v5053
  %v5057 = vclz %v5056
  %v5058 = vsub.s32 %v5057, 2
  %vm5059 = vcmp.gt.s32.totalorder 0, %v5058
  %v5060 = vsel %vm5059, 0, %v5058
  %v5061 = vsub.s32 32, %v5060
  %v5062 = vshll.u32 %v5053, %v5060
  %v5063 = vshrl.u32 %v5045, %v5061
  %v5064 = vor.u32 %v5062, %v5063
  %v5065 = vsub.s32 4294967266, %v5060
  %v5066 = vadd.s32 %v5065, 127
  %v5067 = vshll.u32 %v5066, 23
  %v5068 = vor.u32 4788187, %v5067
  %v5069 = vand.u32 2147483647, %v5068
  %v5071 = vcvt.s32.f32 %v5064
  %v5072 = vmul.f32 %v5071, %v5069
  %v5073 = vxor.u32 %v5072, 2147483648
  %v5074 = vsel %vm4991, %v5073, %v5072
  %v5075 = vsub.s32 4, %v5051
  %v5076 = vsel %vm4991, %v5075, %v5051
  %v5077 = vsel %vm4990, %v4778, %v5074
  %v5078 = vsel %vm4990, 0, %v5076
  %v5079 = vcosq.f32.pop %v5077
  %v5080 = vsinq.f32.pop %v5077
  %vm5081 = vweird.f32 %v4778
  %v5082 = vand.u32 %v5078, 3
  %vm5083 = vcmp.lt.s32.totalorder %v5082, 2
  %vm5084 = vcmp.eq.s32.totalorder %v5082, 0
  %v5085 = vxor.u32 %v5080, 2147483648
  %v5086 = vsel %vm5084, %v5079, %v5085
  %vm5087 = vcmp.eq.s32.totalorder %v5082, 2
  %v5088 = vxor.u32 %v5079, 2147483648
  %v5089 = vsel %vm5087, %v5088, %v5080
  %v5090 = vsel %vm5083, %v5086, %v5089
  %v5091 = vsel %vm5081, nan, %v5090
  %5093 = vrot.lane.b32.xlu0 %v4884, 127
  %v5094 = vpop.permute.xlu0 %5093
  %v5096 = vmul.f32 %v5091, %v5094
  %v5097 = vand.u32 2147483647, %v4778
  %vm5098 = vcmp.le.f32.partialorder %v5097, 0.7853982
  %vm5099 = vcmp.lt.s32.totalorder %v4778, 0
  %v5100 = vand.u32 %v4778, 2139095040
  %v5101 = vshrl.u32 %v5100, 23
  %v5102 = vsub.s32 %v5101, 127
  %v5103 = vand.u32 2147483647, %v4778
  %v5104 = vand.u32 %v5103, 8388607
  %v5105 = vor.u32 %v5104, 8388608
  %v5106 = vsub.s32 0, %v5105
  %v5107 = vadd.s32 %v5102, 1
  %vm5108 = vcmp.gt.s32.totalorder %v5107, 0
  %v5109 = vsel %vm5108, %v5107, 0
  %v5110 = vshrl.u32 %v5109, 5
  %v5111 = vand.u32 %v5109, 31
  %v5112 = vsub.s32 32, %v5111
  %v5113 = vshrl.u32 683565275, %v5112
  %v5114 = vshll.u32 683565275, %v5111
  %v5115 = vshrl.u32 2475754826, %v5112
  %v5116 = vor.u32 %v5114, %v5115
  %v5117 = vshll.u32 2475754826, %v5111
  %v5118 = vshrl.u32 2131351028, %v5112
  %v5119 = vor.u32 %v5117, %v5118
  %v5120 = vshll.u32 2131351028, %v5111
  %v5121 = vshrl.u32 2102212464, %v5112
  %v5122 = vor.u32 %v5120, %v5121
  %v5123 = vshll.u32 2102212464, %v5111
  %v5124 = vshrl.u32 920167782, %v5112
  %v5125 = vor.u32 %v5123, %v5124
  %v5126 = vshll.u32 920167782, %v5111
  %v5127 = vshrl.u32 1326507024, %v5112
  %v5128 = vor.u32 %v5126, %v5127
  %vm5129 = vcmp.lt.s32.totalorder %v5110, 1
  %vm5130 = vcmp.lt.s32.totalorder %v5110, 2
  %vm5131 = vcmp.lt.s32.totalorder %v5110, 3
  %vm5132 = vcmp.lt.s32.totalorder %v5110, 4
  %v5133 = vsel %vm5129, %v5113, %v5116
  %v5134 = vsel %vm5132, %v5122, 2102212464
  %v5135 = vsel %vm5131, %v5119, %v5134
  %v5136 = vsel %vm5130, %v5133, %v5135
  %v5137 = vsel %vm5129, %v5116, %v5119
  %v5138 = vsel %vm5132, %v5125, 920167782
  %v5139 = vsel %vm5131, %v5122, %v5138
  %v5140 = vsel %vm5130, %v5137, %v5139
  %v5141 = vsel %vm5129, %v5119, %v5122
  %v5142 = vsel %vm5132, %v5128, 1326507024
  %v5143 = vsel %vm5131, %v5125, %v5142
  %v5144 = vsel %vm5130, %v5141, %v5143
  %v5145 = vshll.u32 %v5105, 8
  %v5146 = vmul.u32.u64.compose %v5145, %v5144
  %v5147 = vextract.low.u32 %v5146
  %v5148 = vextract.high.u32 %v5146
  %v5149 = vmul.u32.u64.compose %v5145, %v5140
  %v5150 = vextract.low.u32 %v5149
  %v5151 = vextract.high.u32 %v5149
  %v5152 = vmul.u32 %v5145, %v5136
  %v5153 = vadd.s32 %v5148, %v5150
  %vm5154 = vc.u32 %v5148, %v5150
  %v5155 = vadd.s32 %v5151, 1
  %v5156 = vsel %vm5154, %v5155, %v5151
  %v5157 = vadd.s32 %v5152, %v5156
  %v5158 = vadd.s32 %v5157, 536870912
  %v5159 = vshrl.u32 %v5158, 30
  %v5160 = vshll.u32 %v5159, 30
  %v5161 = vsub.s32 %v5157, %v5160
  %vm5162 = vcmp.lt.s32.totalorder %v5161, 0
  %v5163 = vsub.s32 0, %v5161
  %v5164 = vsel %vm5162, %v5163, %v5161
  %v5165 = vclz %v5164
  %v5166 = vsub.s32 %v5165, 2
  %vm5167 = vcmp.gt.s32.totalorder 0, %v5166
  %v5168 = vsel %vm5167, 0, %v5166
  %v5169 = vsub.s32 32, %v5168
  %v5170 = vshll.u32 %v5161, %v5168
  %v5171 = vshrl.u32 %v5153, %v5169
  %v5172 = vor.u32 %v5170, %v5171
  %v5173 = vsub.s32 4294967266, %v5168
  %v5174 = vadd.s32 %v5173, 127
  %v5175 = vshll.u32 %v5174, 23
  %v5176 = vor.u32 4788187, %v5175
  %v5177 = vand.u32 2147483647, %v5176
  %v5179 = vcvt.s32.f32 %v5172
  %v5180 = vmul.f32 %v5179, %v5177
  %v5181 = vxor.u32 %v5180, 2147483648
  %v5182 = vsel %vm5099, %v5181, %v5180
  %v5183 = vsub.s32 4, %v5159
  %v5184 = vsel %vm5099, %v5183, %v5159
  %v5185 = vsel %vm5098, %v4778, %v5182
  %v5186 = vsel %vm5098, 0, %v5184
  %v5187 = vcosq.f32.pop %v5185
  %v5188 = vsinq.f32.pop %v5185
  %vm5189 = vweird.f32 %v4778
  %v5190 = vadd.s32 %v5186, 3
  %v5191 = vand.u32 %v5190, 3
  %vm5192 = vcmp.lt.s32.totalorder %v5191, 2
  %vm5193 = vcmp.eq.s32.totalorder %v5191, 0
  %v5194 = vxor.u32 %v5188, 2147483648
  %v5195 = vsel %vm5193, %v5187, %v5194
  %vm5196 = vcmp.eq.s32.totalorder %v5191, 2
  %v5197 = vxor.u32 %v5187, 2147483648
  %v5198 = vsel %vm5196, %v5197, %v5188
  %v5199 = vsel %vm5192, %v5195, %v5198
  %v5200 = vsel %vm5189, nan, %v5199
  %v5201 = vsub.f32 0.0, %v5200
  %v5202 = vmul.f32 %v5201, %v5094
  %v5203 = vand.u32 2147483647, %v4780
  %vm5204 = vcmp.le.f32.partialorder %v5203, 0.7853982
  %vm5205 = vcmp.lt.s32.totalorder %v4780, 0
  %v5206 = vand.u32 %v4780, 2139095040
  %v5207 = vshrl.u32 %v5206, 23
  %v5208 = vsub.s32 %v5207, 127
  %v5209 = vand.u32 2147483647, %v4780
  %v5210 = vand.u32 %v5209, 8388607
  %v5211 = vor.u32 %v5210, 8388608
  %v5212 = vsub.s32 0, %v5211
  %v5213 = vadd.s32 %v5208, 1
  %vm5214 = vcmp.gt.s32.totalorder %v5213, 0
  %v5215 = vsel %vm5214, %v5213, 0
  %v5216 = vshrl.u32 %v5215, 5
  %v5217 = vand.u32 %v5215, 31
  %v5218 = vsub.s32 32, %v5217
  %v5219 = vshrl.u32 683565275, %v5218
  %v5220 = vshll.u32 683565275, %v5217
  %v5221 = vshrl.u32 2475754826, %v5218
  %v5222 = vor.u32 %v5220, %v5221
  %v5223 = vshll.u32 2475754826, %v5217
  %v5224 = vshrl.u32 2131351028, %v5218
  %v5225 = vor.u32 %v5223, %v5224
  %v5226 = vshll.u32 2131351028, %v5217
  %v5227 = vshrl.u32 2102212464, %v5218
  %v5228 = vor.u32 %v5226, %v5227
  %v5229 = vshll.u32 2102212464, %v5217
  %v5230 = vshrl.u32 920167782, %v5218
  %v5231 = vor.u32 %v5229, %v5230
  %v5232 = vshll.u32 920167782, %v5217
  %v5233 = vshrl.u32 1326507024, %v5218
  %v5234 = vor.u32 %v5232, %v5233
  %vm5235 = vcmp.lt.s32.totalorder %v5216, 1
  %vm5236 = vcmp.lt.s32.totalorder %v5216, 2
  %vm5237 = vcmp.lt.s32.totalorder %v5216, 3
  %vm5238 = vcmp.lt.s32.totalorder %v5216, 4
  %v5239 = vsel %vm5235, %v5219, %v5222
  %v5240 = vsel %vm5238, %v5228, 2102212464
  %v5241 = vsel %vm5237, %v5225, %v5240
  %v5242 = vsel %vm5236, %v5239, %v5241
  %v5243 = vsel %vm5235, %v5222, %v5225
  %v5244 = vsel %vm5238, %v5231, 920167782
  %v5245 = vsel %vm5237, %v5228, %v5244
  %v5246 = vsel %vm5236, %v5243, %v5245
  %v5247 = vsel %vm5235, %v5225, %v5228
  %v5248 = vsel %vm5238, %v5234, 1326507024
  %v5249 = vsel %vm5237, %v5231, %v5248
  %v5250 = vsel %vm5236, %v5247, %v5249
  %v5251 = vshll.u32 %v5211, 8
  %v5252 = vmul.u32.u64.compose %v5251, %v5250
  %v5253 = vextract.low.u32 %v5252
  %v5254 = vextract.high.u32 %v5252
  %v5255 = vmul.u32.u64.compose %v5251, %v5246
  %v5256 = vextract.low.u32 %v5255
  %v5257 = vextract.high.u32 %v5255
  %v5258 = vmul.u32 %v5251, %v5242
  %v5259 = vadd.s32 %v5254, %v5256
  %vm5260 = vc.u32 %v5254, %v5256
  %v5261 = vadd.s32 %v5257, 1
  %v5262 = vsel %vm5260, %v5261, %v5257
  %v5263 = vadd.s32 %v5258, %v5262
  %v5264 = vadd.s32 %v5263, 536870912
  %v5265 = vshrl.u32 %v5264, 30
  %v5266 = vshll.u32 %v5265, 30
  %v5267 = vsub.s32 %v5263, %v5266
  %vm5268 = vcmp.lt.s32.totalorder %v5267, 0
  %v5269 = vsub.s32 0, %v5267
  %v5270 = vsel %vm5268, %v5269, %v5267
  %v5271 = vclz %v5270
  %v5272 = vsub.s32 %v5271, 2
  %vm5273 = vcmp.gt.s32.totalorder 0, %v5272
  %v5274 = vsel %vm5273, 0, %v5272
  %v5275 = vsub.s32 32, %v5274
  %v5276 = vshll.u32 %v5267, %v5274
  %v5277 = vshrl.u32 %v5259, %v5275
  %v5278 = vor.u32 %v5276, %v5277
  %v5279 = vsub.s32 4294967266, %v5274
  %v5280 = vadd.s32 %v5279, 127
  %v5281 = vshll.u32 %v5280, 23
  %v5282 = vor.u32 4788187, %v5281
  %v5283 = vand.u32 2147483647, %v5282
  %v5285 = vcvt.s32.f32 %v5278
  %v5286 = vmul.f32 %v5285, %v5283
  %v5287 = vxor.u32 %v5286, 2147483648
  %v5288 = vsel %vm5205, %v5287, %v5286
  %v5289 = vsub.s32 4, %v5265
  %v5290 = vsel %vm5205, %v5289, %v5265
  %v5291 = vsel %vm5204, %v4780, %v5288
  %v5292 = vsel %vm5204, 0, %v5290
  %v5293 = vcosq.f32.pop %v5291
  %v5294 = vsinq.f32.pop %v5291
  %vm5295 = vweird.f32 %v4780
  %v5296 = vand.u32 %v5292, 3
  %vm5297 = vcmp.lt.s32.totalorder %v5296, 2
  %vm5298 = vcmp.eq.s32.totalorder %v5296, 0
  %v5299 = vxor.u32 %v5294, 2147483648
  %v5300 = vsel %vm5298, %v5293, %v5299
  %vm5301 = vcmp.eq.s32.totalorder %v5296, 2
  %v5302 = vxor.u32 %v5293, 2147483648
  %v5303 = vsel %vm5301, %v5302, %v5294
  %v5304 = vsel %vm5297, %v5300, %v5303
  %v5305 = vsel %vm5295, nan, %v5304
  %v5306 = vsub.f32 0.0, %v5305
  %5308 = vrot.lane.b32.xlu0 %v4988, 127
  %v5309 = vpop.permute.xlu0 %5308
  %v5311 = vmul.f32 %v5306, %v5309
  %v5312 = vand.u32 2147483647, %v4780
  %vm5313 = vcmp.le.f32.partialorder %v5312, 0.7853982
  %vm5314 = vcmp.lt.s32.totalorder %v4780, 0
  %v5315 = vand.u32 %v4780, 2139095040
  %v5316 = vshrl.u32 %v5315, 23
  %v5317 = vsub.s32 %v5316, 127
  %v5318 = vand.u32 2147483647, %v4780
  %v5319 = vand.u32 %v5318, 8388607
  %v5320 = vor.u32 %v5319, 8388608
  %v5321 = vsub.s32 0, %v5320
  %v5322 = vadd.s32 %v5317, 1
  %vm5323 = vcmp.gt.s32.totalorder %v5322, 0
  %v5324 = vsel %vm5323, %v5322, 0
  %v5325 = vshrl.u32 %v5324, 5
  %v5326 = vand.u32 %v5324, 31
  %v5327 = vsub.s32 32, %v5326
  %v5328 = vshrl.u32 683565275, %v5327
  %v5329 = vshll.u32 683565275, %v5326
  %v5330 = vshrl.u32 2475754826, %v5327
  %v5331 = vor.u32 %v5329, %v5330
  %v5332 = vshll.u32 2475754826, %v5326
  %v5333 = vshrl.u32 2131351028, %v5327
  %v5334 = vor.u32 %v5332, %v5333
  %v5335 = vshll.u32 2131351028, %v5326
  %v5336 = vshrl.u32 2102212464, %v5327
  %v5337 = vor.u32 %v5335, %v5336
  %v5338 = vshll.u32 2102212464, %v5326
  %v5339 = vshrl.u32 920167782, %v5327
  %v5340 = vor.u32 %v5338, %v5339
  %v5341 = vshll.u32 920167782, %v5326
  %v5342 = vshrl.u32 1326507024, %v5327
  %v5343 = vor.u32 %v5341, %v5342
  %vm5344 = vcmp.lt.s32.totalorder %v5325, 1
  %vm5345 = vcmp.lt.s32.totalorder %v5325, 2
  %vm5346 = vcmp.lt.s32.totalorder %v5325, 3
  %vm5347 = vcmp.lt.s32.totalorder %v5325, 4
  %v5348 = vsel %vm5344, %v5328, %v5331
  %v5349 = vsel %vm5347, %v5337, 2102212464
  %v5350 = vsel %vm5346, %v5334, %v5349
  %v5351 = vsel %vm5345, %v5348, %v5350
  %v5352 = vsel %vm5344, %v5331, %v5334
  %v5353 = vsel %vm5347, %v5340, 920167782
  %v5354 = vsel %vm5346, %v5337, %v5353
  %v5355 = vsel %vm5345, %v5352, %v5354
  %v5356 = vsel %vm5344, %v5334, %v5337
  %v5357 = vsel %vm5347, %v5343, 1326507024
  %v5358 = vsel %vm5346, %v5340, %v5357
  %v5359 = vsel %vm5345, %v5356, %v5358
  %v5360 = vshll.u32 %v5320, 8
  %v5361 = vmul.u32.u64.compose %v5360, %v5359
  %v5362 = vextract.low.u32 %v5361
  %v5363 = vextract.high.u32 %v5361
  %v5364 = vmul.u32.u64.compose %v5360, %v5355
  %v5365 = vextract.low.u32 %v5364
  %v5366 = vextract.high.u32 %v5364
  %v5367 = vmul.u32 %v5360, %v5351
  %v5368 = vadd.s32 %v5363, %v5365
  %vm5369 = vc.u32 %v5363, %v5365
  %v5370 = vadd.s32 %v5366, 1
  %v5371 = vsel %vm5369, %v5370, %v5366
  %v5372 = vadd.s32 %v5367, %v5371
  %v5373 = vadd.s32 %v5372, 536870912
  %v5374 = vshrl.u32 %v5373, 30
  %v5375 = vshll.u32 %v5374, 30
  %v5376 = vsub.s32 %v5372, %v5375
  %vm5377 = vcmp.lt.s32.totalorder %v5376, 0
  %v5378 = vsub.s32 0, %v5376
  %v5379 = vsel %vm5377, %v5378, %v5376
  %v5380 = vclz %v5379
  %v5381 = vsub.s32 %v5380, 2
  %vm5382 = vcmp.gt.s32.totalorder 0, %v5381
  %v5383 = vsel %vm5382, 0, %v5381
  %v5384 = vsub.s32 32, %v5383
  %v5385 = vshll.u32 %v5376, %v5383
  %v5386 = vshrl.u32 %v5368, %v5384
  %v5387 = vor.u32 %v5385, %v5386
  %v5388 = vsub.s32 4294967266, %v5383
  %v5389 = vadd.s32 %v5388, 127
  %v5390 = vshll.u32 %v5389, 23
  %v5391 = vor.u32 4788187, %v5390
  %v5392 = vand.u32 2147483647, %v5391
  %v5394 = vcvt.s32.f32 %v5387
  %v5395 = vmul.f32 %v5394, %v5392
  %v5396 = vxor.u32 %v5395, 2147483648
  %v5397 = vsel %vm5314, %v5396, %v5395
  %v5398 = vsub.s32 4, %v5374
  %v5399 = vsel %vm5314, %v5398, %v5374
  %v5400 = vsel %vm5313, %v4780, %v5397
  %v5401 = vsel %vm5313, 0, %v5399
  %v5402 = vcosq.f32.pop %v5400
  %v5403 = vsinq.f32.pop %v5400
  %vm5404 = vweird.f32 %v4780
  %v5405 = vadd.s32 %v5401, 3
  %v5406 = vand.u32 %v5405, 3
  %vm5407 = vcmp.lt.s32.totalorder %v5406, 2
  %vm5408 = vcmp.eq.s32.totalorder %v5406, 0
  %v5409 = vxor.u32 %v5403, 2147483648
  %v5410 = vsel %vm5408, %v5402, %v5409
  %vm5411 = vcmp.eq.s32.totalorder %v5406, 2
  %v5412 = vxor.u32 %v5402, 2147483648
  %v5413 = vsel %vm5411, %v5412, %v5403
  %v5414 = vsel %vm5407, %v5410, %v5413
  %v5415 = vsel %vm5404, nan, %v5414
  %v5416 = vsub.f32 0.0, %v5415
  %v5417 = vmul.f32 %v5416, %v5309
  %v5418 = vmul.f32 %v5305, %v5309
  %v5419 = vmul.f32 %v5200, %v5094
  %v5420 = vld [vmem:[%s1 + $0xc0] sm:$0x1]
  %v5421 = vsub.f32 1.0, %v5420
  %v5422 = vlaneseq
  %v5423 = vshrl.u32 %v5422, 7
  %v5424 = vsub.s32 0, %v5423
  %v5425 = vrot.slane %v5420, %v5424
  %5427 = vset.pattern.permute.xlu0 0
  %5428 = vperm.xlu0 %5427, %v5096
  %v5429 = vpop.permute.xlu0 %5428
  %v5431 = vmul.f32 %v5425, %v5429
  %v5432 = vlaneseq
  %v5433 = vshrl.u32 %v5432, 7
  %v5434 = vsub.s32 0, %v5433
  %v5435 = vrot.slane %v5421, %v5434
  %v5436 = vmul.f32 %v5435, %v5429
  %v5437 = vadd.f32 %v5431, %v5436
  %5439 = vset.pattern.permute.xlu0 0
  %5440 = vperm.xlu0 %5439, %v5419
  %v5441 = vpop.permute.xlu0 %5440
  %v5443 = vmul.f32 %v5425, %v5441
  %5445 = vset.pattern.permute.xlu0 0
  %5446 = vperm.xlu0 %5445, %v5202
  %v5447 = vpop.permute.xlu0 %5446
  %v5449 = vmul.f32 %v5435, %v5447
  %v5450 = vadd.f32 %v5443, %v5449
  %5452 = vset.pattern.permute.xlu0 0
  %5453 = vperm.xlu0 %5452, %v5418
  %v5454 = vpop.permute.xlu0 %5453
  %v5456 = vmul.f32 %v5425, %v5454
  %5458 = vset.pattern.permute.xlu0 0
  %5459 = vperm.xlu0 %5458, %v5311
  %v5460 = vpop.permute.xlu0 %5459
  %v5462 = vmul.f32 %v5435, %v5460
  %v5463 = vadd.f32 %v5456, %v5462
  %5465 = vset.pattern.permute.xlu0 0
  %5466 = vperm.xlu0 %5465, %v5417
  %v5467 = vpop.permute.xlu0 %5466
  %v5469 = vmul.f32 %v5425, %v5467
  %v5470 = vmul.f32 %v5435, %v5467
  %v5471 = vadd.f32 %v5469, %v5470
  %v5472 = vld [vmem:[%s1 + $0x40] sm:$0xff]
  %v5473 = vld [vmem:[%s1 + $0x48] sm:$0xff]
  %v5474 = vld [vmem:[%s1 + $0xc1] sm:$0x1]
  %v5475 = vsub.f32 1.0, %v5474
  %v5476 = vlaneseq
  %v5477 = vshrl.u32 %v5476, 7
  %v5478 = vsub.s32 0, %v5477
  %v5479 = vrot.slane %v5474, %v5478
  %5480 = vset.pattern.permute.xlu0 3
  %5481 = vperm.xlu0 %5480, %v5096
  %v5482 = vpop.permute.xlu0 %5481
  %v5484 = vmul.f32 %v5479, %v5482
  %v5485 = vlaneseq
  %v5486 = vshrl.u32 %v5485, 7
  %v5487 = vsub.s32 0, %v5486
  %v5488 = vrot.slane %v5475, %v5487
  %v5489 = vmul.f32 %v5488, %v5482
  %v5490 = vadd.f32 %v5484, %v5489
  %5491 = vset.pattern.permute.xlu0 3
  %5492 = vperm.xlu0 %5491, %v5419
  %v5493 = vpop.permute.xlu0 %5492
  %v5495 = vmul.f32 %v5479, %v5493
  %5496 = vset.pattern.permute.xlu0 3
  %5497 = vperm.xlu0 %5496, %v5202
  %v5498 = vpop.permute.xlu0 %5497
  %v5500 = vmul.f32 %v5488, %v5498
  %v5501 = vadd.f32 %v5495, %v5500
  %5502 = vset.pattern.permute.xlu0 3
  %5503 = vperm.xlu0 %5502, %v5418
  %v5504 = vpop.permute.xlu0 %5503
  %v5506 = vmul.f32 %v5479, %v5504
  %5507 = vset.pattern.permute.xlu0 3
  %5508 = vperm.xlu0 %5507, %v5311
  %v5509 = vpop.permute.xlu0 %5508
  %v5511 = vmul.f32 %v5488, %v5509
  %v5512 = vadd.f32 %v5506, %v5511
  %5513 = vset.pattern.permute.xlu0 3
  %5514 = vperm.xlu0 %5513, %v5417
  %v5515 = vpop.permute.xlu0 %5514
  %v5517 = vmul.f32 %v5479, %v5515
  %v5518 = vmul.f32 %v5488, %v5515
  %v5519 = vadd.f32 %v5517, %v5518
  %v5520 = vld [vmem:[%s1 + $0x50] sm:$0xff]
  %v5521 = vld [vmem:[%s1 + $0x58] sm:$0xff]
  %v5522 = vld [vmem:[%s1 + $0xc2] sm:$0x1]
  %v5523 = vsub.f32 1.0, %v5522
  %v5524 = vlaneseq
  %v5525 = vshrl.u32 %v5524, 7
  %v5526 = vsub.s32 0, %v5525
  %v5527 = vrot.slane %v5522, %v5526
  %5528 = vset.pattern.permute.xlu0 6
  %5529 = vperm.xlu0 %5528, %v5096
  %v5530 = vpop.permute.xlu0 %5529
  %v5532 = vmul.f32 %v5527, %v5530
  %v5533 = vlaneseq
  %v5534 = vshrl.u32 %v5533, 7
  %v5535 = vsub.s32 0, %v5534
  %v5536 = vrot.slane %v5523, %v5535
  %v5537 = vmul.f32 %v5536, %v5530
  %v5538 = vadd.f32 %v5532, %v5537
  %5539 = vset.pattern.permute.xlu0 6
  %5540 = vperm.xlu0 %5539, %v5419
  %v5541 = vpop.permute.xlu0 %5540
  %v5543 = vmul.f32 %v5527, %v5541
  %5544 = vset.pattern.permute.xlu0 6
  %5545 = vperm.xlu0 %5544, %v5202
  %v5546 = vpop.permute.xlu0 %5545
  %v5548 = vmul.f32 %v5536, %v5546
  %v5549 = vadd.f32 %v5543, %v5548
  %5550 = vset.pattern.permute.xlu0 6
  %5551 = vperm.xlu0 %5550, %v5418
  %v5552 = vpop.permute.xlu0 %5551
  %v5554 = vmul.f32 %v5527, %v5552
  %5555 = vset.pattern.permute.xlu0 6
  %5556 = vperm.xlu0 %5555, %v5311
  %v5557 = vpop.permute.xlu0 %5556
  %v5559 = vmul.f32 %v5536, %v5557
  %v5560 = vadd.f32 %v5554, %v5559
  %5561 = vset.pattern.permute.xlu0 6
  %5562 = vperm.xlu0 %5561, %v5417
  %v5563 = vpop.permute.xlu0 %5562
  %v5565 = vmul.f32 %v5527, %v5563
  %v5566 = vmul.f32 %v5536, %v5563
  %v5567 = vadd.f32 %v5565, %v5566
  %v5568 = vld [vmem:[%s1 + $0x60] sm:$0xff]
  %v5569 = vld [vmem:[%s1 + $0x68] sm:$0xff]
  %v5570 = vld [vmem:[%s1 + $0xc3] sm:$0x1]
  %v5571 = vsub.f32 1.0, %v5570
  %v5572 = vlaneseq
  %v5573 = vshrl.u32 %v5572, 7
  %v5574 = vsub.s32 0, %v5573
  %v5575 = vrot.slane %v5570, %v5574
  %5576 = vset.pattern.permute.xlu0 9
  %5577 = vperm.xlu0 %5576, %v5096
  %v5578 = vpop.permute.xlu0 %5577
  %v5580 = vmul.f32 %v5575, %v5578
  %v5581 = vlaneseq
  %v5582 = vshrl.u32 %v5581, 7
  %v5583 = vsub.s32 0, %v5582
  %v5584 = vrot.slane %v5571, %v5583
  %v5585 = vmul.f32 %v5584, %v5578
  %v5586 = vadd.f32 %v5580, %v5585
  %5587 = vset.pattern.permute.xlu0 9
  %5588 = vperm.xlu0 %5587, %v5419
  %v5589 = vpop.permute.xlu0 %5588
  %v5591 = vmul.f32 %v5575, %v5589
  %5592 = vset.pattern.permute.xlu0 9
  %5593 = vperm.xlu0 %5592, %v5202
  %v5594 = vpop.permute.xlu0 %5593
  %v5596 = vmul.f32 %v5584, %v5594
  %v5597 = vadd.f32 %v5591, %v5596
  %5598 = vset.pattern.permute.xlu0 9
  %5599 = vperm.xlu0 %5598, %v5418
  %v5600 = vpop.permute.xlu0 %5599
  %v5602 = vmul.f32 %v5575, %v5600
  %5603 = vset.pattern.permute.xlu0 9
  %5604 = vperm.xlu0 %5603, %v5311
  %v5605 = vpop.permute.xlu0 %5604
  %v5607 = vmul.f32 %v5584, %v5605
  %v5608 = vadd.f32 %v5602, %v5607
  %5609 = vset.pattern.permute.xlu0 9
  %5610 = vperm.xlu0 %5609, %v5417
  %v5611 = vpop.permute.xlu0 %5610
  %v5613 = vmul.f32 %v5575, %v5611
  %v5614 = vmul.f32 %v5584, %v5611
  %v5615 = vadd.f32 %v5613, %v5614
  %v5616 = vld [vmem:[%s1 + $0x70] sm:$0xff]
  %v5617 = vld [vmem:[%s1 + $0x78] sm:$0xff]
  %vm5618 = vcmp.eq.s32.totalorder %v4763, 0
  %v5619 = vsel %vm5618, 1, 0
  %v5620 = vcvt.s32.f32 %v5619
  %v5621 = vsel %vm33, %v5620, 0.0
  %vm5622 = vcmask 130048
  %v5624 = vsel %vm5622, %v5621, 0
  %5626 = vmatprep.subr.mxu0 0.0
  %v5627 = vand.u32 %v5472, 4294901760
  %5628 = vmatpush1.msra.mxu0 %v5627
  %5629 = vmatprep.subr.mxu0 0.0
  %v5630 = vand.u32 %v5473, 4294901760
  %5631 = vmatpush1.msra.mxu0 %v5630
  %5632 = vmatprep.subr.mxu0 0.0
  %5633 = vmatpush1.msra.mxu0 0.0
  %5634 = vmatprep.subr.mxu0 0.0
  %5635 = vmatpush1.msra.mxu0 0.0
  %5636 = vmatprep.subr.mxu0 0.0
  %5637 = vmatpush1.msra.mxu0 0.0
  %5638 = vmatprep.subr.mxu0 0.0
  %5639 = vmatpush1.msra.mxu0 0.0
  %5640 = vmatprep.subr.mxu0 0.0
  %5641 = vmatpush1.msra.mxu0 0.0
  %5642 = vmatprep.subr.mxu0 0.0
  %5643 = vmatpush1.msra.mxu0 0.0
  %5644 = vmatprep.subr.mxu0 0.0
  %5645 = vmatpush1.msra.mxu0 0.0
  %5646 = vmatprep.subr.mxu0 0.0
  %5647 = vmatpush1.msra.mxu0 0.0
  %5648 = vmatprep.subr.mxu0 0.0
  %5649 = vmatpush1.msra.mxu0 0.0
  %5650 = vmatprep.subr.mxu0 0.0
  %5651 = vmatpush1.msra.mxu0 0.0
  %5652 = vmatprep.subr.mxu0 0.0
  %5653 = vmatpush1.msra.mxu0 0.0
  %5654 = vmatprep.subr.mxu0 0.0
  %5655 = vmatpush1.msra.mxu0 0.0
  %5656 = vmatprep.subr.mxu0 0.0
  %5657 = vmatpush1.msra.mxu0 0.0
  %5658 = vmatprep.subr.mxu0 0.0
  %5659 = vmatpush1.msra.mxu0 0.0
  %5660 = vmatprep.subr.mxu0 0.0
  %5661 = vmatpush1.msra.mxu0 0.0
  %5662 = vmatprep.subr.mxu0 0.0
  %5663 = vmatpush1.msra.mxu0 0.0
  %5664 = vmatprep.subr.mxu0 0.0
  %5665 = vmatpush1.msra.mxu0 0.0
  %5666 = vmatprep.subr.mxu0 0.0
  %5667 = vmatpush1.msra.mxu0 0.0
  %5668 = vmatprep.subr.mxu0 0.0
  %5669 = vmatpush1.msra.mxu0 0.0
  %5670 = vmatprep.subr.mxu0 0.0
  %5671 = vmatpush1.msra.mxu0 0.0
  %5672 = vmatprep.subr.mxu0 0.0
  %5673 = vmatpush1.msra.mxu0 0.0
  %5674 = vmatprep.subr.mxu0 0.0
  %5675 = vmatpush1.msra.mxu0 0.0
  %5676 = vmatprep.subr.mxu0 0.0
  %5677 = vmatpush1.msra.mxu0 0.0
  %5678 = vmatprep.subr.mxu0 0.0
  %5679 = vmatpush1.msra.mxu0 0.0
  %5680 = vmatprep.subr.mxu0 0.0
  %5681 = vmatpush1.msra.mxu0 0.0
  %5682 = vmatprep.subr.mxu0 0.0
  %5683 = vmatpush1.msra.mxu0 0.0
  %5684 = vmatprep.subr.mxu0 0.0
  %5685 = vmatpush1.msra.mxu0 0.0
  %5686 = vmatprep.subr.mxu0 0.0
  %5687 = vmatpush1.msra.mxu0 0.0
  %5688 = vmatprep.subr.mxu0 0.0
  %5689 = vmatpush1.msra.mxu0 0.0
  %5690 = vmatprep.subr.mxu0 0.0
  %5691 = vmatpush1.msra.mxu0 0.0
  %5692 = vmatprep.mubr.f32.mxu0 0.0
  %v5693 = vand.u32 %v5624, 4294901760
  %v5694 = vsub.f32 %v5624, %v5693
  %v5695 = vand.u32 %v5694, 4294901760
  %v5696 = vsub.f32 %v5694, %v5695
  %v5697 = vand.u32 %v5696, 4294901760
  %5698 = vmatmul.mubr.f32.gmra.mrb[0].mxu0 %v5697
  %v5699 = vpop.f32.mrb[0].mxu0
  %v5700 = vadd.f32 0.0, %v5699
  %v5701 = vpop.f32.mrb[0].mxu0
  %5702 = vdwg.mxu0
  %5703 = vmatprep.subr.mxu0 0.0
  %v5704 = vand.u32 %v5472, 4294901760
  %v5705 = vsub.f32 %v5472, %v5704
  %v5706 = vand.u32 %v5705, 4294901760
  %v5707 = vsub.f32 %v5705, %v5706
  %v5708 = vand.u32 %v5707, 4294901760
  %5709 = vmatpush1.msra.mxu0 %v5708
  %5710 = vmatprep.subr.mxu0 0.0
  %v5711 = vand.u32 %v5473, 4294901760
  %v5712 = vsub.f32 %v5473, %v5711
  %v5713 = vand.u32 %v5712, 4294901760
  %v5714 = vsub.f32 %v5712, %v5713
  %v5715 = vand.u32 %v5714, 4294901760
  %5716 = vmatpush1.msra.mxu0 %v5715
  %5717 = vmatprep.subr.mxu0 0.0
  %5718 = vmatpush1.msra.mxu0 0.0
  %5719 = vmatprep.subr.mxu0 0.0
  %5720 = vmatpush1.msra.mxu0 0.0
  %5721 = vmatprep.subr.mxu0 0.0
  %5722 = vmatpush1.msra.mxu0 0.0
  %5723 = vmatprep.subr.mxu0 0.0
  %5724 = vmatpush1.msra.mxu0 0.0
  %5725 = vmatprep.subr.mxu0 0.0
  %5726 = vmatpush1.msra.mxu0 0.0
  %5727 = vmatprep.subr.mxu0 0.0
  %5728 = vmatpush1.msra.mxu0 0.0
  %5729 = vmatprep.subr.mxu0 0.0
  %5730 = vmatpush1.msra.mxu0 0.0
  %5731 = vmatprep.subr.mxu0 0.0
  %5732 = vmatpush1.msra.mxu0 0.0
  %5733 = vmatprep.subr.mxu0 0.0
  %5734 = vmatpush1.msra.mxu0 0.0
  %5735 = vmatprep.subr.mxu0 0.0
  %5736 = vmatpush1.msra.mxu0 0.0
  %5737 = vmatprep.subr.mxu0 0.0
  %5738 = vmatpush1.msra.mxu0 0.0
  %5739 = vmatprep.subr.mxu0 0.0
  %5740 = vmatpush1.msra.mxu0 0.0
  %5741 = vmatprep.subr.mxu0 0.0
  %5742 = vmatpush1.msra.mxu0 0.0
  %5743 = vmatprep.subr.mxu0 0.0
  %5744 = vmatpush1.msra.mxu0 0.0
  %5745 = vmatprep.subr.mxu0 0.0
  %5746 = vmatpush1.msra.mxu0 0.0
  %5747 = vmatprep.subr.mxu0 0.0
  %5748 = vmatpush1.msra.mxu0 0.0
  %5749 = vmatprep.subr.mxu0 0.0
  %5750 = vmatpush1.msra.mxu0 0.0
  %5751 = vmatprep.subr.mxu0 0.0
  %5752 = vmatpush1.msra.mxu0 0.0
  %5753 = vmatprep.subr.mxu0 0.0
  %5754 = vmatpush1.msra.mxu0 0.0
  %5755 = vmatprep.subr.mxu0 0.0
  %5756 = vmatpush1.msra.mxu0 0.0
  %5757 = vmatprep.subr.mxu0 0.0
  %5758 = vmatpush1.msra.mxu0 0.0
  %5759 = vmatprep.subr.mxu0 0.0
  %5760 = vmatpush1.msra.mxu0 0.0
  %5761 = vmatprep.subr.mxu0 0.0
  %5762 = vmatpush1.msra.mxu0 0.0
  %5763 = vmatprep.subr.mxu0 0.0
  %5764 = vmatpush1.msra.mxu0 0.0
  %5765 = vmatprep.subr.mxu0 0.0
  %5766 = vmatpush1.msra.mxu0 0.0
  %5767 = vmatprep.subr.mxu0 0.0
  %5768 = vmatpush1.msra.mxu0 0.0
  %5769 = vmatprep.subr.mxu0 0.0
  %5770 = vmatpush1.msra.mxu0 0.0
  %5771 = vmatprep.subr.mxu0 0.0
  %5772 = vmatpush1.msra.mxu0 0.0
  %5773 = vmatprep.subr.mxu0 0.0
  %5774 = vmatpush1.msra.mxu0 0.0
  %5775 = vmatprep.subr.mxu0 0.0
  %5776 = vmatpush1.msra.mxu0 0.0
  %5777 = vmatprep.mubr.f32.mxu0 0.0
  %v5778 = vand.u32 %v5624, 4294901760
  %5779 = vmatmul.mubr.f32.gmra.mrb[0].mxu0 %v5778
  %v5780 = vpop.f32.mrb[0].mxu0
  %v5781 = vadd.f32 %v5700, %v5780
  %v5782 = vpop.f32.mrb[0].mxu0
  %5783 = vdwg.mxu0
  %5784 = vmatprep.subr.mxu0 0.0
  %v5785 = vand.u32 %v5472, 4294901760
  %v5786 = vsub.f32 %v5472, %v5785
  %5787 = vmatpush1.msra.mxu0 %v5786
  %5788 = vmatprep.subr.mxu0 0.0
  %v5789 = vand.u32 %v5473, 4294901760
  %v5790 = vsub.f32 %v5473, %v5789
  %5791 = vmatpush1.msra.mxu0 %v5790
  %5792 = vmatprep.subr.mxu0 0.0
  %5793 = vmatpush1.msra.mxu0 0.0
  %5794 = vmatprep.subr.mxu0 0.0
  %5795 = vmatpush1.msra.mxu0 0.0
  %5796 = vmatprep.subr.mxu0 0.0
  %5797 = vmatpush1.msra.mxu0 0.0
  %5798 = vmatprep.subr.mxu0 0.0
  %5799 = vmatpush1.msra.mxu0 0.0
  %5800 = vmatprep.subr.mxu0 0.0
  %5801 = vmatpush1.msra.mxu0 0.0
  %5802 = vmatprep.subr.mxu0 0.0
  %5803 = vmatpush1.msra.mxu0 0.0
  %5804 = vmatprep.subr.mxu0 0.0
  %5805 = vmatpush1.msra.mxu0 0.0
  %5806 = vmatprep.subr.mxu0 0.0
  %5807 = vmatpush1.msra.mxu0 0.0
  %5808 = vmatprep.subr.mxu0 0.0
  %5809 = vmatpush1.msra.mxu0 0.0
  %5810 = vmatprep.subr.mxu0 0.0
  %5811 = vmatpush1.msra.mxu0 0.0
  %5812 = vmatprep.subr.mxu0 0.0
  %5813 = vmatpush1.msra.mxu0 0.0
  %5814 = vmatprep.subr.mxu0 0.0
  %5815 = vmatpush1.msra.mxu0 0.0
  %5816 = vmatprep.subr.mxu0 0.0
  %5817 = vmatpush1.msra.mxu0 0.0
  %5818 = vmatprep.subr.mxu0 0.0
  %5819 = vmatpush1.msra.mxu0 0.0
  %5820 = vmatprep.subr.mxu0 0.0
  %5821 = vmatpush1.msra.mxu0 0.0
  %5822 = vmatprep.subr.mxu0 0.0
  %5823 = vmatpush1.msra.mxu0 0.0
  %5824 = vmatprep.subr.mxu0 0.0
  %5825 = vmatpush1.msra.mxu0 0.0
  %5826 = vmatprep.subr.mxu0 0.0
  %5827 = vmatpush1.msra.mxu0 0.0
  %5828 = vmatprep.subr.mxu0 0.0
  %5829 = vmatpush1.msra.mxu0 0.0
  %5830 = vmatprep.subr.mxu0 0.0
  %5831 = vmatpush1.msra.mxu0 0.0
  %5832 = vmatprep.subr.mxu0 0.0
  %5833 = vmatpush1.msra.mxu0 0.0
  %5834 = vmatprep.subr.mxu0 0.0
  %5835 = vmatpush1.msra.mxu0 0.0
  %5836 = vmatprep.subr.mxu0 0.0
  %5837 = vmatpush1.msra.mxu0 0.0
  %5838 = vmatprep.subr.mxu0 0.0
  %5839 = vmatpush1.msra.mxu0 0.0
  %5840 = vmatprep.subr.mxu0 0.0
  %5841 = vmatpush1.msra.mxu0 0.0
  %5842 = vmatprep.subr.mxu0 0.0
  %5843 = vmatpush1.msra.mxu0 0.0
  %5844 = vmatprep.subr.mxu0 0.0
  %5845 = vmatpush1.msra.mxu0 0.0
  %5846 = vmatprep.subr.mxu0 0.0
  %5847 = vmatpush1.msra.mxu0 0.0
  %5848 = vmatprep.subr.mxu0 0.0
  %5849 = vmatpush1.msra.mxu0 0.0
  %5850 = vmatprep.subr.mxu0 0.0
  %5851 = vmatpush1.msra.mxu0 0.0
  %5852 = vmatprep.mubr.f32.mxu0 0.0
  %v5853 = vand.u32 %v5624, 4294901760
  %v5854 = vsub.f32 %v5624, %v5853
  %5855 = vmatmul.mubr.f32.gmra.mrb[0].mxu0 %v5854
  %v5856 = vpop.f32.mrb[0].mxu0
  %v5857 = vadd.f32 %v5781, %v5856
  %v5858 = vpop.f32.mrb[0].mxu0
  %5859 = vdwg.mxu0
  %5860 = vmatprep.subr.mxu0 0.0
  %v5861 = vand.u32 %v5472, 4294901760
  %5862 = vmatpush1.msra.mxu0 %v5861
  %5863 = vmatprep.subr.mxu0 0.0
  %v5864 = vand.u32 %v5473, 4294901760
  %5865 = vmatpush1.msra.mxu0 %v5864
  %5866 = vmatprep.subr.mxu0 0.0
  %5867 = vmatpush1.msra.mxu0 0.0
  %5868 = vmatprep.subr.mxu0 0.0
  %5869 = vmatpush1.msra.mxu0 0.0
  %5870 = vmatprep.subr.mxu0 0.0
  %5871 = vmatpush1.msra.mxu0 0.0
  %5872 = vmatprep.subr.mxu0 0.0
  %5873 = vmatpush1.msra.mxu0 0.0
  %5874 = vmatprep.subr.mxu0 0.0
  %5875 = vmatpush1.msra.mxu0 0.0
  %5876 = vmatprep.subr.mxu0 0.0
  %5877 = vmatpush1.msra.mxu0 0.0
  %5878 = vmatprep.subr.mxu0 0.0
  %5879 = vmatpush1.msra.mxu0 0.0
  %5880 = vmatprep.subr.mxu0 0.0
  %5881 = vmatpush1.msra.mxu0 0.0
  %5882 = vmatprep.subr.mxu0 0.0
  %5883 = vmatpush1.msra.mxu0 0.0
  %5884 = vmatprep.subr.mxu0 0.0
  %5885 = vmatpush1.msra.mxu0 0.0
  %5886 = vmatprep.subr.mxu0 0.0
  %5887 = vmatpush1.msra.mxu0 0.0
  %5888 = vmatprep.subr.mxu0 0.0
  %5889 = vmatpush1.msra.mxu0 0.0
  %5890 = vmatprep.subr.mxu0 0.0
  %5891 = vmatpush1.msra.mxu0 0.0
  %5892 = vmatprep.subr.mxu0 0.0
  %5893 = vmatpush1.msra.mxu0 0.0
  %5894 = vmatprep.subr.mxu0 0.0
  %5895 = vmatpush1.msra.mxu0 0.0
  %5896 = vmatprep.subr.mxu0 0.0
  %5897 = vmatpush1.msra.mxu0 0.0
  %5898 = vmatprep.subr.mxu0 0.0
  %5899 = vmatpush1.msra.mxu0 0.0
  %5900 = vmatprep.subr.mxu0 0.0
  %5901 = vmatpush1.msra.mxu0 0.0
  %5902 = vmatprep.subr.mxu0 0.0
  %5903 = vmatpush1.msra.mxu0 0.0
  %5904 = vmatprep.subr.mxu0 0.0
  %5905 = vmatpush1.msra.mxu0 0.0
  %5906 = vmatprep.subr.mxu0 0.0
  %5907 = vmatpush1.msra.mxu0 0.0
  %5908 = vmatprep.subr.mxu0 0.0
  %5909 = vmatpush1.msra.mxu0 0.0
  %5910 = vmatprep.subr.mxu0 0.0
  %5911 = vmatpush1.msra.mxu0 0.0
  %5912 = vmatprep.subr.mxu0 0.0
  %5913 = vmatpush1.msra.mxu0 0.0
  %5914 = vmatprep.subr.mxu0 0.0
  %5915 = vmatpush1.msra.mxu0 0.0
  %5916 = vmatprep.subr.mxu0 0.0
  %5917 = vmatpush1.msra.mxu0 0.0
  %5918 = vmatprep.subr.mxu0 0.0
  %5919 = vmatpush1.msra.mxu0 0.0
  %5920 = vmatprep.subr.mxu0 0.0
  %5921 = vmatpush1.msra.mxu0 0.0
  %5922 = vmatprep.subr.mxu0 0.0
  %5923 = vmatpush1.msra.mxu0 0.0
  %5924 = vmatprep.subr.mxu0 0.0
  %5925 = vmatpush1.msra.mxu0 0.0
  %5926 = vmatprep.mubr.f32.mxu0 0.0
  %v5927 = vand.u32 %v5624, 4294901760
  %v5928 = vsub.f32 %v5624, %v5927
  %v5929 = vand.u32 %v5928, 4294901760
  %5930 = vmatmul.mubr.f32.gmra.mrb[0].mxu0 %v5929
  %v5931 = vpop.f32.mrb[0].mxu0
  %v5932 = vadd.f32 %v5857, %v5931
  %v5933 = vpop.f32.mrb[0].mxu0
  %5934 = vdwg.mxu0
  %5935 = vmatprep.subr.mxu0 0.0
  %v5936 = vand.u32 %v5472, 4294901760
  %v5937 = vsub.f32 %v5472, %v5936
  %v5938 = vand.u32 %v5937, 4294901760
  %5939 = vmatpush1.msra.mxu0 %v5938
  %5940 = vmatprep.subr.mxu0 0.0
  %v5941 = vand.u32 %v5473, 4294901760
  %v5942 = vsub.f32 %v5473, %v5941
  %v5943 = vand.u32 %v5942, 4294901760
  %5944 = vmatpush1.msra.mxu0 %v5943
  %5945 = vmatprep.subr.mxu0 0.0
  %5946 = vmatpush1.msra.mxu0 0.0
  %5947 = vmatprep.subr.mxu0 0.0
  %5948 = vmatpush1.msra.mxu0 0.0
  %5949 = vmatprep.subr.mxu0 0.0
  %5950 = vmatpush1.msra.mxu0 0.0
  %5951 = vmatprep.subr.mxu0 0.0
  %5952 = vmatpush1.msra.mxu0 0.0
  %5953 = vmatprep.subr.mxu0 0.0
  %5954 = vmatpush1.msra.mxu0 0.0
  %5955 = vmatprep.subr.mxu0 0.0
  %5956 = vmatpush1.msra.mxu0 0.0
  %5957 = vmatprep.subr.mxu0 0.0
  %5958 = vmatpush1.msra.mxu0 0.0
  %5959 = vmatprep.subr.mxu0 0.0
  %5960 = vmatpush1.msra.mxu0 0.0
  %5961 = vmatprep.subr.mxu0 0.0
  %5962 = vmatpush1.msra.mxu0 0.0
  %5963 = vmatprep.subr.mxu0 0.0
  %5964 = vmatpush1.msra.mxu0 0.0
  %5965 = vmatprep.subr.mxu0 0.0
  %5966 = vmatpush1.msra.mxu0 0.0
  %5967 = vmatprep.subr.mxu0 0.0
  %5968 = vmatpush1.msra.mxu0 0.0
  %5969 = vmatprep.subr.mxu0 0.0
  %5970 = vmatpush1.msra.mxu0 0.0
  %5971 = vmatprep.subr.mxu0 0.0
  %5972 = vmatpush1.msra.mxu0 0.0
  %5973 = vmatprep.subr.mxu0 0.0
  %5974 = vmatpush1.msra.mxu0 0.0
  %5975 = vmatprep.subr.mxu0 0.0
  %5976 = vmatpush1.msra.mxu0 0.0
  %5977 = vmatprep.subr.mxu0 0.0
  %5978 = vmatpush1.msra.mxu0 0.0
  %5979 = vmatprep.subr.mxu0 0.0
  %5980 = vmatpush1.msra.mxu0 0.0
  %5981 = vmatprep.subr.mxu0 0.0
  %5982 = vmatpush1.msra.mxu0 0.0
  %5983 = vmatprep.subr.mxu0 0.0
  %5984 = vmatpush1.msra.mxu0 0.0
  %5985 = vmatprep.subr.mxu0 0.0
  %5986 = vmatpush1.msra.mxu0 0.0
  %5987 = vmatprep.subr.mxu0 0.0
  %5988 = vmatpush1.msra.mxu0 0.0
  %5989 = vmatprep.subr.mxu0 0.0
  %5990 = vmatpush1.msra.mxu0 0.0
  %5991 = vmatprep.subr.mxu0 0.0
  %5992 = vmatpush1.msra.mxu0 0.0
  %5993 = vmatprep.subr.mxu0 0.0
  %5994 = vmatpush1.msra.mxu0 0.0
  %5995 = vmatprep.subr.mxu0 0.0
  %5996 = vmatpush1.msra.mxu0 0.0
  %5997 = vmatprep.subr.mxu0 0.0
  %5998 = vmatpush1.msra.mxu0 0.0
  %5999 = vmatprep.subr.mxu0 0.0
  %6000 = vmatpush1.msra.mxu0 0.0
  %6001 = vmatprep.subr.mxu0 0.0
  %6002 = vmatpush1.msra.mxu0 0.0
  %6003 = vmatprep.subr.mxu0 0.0
  %6004 = vmatpush1.msra.mxu0 0.0
  %6005 = vmatprep.mubr.f32.mxu0 0.0
  %v6006 = vand.u32 %v5624, 4294901760
  %6007 = vmatmul.mubr.f32.gmra.mrb[0].mxu0 %v6006
  %v6008 = vpop.f32.mrb[0].mxu0
  %v6009 = vadd.f32 %v5932, %v6008
  %v6010 = vpop.f32.mrb[0].mxu0
  %6011 = vdwg.mxu0
  %6012 = vmatprep.subr.mxu0 0.0
  %v6013 = vand.u32 %v5472, 4294901760
  %6014 = vmatpush1.msra.mxu0 %v6013
  %6015 = vmatprep.subr.mxu0 0.0
  %v6016 = vand.u32 %v5473, 4294901760
  %6017 = vmatpush1.msra.mxu0 %v6016
  %6018 = vmatprep.subr.mxu0 0.0
  %6019 = vmatpush1.msra.mxu0 0.0
  %6020 = vmatprep.subr.mxu0 0.0
  %6021 = vmatpush1.msra.mxu0 0.0
  %6022 = vmatprep.subr.mxu0 0.0
  %6023 = vmatpush1.msra.mxu0 0.0
  %6024 = vmatprep.subr.mxu0 0.0
  %6025 = vmatpush1.msra.mxu0 0.0
  %6026 = vmatprep.subr.mxu0 0.0
  %6027 = vmatpush1.msra.mxu0 0.0
  %6028 = vmatprep.subr.mxu0 0.0
  %6029 = vmatpush1.msra.mxu0 0.0
  %6030 = vmatprep.subr.mxu0 0.0
  %6031 = vmatpush1.msra.mxu0 0.0
  %6032 = vmatprep.subr.mxu0 0.0
  %6033 = vmatpush1.msra.mxu0 0.0
  %6034 = vmatprep.subr.mxu0 0.0
  %6035 = vmatpush1.msra.mxu0 0.0
  %6036 = vmatprep.subr.mxu0 0.0
  %6037 = vmatpush1.msra.mxu0 0.0
  %6038 = vmatprep.subr.mxu0 0.0
  %6039 = vmatpush1.msra.mxu0 0.0
  %6040 = vmatprep.subr.mxu0 0.0
  %6041 = vmatpush1.msra.mxu0 0.0
  %6042 = vmatprep.subr.mxu0 0.0
  %6043 = vmatpush1.msra.mxu0 0.0
  %6044 = vmatprep.subr.mxu0 0.0
  %6045 = vmatpush1.msra.mxu0 0.0
  %6046 = vmatprep.subr.mxu0 0.0
  %6047 = vmatpush1.msra.mxu0 0.0
  %6048 = vmatprep.subr.mxu0 0.0
  %6049 = vmatpush1.msra.mxu0 0.0
  %6050 = vmatprep.subr.mxu0 0.0
  %6051 = vmatpush1.msra.mxu0 0.0
  %6052 = vmatprep.subr.mxu0 0.0
  %6053 = vmatpush1.msra.mxu0 0.0
  %6054 = vmatprep.subr.mxu0 0.0
  %6055 = vmatpush1.msra.mxu0 0.0
  %6056 = vmatprep.subr.mxu0 0.0
  %6057 = vmatpush1.msra.mxu0 0.0
  %6058 = vmatprep.subr.mxu0 0.0
  %6059 = vmatpush1.msra.mxu0 0.0
  %6060 = vmatprep.subr.mxu0 0.0
  %6061 = vmatpush1.msra.mxu0 0.0
  %6062 = vmatprep.subr.mxu0 0.0
  %6063 = vmatpush1.msra.mxu0 0.0
  %6064 = vmatprep.subr.mxu0 0.0
  %6065 = vmatpush1.msra.mxu0 0.0
  %6066 = vmatprep.subr.mxu0 0.0
  %6067 = vmatpush1.msra.mxu0 0.0
  %6068 = vmatprep.subr.mxu0 0.0
  %6069 = vmatpush1.msra.mxu0 0.0
  %6070 = vmatprep.subr.mxu0 0.0
  %6071 = vmatpush1.msra.mxu0 0.0
  %6072 = vmatprep.subr.mxu0 0.0
  %6073 = vmatpush1.msra.mxu0 0.0
  %6074 = vmatprep.subr.mxu0 0.0
  %6075 = vmatpush1.msra.mxu0 0.0
  %6076 = vmatprep.subr.mxu0 0.0
  %6077 = vmatpush1.msra.mxu0 0.0
  %6078 = vmatprep.mubr.f32.mxu0 0.0
  %v6079 = vand.u32 %v5624, 4294901760
  %6080 = vmatmul.mubr.f32.gmra.mrb[0].mxu0 %v6079
  %v6081 = vpop.f32.mrb[0].mxu0
  %v6082 = vadd.f32 %v6009, %v6081
  %v6083 = vpop.f32.mrb[0].mxu0
  %6084 = vdwg.mxu0
  %v6085 = vmul.f32 %v5437, %v5620
  %v6086 = vmul.f32 %v5450, 0.0
  %v6087 = vsub.f32 %v6085, %v6086
  %v6088 = vmul.f32 %v5463, %v6082
  %v6089 = vadd.f32 %v6087, %v6088
  %v6091 = vrot.slane %v6082, 2
  %v6093 = vmul.f32 %v5471, %v6091
  %v6094 = vsub.f32 %v6089, %v6093
  %v6095 = vmul.f32 %v5437, 0.0
  %v6096 = vmul.f32 %v5450, %v5620
  %v6097 = vadd.f32 %v6095, %v6096
  %v6098 = vmul.f32 %v5463, %v6091
  %v6099 = vadd.f32 %v6097, %v6098
  %v6100 = vmul.f32 %v5471, %v6082
  %v6101 = vadd.f32 %v6099, %v6100
  %v6103 = vrot.slane %v6101, 6
  %v6105 = vsel %vm33, %v6094, %v6103
  %v6107 = vsel %vm5622, %v6105, 0
  %6109 = vmatprep.subr.mxu0 0.0
  %v6110 = vand.u32 %v5520, 4294901760
  %6111 = vmatpush1.msra.mxu0 %v6110
  %6112 = vmatprep.subr.mxu0 0.0
  %v6113 = vand.u32 %v5521, 4294901760
  %6114 = vmatpush1.msra.mxu0 %v6113
  %6115 = vmatprep.subr.mxu0 0.0
  %6116 = vmatpush1.msra.mxu0 0.0
  %6117 = vmatprep.subr.mxu0 0.0
  %6118 = vmatpush1.msra.mxu0 0.0
  %6119 = vmatprep.subr.mxu0 0.0
  %6120 = vmatpush1.msra.mxu0 0.0
  %6121 = vmatprep.subr.mxu0 0.0
  %6122 = vmatpush1.msra.mxu0 0.0
  %6123 = vmatprep.subr.mxu0 0.0
  %6124 = vmatpush1.msra.mxu0 0.0
  %6125 = vmatprep.subr.mxu0 0.0
  %6126 = vmatpush1.msra.mxu0 0.0
  %6127 = vmatprep.subr.mxu0 0.0
  %6128 = vmatpush1.msra.mxu0 0.0
  %6129 = vmatprep.subr.mxu0 0.0
  %6130 = vmatpush1.msra.mxu0 0.0
  %6131 = vmatprep.subr.mxu0 0.0
  %6132 = vmatpush1.msra.mxu0 0.0
  %6133 = vmatprep.subr.mxu0 0.0
  %6134 = vmatpush1.msra.mxu0 0.0
  %6135 = vmatprep.subr.mxu0 0.0
  %6136 = vmatpush1.msra.mxu0 0.0
  %6137 = vmatprep.subr.mxu0 0.0
  %6138 = vmatpush1.msra.mxu0 0.0
  %6139 = vmatprep.subr.mxu0 0.0
  %6140 = vmatpush1.msra.mxu0 0.0
  %6141 = vmatprep.subr.mxu0 0.0
  %6142 = vmatpush1.msra.mxu0 0.0
  %6143 = vmatprep.subr.mxu0 0.0
  %6144 = vmatpush1.msra.mxu0 0.0
  %6145 = vmatprep.subr.mxu0 0.0
  %6146 = vmatpush1.msra.mxu0 0.0
  %6147 = vmatprep.subr.mxu0 0.0
  %6148 = vmatpush1.msra.mxu0 0.0
  %6149 = vmatprep.subr.mxu0 0.0
  %6150 = vmatpush1.msra.mxu0 0.0
  %6151 = vmatprep.subr.mxu0 0.0
  %6152 = vmatpush1.msra.mxu0 0.0
  %6153 = vmatprep.subr.mxu0 0.0
  %6154 = vmatpush1.msra.mxu0 0.0
  %6155 = vmatprep.subr.mxu0 0.0
  %6156 = vmatpush1.msra.mxu0 0.0
  %6157 = vmatprep.subr.mxu0 0.0
  %6158 = vmatpush1.msra.mxu0 0.0
  %6159 = vmatprep.subr.mxu0 0.0
  %6160 = vmatpush1.msra.mxu0 0.0
  %6161 = vmatprep.subr.mxu0 0.0
  %6162 = vmatpush1.msra.mxu0 0.0
  %6163 = vmatprep.subr.mxu0 0.0
  %6164 = vmatpush1.msra.mxu0 0.0
  %6165 = vmatprep.subr.mxu0 0.0
  %6166 = vmatpush1.msra.mxu0 0.0
  %6167 = vmatprep.subr.mxu0 0.0
  %6168 = vmatpush1.msra.mxu0 0.0
  %6169 = vmatprep.subr.mxu0 0.0
  %6170 = vmatpush1.msra.mxu0 0.0
  %6171 = vmatprep.subr.mxu0 0.0
  %6172 = vmatpush1.msra.mxu0 0.0
  %6173 = vmatprep.subr.mxu0 0.0
  %6174 = vmatpush1.msra.mxu0 0.0
  %6175 = vmatprep.mubr.f32.mxu0 0.0
  %v6176 = vand.u32 %v6107, 4294901760
  %v6177 = vsub.f32 %v6107, %v6176
  %v6178 = vand.u32 %v6177, 4294901760
  %v6179 = vsub.f32 %v6177, %v6178
  %v6180 = vand.u32 %v6179, 4294901760
  %6181 = vmatmul.mubr.f32.gmra.mrb[0].mxu0 %v6180
  %v6182 = vpop.f32.mrb[0].mxu0
  %v6183 = vadd.f32 0.0, %v6182
  %v6184 = vpop.f32.mrb[0].mxu0
  %6185 = vdwg.mxu0
  %6186 = vmatprep.subr.mxu0 0.0
  %v6187 = vand.u32 %v5520, 4294901760
  %v6188 = vsub.f32 %v5520, %v6187
  %v6189 = vand.u32 %v6188, 4294901760
  %v6190 = vsub.f32 %v6188, %v6189
  %v6191 = vand.u32 %v6190, 4294901760
  %6192 = vmatpush1.msra.mxu0 %v6191
  %6193 = vmatprep.subr.mxu0 0.0
  %v6194 = vand.u32 %v5521, 4294901760
  %v6195 = vsub.f32 %v5521, %v6194
  %v6196 = vand.u32 %v6195, 4294901760
  %v6197 = vsub.f32 %v6195, %v6196
  %v6198 = vand.u32 %v6197, 4294901760
  %6199 = vmatpush1.msra.mxu0 %v6198
  %6200 = vmatprep.subr.mxu0 0.0
  %6201 = vmatpush1.msra.mxu0 0.0
  %6202 = vmatprep.subr.mxu0 0.0
  %6203 = vmatpush1.msra.mxu0 0.0
  %6204 = vmatprep.subr.mxu0 0.0
  %6205 = vmatpush1.msra.mxu0 0.0
  %6206 = vmatprep.subr.mxu0 0.0
  %6207 = vmatpush1.msra.mxu0 0.0
  %6208 = vmatprep.subr.mxu0 0.0
  %6209 = vmatpush1.msra.mxu0 0.0
  %6210 = vmatprep.subr.mxu0 0.0
  %6211 = vmatpush1.msra.mxu0 0.0
  %6212 = vmatprep.subr.mxu0 0.0
  %6213 = vmatpush1.msra.mxu0 0.0
  %6214 = vmatprep.subr.mxu0 0.0
  %6215 = vmatpush1.msra.mxu0 0.0
  %6216 = vmatprep.subr.mxu0 0.0
  %6217 = vmatpush1.msra.mxu0 0.0
  %6218 = vmatprep.subr.mxu0 0.0
  %6219 = vmatpush1.msra.mxu0 0.0
  %6220 = vmatprep.subr.mxu0 0.0
  %6221 = vmatpush1.msra.mxu0 0.0
  %6222 = vmatprep.subr.mxu0 0.0
  %6223 = vmatpush1.msra.mxu0 0.0
  %6224 = vmatprep.subr.mxu0 0.0
  %6225 = vmatpush1.msra.mxu0 0.0
  %6226 = vmatprep.subr.mxu0 0.0
  %6227 = vmatpush1.msra.mxu0 0.0
  %6228 = vmatprep.subr.mxu0 0.0
  %6229 = vmatpush1.msra.mxu0 0.0
  %6230 = vmatprep.subr.mxu0 0.0
  %6231 = vmatpush1.msra.mxu0 0.0
  %6232 = vmatprep.subr.mxu0 0.0
  %6233 = vmatpush1.msra.mxu0 0.0
  %6234 = vmatprep.subr.mxu0 0.0
  %6235 = vmatpush1.msra.mxu0 0.0
  %6236 = vmatprep.subr.mxu0 0.0
  %6237 = vmatpush1.msra.mxu0 0.0
  %6238 = vmatprep.subr.mxu0 0.0
  %6239 = vmatpush1.msra.mxu0 0.0
  %6240 = vmatprep.subr.mxu0 0.0
  %6241 = vmatpush1.msra.mxu0 0.0
  %6242 = vmatprep.subr.mxu0 0.0
  %6243 = vmatpush1.msra.mxu0 0.0
  %6244 = vmatprep.subr.mxu0 0.0
  %6245 = vmatpush1.msra.mxu0 0.0
  %6246 = vmatprep.subr.mxu0 0.0
  %6247 = vmatpush1.msra.mxu0 0.0
  %6248 = vmatprep.subr.mxu0 0.0
  %6249 = vmatpush1.msra.mxu0 0.0
  %6250 = vmatprep.subr.mxu0 0.0
  %6251 = vmatpush1.msra.mxu0 0.0
  %6252 = vmatprep.subr.mxu0 0.0
  %6253 = vmatpush1.msra.mxu0 0.0
  %6254 = vmatprep.subr.mxu0 0.0
  %6255 = vmatpush1.msra.mxu0 0.0
  %6256 = vmatprep.subr.mxu0 0.0
  %6257 = vmatpush1.msra.mxu0 0.0
  %6258 = vmatprep.subr.mxu0 0.0
  %6259 = vmatpush1.msra.mxu0 0.0
  %6260 = vmatprep.mubr.f32.mxu0 0.0
  %v6261 = vand.u32 %v6107, 4294901760
  %6262 = vmatmul.mubr.f32.gmra.mrb[0].mxu0 %v6261
  %v6263 = vpop.f32.mrb[0].mxu0
  %v6264 = vadd.f32 %v6183, %v6263
  %v6265 = vpop.f32.mrb[0].mxu0
  %6266 = vdwg.mxu0
  %6267 = vmatprep.subr.mxu0 0.0
  %v6268 = vand.u32 %v5520, 4294901760
  %v6269 = vsub.f32 %v5520, %v6268
  %6270 = vmatpush1.msra.mxu0 %v6269
  %6271 = vmatprep.subr.mxu0 0.0
  %v6272 = vand.u32 %v5521, 4294901760
  %v6273 = vsub.f32 %v5521, %v6272
  %6274 = vmatpush1.msra.mxu0 %v6273
  %6275 = vmatprep.subr.mxu0 0.0
  %6276 = vmatpush1.msra.mxu0 0.0
  %6277 = vmatprep.subr.mxu0 0.0
  %6278 = vmatpush1.msra.mxu0 0.0
  %6279 = vmatprep.subr.mxu0 0.0
  %6280 = vmatpush1.msra.mxu0 0.0
  %6281 = vmatprep.subr.mxu0 0.0
  %6282 = vmatpush1.msra.mxu0 0.0
  %6283 = vmatprep.subr.mxu0 0.0
  %6284 = vmatpush1.msra.mxu0 0.0
  %6285 = vmatprep.subr.mxu0 0.0
  %6286 = vmatpush1.msra.mxu0 0.0
  %6287 = vmatprep.subr.mxu0 0.0
  %6288 = vmatpush1.msra.mxu0 0.0
  %6289 = vmatprep.subr.mxu0 0.0
  %6290 = vmatpush1.msra.mxu0 0.0
  %6291 = vmatprep.subr.mxu0 0.0
  %6292 = vmatpush1.msra.mxu0 0.0
  %6293 = vmatprep.subr.mxu0 0.0
  %6294 = vmatpush1.msra.mxu0 0.0
  %6295 = vmatprep.subr.mxu0 0.0
  %6296 = vmatpush1.msra.mxu0 0.0
  %6297 = vmatprep.subr.mxu0 0.0
  %6298 = vmatpush1.msra.mxu0 0.0
  %6299 = vmatprep.subr.mxu0 0.0
  %6300 = vmatpush1.msra.mxu0 0.0
  %6301 = vmatprep.subr.mxu0 0.0
  %6302 = vmatpush1.msra.mxu0 0.0
  %6303 = vmatprep.subr.mxu0 0.0
  %6304 = vmatpush1.msra.mxu0 0.0
  %6305 = vmatprep.subr.mxu0 0.0
  %6306 = vmatpush1.msra.mxu0 0.0
  %6307 = vmatprep.subr.mxu0 0.0
  %6308 = vmatpush1.msra.mxu0 0.0
  %6309 = vmatprep.subr.mxu0 0.0
  %6310 = vmatpush1.msra.mxu0 0.0
  %6311 = vmatprep.subr.mxu0 0.0
  %6312 = vmatpush1.msra.mxu0 0.0
  %6313 = vmatprep.subr.mxu0 0.0
  %6314 = vmatpush1.msra.mxu0 0.0
  %6315 = vmatprep.subr.mxu0 0.0
  %6316 = vmatpush1.msra.mxu0 0.0
  %6317 = vmatprep.subr.mxu0 0.0
  %6318 = vmatpush1.msra.mxu0 0.0
  %6319 = vmatprep.subr.mxu0 0.0
  %6320 = vmatpush1.msra.mxu0 0.0
  %6321 = vmatprep.subr.mxu0 0.0
  %6322 = vmatpush1.msra.mxu0 0.0
  %6323 = vmatprep.subr.mxu0 0.0
  %6324 = vmatpush1.msra.mxu0 0.0
  %6325 = vmatprep.subr.mxu0 0.0
  %6326 = vmatpush1.msra.mxu0 0.0
  %6327 = vmatprep.subr.mxu0 0.0
  %6328 = vmatpush1.msra.mxu0 0.0
  %6329 = vmatprep.subr.mxu0 0.0
  %6330 = vmatpush1.msra.mxu0 0.0
  %6331 = vmatprep.subr.mxu0 0.0
  %6332 = vmatpush1.msra.mxu0 0.0
  %6333 = vmatprep.subr.mxu0 0.0
  %6334 = vmatpush1.msra.mxu0 0.0
  %6335 = vmatprep.mubr.f32.mxu0 0.0
  %v6336 = vand.u32 %v6107, 4294901760
  %v6337 = vsub.f32 %v6107, %v6336
  %6338 = vmatmul.mubr.f32.gmra.mrb[0].mxu0 %v6337
  %v6339 = vpop.f32.mrb[0].mxu0
  %v6340 = vadd.f32 %v6264, %v6339
  %v6341 = vpop.f32.mrb[0].mxu0
  %6342 = vdwg.mxu0
  %6343 = vmatprep.subr.mxu0 0.0
  %v6344 = vand.u32 %v5520, 4294901760
  %6345 = vmatpush1.msra.mxu0 %v6344
  %6346 = vmatprep.subr.mxu0 0.0
  %v6347 = vand.u32 %v5521, 4294901760
  %6348 = vmatpush1.msra.mxu0 %v6347
  %6349 = vmatprep.subr.mxu0 0.0
  %6350 = vmatpush1.msra.mxu0 0.0
  %6351 = vmatprep.subr.mxu0 0.0
  %6352 = vmatpush1.msra.mxu0 0.0
  %6353 = vmatprep.subr.mxu0 0.0
  %6354 = vmatpush1.msra.mxu0 0.0
  %6355 = vmatprep.subr.mxu0 0.0
  %6356 = vmatpush1.msra.mxu0 0.0
  %6357 = vmatprep.subr.mxu0 0.0
  %6358 = vmatpush1.msra.mxu0 0.0
  %6359 = vmatprep.subr.mxu0 0.0
  %6360 = vmatpush1.msra.mxu0 0.0
  %6361 = vmatprep.subr.mxu0 0.0
  %6362 = vmatpush1.msra.mxu0 0.0
  %6363 = vmatprep.subr.mxu0 0.0
  %6364 = vmatpush1.msra.mxu0 0.0
  %6365 = vmatprep.subr.mxu0 0.0
  %6366 = vmatpush1.msra.mxu0 0.0
  %6367 = vmatprep.subr.mxu0 0.0
  %6368 = vmatpush1.msra.mxu0 0.0
  %6369 = vmatprep.subr.mxu0 0.0
  %6370 = vmatpush1.msra.mxu0 0.0
  %6371 = vmatprep.subr.mxu0 0.0
  %6372 = vmatpush1.msra.mxu0 0.0
  %6373 = vmatprep.subr.mxu0 0.0
  %6374 = vmatpush1.msra.mxu0 0.0
  %6375 = vmatprep.subr.mxu0 0.0
  %6376 = vmatpush1.msra.mxu0 0.0
  %6377 = vmatprep.subr.mxu0 0.0
  %6378 = vmatpush1.msra.mxu0 0.0
  %6379 = vmatprep.subr.mxu0 0.0
  %6380 = vmatpush1.msra.mxu0 0.0
  %6381 = vmatprep.subr.mxu0 0.0
  %6382 = vmatpush1.msra.mxu0 0.0
  %6383 = vmatprep.subr.mxu0 0.0
  %6384 = vmatpush1.msra.mxu0 0.0
  %6385 = vmatprep.subr.mxu0 0.0
  %6386 = vmatpush1.msra.mxu0 0.0
  %6387 = vmatprep.subr.mxu0 0.0
  %6388 = vmatpush1.msra.mxu0 0.0
  %6389 = vmatprep.subr.mxu0 0.0
  %6390 = vmatpush1.msra.mxu0 0.0
  %6391 = vmatprep.subr.mxu0 0.0
  %6392 = vmatpush1.msra.mxu0 0.0
  %6393 = vmatprep.subr.mxu0 0.0
  %6394 = vmatpush1.msra.mxu0 0.0
  %6395 = vmatprep.subr.mxu0 0.0
  %6396 = vmatpush1.msra.mxu0 0.0
  %6397 = vmatprep.subr.mxu0 0.0
  %6398 = vmatpush1.msra.mxu0 0.0
  %6399 = vmatprep.subr.mxu0 0.0
  %6400 = vmatpush1.msra.mxu0 0.0
  %6401 = vmatprep.subr.mxu0 0.0
  %6402 = vmatpush1.msra.mxu0 0.0
  %6403 = vmatprep.subr.mxu0 0.0
  %6404 = vmatpush1.msra.mxu0 0.0
  %6405 = vmatprep.subr.mxu0 0.0
  %6406 = vmatpush1.msra.mxu0 0.0
  %6407 = vmatprep.subr.mxu0 0.0
  %6408 = vmatpush1.msra.mxu0 0.0
  %6409 = vmatprep.mubr.f32.mxu0 0.0
  %v6410 = vand.u32 %v6107, 4294901760
  %v6411 = vsub.f32 %v6107, %v6410
  %v6412 = vand.u32 %v6411, 4294901760
  %6413 = vmatmul.mubr.f32.gmra.mrb[0].mxu0 %v6412
  %v6414 = vpop.f32.mrb[0].mxu0
  %v6415 = vadd.f32 %v6340, %v6414
  %v6416 = vpop.f32.mrb[0].mxu0
  %6417 = vdwg.mxu0
  %6418 = vmatprep.subr.mxu0 0.0
  %v6419 = vand.u32 %v5520, 4294901760
  %v6420 = vsub.f32 %v5520, %v6419
  %v6421 = vand.u32 %v6420, 4294901760
  %6422 = vmatpush1.msra.mxu0 %v6421
  %6423 = vmatprep.subr.mxu0 0.0
  %v6424 = vand.u32 %v5521, 4294901760
  %v6425 = vsub.f32 %v5521, %v6424
  %v6426 = vand.u32 %v6425, 4294901760
  %6427 = vmatpush1.msra.mxu0 %v6426
  %6428 = vmatprep.subr.mxu0 0.0
  %6429 = vmatpush1.msra.mxu0 0.0
  %6430 = vmatprep.subr.mxu0 0.0
  %6431 = vmatpush1.msra.mxu0 0.0
  %6432 = vmatprep.subr.mxu0 0.0
  %6433 = vmatpush1.msra.mxu0 0.0
  %6434 = vmatprep.subr.mxu0 0.0
  %6435 = vmatpush1.msra.mxu0 0.0
  %6436 = vmatprep.subr.mxu0 0.0
  %6437 = vmatpush1.msra.mxu0 0.0
  %6438 = vmatprep.subr.mxu0 0.0
  %6439 = vmatpush1.msra.mxu0 0.0
  %6440 = vmatprep.subr.mxu0 0.0
  %6441 = vmatpush1.msra.mxu0 0.0
  %6442 = vmatprep.subr.mxu0 0.0
  %6443 = vmatpush1.msra.mxu0 0.0
  %6444 = vmatprep.subr.mxu0 0.0
  %6445 = vmatpush1.msra.mxu0 0.0
  %6446 = vmatprep.subr.mxu0 0.0
  %6447 = vmatpush1.msra.mxu0 0.0
  %6448 = vmatprep.subr.mxu0 0.0
  %6449 = vmatpush1.msra.mxu0 0.0
  %6450 = vmatprep.subr.mxu0 0.0
  %6451 = vmatpush1.msra.mxu0 0.0
  %6452 = vmatprep.subr.mxu0 0.0
  %6453 = vmatpush1.msra.mxu0 0.0
  %6454 = vmatprep.subr.mxu0 0.0
  %6455 = vmatpush1.msra.mxu0 0.0
  %6456 = vmatprep.subr.mxu0 0.0
  %6457 = vmatpush1.msra.mxu0 0.0
  %6458 = vmatprep.subr.mxu0 0.0
  %6459 = vmatpush1.msra.mxu0 0.0
  %6460 = vmatprep.subr.mxu0 0.0
  %6461 = vmatpush1.msra.mxu0 0.0
  %6462 = vmatprep.subr.mxu0 0.0
  %6463 = vmatpush1.msra.mxu0 0.0
  %6464 = vmatprep.subr.mxu0 0.0
  %6465 = vmatpush1.msra.mxu0 0.0
  %6466 = vmatprep.subr.mxu0 0.0
  %6467 = vmatpush1.msra.mxu0 0.0
  %6468 = vmatprep.subr.mxu0 0.0
  %6469 = vmatpush1.msra.mxu0 0.0
  %6470 = vmatprep.subr.mxu0 0.0
  %6471 = vmatpush1.msra.mxu0 0.0
  %6472 = vmatprep.subr.mxu0 0.0
  %6473 = vmatpush1.msra.mxu0 0.0
  %6474 = vmatprep.subr.mxu0 0.0
  %6475 = vmatpush1.msra.mxu0 0.0
  %6476 = vmatprep.subr.mxu0 0.0
  %6477 = vmatpush1.msra.mxu0 0.0
  %6478 = vmatprep.subr.mxu0 0.0
  %6479 = vmatpush1.msra.mxu0 0.0
  %6480 = vmatprep.subr.mxu0 0.0
  %6481 = vmatpush1.msra.mxu0 0.0
  %6482 = vmatprep.subr.mxu0 0.0
  %6483 = vmatpush1.msra.mxu0 0.0
  %6484 = vmatprep.subr.mxu0 0.0
  %6485 = vmatpush1.msra.mxu0 0.0
  %6486 = vmatprep.subr.mxu0 0.0
  %6487 = vmatpush1.msra.mxu0 0.0
  %6488 = vmatprep.mubr.f32.mxu0 0.0
  %v6489 = vand.u32 %v6107, 4294901760
  %6490 = vmatmul.mubr.f32.gmra.mrb[0].mxu0 %v6489
  %v6491 = vpop.f32.mrb[0].mxu0
  %v6492 = vadd.f32 %v6415, %v6491
  %v6493 = vpop.f32.mrb[0].mxu0
  %6494 = vdwg.mxu0
  %6495 = vmatprep.subr.mxu0 0.0
  %v6496 = vand.u32 %v5520, 4294901760
  %6497 = vmatpush1.msra.mxu0 %v6496
  %6498 = vmatprep.subr.mxu0 0.0
  %v6499 = vand.u32 %v5521, 4294901760
  %6500 = vmatpush1.msra.mxu0 %v6499
  %6501 = vmatprep.subr.mxu0 0.0
  %6502 = vmatpush1.msra.mxu0 0.0
  %6503 = vmatprep.subr.mxu0 0.0
  %6504 = vmatpush1.msra.mxu0 0.0
  %6505 = vmatprep.subr.mxu0 0.0
  %6506 = vmatpush1.msra.mxu0 0.0
  %6507 = vmatprep.subr.mxu0 0.0
  %6508 = vmatpush1.msra.mxu0 0.0
  %6509 = vmatprep.subr.mxu0 0.0
  %6510 = vmatpush1.msra.mxu0 0.0
  %6511 = vmatprep.subr.mxu0 0.0
  %6512 = vmatpush1.msra.mxu0 0.0
  %6513 = vmatprep.subr.mxu0 0.0
  %6514 = vmatpush1.msra.mxu0 0.0
  %6515 = vmatprep.subr.mxu0 0.0
  %6516 = vmatpush1.msra.mxu0 0.0
  %6517 = vmatprep.subr.mxu0 0.0
  %6518 = vmatpush1.msra.mxu0 0.0
  %6519 = vmatprep.subr.mxu0 0.0
  %6520 = vmatpush1.msra.mxu0 0.0
  %6521 = vmatprep.subr.mxu0 0.0
  %6522 = vmatpush1.msra.mxu0 0.0
  %6523 = vmatprep.subr.mxu0 0.0
  %6524 = vmatpush1.msra.mxu0 0.0
  %6525 = vmatprep.subr.mxu0 0.0
  %6526 = vmatpush1.msra.mxu0 0.0
  %6527 = vmatprep.subr.mxu0 0.0
  %6528 = vmatpush1.msra.mxu0 0.0
  %6529 = vmatprep.subr.mxu0 0.0
  %6530 = vmatpush1.msra.mxu0 0.0
  %6531 = vmatprep.subr.mxu0 0.0
  %6532 = vmatpush1.msra.mxu0 0.0
  %6533 = vmatprep.subr.mxu0 0.0
  %6534 = vmatpush1.msra.mxu0 0.0
  %6535 = vmatprep.subr.mxu0 0.0
  %6536 = vmatpush1.msra.mxu0 0.0
  %6537 = vmatprep.subr.mxu0 0.0
  %6538 = vmatpush1.msra.mxu0 0.0
  %6539 = vmatprep.subr.mxu0 0.0
  %6540 = vmatpush1.msra.mxu0 0.0
  %6541 = vmatprep.subr.mxu0 0.0
  %6542 = vmatpush1.msra.mxu0 0.0
  %6543 = vmatprep.subr.mxu0 0.0
  %6544 = vmatpush1.msra.mxu0 0.0
  %6545 = vmatprep.subr.mxu0 0.0
  %6546 = vmatpush1.msra.mxu0 0.0
  %6547 = vmatprep.subr.mxu0 0.0
  %6548 = vmatpush1.msra.mxu0 0.0
  %6549 = vmatprep.subr.mxu0 0.0
  %6550 = vmatpush1.msra.mxu0 0.0
  %6551 = vmatprep.subr.mxu0 0.0
  %6552 = vmatpush1.msra.mxu0 0.0
  %6553 = vmatprep.subr.mxu0 0.0
  %6554 = vmatpush1.msra.mxu0 0.0
  %6555 = vmatprep.subr.mxu0 0.0
  %6556 = vmatpush1.msra.mxu0 0.0
  %6557 = vmatprep.subr.mxu0 0.0
  %6558 = vmatpush1.msra.mxu0 0.0
  %6559 = vmatprep.subr.mxu0 0.0
  %6560 = vmatpush1.msra.mxu0 0.0
  %6561 = vmatprep.mubr.f32.mxu0 0.0
  %v6562 = vand.u32 %v6107, 4294901760
  %6563 = vmatmul.mubr.f32.gmra.mrb[0].mxu0 %v6562
  %v6564 = vpop.f32.mrb[0].mxu0
  %v6565 = vadd.f32 %v6492, %v6564
  %v6566 = vpop.f32.mrb[0].mxu0
  %6567 = vdwg.mxu0
  %v6568 = vmul.f32 %v5490, %v6094
  %v6569 = vmul.f32 %v5501, %v6101
  %v6570 = vsub.f32 %v6568, %v6569
  %v6571 = vmul.f32 %v5512, %v6565
  %v6572 = vadd.f32 %v6570, %v6571
  %v6574 = vrot.slane %v6565, 2
  %v6576 = vmul.f32 %v5519, %v6574
  %v6577 = vsub.f32 %v6572, %v6576
  %v6578 = vmul.f32 %v5490, %v6101
  %v6579 = vmul.f32 %v5501, %v6094
  %v6580 = vadd.f32 %v6578, %v6579
  %v6581 = vmul.f32 %v5512, %v6574
  %v6582 = vadd.f32 %v6580, %v6581
  %v6583 = vmul.f32 %v5519, %v6565
  %v6584 = vadd.f32 %v6582, %v6583
  %v6586 = vrot.slane %v6584, 6
  %v6588 = vsel %vm33, %v6577, %v6586
  %v6590 = vsel %vm5622, %v6588, 0
  %6592 = vmatprep.subr.mxu0 0.0
  %v6593 = vand.u32 %v5568, 4294901760
  %6594 = vmatpush1.msra.mxu0 %v6593
  %6595 = vmatprep.subr.mxu0 0.0
  %v6596 = vand.u32 %v5569, 4294901760
  %6597 = vmatpush1.msra.mxu0 %v6596
  %6598 = vmatprep.subr.mxu0 0.0
  %6599 = vmatpush1.msra.mxu0 0.0
  %6600 = vmatprep.subr.mxu0 0.0
  %6601 = vmatpush1.msra.mxu0 0.0
  %6602 = vmatprep.subr.mxu0 0.0
  %6603 = vmatpush1.msra.mxu0 0.0
  %6604 = vmatprep.subr.mxu0 0.0
  %6605 = vmatpush1.msra.mxu0 0.0
  %6606 = vmatprep.subr.mxu0 0.0
  %6607 = vmatpush1.msra.mxu0 0.0
  %6608 = vmatprep.subr.mxu0 0.0
  %6609 = vmatpush1.msra.mxu0 0.0
  %6610 = vmatprep.subr.mxu0 0.0
  %6611 = vmatpush1.msra.mxu0 0.0
  %6612 = vmatprep.subr.mxu0 0.0
  %6613 = vmatpush1.msra.mxu0 0.0
  %6614 = vmatprep.subr.mxu0 0.0
  %6615 = vmatpush1.msra.mxu0 0.0
  %6616 = vmatprep.subr.mxu0 0.0
  %6617 = vmatpush1.msra.mxu0 0.0
  %6618 = vmatprep.subr.mxu0 0.0
  %6619 = vmatpush1.msra.mxu0 0.0
  %6620 = vmatprep.subr.mxu0 0.0
  %6621 = vmatpush1.msra.mxu0 0.0
  %6622 = vmatprep.subr.mxu0 0.0
  %6623 = vmatpush1.msra.mxu0 0.0
  %6624 = vmatprep.subr.mxu0 0.0
  %6625 = vmatpush1.msra.mxu0 0.0
  %6626 = vmatprep.subr.mxu0 0.0
  %6627 = vmatpush1.msra.mxu0 0.0
  %6628 = vmatprep.subr.mxu0 0.0
  %6629 = vmatpush1.msra.mxu0 0.0
  %6630 = vmatprep.subr.mxu0 0.0
  %6631 = vmatpush1.msra.mxu0 0.0
  %6632 = vmatprep.subr.mxu0 0.0
  %6633 = vmatpush1.msra.mxu0 0.0
  %6634 = vmatprep.subr.mxu0 0.0
  %6635 = vmatpush1.msra.mxu0 0.0
  %6636 = vmatprep.subr.mxu0 0.0
  %6637 = vmatpush1.msra.mxu0 0.0
  %6638 = vmatprep.subr.mxu0 0.0
  %6639 = vmatpush1.msra.mxu0 0.0
  %6640 = vmatprep.subr.mxu0 0.0
  %6641 = vmatpush1.msra.mxu0 0.0
  %6642 = vmatprep.subr.mxu0 0.0
  %6643 = vmatpush1.msra.mxu0 0.0
  %6644 = vmatprep.subr.mxu0 0.0
  %6645 = vmatpush1.msra.mxu0 0.0
  %6646 = vmatprep.subr.mxu0 0.0
  %6647 = vmatpush1.msra.mxu0 0.0
  %6648 = vmatprep.subr.mxu0 0.0
  %6649 = vmatpush1.msra.mxu0 0.0
  %6650 = vmatprep.subr.mxu0 0.0
  %6651 = vmatpush1.msra.mxu0 0.0
  %6652 = vmatprep.subr.mxu0 0.0
  %6653 = vmatpush1.msra.mxu0 0.0
  %6654 = vmatprep.subr.mxu0 0.0
  %6655 = vmatpush1.msra.mxu0 0.0
  %6656 = vmatprep.subr.mxu0 0.0
  %6657 = vmatpush1.msra.mxu0 0.0
  %6658 = vmatprep.mubr.f32.mxu0 0.0
  %v6659 = vand.u32 %v6590, 4294901760
  %v6660 = vsub.f32 %v6590, %v6659
  %v6661 = vand.u32 %v6660, 4294901760
  %v6662 = vsub.f32 %v6660, %v6661
  %v6663 = vand.u32 %v6662, 4294901760
  %6664 = vmatmul.mubr.f32.gmra.mrb[0].mxu0 %v6663
  %v6665 = vpop.f32.mrb[0].mxu0
  %v6666 = vadd.f32 0.0, %v6665
  %v6667 = vpop.f32.mrb[0].mxu0
  %6668 = vdwg.mxu0
  %6669 = vmatprep.subr.mxu0 0.0
  %v6670 = vand.u32 %v5568, 4294901760
  %v6671 = vsub.f32 %v5568, %v6670
  %v6672 = vand.u32 %v6671, 4294901760
  %v6673 = vsub.f32 %v6671, %v6672
  %v6674 = vand.u32 %v6673, 4294901760
  %6675 = vmatpush1.msra.mxu0 %v6674
  %6676 = vmatprep.subr.mxu0 0.0
  %v6677 = vand.u32 %v5569, 4294901760
  %v6678 = vsub.f32 %v5569, %v6677
  %v6679 = vand.u32 %v6678, 4294901760
  %v6680 = vsub.f32 %v6678, %v6679
  %v6681 = vand.u32 %v6680, 4294901760
  %6682 = vmatpush1.msra.mxu0 %v6681
  %6683 = vmatprep.subr.mxu0 0.0
  %6684 = vmatpush1.msra.mxu0 0.0
  %6685 = vmatprep.subr.mxu0 0.0
  %6686 = vmatpush1.msra.mxu0 0.0
  %6687 = vmatprep.subr.mxu0 0.0
  %6688 = vmatpush1.msra.mxu0 0.0
  %6689 = vmatprep.subr.mxu0 0.0
  %6690 = vmatpush1.msra.mxu0 0.0
  %6691 = vmatprep.subr.mxu0 0.0
  %6692 = vmatpush1.msra.mxu0 0.0
  %6693 = vmatprep.subr.mxu0 0.0
  %6694 = vmatpush1.msra.mxu0 0.0
  %6695 = vmatprep.subr.mxu0 0.0
  %6696 = vmatpush1.msra.mxu0 0.0
  %6697 = vmatprep.subr.mxu0 0.0
  %6698 = vmatpush1.msra.mxu0 0.0
  %6699 = vmatprep.subr.mxu0 0.0
  %6700 = vmatpush1.msra.mxu0 0.0
  %6701 = vmatprep.subr.mxu0 0.0
  %6702 = vmatpush1.msra.mxu0 0.0
  %6703 = vmatprep.subr.mxu0 0.0
  %6704 = vmatpush1.msra.mxu0 0.0
  %6705 = vmatprep.subr.mxu0 0.0
  %6706 = vmatpush1.msra.mxu0 0.0
  %6707 = vmatprep.subr.mxu0 0.0
  %6708 = vmatpush1.msra.mxu0 0.0
  %6709 = vmatprep.subr.mxu0 0.0
  %6710 = vmatpush1.msra.mxu0 0.0
  %6711 = vmatprep.subr.mxu0 0.0
  %6712 = vmatpush1.msra.mxu0 0.0
  %6713 = vmatprep.subr.mxu0 0.0
  %6714 = vmatpush1.msra.mxu0 0.0
  %6715 = vmatprep.subr.mxu0 0.0
  %6716 = vmatpush1.msra.mxu0 0.0
  %6717 = vmatprep.subr.mxu0 0.0
  %6718 = vmatpush1.msra.mxu0 0.0
  %6719 = vmatprep.subr.mxu0 0.0
  %6720 = vmatpush1.msra.mxu0 0.0
  %6721 = vmatprep.subr.mxu0 0.0
  %6722 = vmatpush1.msra.mxu0 0.0
  %6723 = vmatprep.subr.mxu0 0.0
  %6724 = vmatpush1.msra.mxu0 0.0
  %6725 = vmatprep.subr.mxu0 0.0
  %6726 = vmatpush1.msra.mxu0 0.0
  %6727 = vmatprep.subr.mxu0 0.0
  %6728 = vmatpush1.msra.mxu0 0.0
  %6729 = vmatprep.subr.mxu0 0.0
  %6730 = vmatpush1.msra.mxu0 0.0
  %6731 = vmatprep.subr.mxu0 0.0
  %6732 = vmatpush1.msra.mxu0 0.0
  %6733 = vmatprep.subr.mxu0 0.0
  %6734 = vmatpush1.msra.mxu0 0.0
  %6735 = vmatprep.subr.mxu0 0.0
  %6736 = vmatpush1.msra.mxu0 0.0
  %6737 = vmatprep.subr.mxu0 0.0
  %6738 = vmatpush1.msra.mxu0 0.0
  %6739 = vmatprep.subr.mxu0 0.0
  %6740 = vmatpush1.msra.mxu0 0.0
  %6741 = vmatprep.subr.mxu0 0.0
  %6742 = vmatpush1.msra.mxu0 0.0
  %6743 = vmatprep.mubr.f32.mxu0 0.0
  %v6744 = vand.u32 %v6590, 4294901760
  %6745 = vmatmul.mubr.f32.gmra.mrb[0].mxu0 %v6744
  %v6746 = vpop.f32.mrb[0].mxu0
  %v6747 = vadd.f32 %v6666, %v6746
  %v6748 = vpop.f32.mrb[0].mxu0
  %6749 = vdwg.mxu0
  %6750 = vmatprep.subr.mxu0 0.0
  %v6751 = vand.u32 %v5568, 4294901760
  %v6752 = vsub.f32 %v5568, %v6751
  %6753 = vmatpush1.msra.mxu0 %v6752
  %6754 = vmatprep.subr.mxu0 0.0
  %v6755 = vand.u32 %v5569, 4294901760
  %v6756 = vsub.f32 %v5569, %v6755
  %6757 = vmatpush1.msra.mxu0 %v6756
  %6758 = vmatprep.subr.mxu0 0.0
  %6759 = vmatpush1.msra.mxu0 0.0
  %6760 = vmatprep.subr.mxu0 0.0
  %6761 = vmatpush1.msra.mxu0 0.0
  %6762 = vmatprep.subr.mxu0 0.0
  %6763 = vmatpush1.msra.mxu0 0.0
  %6764 = vmatprep.subr.mxu0 0.0
  %6765 = vmatpush1.msra.mxu0 0.0
  %6766 = vmatprep.subr.mxu0 0.0
  %6767 = vmatpush1.msra.mxu0 0.0
  %6768 = vmatprep.subr.mxu0 0.0
  %6769 = vmatpush1.msra.mxu0 0.0
  %6770 = vmatprep.subr.mxu0 0.0
  %6771 = vmatpush1.msra.mxu0 0.0
  %6772 = vmatprep.subr.mxu0 0.0
  %6773 = vmatpush1.msra.mxu0 0.0
  %6774 = vmatprep.subr.mxu0 0.0
  %6775 = vmatpush1.msra.mxu0 0.0
  %6776 = vmatprep.subr.mxu0 0.0
  %6777 = vmatpush1.msra.mxu0 0.0
  %6778 = vmatprep.subr.mxu0 0.0
  %6779 = vmatpush1.msra.mxu0 0.0
  %6780 = vmatprep.subr.mxu0 0.0
  %6781 = vmatpush1.msra.mxu0 0.0
  %6782 = vmatprep.subr.mxu0 0.0
  %6783 = vmatpush1.msra.mxu0 0.0
  %6784 = vmatprep.subr.mxu0 0.0
  %6785 = vmatpush1.msra.mxu0 0.0
  %6786 = vmatprep.subr.mxu0 0.0
  %6787 = vmatpush1.msra.mxu0 0.0
  %6788 = vmatprep.subr.mxu0 0.0
  %6789 = vmatpush1.msra.mxu0 0.0
  %6790 = vmatprep.subr.mxu0 0.0
  %6791 = vmatpush1.msra.mxu0 0.0
  %6792 = vmatprep.subr.mxu0 0.0
  %6793 = vmatpush1.msra.mxu0 0.0
  %6794 = vmatprep.subr.mxu0 0.0
  %6795 = vmatpush1.msra.mxu0 0.0
  %6796 = vmatprep.subr.mxu0 0.0
  %6797 = vmatpush1.msra.mxu0 0.0
  %6798 = vmatprep.subr.mxu0 0.0
  %6799 = vmatpush1.msra.mxu0 0.0
  %6800 = vmatprep.subr.mxu0 0.0
  %6801 = vmatpush1.msra.mxu0 0.0
  %6802 = vmatprep.subr.mxu0 0.0
  %6803 = vmatpush1.msra.mxu0 0.0
  %6804 = vmatprep.subr.mxu0 0.0
  %6805 = vmatpush1.msra.mxu0 0.0
  %6806 = vmatprep.subr.mxu0 0.0
  %6807 = vmatpush1.msra.mxu0 0.0
  %6808 = vmatprep.subr.mxu0 0.0
  %6809 = vmatpush1.msra.mxu0 0.0
  %6810 = vmatprep.subr.mxu0 0.0
  %6811 = vmatpush1.msra.mxu0 0.0
  %6812 = vmatprep.subr.mxu0 0.0
  %6813 = vmatpush1.msra.mxu0 0.0
  %6814 = vmatprep.subr.mxu0 0.0
  %6815 = vmatpush1.msra.mxu0 0.0
  %6816 = vmatprep.subr.mxu0 0.0
  %6817 = vmatpush1.msra.mxu0 0.0
  %6818 = vmatprep.mubr.f32.mxu0 0.0
  %v6819 = vand.u32 %v6590, 4294901760
  %v6820 = vsub.f32 %v6590, %v6819
  %6821 = vmatmul.mubr.f32.gmra.mrb[0].mxu0 %v6820
  %v6822 = vpop.f32.mrb[0].mxu0
  %v6823 = vadd.f32 %v6747, %v6822
  %v6824 = vpop.f32.mrb[0].mxu0
  %6825 = vdwg.mxu0
  %6826 = vmatprep.subr.mxu0 0.0
  %v6827 = vand.u32 %v5568, 4294901760
  %6828 = vmatpush1.msra.mxu0 %v6827
  %6829 = vmatprep.subr.mxu0 0.0
  %v6830 = vand.u32 %v5569, 4294901760
  %6831 = vmatpush1.msra.mxu0 %v6830
  %6832 = vmatprep.subr.mxu0 0.0
  %6833 = vmatpush1.msra.mxu0 0.0
  %6834 = vmatprep.subr.mxu0 0.0
  %6835 = vmatpush1.msra.mxu0 0.0
  %6836 = vmatprep.subr.mxu0 0.0
  %6837 = vmatpush1.msra.mxu0 0.0
  %6838 = vmatprep.subr.mxu0 0.0
  %6839 = vmatpush1.msra.mxu0 0.0
  %6840 = vmatprep.subr.mxu0 0.0
  %6841 = vmatpush1.msra.mxu0 0.0
  %6842 = vmatprep.subr.mxu0 0.0
  %6843 = vmatpush1.msra.mxu0 0.0
  %6844 = vmatprep.subr.mxu0 0.0
  %6845 = vmatpush1.msra.mxu0 0.0
  %6846 = vmatprep.subr.mxu0 0.0
  %6847 = vmatpush1.msra.mxu0 0.0
  %6848 = vmatprep.subr.mxu0 0.0
  %6849 = vmatpush1.msra.mxu0 0.0
  %6850 = vmatprep.subr.mxu0 0.0
  %6851 = vmatpush1.msra.mxu0 0.0
  %6852 = vmatprep.subr.mxu0 0.0
  %6853 = vmatpush1.msra.mxu0 0.0
  %6854 = vmatprep.subr.mxu0 0.0
  %6855 = vmatpush1.msra.mxu0 0.0
  %6856 = vmatprep.subr.mxu0 0.0
  %6857 = vmatpush1.msra.mxu0 0.0
  %6858 = vmatprep.subr.mxu0 0.0
  %6859 = vmatpush1.msra.mxu0 0.0
  %6860 = vmatprep.subr.mxu0 0.0
  %6861 = vmatpush1.msra.mxu0 0.0
  %6862 = vmatprep.subr.mxu0 0.0
  %6863 = vmatpush1.msra.mxu0 0.0
  %6864 = vmatprep.subr.mxu0 0.0
  %6865 = vmatpush1.msra.mxu0 0.0
  %6866 = vmatprep.subr.mxu0 0.0
  %6867 = vmatpush1.msra.mxu0 0.0
  %6868 = vmatprep.subr.mxu0 0.0
  %6869 = vmatpush1.msra.mxu0 0.0
  %6870 = vmatprep.subr.mxu0 0.0
  %6871 = vmatpush1.msra.mxu0 0.0
  %6872 = vmatprep.subr.mxu0 0.0
  %6873 = vmatpush1.msra.mxu0 0.0
  %6874 = vmatprep.subr.mxu0 0.0
  %6875 = vmatpush1.msra.mxu0 0.0
  %6876 = vmatprep.subr.mxu0 0.0
  %6877 = vmatpush1.msra.mxu0 0.0
  %6878 = vmatprep.subr.mxu0 0.0
  %6879 = vmatpush1.msra.mxu0 0.0
  %6880 = vmatprep.subr.mxu0 0.0
  %6881 = vmatpush1.msra.mxu0 0.0
  %6882 = vmatprep.subr.mxu0 0.0
  %6883 = vmatpush1.msra.mxu0 0.0
  %6884 = vmatprep.subr.mxu0 0.0
  %6885 = vmatpush1.msra.mxu0 0.0
  %6886 = vmatprep.subr.mxu0 0.0
  %6887 = vmatpush1.msra.mxu0 0.0
  %6888 = vmatprep.subr.mxu0 0.0
  %6889 = vmatpush1.msra.mxu0 0.0
  %6890 = vmatprep.subr.mxu0 0.0
  %6891 = vmatpush1.msra.mxu0 0.0
  %6892 = vmatprep.mubr.f32.mxu0 0.0
  %v6893 = vand.u32 %v6590, 4294901760
  %v6894 = vsub.f32 %v6590, %v6893
  %v6895 = vand.u32 %v6894, 4294901760
  %6896 = vmatmul.mubr.f32.gmra.mrb[0].mxu0 %v6895
  %v6897 = vpop.f32.mrb[0].mxu0
  %v6898 = vadd.f32 %v6823, %v6897
  %v6899 = vpop.f32.mrb[0].mxu0
  %6900 = vdwg.mxu0
  %6901 = vmatprep.subr.mxu0 0.0
  %v6902 = vand.u32 %v5568, 4294901760
  %v6903 = vsub.f32 %v5568, %v6902
  %v6904 = vand.u32 %v6903, 4294901760
  %6905 = vmatpush1.msra.mxu0 %v6904
  %6906 = vmatprep.subr.mxu0 0.0
  %v6907 = vand.u32 %v5569, 4294901760
  %v6908 = vsub.f32 %v5569, %v6907
  %v6909 = vand.u32 %v6908, 4294901760
  %6910 = vmatpush1.msra.mxu0 %v6909
  %6911 = vmatprep.subr.mxu0 0.0
  %6912 = vmatpush1.msra.mxu0 0.0
  %6913 = vmatprep.subr.mxu0 0.0
  %6914 = vmatpush1.msra.mxu0 0.0
  %6915 = vmatprep.subr.mxu0 0.0
  %6916 = vmatpush1.msra.mxu0 0.0
  %6917 = vmatprep.subr.mxu0 0.0
  %6918 = vmatpush1.msra.mxu0 0.0
  %6919 = vmatprep.subr.mxu0 0.0
  %6920 = vmatpush1.msra.mxu0 0.0
  %6921 = vmatprep.subr.mxu0 0.0
  %6922 = vmatpush1.msra.mxu0 0.0
  %6923 = vmatprep.subr.mxu0 0.0
  %6924 = vmatpush1.msra.mxu0 0.0
  %6925 = vmatprep.subr.mxu0 0.0
  %6926 = vmatpush1.msra.mxu0 0.0
  %6927 = vmatprep.subr.mxu0 0.0
  %6928 = vmatpush1.msra.mxu0 0.0
  %6929 = vmatprep.subr.mxu0 0.0
  %6930 = vmatpush1.msra.mxu0 0.0
  %6931 = vmatprep.subr.mxu0 0.0
  %6932 = vmatpush1.msra.mxu0 0.0
  %6933 = vmatprep.subr.mxu0 0.0
  %6934 = vmatpush1.msra.mxu0 0.0
  %6935 = vmatprep.subr.mxu0 0.0
  %6936 = vmatpush1.msra.mxu0 0.0
  %6937 = vmatprep.subr.mxu0 0.0
  %6938 = vmatpush1.msra.mxu0 0.0
  %6939 = vmatprep.subr.mxu0 0.0
  %6940 = vmatpush1.msra.mxu0 0.0
  %6941 = vmatprep.subr.mxu0 0.0
  %6942 = vmatpush1.msra.mxu0 0.0
  %6943 = vmatprep.subr.mxu0 0.0
  %6944 = vmatpush1.msra.mxu0 0.0
  %6945 = vmatprep.subr.mxu0 0.0
  %6946 = vmatpush1.msra.mxu0 0.0
  %6947 = vmatprep.subr.mxu0 0.0
  %6948 = vmatpush1.msra.mxu0 0.0
  %6949 = vmatprep.subr.mxu0 0.0
  %6950 = vmatpush1.msra.mxu0 0.0
  %6951 = vmatprep.subr.mxu0 0.0
  %6952 = vmatpush1.msra.mxu0 0.0
  %6953 = vmatprep.subr.mxu0 0.0
  %6954 = vmatpush1.msra.mxu0 0.0
  %6955 = vmatprep.subr.mxu0 0.0
  %6956 = vmatpush1.msra.mxu0 0.0
  %6957 = vmatprep.subr.mxu0 0.0
  %6958 = vmatpush1.msra.mxu0 0.0
  %6959 = vmatprep.subr.mxu0 0.0
  %6960 = vmatpush1.msra.mxu0 0.0
  %6961 = vmatprep.subr.mxu0 0.0
  %6962 = vmatpush1.msra.mxu0 0.0
  %6963 = vmatprep.subr.mxu0 0.0
  %6964 = vmatpush1.msra.mxu0 0.0
  %6965 = vmatprep.subr.mxu0 0.0
  %6966 = vmatpush1.msra.mxu0 0.0
  %6967 = vmatprep.subr.mxu0 0.0
  %6968 = vmatpush1.msra.mxu0 0.0
  %6969 = vmatprep.subr.mxu0 0.0
  %6970 = vmatpush1.msra.mxu0 0.0
  %6971 = vmatprep.mubr.f32.mxu0 0.0
  %v6972 = vand.u32 %v6590, 4294901760
  %6973 = vmatmul.mubr.f32.gmra.mrb[0].mxu0 %v6972
  %v6974 = vpop.f32.mrb[0].mxu0
  %v6975 = vadd.f32 %v6898, %v6974
  %v6976 = vpop.f32.mrb[0].mxu0
  %6977 = vdwg.mxu0
  %6978 = vmatprep.subr.mxu0 0.0
  %v6979 = vand.u32 %v5568, 4294901760
  %6980 = vmatpush1.msra.mxu0 %v6979
  %6981 = vmatprep.subr.mxu0 0.0
  %v6982 = vand.u32 %v5569, 4294901760
  %6983 = vmatpush1.msra.mxu0 %v6982
  %6984 = vmatprep.subr.mxu0 0.0
  %6985 = vmatpush1.msra.mxu0 0.0
  %6986 = vmatprep.subr.mxu0 0.0
  %6987 = vmatpush1.msra.mxu0 0.0
  %6988 = vmatprep.subr.mxu0 0.0
  %6989 = vmatpush1.msra.mxu0 0.0
  %6990 = vmatprep.subr.mxu0 0.0
  %6991 = vmatpush1.msra.mxu0 0.0
  %6992 = vmatprep.subr.mxu0 0.0
  %6993 = vmatpush1.msra.mxu0 0.0
  %6994 = vmatprep.subr.mxu0 0.0
  %6995 = vmatpush1.msra.mxu0 0.0
  %6996 = vmatprep.subr.mxu0 0.0
  %6997 = vmatpush1.msra.mxu0 0.0
  %6998 = vmatprep.subr.mxu0 0.0
  %6999 = vmatpush1.msra.mxu0 0.0
  %7000 = vmatprep.subr.mxu0 0.0
  %7001 = vmatpush1.msra.mxu0 0.0
  %7002 = vmatprep.subr.mxu0 0.0
  %7003 = vmatpush1.msra.mxu0 0.0
  %7004 = vmatprep.subr.mxu0 0.0
  %7005 = vmatpush1.msra.mxu0 0.0
  %7006 = vmatprep.subr.mxu0 0.0
  %7007 = vmatpush1.msra.mxu0 0.0
  %7008 = vmatprep.subr.mxu0 0.0
  %7009 = vmatpush1.msra.mxu0 0.0
  %7010 = vmatprep.subr.mxu0 0.0
  %7011 = vmatpush1.msra.mxu0 0.0
  %7012 = vmatprep.subr.mxu0 0.0
  %7013 = vmatpush1.msra.mxu0 0.0
  %7014 = vmatprep.subr.mxu0 0.0
  %7015 = vmatpush1.msra.mxu0 0.0
  %7016 = vmatprep.subr.mxu0 0.0
  %7017 = vmatpush1.msra.mxu0 0.0
  %7018 = vmatprep.subr.mxu0 0.0
  %7019 = vmatpush1.msra.mxu0 0.0
  %7020 = vmatprep.subr.mxu0 0.0
  %7021 = vmatpush1.msra.mxu0 0.0
  %7022 = vmatprep.subr.mxu0 0.0
  %7023 = vmatpush1.msra.mxu0 0.0
  %7024 = vmatprep.subr.mxu0 0.0
  %7025 = vmatpush1.msra.mxu0 0.0
  %7026 = vmatprep.subr.mxu0 0.0
  %7027 = vmatpush1.msra.mxu0 0.0
  %7028 = vmatprep.subr.mxu0 0.0
  %7029 = vmatpush1.msra.mxu0 0.0
  %7030 = vmatprep.subr.mxu0 0.0
  %7031 = vmatpush1.msra.mxu0 0.0
  %7032 = vmatprep.subr.mxu0 0.0
  %7033 = vmatpush1.msra.mxu0 0.0
  %7034 = vmatprep.subr.mxu0 0.0
  %7035 = vmatpush1.msra.mxu0 0.0
  %7036 = vmatprep.subr.mxu0 0.0
  %7037 = vmatpush1.msra.mxu0 0.0
  %7038 = vmatprep.subr.mxu0 0.0
  %7039 = vmatpush1.msra.mxu0 0.0
  %7040 = vmatprep.subr.mxu0 0.0
  %7041 = vmatpush1.msra.mxu0 0.0
  %7042 = vmatprep.subr.mxu0 0.0
  %7043 = vmatpush1.msra.mxu0 0.0
  %7044 = vmatprep.mubr.f32.mxu0 0.0
  %v7045 = vand.u32 %v6590, 4294901760
  %7046 = vmatmul.mubr.f32.gmra.mrb[0].mxu0 %v7045
  %v7047 = vpop.f32.mrb[0].mxu0
  %v7048 = vadd.f32 %v6975, %v7047
  %v7049 = vpop.f32.mrb[0].mxu0
  %7050 = vdwg.mxu0
  %v7051 = vmul.f32 %v5538, %v6577
  %v7052 = vmul.f32 %v5549, %v6584
  %v7053 = vsub.f32 %v7051, %v7052
  %v7054 = vmul.f32 %v5560, %v7048
  %v7055 = vadd.f32 %v7053, %v7054
  %v7057 = vrot.slane %v7048, 2
  %v7059 = vmul.f32 %v5567, %v7057
  %v7060 = vsub.f32 %v7055, %v7059
  %v7061 = vmul.f32 %v5538, %v6584
  %v7062 = vmul.f32 %v5549, %v6577
  %v7063 = vadd.f32 %v7061, %v7062
  %v7064 = vmul.f32 %v5560, %v7057
  %v7065 = vadd.f32 %v7063, %v7064
  %v7066 = vmul.f32 %v5567, %v7048
  %v7067 = vadd.f32 %v7065, %v7066
  %v7069 = vrot.slane %v7067, 6
  %v7071 = vsel %vm33, %v7060, %v7069
  %v7073 = vsel %vm5622, %v7071, 0
  %7075 = vmatprep.subr.mxu0 0.0
  %v7076 = vand.u32 %v5616, 4294901760
  %7077 = vmatpush1.msra.mxu0 %v7076
  %7078 = vmatprep.subr.mxu0 0.0
  %v7079 = vand.u32 %v5617, 4294901760
  %7080 = vmatpush1.msra.mxu0 %v7079
  %7081 = vmatprep.subr.mxu0 0.0
  %7082 = vmatpush1.msra.mxu0 0.0
  %7083 = vmatprep.subr.mxu0 0.0
  %7084 = vmatpush1.msra.mxu0 0.0
  %7085 = vmatprep.subr.mxu0 0.0
  %7086 = vmatpush1.msra.mxu0 0.0
  %7087 = vmatprep.subr.mxu0 0.0
  %7088 = vmatpush1.msra.mxu0 0.0
  %7089 = vmatprep.subr.mxu0 0.0
  %7090 = vmatpush1.msra.mxu0 0.0
  %7091 = vmatprep.subr.mxu0 0.0
  %7092 = vmatpush1.msra.mxu0 0.0
  %7093 = vmatprep.subr.mxu0 0.0
  %7094 = vmatpush1.msra.mxu0 0.0
  %7095 = vmatprep.subr.mxu0 0.0
  %7096 = vmatpush1.msra.mxu0 0.0
  %7097 = vmatprep.subr.mxu0 0.0
  %7098 = vmatpush1.msra.mxu0 0.0
  %7099 = vmatprep.subr.mxu0 0.0
  %7100 = vmatpush1.msra.mxu0 0.0
  %7101 = vmatprep.subr.mxu0 0.0
  %7102 = vmatpush1.msra.mxu0 0.0
  %7103 = vmatprep.subr.mxu0 0.0
  %7104 = vmatpush1.msra.mxu0 0.0
  %7105 = vmatprep.subr.mxu0 0.0
  %7106 = vmatpush1.msra.mxu0 0.0
  %7107 = vmatprep.subr.mxu0 0.0
  %7108 = vmatpush1.msra.mxu0 0.0
  %7109 = vmatprep.subr.mxu0 0.0
  %7110 = vmatpush1.msra.mxu0 0.0
  %7111 = vmatprep.subr.mxu0 0.0
  %7112 = vmatpush1.msra.mxu0 0.0
  %7113 = vmatprep.subr.mxu0 0.0
  %7114 = vmatpush1.msra.mxu0 0.0
  %7115 = vmatprep.subr.mxu0 0.0
  %7116 = vmatpush1.msra.mxu0 0.0
  %7117 = vmatprep.subr.mxu0 0.0
  %7118 = vmatpush1.msra.mxu0 0.0
  %7119 = vmatprep.subr.mxu0 0.0
  %7120 = vmatpush1.msra.mxu0 0.0
  %7121 = vmatprep.subr.mxu0 0.0
  %7122 = vmatpush1.msra.mxu0 0.0
  %7123 = vmatprep.subr.mxu0 0.0
  %7124 = vmatpush1.msra.mxu0 0.0
  %7125 = vmatprep.subr.mxu0 0.0
  %7126 = vmatpush1.msra.mxu0 0.0
  %7127 = vmatprep.subr.mxu0 0.0
  %7128 = vmatpush1.msra.mxu0 0.0
  %7129 = vmatprep.subr.mxu0 0.0
  %7130 = vmatpush1.msra.mxu0 0.0
  %7131 = vmatprep.subr.mxu0 0.0
  %7132 = vmatpush1.msra.mxu0 0.0
  %7133 = vmatprep.subr.mxu0 0.0
  %7134 = vmatpush1.msra.mxu0 0.0
  %7135 = vmatprep.subr.mxu0 0.0
  %7136 = vmatpush1.msra.mxu0 0.0
  %7137 = vmatprep.subr.mxu0 0.0
  %7138 = vmatpush1.msra.mxu0 0.0
  %7139 = vmatprep.subr.mxu0 0.0
  %7140 = vmatpush1.msra.mxu0 0.0
  %7141 = vmatprep.mubr.f32.mxu0 0.0
  %v7142 = vand.u32 %v7073, 4294901760
  %v7143 = vsub.f32 %v7073, %v7142
  %v7144 = vand.u32 %v7143, 4294901760
  %v7145 = vsub.f32 %v7143, %v7144
  %v7146 = vand.u32 %v7145, 4294901760
  %7147 = vmatmul.mubr.f32.gmra.mrb[0].mxu0 %v7146
  %v7148 = vpop.f32.mrb[0].mxu0
  %v7149 = vadd.f32 0.0, %v7148
  %v7150 = vpop.f32.mrb[0].mxu0
  %7151 = vdwg.mxu0
  %7152 = vmatprep.subr.mxu0 0.0
  %v7153 = vand.u32 %v5616, 4294901760
  %v7154 = vsub.f32 %v5616, %v7153
  %v7155 = vand.u32 %v7154, 4294901760
  %v7156 = vsub.f32 %v7154, %v7155
  %v7157 = vand.u32 %v7156, 4294901760
  %7158 = vmatpush1.msra.mxu0 %v7157
  %7159 = vmatprep.subr.mxu0 0.0
  %v7160 = vand.u32 %v5617, 4294901760
  %v7161 = vsub.f32 %v5617, %v7160
  %v7162 = vand.u32 %v7161, 4294901760
  %v7163 = vsub.f32 %v7161, %v7162
  %v7164 = vand.u32 %v7163, 4294901760
  %7165 = vmatpush1.msra.mxu0 %v7164
  %7166 = vmatprep.subr.mxu0 0.0
  %7167 = vmatpush1.msra.mxu0 0.0
  %7168 = vmatprep.subr.mxu0 0.0
  %7169 = vmatpush1.msra.mxu0 0.0
  %7170 = vmatprep.subr.mxu0 0.0
  %7171 = vmatpush1.msra.mxu0 0.0
  %7172 = vmatprep.subr.mxu0 0.0
  %7173 = vmatpush1.msra.mxu0 0.0
  %7174 = vmatprep.subr.mxu0 0.0
  %7175 = vmatpush1.msra.mxu0 0.0
  %7176 = vmatprep.subr.mxu0 0.0
  %7177 = vmatpush1.msra.mxu0 0.0
  %7178 = vmatprep.subr.mxu0 0.0
  %7179 = vmatpush1.msra.mxu0 0.0
  %7180 = vmatprep.subr.mxu0 0.0
  %7181 = vmatpush1.msra.mxu0 0.0
  %7182 = vmatprep.subr.mxu0 0.0
  %7183 = vmatpush1.msra.mxu0 0.0
  %7184 = vmatprep.subr.mxu0 0.0
  %7185 = vmatpush1.msra.mxu0 0.0
  %7186 = vmatprep.subr.mxu0 0.0
  %7187 = vmatpush1.msra.mxu0 0.0
  %7188 = vmatprep.subr.mxu0 0.0
  %7189 = vmatpush1.msra.mxu0 0.0
  %7190 = vmatprep.subr.mxu0 0.0
  %7191 = vmatpush1.msra.mxu0 0.0
  %7192 = vmatprep.subr.mxu0 0.0
  %7193 = vmatpush1.msra.mxu0 0.0
  %7194 = vmatprep.subr.mxu0 0.0
  %7195 = vmatpush1.msra.mxu0 0.0
  %7196 = vmatprep.subr.mxu0 0.0
  %7197 = vmatpush1.msra.mxu0 0.0
  %7198 = vmatprep.subr.mxu0 0.0
  %7199 = vmatpush1.msra.mxu0 0.0
  %7200 = vmatprep.subr.mxu0 0.0
  %7201 = vmatpush1.msra.mxu0 0.0
  %7202 = vmatprep.subr.mxu0 0.0
  %7203 = vmatpush1.msra.mxu0 0.0
  %7204 = vmatprep.subr.mxu0 0.0
  %7205 = vmatpush1.msra.mxu0 0.0
  %7206 = vmatprep.subr.mxu0 0.0
  %7207 = vmatpush1.msra.mxu0 0.0
  %7208 = vmatprep.subr.mxu0 0.0
  %7209 = vmatpush1.msra.mxu0 0.0
  %7210 = vmatprep.subr.mxu0 0.0
  %7211 = vmatpush1.msra.mxu0 0.0
  %7212 = vmatprep.subr.mxu0 0.0
  %7213 = vmatpush1.msra.mxu0 0.0
  %7214 = vmatprep.subr.mxu0 0.0
  %7215 = vmatpush1.msra.mxu0 0.0
  %7216 = vmatprep.subr.mxu0 0.0
  %7217 = vmatpush1.msra.mxu0 0.0
  %7218 = vmatprep.subr.mxu0 0.0
  %7219 = vmatpush1.msra.mxu0 0.0
  %7220 = vmatprep.subr.mxu0 0.0
  %7221 = vmatpush1.msra.mxu0 0.0
  %7222 = vmatprep.subr.mxu0 0.0
  %7223 = vmatpush1.msra.mxu0 0.0
  %7224 = vmatprep.subr.mxu0 0.0
  %7225 = vmatpush1.msra.mxu0 0.0
  %7226 = vmatprep.mubr.f32.mxu0 0.0
  %v7227 = vand.u32 %v7073, 4294901760
  %7228 = vmatmul.mubr.f32.gmra.mrb[0].mxu0 %v7227
  %v7229 = vpop.f32.mrb[0].mxu0
  %v7230 = vadd.f32 %v7149, %v7229
  %v7231 = vpop.f32.mrb[0].mxu0
  %7232 = vdwg.mxu0
  %7233 = vmatprep.subr.mxu0 0.0
  %v7234 = vand.u32 %v5616, 4294901760
  %v7235 = vsub.f32 %v5616, %v7234
  %7236 = vmatpush1.msra.mxu0 %v7235
  %7237 = vmatprep.subr.mxu0 0.0
  %v7238 = vand.u32 %v5617, 4294901760
  %v7239 = vsub.f32 %v5617, %v7238
  %7240 = vmatpush1.msra.mxu0 %v7239
  %7241 = vmatprep.subr.mxu0 0.0
  %7242 = vmatpush1.msra.mxu0 0.0
  %7243 = vmatprep.subr.mxu0 0.0
  %7244 = vmatpush1.msra.mxu0 0.0
  %7245 = vmatprep.subr.mxu0 0.0
  %7246 = vmatpush1.msra.mxu0 0.0
  %7247 = vmatprep.subr.mxu0 0.0
  %7248 = vmatpush1.msra.mxu0 0.0
  %7249 = vmatprep.subr.mxu0 0.0
  %7250 = vmatpush1.msra.mxu0 0.0
  %7251 = vmatprep.subr.mxu0 0.0
  %7252 = vmatpush1.msra.mxu0 0.0
  %7253 = vmatprep.subr.mxu0 0.0
  %7254 = vmatpush1.msra.mxu0 0.0
  %7255 = vmatprep.subr.mxu0 0.0
  %7256 = vmatpush1.msra.mxu0 0.0
  %7257 = vmatprep.subr.mxu0 0.0
  %7258 = vmatpush1.msra.mxu0 0.0
  %7259 = vmatprep.subr.mxu0 0.0
  %7260 = vmatpush1.msra.mxu0 0.0
  %7261 = vmatprep.subr.mxu0 0.0
  %7262 = vmatpush1.msra.mxu0 0.0
  %7263 = vmatprep.subr.mxu0 0.0
  %7264 = vmatpush1.msra.mxu0 0.0
  %7265 = vmatprep.subr.mxu0 0.0
  %7266 = vmatpush1.msra.mxu0 0.0
  %7267 = vmatprep.subr.mxu0 0.0
  %7268 = vmatpush1.msra.mxu0 0.0
  %7269 = vmatprep.subr.mxu0 0.0
  %7270 = vmatpush1.msra.mxu0 0.0
  %7271 = vmatprep.subr.mxu0 0.0
  %7272 = vmatpush1.msra.mxu0 0.0
  %7273 = vmatprep.subr.mxu0 0.0
  %7274 = vmatpush1.msra.mxu0 0.0
  %7275 = vmatprep.subr.mxu0 0.0
  %7276 = vmatpush1.msra.mxu0 0.0
  %7277 = vmatprep.subr.mxu0 0.0
  %7278 = vmatpush1.msra.mxu0 0.0
  %7279 = vmatprep.subr.mxu0 0.0
  %7280 = vmatpush1.msra.mxu0 0.0
  %7281 = vmatprep.subr.mxu0 0.0
  %7282 = vmatpush1.msra.mxu0 0.0
  %7283 = vmatprep.subr.mxu0 0.0
  %7284 = vmatpush1.msra.mxu0 0.0
  %7285 = vmatprep.subr.mxu0 0.0
  %7286 = vmatpush1.msra.mxu0 0.0
  %7287 = vmatprep.subr.mxu0 0.0
  %7288 = vmatpush1.msra.mxu0 0.0
  %7289 = vmatprep.subr.mxu0 0.0
  %7290 = vmatpush1.msra.mxu0 0.0
  %7291 = vmatprep.subr.mxu0 0.0
  %7292 = vmatpush1.msra.mxu0 0.0
  %7293 = vmatprep.subr.mxu0 0.0
  %7294 = vmatpush1.msra.mxu0 0.0
  %7295 = vmatprep.subr.mxu0 0.0
  %7296 = vmatpush1.msra.mxu0 0.0
  %7297 = vmatprep.subr.mxu0 0.0
  %7298 = vmatpush1.msra.mxu0 0.0
  %7299 = vmatprep.subr.mxu0 0.0
  %7300 = vmatpush1.msra.mxu0 0.0
  %7301 = vmatprep.mubr.f32.mxu0 0.0
  %v7302 = vand.u32 %v7073, 4294901760
  %v7303 = vsub.f32 %v7073, %v7302
  %7304 = vmatmul.mubr.f32.gmra.mrb[0].mxu0 %v7303
  %v7305 = vpop.f32.mrb[0].mxu0
  %v7306 = vadd.f32 %v7230, %v7305
  %v7307 = vpop.f32.mrb[0].mxu0
  %7308 = vdwg.mxu0
  %7309 = vmatprep.subr.mxu0 0.0
  %v7310 = vand.u32 %v5616, 4294901760
  %7311 = vmatpush1.msra.mxu0 %v7310
  %7312 = vmatprep.subr.mxu0 0.0
  %v7313 = vand.u32 %v5617, 4294901760
  %7314 = vmatpush1.msra.mxu0 %v7313
  %7315 = vmatprep.subr.mxu0 0.0
  %7316 = vmatpush1.msra.mxu0 0.0
  %7317 = vmatprep.subr.mxu0 0.0
  %7318 = vmatpush1.msra.mxu0 0.0
  %7319 = vmatprep.subr.mxu0 0.0
  %7320 = vmatpush1.msra.mxu0 0.0
  %7321 = vmatprep.subr.mxu0 0.0
  %7322 = vmatpush1.msra.mxu0 0.0
  %7323 = vmatprep.subr.mxu0 0.0
  %7324 = vmatpush1.msra.mxu0 0.0
  %7325 = vmatprep.subr.mxu0 0.0
  %7326 = vmatpush1.msra.mxu0 0.0
  %7327 = vmatprep.subr.mxu0 0.0
  %7328 = vmatpush1.msra.mxu0 0.0
  %7329 = vmatprep.subr.mxu0 0.0
  %7330 = vmatpush1.msra.mxu0 0.0
  %7331 = vmatprep.subr.mxu0 0.0
  %7332 = vmatpush1.msra.mxu0 0.0
  %7333 = vmatprep.subr.mxu0 0.0
  %7334 = vmatpush1.msra.mxu0 0.0
  %7335 = vmatprep.subr.mxu0 0.0
  %7336 = vmatpush1.msra.mxu0 0.0
  %7337 = vmatprep.subr.mxu0 0.0
  %7338 = vmatpush1.msra.mxu0 0.0
  %7339 = vmatprep.subr.mxu0 0.0
  %7340 = vmatpush1.msra.mxu0 0.0
  %7341 = vmatprep.subr.mxu0 0.0
  %7342 = vmatpush1.msra.mxu0 0.0
  %7343 = vmatprep.subr.mxu0 0.0
  %7344 = vmatpush1.msra.mxu0 0.0
  %7345 = vmatprep.subr.mxu0 0.0
  %7346 = vmatpush1.msra.mxu0 0.0
  %7347 = vmatprep.subr.mxu0 0.0
  %7348 = vmatpush1.msra.mxu0 0.0
  %7349 = vmatprep.subr.mxu0 0.0
  %7350 = vmatpush1.msra.mxu0 0.0
  %7351 = vmatprep.subr.mxu0 0.0
  %7352 = vmatpush1.msra.mxu0 0.0
  %7353 = vmatprep.subr.mxu0 0.0
  %7354 = vmatpush1.msra.mxu0 0.0
  %7355 = vmatprep.subr.mxu0 0.0
  %7356 = vmatpush1.msra.mxu0 0.0
  %7357 = vmatprep.subr.mxu0 0.0
  %7358 = vmatpush1.msra.mxu0 0.0
  %7359 = vmatprep.subr.mxu0 0.0
  %7360 = vmatpush1.msra.mxu0 0.0
  %7361 = vmatprep.subr.mxu0 0.0
  %7362 = vmatpush1.msra.mxu0 0.0
  %7363 = vmatprep.subr.mxu0 0.0
  %7364 = vmatpush1.msra.mxu0 0.0
  %7365 = vmatprep.subr.mxu0 0.0
  %7366 = vmatpush1.msra.mxu0 0.0
  %7367 = vmatprep.subr.mxu0 0.0
  %7368 = vmatpush1.msra.mxu0 0.0
  %7369 = vmatprep.subr.mxu0 0.0
  %7370 = vmatpush1.msra.mxu0 0.0
  %7371 = vmatprep.subr.mxu0 0.0
  %7372 = vmatpush1.msra.mxu0 0.0
  %7373 = vmatprep.subr.mxu0 0.0
  %7374 = vmatpush1.msra.mxu0 0.0
  %7375 = vmatprep.mubr.f32.mxu0 0.0
  %v7376 = vand.u32 %v7073, 4294901760
  %v7377 = vsub.f32 %v7073, %v7376
  %v7378 = vand.u32 %v7377, 4294901760
  %7379 = vmatmul.mubr.f32.gmra.mrb[0].mxu0 %v7378
  %v7380 = vpop.f32.mrb[0].mxu0
  %v7381 = vadd.f32 %v7306, %v7380
  %v7382 = vpop.f32.mrb[0].mxu0
  %7383 = vdwg.mxu0
  %7384 = vmatprep.subr.mxu0 0.0
  %v7385 = vand.u32 %v5616, 4294901760
  %v7386 = vsub.f32 %v5616, %v7385
  %v7387 = vand.u32 %v7386, 4294901760
  %7388 = vmatpush1.msra.mxu0 %v7387
  %7389 = vmatprep.subr.mxu0 0.0
  %v7390 = vand.u32 %v5617, 4294901760
  %v7391 = vsub.f32 %v5617, %v7390
  %v7392 = vand.u32 %v7391, 4294901760
  %7393 = vmatpush1.msra.mxu0 %v7392
  %7394 = vmatprep.subr.mxu0 0.0
  %7395 = vmatpush1.msra.mxu0 0.0
  %7396 = vmatprep.subr.mxu0 0.0
  %7397 = vmatpush1.msra.mxu0 0.0
  %7398 = vmatprep.subr.mxu0 0.0
  %7399 = vmatpush1.msra.mxu0 0.0
  %7400 = vmatprep.subr.mxu0 0.0
  %7401 = vmatpush1.msra.mxu0 0.0
  %7402 = vmatprep.subr.mxu0 0.0
  %7403 = vmatpush1.msra.mxu0 0.0
  %7404 = vmatprep.subr.mxu0 0.0
  %7405 = vmatpush1.msra.mxu0 0.0
  %7406 = vmatprep.subr.mxu0 0.0
  %7407 = vmatpush1.msra.mxu0 0.0
  %7408 = vmatprep.subr.mxu0 0.0
  %7409 = vmatpush1.msra.mxu0 0.0
  %7410 = vmatprep.subr.mxu0 0.0
  %7411 = vmatpush1.msra.mxu0 0.0
  %7412 = vmatprep.subr.mxu0 0.0
  %7413 = vmatpush1.msra.mxu0 0.0
  %7414 = vmatprep.subr.mxu0 0.0
  %7415 = vmatpush1.msra.mxu0 0.0
  %7416 = vmatprep.subr.mxu0 0.0
  %7417 = vmatpush1.msra.mxu0 0.0
  %7418 = vmatprep.subr.mxu0 0.0
  %7419 = vmatpush1.msra.mxu0 0.0
  %7420 = vmatprep.subr.mxu0 0.0
  %7421 = vmatpush1.msra.mxu0 0.0
  %7422 = vmatprep.subr.mxu0 0.0
  %7423 = vmatpush1.msra.mxu0 0.0
  %7424 = vmatprep.subr.mxu0 0.0
  %7425 = vmatpush1.msra.mxu0 0.0
  %7426 = vmatprep.subr.mxu0 0.0
  %7427 = vmatpush1.msra.mxu0 0.0
  %7428 = vmatprep.subr.mxu0 0.0
  %7429 = vmatpush1.msra.mxu0 0.0
  %7430 = vmatprep.subr.mxu0 0.0
  %7431 = vmatpush1.msra.mxu0 0.0
  %7432 = vmatprep.subr.mxu0 0.0
  %7433 = vmatpush1.msra.mxu0 0.0
  %7434 = vmatprep.subr.mxu0 0.0
  %7435 = vmatpush1.msra.mxu0 0.0
  %7436 = vmatprep.subr.mxu0 0.0
  %7437 = vmatpush1.msra.mxu0 0.0
  %7438 = vmatprep.subr.mxu0 0.0
  %7439 = vmatpush1.msra.mxu0 0.0
  %7440 = vmatprep.subr.mxu0 0.0
  %7441 = vmatpush1.msra.mxu0 0.0
  %7442 = vmatprep.subr.mxu0 0.0
  %7443 = vmatpush1.msra.mxu0 0.0
  %7444 = vmatprep.subr.mxu0 0.0
  %7445 = vmatpush1.msra.mxu0 0.0
  %7446 = vmatprep.subr.mxu0 0.0
  %7447 = vmatpush1.msra.mxu0 0.0
  %7448 = vmatprep.subr.mxu0 0.0
  %7449 = vmatpush1.msra.mxu0 0.0
  %7450 = vmatprep.subr.mxu0 0.0
  %7451 = vmatpush1.msra.mxu0 0.0
  %7452 = vmatprep.subr.mxu0 0.0
  %7453 = vmatpush1.msra.mxu0 0.0
  %7454 = vmatprep.mubr.f32.mxu0 0.0
  %v7455 = vand.u32 %v7073, 4294901760
  %7456 = vmatmul.mubr.f32.gmra.mrb[0].mxu0 %v7455
  %v7457 = vpop.f32.mrb[0].mxu0
  %v7458 = vadd.f32 %v7381, %v7457
  %v7459 = vpop.f32.mrb[0].mxu0
  %7460 = vdwg.mxu0
  %7461 = vmatprep.subr.mxu0 0.0
  %v7462 = vand.u32 %v5616, 4294901760
  %7463 = vmatpush1.msra.mxu0 %v7462
  %7464 = vmatprep.subr.mxu0 0.0
  %v7465 = vand.u32 %v5617, 4294901760
  %7466 = vmatpush1.msra.mxu0 %v7465
  %7467 = vmatprep.subr.mxu0 0.0
  %7468 = vmatpush1.msra.mxu0 0.0
  %7469 = vmatprep.subr.mxu0 0.0
  %7470 = vmatpush1.msra.mxu0 0.0
  %7471 = vmatprep.subr.mxu0 0.0
  %7472 = vmatpush1.msra.mxu0 0.0
  %7473 = vmatprep.subr.mxu0 0.0
  %7474 = vmatpush1.msra.mxu0 0.0
  %7475 = vmatprep.subr.mxu0 0.0
  %7476 = vmatpush1.msra.mxu0 0.0
  %7477 = vmatprep.subr.mxu0 0.0
  %7478 = vmatpush1.msra.mxu0 0.0
  %7479 = vmatprep.subr.mxu0 0.0
  %7480 = vmatpush1.msra.mxu0 0.0
  %7481 = vmatprep.subr.mxu0 0.0
  %7482 = vmatpush1.msra.mxu0 0.0
  %7483 = vmatprep.subr.mxu0 0.0
  %7484 = vmatpush1.msra.mxu0 0.0
  %7485 = vmatprep.subr.mxu0 0.0
  %7486 = vmatpush1.msra.mxu0 0.0
  %7487 = vmatprep.subr.mxu0 0.0
  %7488 = vmatpush1.msra.mxu0 0.0
  %7489 = vmatprep.subr.mxu0 0.0
  %7490 = vmatpush1.msra.mxu0 0.0
  %7491 = vmatprep.subr.mxu0 0.0
  %7492 = vmatpush1.msra.mxu0 0.0
  %7493 = vmatprep.subr.mxu0 0.0
  %7494 = vmatpush1.msra.mxu0 0.0
  %7495 = vmatprep.subr.mxu0 0.0
  %7496 = vmatpush1.msra.mxu0 0.0
  %7497 = vmatprep.subr.mxu0 0.0
  %7498 = vmatpush1.msra.mxu0 0.0
  %7499 = vmatprep.subr.mxu0 0.0
  %7500 = vmatpush1.msra.mxu0 0.0
  %7501 = vmatprep.subr.mxu0 0.0
  %7502 = vmatpush1.msra.mxu0 0.0
  %7503 = vmatprep.subr.mxu0 0.0
  %7504 = vmatpush1.msra.mxu0 0.0
  %7505 = vmatprep.subr.mxu0 0.0
  %7506 = vmatpush1.msra.mxu0 0.0
  %7507 = vmatprep.subr.mxu0 0.0
  %7508 = vmatpush1.msra.mxu0 0.0
  %7509 = vmatprep.subr.mxu0 0.0
  %7510 = vmatpush1.msra.mxu0 0.0
  %7511 = vmatprep.subr.mxu0 0.0
  %7512 = vmatpush1.msra.mxu0 0.0
  %7513 = vmatprep.subr.mxu0 0.0
  %7514 = vmatpush1.msra.mxu0 0.0
  %7515 = vmatprep.subr.mxu0 0.0
  %7516 = vmatpush1.msra.mxu0 0.0
  %7517 = vmatprep.subr.mxu0 0.0
  %7518 = vmatpush1.msra.mxu0 0.0
  %7519 = vmatprep.subr.mxu0 0.0
  %7520 = vmatpush1.msra.mxu0 0.0
  %7521 = vmatprep.subr.mxu0 0.0
  %7522 = vmatpush1.msra.mxu0 0.0
  %7523 = vmatprep.subr.mxu0 0.0
  %7524 = vmatpush1.msra.mxu0 0.0
  %7525 = vmatprep.subr.mxu0 0.0
  %7526 = vmatpush1.msra.mxu0 0.0
  %7527 = vmatprep.mubr.f32.mxu0 0.0
  %v7528 = vand.u32 %v7073, 4294901760
  %7529 = vmatmul.mubr.f32.gmra.mrb[0].mxu0 %v7528
  %v7530 = vpop.f32.mrb[0].mxu0
  %v7531 = vadd.f32 %v7458, %v7530
  %v7532 = vpop.f32.mrb[0].mxu0
  %7533 = vdwg.mxu0
  %v7534 = vmul.f32 %v5586, %v7060
  %v7535 = vmul.f32 %v5597, %v7067
  %v7536 = vsub.f32 %v7534, %v7535
  %v7537 = vmul.f32 %v5608, %v7531
  %v7538 = vadd.f32 %v7536, %v7537
  %v7540 = vrot.slane %v7531, 2
  %v7542 = vmul.f32 %v5615, %v7540
  %v7543 = vsub.f32 %v7538, %v7542
  %v7544 = vmul.f32 %v5586, %v7067
  %v7545 = vmul.f32 %v5597, %v7060
  %v7546 = vadd.f32 %v7544, %v7545
  %v7547 = vmul.f32 %v5608, %v7540
  %v7548 = vadd.f32 %v7546, %v7547
  %v7549 = vmul.f32 %v5615, %v7531
  %v7550 = vadd.f32 %v7548, %v7549
  %v7551 = vld [vmem:[%s1 + $0x80] sm:$0xff]
  %v7552 = vld [vmem:[%s1 + $0x88] sm:$0xff]
  %v7553 = vld [vmem:[%s1 + $0x90] sm:$0xff]
  %v7554 = vld [vmem:[%s1 + $0x98] sm:$0xff]
  %7556 = vrot.lane.b32.xlu0 %v7550, 16
  %v7557 = vpop.permute.xlu0 %7556
  %v7559 = vsel %vm5622, %v7543, %v7557
  %vm7560 = vcmask 261120
  %v7562 = vsel %vm7560, %v7559, 0
  %7564 = vmatprep.subr.mxu0 0.0
  %v7565 = vand.u32 %v7551, 4294901760
  %7566 = vmatpush1.msra.mxu0 %v7565
  %7567 = vmatprep.subr.mxu0 0.0
  %v7568 = vand.u32 %v7552, 4294901760
  %7569 = vmatpush1.msra.mxu0 %v7568
  %7570 = vmatprep.subr.mxu0 0.0
  %v7571 = vand.u32 %v7553, 4294901760
  %7572 = vmatpush1.msra.mxu0 %v7571
  %7573 = vmatprep.subr.mxu0 0.0
  %v7574 = vand.u32 %v7554, 4294901760
  %7575 = vmatpush1.msra.mxu0 %v7574
  %7576 = vmatprep.subr.mxu0 0.0
  %7577 = vmatpush1.msra.mxu0 0.0
  %7578 = vmatprep.subr.mxu0 0.0
  %7579 = vmatpush1.msra.mxu0 0.0
  %7580 = vmatprep.subr.mxu0 0.0
  %7581 = vmatpush1.msra.mxu0 0.0
  %7582 = vmatprep.subr.mxu0 0.0
  %7583 = vmatpush1.msra.mxu0 0.0
  %7584 = vmatprep.subr.mxu0 0.0
  %7585 = vmatpush1.msra.mxu0 0.0
  %7586 = vmatprep.subr.mxu0 0.0
  %7587 = vmatpush1.msra.mxu0 0.0
  %7588 = vmatprep.subr.mxu0 0.0
  %7589 = vmatpush1.msra.mxu0 0.0
  %7590 = vmatprep.subr.mxu0 0.0
  %7591 = vmatpush1.msra.mxu0 0.0
  %7592 = vmatprep.subr.mxu0 0.0
  %7593 = vmatpush1.msra.mxu0 0.0
  %7594 = vmatprep.subr.mxu0 0.0
  %7595 = vmatpush1.msra.mxu0 0.0
  %7596 = vmatprep.subr.mxu0 0.0
  %7597 = vmatpush1.msra.mxu0 0.0
  %7598 = vmatprep.subr.mxu0 0.0
  %7599 = vmatpush1.msra.mxu0 0.0
  %7600 = vmatprep.subr.mxu0 0.0
  %7601 = vmatpush1.msra.mxu0 0.0
  %7602 = vmatprep.subr.mxu0 0.0
  %7603 = vmatpush1.msra.mxu0 0.0
  %7604 = vmatprep.subr.mxu0 0.0
  %7605 = vmatpush1.msra.mxu0 0.0
  %7606 = vmatprep.subr.mxu0 0.0
  %7607 = vmatpush1.msra.mxu0 0.0
  %7608 = vmatprep.subr.mxu0 0.0
  %7609 = vmatpush1.msra.mxu0 0.0
  %7610 = vmatprep.subr.mxu0 0.0
  %7611 = vmatpush1.msra.mxu0 0.0
  %7612 = vmatprep.subr.mxu0 0.0
  %7613 = vmatpush1.msra.mxu0 0.0
  %7614 = vmatprep.subr.mxu0 0.0
  %7615 = vmatpush1.msra.mxu0 0.0
  %7616 = vmatprep.subr.mxu0 0.0
  %7617 = vmatpush1.msra.mxu0 0.0
  %7618 = vmatprep.subr.mxu0 0.0
  %7619 = vmatpush1.msra.mxu0 0.0
  %7620 = vmatprep.subr.mxu0 0.0
  %7621 = vmatpush1.msra.mxu0 0.0
  %7622 = vmatprep.subr.mxu0 0.0
  %7623 = vmatpush1.msra.mxu0 0.0
  %7624 = vmatprep.subr.mxu0 0.0
  %7625 = vmatpush1.msra.mxu0 0.0
  %7626 = vmatprep.subr.mxu0 0.0
  %7627 = vmatpush1.msra.mxu0 0.0
  %7628 = vmatprep.subr.mxu0 0.0
  %7629 = vmatpush1.msra.mxu0 0.0
  %7630 = vmatprep.subr.mxu0 0.0
  %7631 = vmatpush1.msra.mxu0 0.0
  %7632 = vmatprep.mubr.f32.mxu0 0.0
  %v7633 = vand.u32 %v7562, 4294901760
  %v7634 = vsub.f32 %v7562, %v7633
  %v7635 = vand.u32 %v7634, 4294901760
  %v7636 = vsub.f32 %v7634, %v7635
  %v7637 = vand.u32 %v7636, 4294901760
  %7638 = vmatmul.mubr.f32.gmra.mrb[0].mxu0 %v7637
  %v7639 = vpop.f32.mrb[0].mxu0
  %v7640 = vadd.f32 0.0, %v7639
  %v7641 = vpop.f32.mrb[0].mxu0
  %7642 = vdwg.mxu0
  %7643 = vmatprep.subr.mxu0 0.0
  %v7644 = vand.u32 %v7551, 4294901760
  %v7645 = vsub.f32 %v7551, %v7644
  %v7646 = vand.u32 %v7645, 4294901760
  %v7647 = vsub.f32 %v7645, %v7646
  %v7648 = vand.u32 %v7647, 4294901760
  %7649 = vmatpush1.msra.mxu0 %v7648
  %7650 = vmatprep.subr.mxu0 0.0
  %v7651 = vand.u32 %v7552, 4294901760
  %v7652 = vsub.f32 %v7552, %v7651
  %v7653 = vand.u32 %v7652, 4294901760
  %v7654 = vsub.f32 %v7652, %v7653
  %v7655 = vand.u32 %v7654, 4294901760
  %7656 = vmatpush1.msra.mxu0 %v7655
  %7657 = vmatprep.subr.mxu0 0.0
  %v7658 = vand.u32 %v7553, 4294901760
  %v7659 = vsub.f32 %v7553, %v7658
  %v7660 = vand.u32 %v7659, 4294901760
  %v7661 = vsub.f32 %v7659, %v7660
  %v7662 = vand.u32 %v7661, 4294901760
  %7663 = vmatpush1.msra.mxu0 %v7662
  %7664 = vmatprep.subr.mxu0 0.0
  %v7665 = vand.u32 %v7554, 4294901760
  %v7666 = vsub.f32 %v7554, %v7665
  %v7667 = vand.u32 %v7666, 4294901760
  %v7668 = vsub.f32 %v7666, %v7667
  %v7669 = vand.u32 %v7668, 4294901760
  %7670 = vmatpush1.msra.mxu0 %v7669
  %7671 = vmatprep.subr.mxu0 0.0
  %7672 = vmatpush1.msra.mxu0 0.0
  %7673 = vmatprep.subr.mxu0 0.0
  %7674 = vmatpush1.msra.mxu0 0.0
  %7675 = vmatprep.subr.mxu0 0.0
  %7676 = vmatpush1.msra.mxu0 0.0
  %7677 = vmatprep.subr.mxu0 0.0
  %7678 = vmatpush1.msra.mxu0 0.0
  %7679 = vmatprep.subr.mxu0 0.0
  %7680 = vmatpush1.msra.mxu0 0.0
  %7681 = vmatprep.subr.mxu0 0.0
  %7682 = vmatpush1.msra.mxu0 0.0
  %7683 = vmatprep.subr.mxu0 0.0
  %7684 = vmatpush1.msra.mxu0 0.0
  %7685 = vmatprep.subr.mxu0 0.0
  %7686 = vmatpush1.msra.mxu0 0.0
  %7687 = vmatprep.subr.mxu0 0.0
  %7688 = vmatpush1.msra.mxu0 0.0
  %7689 = vmatprep.subr.mxu0 0.0
  %7690 = vmatpush1.msra.mxu0 0.0
  %7691 = vmatprep.subr.mxu0 0.0
  %7692 = vmatpush1.msra.mxu0 0.0
  %7693 = vmatprep.subr.mxu0 0.0
  %7694 = vmatpush1.msra.mxu0 0.0
  %7695 = vmatprep.subr.mxu0 0.0
  %7696 = vmatpush1.msra.mxu0 0.0
  %7697 = vmatprep.subr.mxu0 0.0
  %7698 = vmatpush1.msra.mxu0 0.0
  %7699 = vmatprep.subr.mxu0 0.0
  %7700 = vmatpush1.msra.mxu0 0.0
  %7701 = vmatprep.subr.mxu0 0.0
  %7702 = vmatpush1.msra.mxu0 0.0
  %7703 = vmatprep.subr.mxu0 0.0
  %7704 = vmatpush1.msra.mxu0 0.0
  %7705 = vmatprep.subr.mxu0 0.0
  %7706 = vmatpush1.msra.mxu0 0.0
  %7707 = vmatprep.subr.mxu0 0.0
  %7708 = vmatpush1.msra.mxu0 0.0
  %7709 = vmatprep.subr.mxu0 0.0
  %7710 = vmatpush1.msra.mxu0 0.0
  %7711 = vmatprep.subr.mxu0 0.0
  %7712 = vmatpush1.msra.mxu0 0.0
  %7713 = vmatprep.subr.mxu0 0.0
  %7714 = vmatpush1.msra.mxu0 0.0
  %7715 = vmatprep.subr.mxu0 0.0
  %7716 = vmatpush1.msra.mxu0 0.0
  %7717 = vmatprep.subr.mxu0 0.0
  %7718 = vmatpush1.msra.mxu0 0.0
  %7719 = vmatprep.subr.mxu0 0.0
  %7720 = vmatpush1.msra.mxu0 0.0
  %7721 = vmatprep.subr.mxu0 0.0
  %7722 = vmatpush1.msra.mxu0 0.0
  %7723 = vmatprep.subr.mxu0 0.0
  %7724 = vmatpush1.msra.mxu0 0.0
  %7725 = vmatprep.subr.mxu0 0.0
  %7726 = vmatpush1.msra.mxu0 0.0
  %7727 = vmatprep.mubr.f32.mxu0 0.0
  %v7728 = vand.u32 %v7562, 4294901760
  %7729 = vmatmul.mubr.f32.gmra.mrb[0].mxu0 %v7728
  %v7730 = vpop.f32.mrb[0].mxu0
  %v7731 = vadd.f32 %v7640, %v7730
  %v7732 = vpop.f32.mrb[0].mxu0
  %7733 = vdwg.mxu0
  %7734 = vmatprep.subr.mxu0 0.0
  %v7735 = vand.u32 %v7551, 4294901760
  %v7736 = vsub.f32 %v7551, %v7735
  %7737 = vmatpush1.msra.mxu0 %v7736
  %7738 = vmatprep.subr.mxu0 0.0
  %v7739 = vand.u32 %v7552, 4294901760
  %v7740 = vsub.f32 %v7552, %v7739
  %7741 = vmatpush1.msra.mxu0 %v7740
  %7742 = vmatprep.subr.mxu0 0.0
  %v7743 = vand.u32 %v7553, 4294901760
  %v7744 = vsub.f32 %v7553, %v7743
  %7745 = vmatpush1.msra.mxu0 %v7744
  %7746 = vmatprep.subr.mxu0 0.0
  %v7747 = vand.u32 %v7554, 4294901760
  %v7748 = vsub.f32 %v7554, %v7747
  %7749 = vmatpush1.msra.mxu0 %v7748
  %7750 = vmatprep.subr.mxu0 0.0
  %7751 = vmatpush1.msra.mxu0 0.0
  %7752 = vmatprep.subr.mxu0 0.0
  %7753 = vmatpush1.msra.mxu0 0.0
  %7754 = vmatprep.subr.mxu0 0.0
  %7755 = vmatpush1.msra.mxu0 0.0
  %7756 = vmatprep.subr.mxu0 0.0
  %7757 = vmatpush1.msra.mxu0 0.0
  %7758 = vmatprep.subr.mxu0 0.0
  %7759 = vmatpush1.msra.mxu0 0.0
  %7760 = vmatprep.subr.mxu0 0.0
  %7761 = vmatpush1.msra.mxu0 0.0
  %7762 = vmatprep.subr.mxu0 0.0
  %7763 = vmatpush1.msra.mxu0 0.0
  %7764 = vmatprep.subr.mxu0 0.0
  %7765 = vmatpush1.msra.mxu0 0.0
  %7766 = vmatprep.subr.mxu0 0.0
  %7767 = vmatpush1.msra.mxu0 0.0
  %7768 = vmatprep.subr.mxu0 0.0
  %7769 = vmatpush1.msra.mxu0 0.0
  %7770 = vmatprep.subr.mxu0 0.0
  %7771 = vmatpush1.msra.mxu0 0.0
  %7772 = vmatprep.subr.mxu0 0.0
  %7773 = vmatpush1.msra.mxu0 0.0
  %7774 = vmatprep.subr.mxu0 0.0
  %7775 = vmatpush1.msra.mxu0 0.0
  %7776 = vmatprep.subr.mxu0 0.0
  %7777 = vmatpush1.msra.mxu0 0.0
  %7778 = vmatprep.subr.mxu0 0.0
  %7779 = vmatpush1.msra.mxu0 0.0
  %7780 = vmatprep.subr.mxu0 0.0
  %7781 = vmatpush1.msra.mxu0 0.0
  %7782 = vmatprep.subr.mxu0 0.0
  %7783 = vmatpush1.msra.mxu0 0.0
  %7784 = vmatprep.subr.mxu0 0.0
  %7785 = vmatpush1.msra.mxu0 0.0
  %7786 = vmatprep.subr.mxu0 0.0
  %7787 = vmatpush1.msra.mxu0 0.0
  %7788 = vmatprep.subr.mxu0 0.0
  %7789 = vmatpush1.msra.mxu0 0.0
  %7790 = vmatprep.subr.mxu0 0.0
  %7791 = vmatpush1.msra.mxu0 0.0
  %7792 = vmatprep.subr.mxu0 0.0
  %7793 = vmatpush1.msra.mxu0 0.0
  %7794 = vmatprep.subr.mxu0 0.0
  %7795 = vmatpush1.msra.mxu0 0.0
  %7796 = vmatprep.subr.mxu0 0.0
  %7797 = vmatpush1.msra.mxu0 0.0
  %7798 = vmatprep.subr.mxu0 0.0
  %7799 = vmatpush1.msra.mxu0 0.0
  %7800 = vmatprep.subr.mxu0 0.0
  %7801 = vmatpush1.msra.mxu0 0.0
  %7802 = vmatprep.subr.mxu0 0.0
  %7803 = vmatpush1.msra.mxu0 0.0
  %7804 = vmatprep.subr.mxu0 0.0
  %7805 = vmatpush1.msra.mxu0 0.0
  %7806 = vmatprep.mubr.f32.mxu0 0.0
  %v7807 = vand.u32 %v7562, 4294901760
  %v7808 = vsub.f32 %v7562, %v7807
  %7809 = vmatmul.mubr.f32.gmra.mrb[0].mxu0 %v7808
  %v7810 = vpop.f32.mrb[0].mxu0
  %v7811 = vadd.f32 %v7731, %v7810
  %v7812 = vpop.f32.mrb[0].mxu0
  %7813 = vdwg.mxu0
  %7814 = vmatprep.subr.mxu0 0.0
  %v7815 = vand.u32 %v7551, 4294901760
  %7816 = vmatpush1.msra.mxu0 %v7815
  %7817 = vmatprep.subr.mxu0 0.0
  %v7818 = vand.u32 %v7552, 4294901760
  %7819 = vmatpush1.msra.mxu0 %v7818
  %7820 = vmatprep.subr.mxu0 0.0
  %v7821 = vand.u32 %v7553, 4294901760
  %7822 = vmatpush1.msra.mxu0 %v7821
  %7823 = vmatprep.subr.mxu0 0.0
  %v7824 = vand.u32 %v7554, 4294901760
  %7825 = vmatpush1.msra.mxu0 %v7824
  %7826 = vmatprep.subr.mxu0 0.0
  %7827 = vmatpush1.msra.mxu0 0.0
  %7828 = vmatprep.subr.mxu0 0.0
  %7829 = vmatpush1.msra.mxu0 0.0
  %7830 = vmatprep.subr.mxu0 0.0
  %7831 = vmatpush1.msra.mxu0 0.0
  %7832 = vmatprep.subr.mxu0 0.0
  %7833 = vmatpush1.msra.mxu0 0.0
  %7834 = vmatprep.subr.mxu0 0.0
  %7835 = vmatpush1.msra.mxu0 0.0
  %7836 = vmatprep.subr.mxu0 0.0
  %7837 = vmatpush1.msra.mxu0 0.0
  %7838 = vmatprep.subr.mxu0 0.0
  %7839 = vmatpush1.msra.mxu0 0.0
  %7840 = vmatprep.subr.mxu0 0.0
  %7841 = vmatpush1.msra.mxu0 0.0
  %7842 = vmatprep.subr.mxu0 0.0
  %7843 = vmatpush1.msra.mxu0 0.0
  %7844 = vmatprep.subr.mxu0 0.0
  %7845 = vmatpush1.msra.mxu0 0.0
  %7846 = vmatprep.subr.mxu0 0.0
  %7847 = vmatpush1.msra.mxu0 0.0
  %7848 = vmatprep.subr.mxu0 0.0
  %7849 = vmatpush1.msra.mxu0 0.0
  %7850 = vmatprep.subr.mxu0 0.0
  %7851 = vmatpush1.msra.mxu0 0.0
  %7852 = vmatprep.subr.mxu0 0.0
  %7853 = vmatpush1.msra.mxu0 0.0
  %7854 = vmatprep.subr.mxu0 0.0
  %7855 = vmatpush1.msra.mxu0 0.0
  %7856 = vmatprep.subr.mxu0 0.0
  %7857 = vmatpush1.msra.mxu0 0.0
  %7858 = vmatprep.subr.mxu0 0.0
  %7859 = vmatpush1.msra.mxu0 0.0
  %7860 = vmatprep.subr.mxu0 0.0
  %7861 = vmatpush1.msra.mxu0 0.0
  %7862 = vmatprep.subr.mxu0 0.0
  %7863 = vmatpush1.msra.mxu0 0.0
  %7864 = vmatprep.subr.mxu0 0.0
  %7865 = vmatpush1.msra.mxu0 0.0
  %7866 = vmatprep.subr.mxu0 0.0
  %7867 = vmatpush1.msra.mxu0 0.0
  %7868 = vmatprep.subr.mxu0 0.0
  %7869 = vmatpush1.msra.mxu0 0.0
  %7870 = vmatprep.subr.mxu0 0.0
  %7871 = vmatpush1.msra.mxu0 0.0
  %7872 = vmatprep.subr.mxu0 0.0
  %7873 = vmatpush1.msra.mxu0 0.0
  %7874 = vmatprep.subr.mxu0 0.0
  %7875 = vmatpush1.msra.mxu0 0.0
  %7876 = vmatprep.subr.mxu0 0.0
  %7877 = vmatpush1.msra.mxu0 0.0
  %7878 = vmatprep.subr.mxu0 0.0
  %7879 = vmatpush1.msra.mxu0 0.0
  %7880 = vmatprep.subr.mxu0 0.0
  %7881 = vmatpush1.msra.mxu0 0.0
  %7882 = vmatprep.mubr.f32.mxu0 0.0
  %v7883 = vand.u32 %v7562, 4294901760
  %v7884 = vsub.f32 %v7562, %v7883
  %v7885 = vand.u32 %v7884, 4294901760
  %7886 = vmatmul.mubr.f32.gmra.mrb[0].mxu0 %v7885
  %v7887 = vpop.f32.mrb[0].mxu0
  %v7888 = vadd.f32 %v7811, %v7887
  %v7889 = vpop.f32.mrb[0].mxu0
  %7890 = vdwg.mxu0
  %7891 = vmatprep.subr.mxu0 0.0
  %v7892 = vand.u32 %v7551, 4294901760
  %v7893 = vsub.f32 %v7551, %v7892
  %v7894 = vand.u32 %v7893, 4294901760
  %7895 = vmatpush1.msra.mxu0 %v7894
  %7896 = vmatprep.subr.mxu0 0.0
  %v7897 = vand.u32 %v7552, 4294901760
  %v7898 = vsub.f32 %v7552, %v7897
  %v7899 = vand.u32 %v7898, 4294901760
  %7900 = vmatpush1.msra.mxu0 %v7899
  %7901 = vmatprep.subr.mxu0 0.0
  %v7902 = vand.u32 %v7553, 4294901760
  %v7903 = vsub.f32 %v7553, %v7902
  %v7904 = vand.u32 %v7903, 4294901760
  %7905 = vmatpush1.msra.mxu0 %v7904
  %7906 = vmatprep.subr.mxu0 0.0
  %v7907 = vand.u32 %v7554, 4294901760
  %v7908 = vsub.f32 %v7554, %v7907
  %v7909 = vand.u32 %v7908, 4294901760
  %7910 = vmatpush1.msra.mxu0 %v7909
  %7911 = vmatprep.subr.mxu0 0.0
  %7912 = vmatpush1.msra.mxu0 0.0
  %7913 = vmatprep.subr.mxu0 0.0
  %7914 = vmatpush1.msra.mxu0 0.0
  %7915 = vmatprep.subr.mxu0 0.0
  %7916 = vmatpush1.msra.mxu0 0.0
  %7917 = vmatprep.subr.mxu0 0.0
  %7918 = vmatpush1.msra.mxu0 0.0
  %7919 = vmatprep.subr.mxu0 0.0
  %7920 = vmatpush1.msra.mxu0 0.0
  %7921 = vmatprep.subr.mxu0 0.0
  %7922 = vmatpush1.msra.mxu0 0.0
  %7923 = vmatprep.subr.mxu0 0.0
  %7924 = vmatpush1.msra.mxu0 0.0
  %7925 = vmatprep.subr.mxu0 0.0
  %7926 = vmatpush1.msra.mxu0 0.0
  %7927 = vmatprep.subr.mxu0 0.0
  %7928 = vmatpush1.msra.mxu0 0.0
  %7929 = vmatprep.subr.mxu0 0.0
  %7930 = vmatpush1.msra.mxu0 0.0
  %7931 = vmatprep.subr.mxu0 0.0
  %7932 = vmatpush1.msra.mxu0 0.0
  %7933 = vmatprep.subr.mxu0 0.0
  %7934 = vmatpush1.msra.mxu0 0.0
  %7935 = vmatprep.subr.mxu0 0.0
  %7936 = vmatpush1.msra.mxu0 0.0
  %7937 = vmatprep.subr.mxu0 0.0
  %7938 = vmatpush1.msra.mxu0 0.0
  %7939 = vmatprep.subr.mxu0 0.0
  %7940 = vmatpush1.msra.mxu0 0.0
  %7941 = vmatprep.subr.mxu0 0.0
  %7942 = vmatpush1.msra.mxu0 0.0
  %7943 = vmatprep.subr.mxu0 0.0
  %7944 = vmatpush1.msra.mxu0 0.0
  %7945 = vmatprep.subr.mxu0 0.0
  %7946 = vmatpush1.msra.mxu0 0.0
  %7947 = vmatprep.subr.mxu0 0.0
  %7948 = vmatpush1.msra.mxu0 0.0
  %7949 = vmatprep.subr.mxu0 0.0
  %7950 = vmatpush1.msra.mxu0 0.0
  %7951 = vmatprep.subr.mxu0 0.0
  %7952 = vmatpush1.msra.mxu0 0.0
  %7953 = vmatprep.subr.mxu0 0.0
  %7954 = vmatpush1.msra.mxu0 0.0
  %7955 = vmatprep.subr.mxu0 0.0
  %7956 = vmatpush1.msra.mxu0 0.0
  %7957 = vmatprep.subr.mxu0 0.0
  %7958 = vmatpush1.msra.mxu0 0.0
  %7959 = vmatprep.subr.mxu0 0.0
  %7960 = vmatpush1.msra.mxu0 0.0
  %7961 = vmatprep.subr.mxu0 0.0
  %7962 = vmatpush1.msra.mxu0 0.0
  %7963 = vmatprep.subr.mxu0 0.0
  %7964 = vmatpush1.msra.mxu0 0.0
  %7965 = vmatprep.subr.mxu0 0.0
  %7966 = vmatpush1.msra.mxu0 0.0
  %7967 = vmatprep.mubr.f32.mxu0 0.0
  %v7968 = vand.u32 %v7562, 4294901760
  %7969 = vmatmul.mubr.f32.gmra.mrb[0].mxu0 %v7968
  %v7970 = vpop.f32.mrb[0].mxu0
  %v7971 = vadd.f32 %v7888, %v7970
  %v7972 = vpop.f32.mrb[0].mxu0
  %7973 = vdwg.mxu0
  %7974 = vmatprep.subr.mxu0 0.0
  %v7975 = vand.u32 %v7551, 4294901760
  %7976 = vmatpush1.msra.mxu0 %v7975
  %7977 = vmatprep.subr.mxu0 0.0
  %v7978 = vand.u32 %v7552, 4294901760
  %7979 = vmatpush1.msra.mxu0 %v7978
  %7980 = vmatprep.subr.mxu0 0.0
  %v7981 = vand.u32 %v7553, 4294901760
  %7982 = vmatpush1.msra.mxu0 %v7981
  %7983 = vmatprep.subr.mxu0 0.0
  %v7984 = vand.u32 %v7554, 4294901760
  %7985 = vmatpush1.msra.mxu0 %v7984
  %7986 = vmatprep.subr.mxu0 0.0
  %7987 = vmatpush1.msra.mxu0 0.0
  %7988 = vmatprep.subr.mxu0 0.0
  %7989 = vmatpush1.msra.mxu0 0.0
  %7990 = vmatprep.subr.mxu0 0.0
  %7991 = vmatpush1.msra.mxu0 0.0
  %7992 = vmatprep.subr.mxu0 0.0
  %7993 = vmatpush1.msra.mxu0 0.0
  %7994 = vmatprep.subr.mxu0 0.0
  %7995 = vmatpush1.msra.mxu0 0.0
  %7996 = vmatprep.subr.mxu0 0.0
  %7997 = vmatpush1.msra.mxu0 0.0
  %7998 = vmatprep.subr.mxu0 0.0
  %7999 = vmatpush1.msra.mxu0 0.0
  %8000 = vmatprep.subr.mxu0 0.0
  %8001 = vmatpush1.msra.mxu0 0.0
  %8002 = vmatprep.subr.mxu0 0.0
  %8003 = vmatpush1.msra.mxu0 0.0
  %8004 = vmatprep.subr.mxu0 0.0
  %8005 = vmatpush1.msra.mxu0 0.0
  %8006 = vmatprep.subr.mxu0 0.0
  %8007 = vmatpush1.msra.mxu0 0.0
  %8008 = vmatprep.subr.mxu0 0.0
  %8009 = vmatpush1.msra.mxu0 0.0
  %8010 = vmatprep.subr.mxu0 0.0
  %8011 = vmatpush1.msra.mxu0 0.0
  %8012 = vmatprep.subr.mxu0 0.0
  %8013 = vmatpush1.msra.mxu0 0.0
  %8014 = vmatprep.subr.mxu0 0.0
  %8015 = vmatpush1.msra.mxu0 0.0
  %8016 = vmatprep.subr.mxu0 0.0
  %8017 = vmatpush1.msra.mxu0 0.0
  %8018 = vmatprep.subr.mxu0 0.0
  %8019 = vmatpush1.msra.mxu0 0.0
  %8020 = vmatprep.subr.mxu0 0.0
  %8021 = vmatpush1.msra.mxu0 0.0
  %8022 = vmatprep.subr.mxu0 0.0
  %8023 = vmatpush1.msra.mxu0 0.0
  %8024 = vmatprep.subr.mxu0 0.0
  %8025 = vmatpush1.msra.mxu0 0.0
  %8026 = vmatprep.subr.mxu0 0.0
  %8027 = vmatpush1.msra.mxu0 0.0
  %8028 = vmatprep.subr.mxu0 0.0
  %8029 = vmatpush1.msra.mxu0 0.0
  %8030 = vmatprep.subr.mxu0 0.0
  %8031 = vmatpush1.msra.mxu0 0.0
  %8032 = vmatprep.subr.mxu0 0.0
  %8033 = vmatpush1.msra.mxu0 0.0
  %8034 = vmatprep.subr.mxu0 0.0
  %8035 = vmatpush1.msra.mxu0 0.0
  %8036 = vmatprep.subr.mxu0 0.0
  %8037 = vmatpush1.msra.mxu0 0.0
  %8038 = vmatprep.subr.mxu0 0.0
  %8039 = vmatpush1.msra.mxu0 0.0
  %8040 = vmatprep.subr.mxu0 0.0
  %8041 = vmatpush1.msra.mxu0 0.0
  %8042 = vmatprep.mubr.f32.mxu0 0.0
  %v8043 = vand.u32 %v7562, 4294901760
  %8044 = vmatmul.mubr.f32.gmra.mrb[0].mxu0 %v8043
  %v8045 = vpop.f32.mrb[0].mxu0
  %v8046 = vadd.f32 %v7971, %v8045
  %v8047 = vpop.f32.mrb[0].mxu0
  %8048 = vdwg.mxu0
  %v8050 = vrot.slane %v8046, 6
  %8051 = vrot.lane.b32.xlu0 %v8050, 112
  %v8052 = vpop.permute.xlu0 %8051
  %v8054 = vsel %vm33, %v8046, %v8052
  %v8056 = vsel %vm5622, %v8054, 0
  %8058 = vmatprep.subr.mxu0 0.0
  %v8059 = vand.u32 %v5472, 4294901760
  %8060 = vmatpush1.msra.mxu0 %v8059
  %8061 = vmatprep.subr.mxu0 0.0
  %v8062 = vand.u32 %v5473, 4294901760
  %8063 = vmatpush1.msra.mxu0 %v8062
  %8064 = vmatprep.subr.mxu0 0.0
  %8065 = vmatpush1.msra.mxu0 0.0
  %8066 = vmatprep.subr.mxu0 0.0
  %8067 = vmatpush1.msra.mxu0 0.0
  %8068 = vmatprep.subr.mxu0 0.0
  %8069 = vmatpush1.msra.mxu0 0.0
  %8070 = vmatprep.subr.mxu0 0.0
  %8071 = vmatpush1.msra.mxu0 0.0
  %8072 = vmatprep.subr.mxu0 0.0
  %8073 = vmatpush1.msra.mxu0 0.0
  %8074 = vmatprep.subr.mxu0 0.0
  %8075 = vmatpush1.msra.mxu0 0.0
  %8076 = vmatprep.subr.mxu0 0.0
  %8077 = vmatpush1.msra.mxu0 0.0
  %8078 = vmatprep.subr.mxu0 0.0
  %8079 = vmatpush1.msra.mxu0 0.0
  %8080 = vmatprep.subr.mxu0 0.0
  %8081 = vmatpush1.msra.mxu0 0.0
  %8082 = vmatprep.subr.mxu0 0.0
  %8083 = vmatpush1.msra.mxu0 0.0
  %8084 = vmatprep.subr.mxu0 0.0
  %8085 = vmatpush1.msra.mxu0 0.0
  %8086 = vmatprep.subr.mxu0 0.0
  %8087 = vmatpush1.msra.mxu0 0.0
  %8088 = vmatprep.subr.mxu0 0.0
  %8089 = vmatpush1.msra.mxu0 0.0
  %8090 = vmatprep.subr.mxu0 0.0
  %8091 = vmatpush1.msra.mxu0 0.0
  %8092 = vmatprep.subr.mxu0 0.0
  %8093 = vmatpush1.msra.mxu0 0.0
  %8094 = vmatprep.subr.mxu0 0.0
  %8095 = vmatpush1.msra.mxu0 0.0
  %8096 = vmatprep.subr.mxu0 0.0
  %8097 = vmatpush1.msra.mxu0 0.0
  %8098 = vmatprep.subr.mxu0 0.0
  %8099 = vmatpush1.msra.mxu0 0.0
  %8100 = vmatprep.subr.mxu0 0.0
  %8101 = vmatpush1.msra.mxu0 0.0
  %8102 = vmatprep.subr.mxu0 0.0
  %8103 = vmatpush1.msra.mxu0 0.0
  %8104 = vmatprep.subr.mxu0 0.0
  %8105 = vmatpush1.msra.mxu0 0.0
  %8106 = vmatprep.subr.mxu0 0.0
  %8107 = vmatpush1.msra.mxu0 0.0
  %8108 = vmatprep.subr.mxu0 0.0
  %8109 = vmatpush1.msra.mxu0 0.0
  %8110 = vmatprep.subr.mxu0 0.0
  %8111 = vmatpush1.msra.mxu0 0.0
  %8112 = vmatprep.subr.mxu0 0.0
  %8113 = vmatpush1.msra.mxu0 0.0
  %8114 = vmatprep.subr.mxu0 0.0
  %8115 = vmatpush1.msra.mxu0 0.0
  %8116 = vmatprep.subr.mxu0 0.0
  %8117 = vmatpush1.msra.mxu0 0.0
  %8118 = vmatprep.subr.mxu0 0.0
  %8119 = vmatpush1.msra.mxu0 0.0
  %8120 = vmatprep.subr.mxu0 0.0
  %8121 = vmatpush1.msra.mxu0 0.0
  %8122 = vmatprep.subr.mxu0 0.0
  %8123 = vmatpush1.msra.mxu0 0.0
  %8124 = vmatprep.mubr.f32.mxu0 0.0
  %v8125 = vand.u32 %v8056, 4294901760
  %v8126 = vsub.f32 %v8056, %v8125
  %v8127 = vand.u32 %v8126, 4294901760
  %v8128 = vsub.f32 %v8126, %v8127
  %v8129 = vand.u32 %v8128, 4294901760
  %8130 = vmatmul.mubr.f32.gmra.mrb[0].mxu0 %v8129
  %v8131 = vpop.f32.mrb[0].mxu0
  %v8132 = vadd.f32 0.0, %v8131
  %v8133 = vpop.f32.mrb[0].mxu0
  %8134 = vdwg.mxu0
  %8135 = vmatprep.subr.mxu0 0.0
  %v8136 = vand.u32 %v5472, 4294901760
  %v8137 = vsub.f32 %v5472, %v8136
  %v8138 = vand.u32 %v8137, 4294901760
  %v8139 = vsub.f32 %v8137, %v8138
  %v8140 = vand.u32 %v8139, 4294901760
  %8141 = vmatpush1.msra.mxu0 %v8140
  %8142 = vmatprep.subr.mxu0 0.0
  %v8143 = vand.u32 %v5473, 4294901760
  %v8144 = vsub.f32 %v5473, %v8143
  %v8145 = vand.u32 %v8144, 4294901760
  %v8146 = vsub.f32 %v8144, %v8145
  %v8147 = vand.u32 %v8146, 4294901760
  %8148 = vmatpush1.msra.mxu0 %v8147
  %8149 = vmatprep.subr.mxu0 0.0
  %8150 = vmatpush1.msra.mxu0 0.0
  %8151 = vmatprep.subr.mxu0 0.0
  %8152 = vmatpush1.msra.mxu0 0.0
  %8153 = vmatprep.subr.mxu0 0.0
  %8154 = vmatpush1.msra.mxu0 0.0
  %8155 = vmatprep.subr.mxu0 0.0
  %8156 = vmatpush1.msra.mxu0 0.0
  %8157 = vmatprep.subr.mxu0 0.0
  %8158 = vmatpush1.msra.mxu0 0.0
  %8159 = vmatprep.subr.mxu0 0.0
  %8160 = vmatpush1.msra.mxu0 0.0
  %8161 = vmatprep.subr.mxu0 0.0
  %8162 = vmatpush1.msra.mxu0 0.0
  %8163 = vmatprep.subr.mxu0 0.0
  %8164 = vmatpush1.msra.mxu0 0.0
  %8165 = vmatprep.subr.mxu0 0.0
  %8166 = vmatpush1.msra.mxu0 0.0
  %8167 = vmatprep.subr.mxu0 0.0
  %8168 = vmatpush1.msra.mxu0 0.0
  %8169 = vmatprep.subr.mxu0 0.0
  %8170 = vmatpush1.msra.mxu0 0.0
  %8171 = vmatprep.subr.mxu0 0.0
  %8172 = vmatpush1.msra.mxu0 0.0
  %8173 = vmatprep.subr.mxu0 0.0
  %8174 = vmatpush1.msra.mxu0 0.0
  %8175 = vmatprep.subr.mxu0 0.0
  %8176 = vmatpush1.msra.mxu0 0.0
  %8177 = vmatprep.subr.mxu0 0.0
  %8178 = vmatpush1.msra.mxu0 0.0
  %8179 = vmatprep.subr.mxu0 0.0
  %8180 = vmatpush1.msra.mxu0 0.0
  %8181 = vmatprep.subr.mxu0 0.0
  %8182 = vmatpush1.msra.mxu0 0.0
  %8183 = vmatprep.subr.mxu0 0.0
  %8184 = vmatpush1.msra.mxu0 0.0
  %8185 = vmatprep.subr.mxu0 0.0
  %8186 = vmatpush1.msra.mxu0 0.0
  %8187 = vmatprep.subr.mxu0 0.0
  %8188 = vmatpush1.msra.mxu0 0.0
  %8189 = vmatprep.subr.mxu0 0.0
  %8190 = vmatpush1.msra.mxu0 0.0
  %8191 = vmatprep.subr.mxu0 0.0
  %8192 = vmatpush1.msra.mxu0 0.0
  %8193 = vmatprep.subr.mxu0 0.0
  %8194 = vmatpush1.msra.mxu0 0.0
  %8195 = vmatprep.subr.mxu0 0.0
  %8196 = vmatpush1.msra.mxu0 0.0
  %8197 = vmatprep.subr.mxu0 0.0
  %8198 = vmatpush1.msra.mxu0 0.0
  %8199 = vmatprep.subr.mxu0 0.0
  %8200 = vmatpush1.msra.mxu0 0.0
  %8201 = vmatprep.subr.mxu0 0.0
  %8202 = vmatpush1.msra.mxu0 0.0
  %8203 = vmatprep.subr.mxu0 0.0
  %8204 = vmatpush1.msra.mxu0 0.0
  %8205 = vmatprep.subr.mxu0 0.0
  %8206 = vmatpush1.msra.mxu0 0.0
  %8207 = vmatprep.subr.mxu0 0.0
  %8208 = vmatpush1.msra.mxu0 0.0
  %8209 = vmatprep.mubr.f32.mxu0 0.0
  %v8210 = vand.u32 %v8056, 4294901760
  %8211 = vmatmul.mubr.f32.gmra.mrb[0].mxu0 %v8210
  %v8212 = vpop.f32.mrb[0].mxu0
  %v8213 = vadd.f32 %v8132, %v8212
  %v8214 = vpop.f32.mrb[0].mxu0
  %8215 = vdwg.mxu0
  %8216 = vmatprep.subr.mxu0 0.0
  %v8217 = vand.u32 %v5472, 4294901760
  %v8218 = vsub.f32 %v5472, %v8217
  %8219 = vmatpush1.msra.mxu0 %v8218
  %8220 = vmatprep.subr.mxu0 0.0
  %v8221 = vand.u32 %v5473, 4294901760
  %v8222 = vsub.f32 %v5473, %v8221
  %8223 = vmatpush1.msra.mxu0 %v8222
  %8224 = vmatprep.subr.mxu0 0.0
  %8225 = vmatpush1.msra.mxu0 0.0
  %8226 = vmatprep.subr.mxu0 0.0
  %8227 = vmatpush1.msra.mxu0 0.0
  %8228 = vmatprep.subr.mxu0 0.0
  %8229 = vmatpush1.msra.mxu0 0.0
  %8230 = vmatprep.subr.mxu0 0.0
  %8231 = vmatpush1.msra.mxu0 0.0
  %8232 = vmatprep.subr.mxu0 0.0
  %8233 = vmatpush1.msra.mxu0 0.0
  %8234 = vmatprep.subr.mxu0 0.0
  %8235 = vmatpush1.msra.mxu0 0.0
  %8236 = vmatprep.subr.mxu0 0.0
  %8237 = vmatpush1.msra.mxu0 0.0
  %8238 = vmatprep.subr.mxu0 0.0
  %8239 = vmatpush1.msra.mxu0 0.0
  %8240 = vmatprep.subr.mxu0 0.0
  %8241 = vmatpush1.msra.mxu0 0.0
  %8242 = vmatprep.subr.mxu0 0.0
  %8243 = vmatpush1.msra.mxu0 0.0
  %8244 = vmatprep.subr.mxu0 0.0
  %8245 = vmatpush1.msra.mxu0 0.0
  %8246 = vmatprep.subr.mxu0 0.0
  %8247 = vmatpush1.msra.mxu0 0.0
  %8248 = vmatprep.subr.mxu0 0.0
  %8249 = vmatpush1.msra.mxu0 0.0
  %8250 = vmatprep.subr.mxu0 0.0
  %8251 = vmatpush1.msra.mxu0 0.0
  %8252 = vmatprep.subr.mxu0 0.0
  %8253 = vmatpush1.msra.mxu0 0.0
  %8254 = vmatprep.subr.mxu0 0.0
  %8255 = vmatpush1.msra.mxu0 0.0
  %8256 = vmatprep.subr.mxu0 0.0
  %8257 = vmatpush1.msra.mxu0 0.0
  %8258 = vmatprep.subr.mxu0 0.0
  %8259 = vmatpush1.msra.mxu0 0.0
  %8260 = vmatprep.subr.mxu0 0.0
  %8261 = vmatpush1.msra.mxu0 0.0
  %8262 = vmatprep.subr.mxu0 0.0
  %8263 = vmatpush1.msra.mxu0 0.0
  %8264 = vmatprep.subr.mxu0 0.0
  %8265 = vmatpush1.msra.mxu0 0.0
  %8266 = vmatprep.subr.mxu0 0.0
  %8267 = vmatpush1.msra.mxu0 0.0
  %8268 = vmatprep.subr.mxu0 0.0
  %8269 = vmatpush1.msra.mxu0 0.0
  %8270 = vmatprep.subr.mxu0 0.0
  %8271 = vmatpush1.msra.mxu0 0.0
  %8272 = vmatprep.subr.mxu0 0.0
  %8273 = vmatpush1.msra.mxu0 0.0
  %8274 = vmatprep.subr.mxu0 0.0
  %8275 = vmatpush1.msra.mxu0 0.0
  %8276 = vmatprep.subr.mxu0 0.0
  %8277 = vmatpush1.msra.mxu0 0.0
  %8278 = vmatprep.subr.mxu0 0.0
  %8279 = vmatpush1.msra.mxu0 0.0
  %8280 = vmatprep.subr.mxu0 0.0
  %8281 = vmatpush1.msra.mxu0 0.0
  %8282 = vmatprep.subr.mxu0 0.0
  %8283 = vmatpush1.msra.mxu0 0.0
  %8284 = vmatprep.mubr.f32.mxu0 0.0
  %v8285 = vand.u32 %v8056, 4294901760
  %v8286 = vsub.f32 %v8056, %v8285
  %8287 = vmatmul.mubr.f32.gmra.mrb[0].mxu0 %v8286
  %v8288 = vpop.f32.mrb[0].mxu0
  %v8289 = vadd.f32 %v8213, %v8288
  %v8290 = vpop.f32.mrb[0].mxu0
  %8291 = vdwg.mxu0
  %8292 = vmatprep.subr.mxu0 0.0
  %v8293 = vand.u32 %v5472, 4294901760
  %8294 = vmatpush1.msra.mxu0 %v8293
  %8295 = vmatprep.subr.mxu0 0.0
  %v8296 = vand.u32 %v5473, 4294901760
  %8297 = vmatpush1.msra.mxu0 %v8296
  %8298 = vmatprep.subr.mxu0 0.0
  %8299 = vmatpush1.msra.mxu0 0.0
  %8300 = vmatprep.subr.mxu0 0.0
  %8301 = vmatpush1.msra.mxu0 0.0
  %8302 = vmatprep.subr.mxu0 0.0
  %8303 = vmatpush1.msra.mxu0 0.0
  %8304 = vmatprep.subr.mxu0 0.0
  %8305 = vmatpush1.msra.mxu0 0.0
  %8306 = vmatprep.subr.mxu0 0.0
  %8307 = vmatpush1.msra.mxu0 0.0
  %8308 = vmatprep.subr.mxu0 0.0
  %8309 = vmatpush1.msra.mxu0 0.0
  %8310 = vmatprep.subr.mxu0 0.0
  %8311 = vmatpush1.msra.mxu0 0.0
  %8312 = vmatprep.subr.mxu0 0.0
  %8313 = vmatpush1.msra.mxu0 0.0
  %8314 = vmatprep.subr.mxu0 0.0
  %8315 = vmatpush1.msra.mxu0 0.0
  %8316 = vmatprep.subr.mxu0 0.0
  %8317 = vmatpush1.msra.mxu0 0.0
  %8318 = vmatprep.subr.mxu0 0.0
  %8319 = vmatpush1.msra.mxu0 0.0
  %8320 = vmatprep.subr.mxu0 0.0
  %8321 = vmatpush1.msra.mxu0 0.0
  %8322 = vmatprep.subr.mxu0 0.0
  %8323 = vmatpush1.msra.mxu0 0.0
  %8324 = vmatprep.subr.mxu0 0.0
  %8325 = vmatpush1.msra.mxu0 0.0
  %8326 = vmatprep.subr.mxu0 0.0
  %8327 = vmatpush1.msra.mxu0 0.0
  %8328 = vmatprep.subr.mxu0 0.0
  %8329 = vmatpush1.msra.mxu0 0.0
  %8330 = vmatprep.subr.mxu0 0.0
  %8331 = vmatpush1.msra.mxu0 0.0
  %8332 = vmatprep.subr.mxu0 0.0
  %8333 = vmatpush1.msra.mxu0 0.0
  %8334 = vmatprep.subr.mxu0 0.0
  %8335 = vmatpush1.msra.mxu0 0.0
  %8336 = vmatprep.subr.mxu0 0.0
  %8337 = vmatpush1.msra.mxu0 0.0
  %8338 = vmatprep.subr.mxu0 0.0
  %8339 = vmatpush1.msra.mxu0 0.0
  %8340 = vmatprep.subr.mxu0 0.0
  %8341 = vmatpush1.msra.mxu0 0.0
  %8342 = vmatprep.subr.mxu0 0.0
  %8343 = vmatpush1.msra.mxu0 0.0
  %8344 = vmatprep.subr.mxu0 0.0
  %8345 = vmatpush1.msra.mxu0 0.0
  %8346 = vmatprep.subr.mxu0 0.0
  %8347 = vmatpush1.msra.mxu0 0.0
  %8348 = vmatprep.subr.mxu0 0.0
  %8349 = vmatpush1.msra.mxu0 0.0
  %8350 = vmatprep.subr.mxu0 0.0
  %8351 = vmatpush1.msra.mxu0 0.0
  %8352 = vmatprep.subr.mxu0 0.0
  %8353 = vmatpush1.msra.mxu0 0.0
  %8354 = vmatprep.subr.mxu0 0.0
  %8355 = vmatpush1.msra.mxu0 0.0
  %8356 = vmatprep.subr.mxu0 0.0
  %8357 = vmatpush1.msra.mxu0 0.0
  %8358 = vmatprep.mubr.f32.mxu0 0.0
  %v8359 = vand.u32 %v8056, 4294901760
  %v8360 = vsub.f32 %v8056, %v8359
  %v8361 = vand.u32 %v8360, 4294901760
  %8362 = vmatmul.mubr.f32.gmra.mrb[0].mxu0 %v8361
  %v8363 = vpop.f32.mrb[0].mxu0
  %v8364 = vadd.f32 %v8289, %v8363
  %v8365 = vpop.f32.mrb[0].mxu0
  %8366 = vdwg.mxu0
  %8367 = vmatprep.subr.mxu0 0.0
  %v8368 = vand.u32 %v5472, 4294901760
  %v8369 = vsub.f32 %v5472, %v8368
  %v8370 = vand.u32 %v8369, 4294901760
  %8371 = vmatpush1.msra.mxu0 %v8370
  %8372 = vmatprep.subr.mxu0 0.0
  %v8373 = vand.u32 %v5473, 4294901760
  %v8374 = vsub.f32 %v5473, %v8373
  %v8375 = vand.u32 %v8374, 4294901760
  %8376 = vmatpush1.msra.mxu0 %v8375
  %8377 = vmatprep.subr.mxu0 0.0
  %8378 = vmatpush1.msra.mxu0 0.0
  %8379 = vmatprep.subr.mxu0 0.0
  %8380 = vmatpush1.msra.mxu0 0.0
  %8381 = vmatprep.subr.mxu0 0.0
  %8382 = vmatpush1.msra.mxu0 0.0
  %8383 = vmatprep.subr.mxu0 0.0
  %8384 = vmatpush1.msra.mxu0 0.0
  %8385 = vmatprep.subr.mxu0 0.0
  %8386 = vmatpush1.msra.mxu0 0.0
  %8387 = vmatprep.subr.mxu0 0.0
  %8388 = vmatpush1.msra.mxu0 0.0
  %8389 = vmatprep.subr.mxu0 0.0
  %8390 = vmatpush1.msra.mxu0 0.0
  %8391 = vmatprep.subr.mxu0 0.0
  %8392 = vmatpush1.msra.mxu0 0.0
  %8393 = vmatprep.subr.mxu0 0.0
  %8394 = vmatpush1.msra.mxu0 0.0
  %8395 = vmatprep.subr.mxu0 0.0
  %8396 = vmatpush1.msra.mxu0 0.0
  %8397 = vmatprep.subr.mxu0 0.0
  %8398 = vmatpush1.msra.mxu0 0.0
  %8399 = vmatprep.subr.mxu0 0.0
  %8400 = vmatpush1.msra.mxu0 0.0
  %8401 = vmatprep.subr.mxu0 0.0
  %8402 = vmatpush1.msra.mxu0 0.0
  %8403 = vmatprep.subr.mxu0 0.0
  %8404 = vmatpush1.msra.mxu0 0.0
  %8405 = vmatprep.subr.mxu0 0.0
  %8406 = vmatpush1.msra.mxu0 0.0
  %8407 = vmatprep.subr.mxu0 0.0
  %8408 = vmatpush1.msra.mxu0 0.0
  %8409 = vmatprep.subr.mxu0 0.0
  %8410 = vmatpush1.msra.mxu0 0.0
  %8411 = vmatprep.subr.mxu0 0.0
  %8412 = vmatpush1.msra.mxu0 0.0
  %8413 = vmatprep.subr.mxu0 0.0
  %8414 = vmatpush1.msra.mxu0 0.0
  %8415 = vmatprep.subr.mxu0 0.0
  %8416 = vmatpush1.msra.mxu0 0.0
  %8417 = vmatprep.subr.mxu0 0.0
  %8418 = vmatpush1.msra.mxu0 0.0
  %8419 = vmatprep.subr.mxu0 0.0
  %8420 = vmatpush1.msra.mxu0 0.0
  %8421 = vmatprep.subr.mxu0 0.0
  %8422 = vmatpush1.msra.mxu0 0.0
  %8423 = vmatprep.subr.mxu0 0.0
  %8424 = vmatpush1.msra.mxu0 0.0
  %8425 = vmatprep.subr.mxu0 0.0
  %8426 = vmatpush1.msra.mxu0 0.0
  %8427 = vmatprep.subr.mxu0 0.0
  %8428 = vmatpush1.msra.mxu0 0.0
  %8429 = vmatprep.subr.mxu0 0.0
  %8430 = vmatpush1.msra.mxu0 0.0
  %8431 = vmatprep.subr.mxu0 0.0
  %8432 = vmatpush1.msra.mxu0 0.0
  %8433 = vmatprep.subr.mxu0 0.0
  %8434 = vmatpush1.msra.mxu0 0.0
  %8435 = vmatprep.subr.mxu0 0.0
  %8436 = vmatpush1.msra.mxu0 0.0
  %8437 = vmatprep.mubr.f32.mxu0 0.0
  %v8438 = vand.u32 %v8056, 4294901760
  %8439 = vmatmul.mubr.f32.gmra.mrb[0].mxu0 %v8438
  %v8440 = vpop.f32.mrb[0].mxu0
  %v8441 = vadd.f32 %v8364, %v8440
  %v8442 = vpop.f32.mrb[0].mxu0
  %8443 = vdwg.mxu0
  %8444 = vmatprep.subr.mxu0 0.0
  %v8445 = vand.u32 %v5472, 4294901760
  %8446 = vmatpush1.msra.mxu0 %v8445
  %8447 = vmatprep.subr.mxu0 0.0
  %v8448 = vand.u32 %v5473, 4294901760
  %8449 = vmatpush1.msra.mxu0 %v8448
  %8450 = vmatprep.subr.mxu0 0.0
  %8451 = vmatpush1.msra.mxu0 0.0
  %8452 = vmatprep.subr.mxu0 0.0
  %8453 = vmatpush1.msra.mxu0 0.0
  %8454 = vmatprep.subr.mxu0 0.0
  %8455 = vmatpush1.msra.mxu0 0.0
  %8456 = vmatprep.subr.mxu0 0.0
  %8457 = vmatpush1.msra.mxu0 0.0
  %8458 = vmatprep.subr.mxu0 0.0
  %8459 = vmatpush1.msra.mxu0 0.0
  %8460 = vmatprep.subr.mxu0 0.0
  %8461 = vmatpush1.msra.mxu0 0.0
  %8462 = vmatprep.subr.mxu0 0.0
  %8463 = vmatpush1.msra.mxu0 0.0
  %8464 = vmatprep.subr.mxu0 0.0
  %8465 = vmatpush1.msra.mxu0 0.0
  %8466 = vmatprep.subr.mxu0 0.0
  %8467 = vmatpush1.msra.mxu0 0.0
  %8468 = vmatprep.subr.mxu0 0.0
  %8469 = vmatpush1.msra.mxu0 0.0
  %8470 = vmatprep.subr.mxu0 0.0
  %8471 = vmatpush1.msra.mxu0 0.0
  %8472 = vmatprep.subr.mxu0 0.0
  %8473 = vmatpush1.msra.mxu0 0.0
  %8474 = vmatprep.subr.mxu0 0.0
  %8475 = vmatpush1.msra.mxu0 0.0
  %8476 = vmatprep.subr.mxu0 0.0
  %8477 = vmatpush1.msra.mxu0 0.0
  %8478 = vmatprep.subr.mxu0 0.0
  %8479 = vmatpush1.msra.mxu0 0.0
  %8480 = vmatprep.subr.mxu0 0.0
  %8481 = vmatpush1.msra.mxu0 0.0
  %8482 = vmatprep.subr.mxu0 0.0
  %8483 = vmatpush1.msra.mxu0 0.0
  %8484 = vmatprep.subr.mxu0 0.0
  %8485 = vmatpush1.msra.mxu0 0.0
  %8486 = vmatprep.subr.mxu0 0.0
  %8487 = vmatpush1.msra.mxu0 0.0
  %8488 = vmatprep.subr.mxu0 0.0
  %8489 = vmatpush1.msra.mxu0 0.0
  %8490 = vmatprep.subr.mxu0 0.0
  %8491 = vmatpush1.msra.mxu0 0.0
  %8492 = vmatprep.subr.mxu0 0.0
  %8493 = vmatpush1.msra.mxu0 0.0
  %8494 = vmatprep.subr.mxu0 0.0
  %8495 = vmatpush1.msra.mxu0 0.0
  %8496 = vmatprep.subr.mxu0 0.0
  %8497 = vmatpush1.msra.mxu0 0.0
  %8498 = vmatprep.subr.mxu0 0.0
  %8499 = vmatpush1.msra.mxu0 0.0
  %8500 = vmatprep.subr.mxu0 0.0
  %8501 = vmatpush1.msra.mxu0 0.0
  %8502 = vmatprep.subr.mxu0 0.0
  %8503 = vmatpush1.msra.mxu0 0.0
  %8504 = vmatprep.subr.mxu0 0.0
  %8505 = vmatpush1.msra.mxu0 0.0
  %8506 = vmatprep.subr.mxu0 0.0
  %8507 = vmatpush1.msra.mxu0 0.0
  %8508 = vmatprep.subr.mxu0 0.0
  %8509 = vmatpush1.msra.mxu0 0.0
  %8510 = vmatprep.mubr.f32.mxu0 0.0
  %v8511 = vand.u32 %v8056, 4294901760
  %8512 = vmatmul.mubr.f32.gmra.mrb[0].mxu0 %v8511
  %v8513 = vpop.f32.mrb[0].mxu0
  %v8514 = vadd.f32 %v8441, %v8513
  %v8515 = vpop.f32.mrb[0].mxu0
  %8516 = vdwg.mxu0
  %v8517 = vmul.f32 %v5437, %v8046
  %8518 = vrot.lane.b32.xlu0 %v8046, 112
  %v8519 = vpop.permute.xlu0 %8518
  %v8521 = vmul.f32 %v5450, %v8519
  %v8522 = vsub.f32 %v8517, %v8521
  %v8523 = vmul.f32 %v5463, %v8514
  %v8524 = vadd.f32 %v8522, %v8523
  %v8526 = vrot.slane %v8514, 2
  %v8528 = vmul.f32 %v5471, %v8526
  %v8529 = vsub.f32 %v8524, %v8528
  %v8530 = vmul.f32 %v5437, %v8519
  %v8531 = vmul.f32 %v5450, %v8046
  %v8532 = vadd.f32 %v8530, %v8531
  %v8533 = vmul.f32 %v5463, %v8526
  %v8534 = vadd.f32 %v8532, %v8533
  %v8535 = vmul.f32 %v5471, %v8514
  %v8536 = vadd.f32 %v8534, %v8535
  %v8538 = vrot.slane %v8536, 6
  %v8540 = vsel %vm33, %v8529, %v8538
  %v8542 = vsel %vm5622, %v8540, 0
  %8544 = vmatprep.subr.mxu0 0.0
  %v8545 = vand.u32 %v5520, 4294901760
  %8546 = vmatpush1.msra.mxu0 %v8545
  %8547 = vmatprep.subr.mxu0 0.0
  %v8548 = vand.u32 %v5521, 4294901760
  %8549 = vmatpush1.msra.mxu0 %v8548
  %8550 = vmatprep.subr.mxu0 0.0
  %8551 = vmatpush1.msra.mxu0 0.0
  %8552 = vmatprep.subr.mxu0 0.0
  %8553 = vmatpush1.msra.mxu0 0.0
  %8554 = vmatprep.subr.mxu0 0.0
  %8555 = vmatpush1.msra.mxu0 0.0
  %8556 = vmatprep.subr.mxu0 0.0
  %8557 = vmatpush1.msra.mxu0 0.0
  %8558 = vmatprep.subr.mxu0 0.0
  %8559 = vmatpush1.msra.mxu0 0.0
  %8560 = vmatprep.subr.mxu0 0.0
  %8561 = vmatpush1.msra.mxu0 0.0
  %8562 = vmatprep.subr.mxu0 0.0
  %8563 = vmatpush1.msra.mxu0 0.0
  %8564 = vmatprep.subr.mxu0 0.0
  %8565 = vmatpush1.msra.mxu0 0.0
  %8566 = vmatprep.subr.mxu0 0.0
  %8567 = vmatpush1.msra.mxu0 0.0
  %8568 = vmatprep.subr.mxu0 0.0
  %8569 = vmatpush1.msra.mxu0 0.0
  %8570 = vmatprep.subr.mxu0 0.0
  %8571 = vmatpush1.msra.mxu0 0.0
  %8572 = vmatprep.subr.mxu0 0.0
  %8573 = vmatpush1.msra.mxu0 0.0
  %8574 = vmatprep.subr.mxu0 0.0
  %8575 = vmatpush1.msra.mxu0 0.0
  %8576 = vmatprep.subr.mxu0 0.0
  %8577 = vmatpush1.msra.mxu0 0.0
  %8578 = vmatprep.subr.mxu0 0.0
  %8579 = vmatpush1.msra.mxu0 0.0
  %8580 = vmatprep.subr.mxu0 0.0
  %8581 = vmatpush1.msra.mxu0 0.0
  %8582 = vmatprep.subr.mxu0 0.0
  %8583 = vmatpush1.msra.mxu0 0.0
  %8584 = vmatprep.subr.mxu0 0.0
  %8585 = vmatpush1.msra.mxu0 0.0
  %8586 = vmatprep.subr.mxu0 0.0
  %8587 = vmatpush1.msra.mxu0 0.0
  %8588 = vmatprep.subr.mxu0 0.0
  %8589 = vmatpush1.msra.mxu0 0.0
  %8590 = vmatprep.subr.mxu0 0.0
  %8591 = vmatpush1.msra.mxu0 0.0
  %8592 = vmatprep.subr.mxu0 0.0
  %8593 = vmatpush1.msra.mxu0 0.0
  %8594 = vmatprep.subr.mxu0 0.0
  %8595 = vmatpush1.msra.mxu0 0.0
  %8596 = vmatprep.subr.mxu0 0.0
  %8597 = vmatpush1.msra.mxu0 0.0
  %8598 = vmatprep.subr.mxu0 0.0
  %8599 = vmatpush1.msra.mxu0 0.0
  %8600 = vmatprep.subr.mxu0 0.0
  %8601 = vmatpush1.msra.mxu0 0.0
  %8602 = vmatprep.subr.mxu0 0.0
  %8603 = vmatpush1.msra.mxu0 0.0
  %8604 = vmatprep.subr.mxu0 0.0
  %8605 = vmatpush1.msra.mxu0 0.0
  %8606 = vmatprep.subr.mxu0 0.0
  %8607 = vmatpush1.msra.mxu0 0.0
  %8608 = vmatprep.subr.mxu0 0.0
  %8609 = vmatpush1.msra.mxu0 0.0
  %8610 = vmatprep.mubr.f32.mxu0 0.0
  %v8611 = vand.u32 %v8542, 4294901760
  %v8612 = vsub.f32 %v8542, %v8611
  %v8613 = vand.u32 %v8612, 4294901760
  %v8614 = vsub.f32 %v8612, %v8613
  %v8615 = vand.u32 %v8614, 4294901760
  %8616 = vmatmul.mubr.f32.gmra.mrb[0].mxu0 %v8615
  %v8617 = vpop.f32.mrb[0].mxu0
  %v8618 = vadd.f32 0.0, %v8617
  %v8619 = vpop.f32.mrb[0].mxu0
  %8620 = vdwg.mxu0
  %8621 = vmatprep.subr.mxu0 0.0
  %v8622 = vand.u32 %v5520, 4294901760
  %v8623 = vsub.f32 %v5520, %v8622
  %v8624 = vand.u32 %v8623, 4294901760
  %v8625 = vsub.f32 %v8623, %v8624
  %v8626 = vand.u32 %v8625, 4294901760
  %8627 = vmatpush1.msra.mxu0 %v8626
  %8628 = vmatprep.subr.mxu0 0.0
  %v8629 = vand.u32 %v5521, 4294901760
  %v8630 = vsub.f32 %v5521, %v8629
  %v8631 = vand.u32 %v8630, 4294901760
  %v8632 = vsub.f32 %v8630, %v8631
  %v8633 = vand.u32 %v8632, 4294901760
  %8634 = vmatpush1.msra.mxu0 %v8633
  %8635 = vmatprep.subr.mxu0 0.0
  %8636 = vmatpush1.msra.mxu0 0.0
  %8637 = vmatprep.subr.mxu0 0.0
  %8638 = vmatpush1.msra.mxu0 0.0
  %8639 = vmatprep.subr.mxu0 0.0
  %8640 = vmatpush1.msra.mxu0 0.0
  %8641 = vmatprep.subr.mxu0 0.0
  %8642 = vmatpush1.msra.mxu0 0.0
  %8643 = vmatprep.subr.mxu0 0.0
  %8644 = vmatpush1.msra.mxu0 0.0
  %8645 = vmatprep.subr.mxu0 0.0
  %8646 = vmatpush1.msra.mxu0 0.0
  %8647 = vmatprep.subr.mxu0 0.0
  %8648 = vmatpush1.msra.mxu0 0.0
  %8649 = vmatprep.subr.mxu0 0.0
  %8650 = vmatpush1.msra.mxu0 0.0
  %8651 = vmatprep.subr.mxu0 0.0
  %8652 = vmatpush1.msra.mxu0 0.0
  %8653 = vmatprep.subr.mxu0 0.0
  %8654 = vmatpush1.msra.mxu0 0.0
  %8655 = vmatprep.subr.mxu0 0.0
  %8656 = vmatpush1.msra.mxu0 0.0
  %8657 = vmatprep.subr.mxu0 0.0
  %8658 = vmatpush1.msra.mxu0 0.0
  %8659 = vmatprep.subr.mxu0 0.0
  %8660 = vmatpush1.msra.mxu0 0.0
  %8661 = vmatprep.subr.mxu0 0.0
  %8662 = vmatpush1.msra.mxu0 0.0
  %8663 = vmatprep.subr.mxu0 0.0
  %8664 = vmatpush1.msra.mxu0 0.0
  %8665 = vmatprep.subr.mxu0 0.0
  %8666 = vmatpush1.msra.mxu0 0.0
  %8667 = vmatprep.subr.mxu0 0.0
  %8668 = vmatpush1.msra.mxu0 0.0
  %8669 = vmatprep.subr.mxu0 0.0
  %8670 = vmatpush1.msra.mxu0 0.0
  %8671 = vmatprep.subr.mxu0 0.0
  %8672 = vmatpush1.msra.mxu0 0.0
  %8673 = vmatprep.subr.mxu0 0.0
  %8674 = vmatpush1.msra.mxu0 0.0
  %8675 = vmatprep.subr.mxu0 0.0
  %8676 = vmatpush1.msra.mxu0 0.0
  %8677 = vmatprep.subr.mxu0 0.0
  %8678 = vmatpush1.msra.mxu0 0.0
  %8679 = vmatprep.subr.mxu0 0.0
  %8680 = vmatpush1.msra.mxu0 0.0
  %8681 = vmatprep.subr.mxu0 0.0
  %8682 = vmatpush1.msra.mxu0 0.0
  %8683 = vmatprep.subr.mxu0 0.0
  %8684 = vmatpush1.msra.mxu0 0.0
  %8685 = vmatprep.subr.mxu0 0.0
  %8686 = vmatpush1.msra.mxu0 0.0
  %8687 = vmatprep.subr.mxu0 0.0
  %8688 = vmatpush1.msra.mxu0 0.0
  %8689 = vmatprep.subr.mxu0 0.0
  %8690 = vmatpush1.msra.mxu0 0.0
  %8691 = vmatprep.subr.mxu0 0.0
  %8692 = vmatpush1.msra.mxu0 0.0
  %8693 = vmatprep.subr.mxu0 0.0
  %8694 = vmatpush1.msra.mxu0 0.0
  %8695 = vmatprep.mubr.f32.mxu0 0.0
  %v8696 = vand.u32 %v8542, 4294901760
  %8697 = vmatmul.mubr.f32.gmra.mrb[0].mxu0 %v8696
  %v8698 = vpop.f32.mrb[0].mxu0
  %v8699 = vadd.f32 %v8618, %v8698
  %v8700 = vpop.f32.mrb[0].mxu0
  %8701 = vdwg.mxu0
  %8702 = vmatprep.subr.mxu0 0.0
  %v8703 = vand.u32 %v5520, 4294901760
  %v8704 = vsub.f32 %v5520, %v8703
  %8705 = vmatpush1.msra.mxu0 %v8704
  %8706 = vmatprep.subr.mxu0 0.0
  %v8707 = vand.u32 %v5521, 4294901760
  %v8708 = vsub.f32 %v5521, %v8707
  %8709 = vmatpush1.msra.mxu0 %v8708
  %8710 = vmatprep.subr.mxu0 0.0
  %8711 = vmatpush1.msra.mxu0 0.0
  %8712 = vmatprep.subr.mxu0 0.0
  %8713 = vmatpush1.msra.mxu0 0.0
  %8714 = vmatprep.subr.mxu0 0.0
  %8715 = vmatpush1.msra.mxu0 0.0
  %8716 = vmatprep.subr.mxu0 0.0
  %8717 = vmatpush1.msra.mxu0 0.0
  %8718 = vmatprep.subr.mxu0 0.0
  %8719 = vmatpush1.msra.mxu0 0.0
  %8720 = vmatprep.subr.mxu0 0.0
  %8721 = vmatpush1.msra.mxu0 0.0
  %8722 = vmatprep.subr.mxu0 0.0
  %8723 = vmatpush1.msra.mxu0 0.0
  %8724 = vmatprep.subr.mxu0 0.0
  %8725 = vmatpush1.msra.mxu0 0.0
  %8726 = vmatprep.subr.mxu0 0.0
  %8727 = vmatpush1.msra.mxu0 0.0
  %8728 = vmatprep.subr.mxu0 0.0
  %8729 = vmatpush1.msra.mxu0 0.0
  %8730 = vmatprep.subr.mxu0 0.0
  %8731 = vmatpush1.msra.mxu0 0.0
  %8732 = vmatprep.subr.mxu0 0.0
  %8733 = vmatpush1.msra.mxu0 0.0
  %8734 = vmatprep.subr.mxu0 0.0
  %8735 = vmatpush1.msra.mxu0 0.0
  %8736 = vmatprep.subr.mxu0 0.0
  %8737 = vmatpush1.msra.mxu0 0.0
  %8738 = vmatprep.subr.mxu0 0.0
  %8739 = vmatpush1.msra.mxu0 0.0
  %8740 = vmatprep.subr.mxu0 0.0
  %8741 = vmatpush1.msra.mxu0 0.0
  %8742 = vmatprep.subr.mxu0 0.0
  %8743 = vmatpush1.msra.mxu0 0.0
  %8744 = vmatprep.subr.mxu0 0.0
  %8745 = vmatpush1.msra.mxu0 0.0
  %8746 = vmatprep.subr.mxu0 0.0
  %8747 = vmatpush1.msra.mxu0 0.0
  %8748 = vmatprep.subr.mxu0 0.0
  %8749 = vmatpush1.msra.mxu0 0.0
  %8750 = vmatprep.subr.mxu0 0.0
  %8751 = vmatpush1.msra.mxu0 0.0
  %8752 = vmatprep.subr.mxu0 0.0
  %8753 = vmatpush1.msra.mxu0 0.0
  %8754 = vmatprep.subr.mxu0 0.0
  %8755 = vmatpush1.msra.mxu0 0.0
  %8756 = vmatprep.subr.mxu0 0.0
  %8757 = vmatpush1.msra.mxu0 0.0
  %8758 = vmatprep.subr.mxu0 0.0
  %8759 = vmatpush1.msra.mxu0 0.0
  %8760 = vmatprep.subr.mxu0 0.0
  %8761 = vmatpush1.msra.mxu0 0.0
  %8762 = vmatprep.subr.mxu0 0.0
  %8763 = vmatpush1.msra.mxu0 0.0
  %8764 = vmatprep.subr.mxu0 0.0
  %8765 = vmatpush1.msra.mxu0 0.0
  %8766 = vmatprep.subr.mxu0 0.0
  %8767 = vmatpush1.msra.mxu0 0.0
  %8768 = vmatprep.subr.mxu0 0.0
  %8769 = vmatpush1.msra.mxu0 0.0
  %8770 = vmatprep.mubr.f32.mxu0 0.0
  %v8771 = vand.u32 %v8542, 4294901760
  %v8772 = vsub.f32 %v8542, %v8771
  %8773 = vmatmul.mubr.f32.gmra.mrb[0].mxu0 %v8772
  %v8774 = vpop.f32.mrb[0].mxu0
  %v8775 = vadd.f32 %v8699, %v8774
  %v8776 = vpop.f32.mrb[0].mxu0
  %8777 = vdwg.mxu0
  %8778 = vmatprep.subr.mxu0 0.0
  %v8779 = vand.u32 %v5520, 4294901760
  %8780 = vmatpush1.msra.mxu0 %v8779
  %8781 = vmatprep.subr.mxu0 0.0
  %v8782 = vand.u32 %v5521, 4294901760
  %8783 = vmatpush1.msra.mxu0 %v8782
  %8784 = vmatprep.subr.mxu0 0.0
  %8785 = vmatpush1.msra.mxu0 0.0
  %8786 = vmatprep.subr.mxu0 0.0
  %8787 = vmatpush1.msra.mxu0 0.0
  %8788 = vmatprep.subr.mxu0 0.0
  %8789 = vmatpush1.msra.mxu0 0.0
  %8790 = vmatprep.subr.mxu0 0.0
  %8791 = vmatpush1.msra.mxu0 0.0
  %8792 = vmatprep.subr.mxu0 0.0
  %8793 = vmatpush1.msra.mxu0 0.0
  %8794 = vmatprep.subr.mxu0 0.0
  %8795 = vmatpush1.msra.mxu0 0.0
  %8796 = vmatprep.subr.mxu0 0.0
  %8797 = vmatpush1.msra.mxu0 0.0
  %8798 = vmatprep.subr.mxu0 0.0
  %8799 = vmatpush1.msra.mxu0 0.0
  %8800 = vmatprep.subr.mxu0 0.0
  %8801 = vmatpush1.msra.mxu0 0.0
  %8802 = vmatprep.subr.mxu0 0.0
  %8803 = vmatpush1.msra.mxu0 0.0
  %8804 = vmatprep.subr.mxu0 0.0
  %8805 = vmatpush1.msra.mxu0 0.0
  %8806 = vmatprep.subr.mxu0 0.0
  %8807 = vmatpush1.msra.mxu0 0.0
  %8808 = vmatprep.subr.mxu0 0.0
  %8809 = vmatpush1.msra.mxu0 0.0
  %8810 = vmatprep.subr.mxu0 0.0
  %8811 = vmatpush1.msra.mxu0 0.0
  %8812 = vmatprep.subr.mxu0 0.0
  %8813 = vmatpush1.msra.mxu0 0.0
  %8814 = vmatprep.subr.mxu0 0.0
  %8815 = vmatpush1.msra.mxu0 0.0
  %8816 = vmatprep.subr.mxu0 0.0
  %8817 = vmatpush1.msra.mxu0 0.0
  %8818 = vmatprep.subr.mxu0 0.0
  %8819 = vmatpush1.msra.mxu0 0.0
  %8820 = vmatprep.subr.mxu0 0.0
  %8821 = vmatpush1.msra.mxu0 0.0
  %8822 = vmatprep.subr.mxu0 0.0
  %8823 = vmatpush1.msra.mxu0 0.0
  %8824 = vmatprep.subr.mxu0 0.0
  %8825 = vmatpush1.msra.mxu0 0.0
  %8826 = vmatprep.subr.mxu0 0.0
  %8827 = vmatpush1.msra.mxu0 0.0
  %8828 = vmatprep.subr.mxu0 0.0
  %8829 = vmatpush1.msra.mxu0 0.0
  %8830 = vmatprep.subr.mxu0 0.0
  %8831 = vmatpush1.msra.mxu0 0.0
  %8832 = vmatprep.subr.mxu0 0.0
  %8833 = vmatpush1.msra.mxu0 0.0
  %8834 = vmatprep.subr.mxu0 0.0
  %8835 = vmatpush1.msra.mxu0 0.0
  %8836 = vmatprep.subr.mxu0 0.0
  %8837 = vmatpush1.msra.mxu0 0.0
  %8838 = vmatprep.subr.mxu0 0.0
  %8839 = vmatpush1.msra.mxu0 0.0
  %8840 = vmatprep.subr.mxu0 0.0
  %8841 = vmatpush1.msra.mxu0 0.0
  %8842 = vmatprep.subr.mxu0 0.0
  %8843 = vmatpush1.msra.mxu0 0.0
  %8844 = vmatprep.mubr.f32.mxu0 0.0
  %v8845 = vand.u32 %v8542, 4294901760
  %v8846 = vsub.f32 %v8542, %v8845
  %v8847 = vand.u32 %v8846, 4294901760
  %8848 = vmatmul.mubr.f32.gmra.mrb[0].mxu0 %v8847
  %v8849 = vpop.f32.mrb[0].mxu0
  %v8850 = vadd.f32 %v8775, %v8849
  %v8851 = vpop.f32.mrb[0].mxu0
  %8852 = vdwg.mxu0
  %8853 = vmatprep.subr.mxu0 0.0
  %v8854 = vand.u32 %v5520, 4294901760
  %v8855 = vsub.f32 %v5520, %v8854
  %v8856 = vand.u32 %v8855, 4294901760
  %8857 = vmatpush1.msra.mxu0 %v8856
  %8858 = vmatprep.subr.mxu0 0.0
  %v8859 = vand.u32 %v5521, 4294901760
  %v8860 = vsub.f32 %v5521, %v8859
  %v8861 = vand.u32 %v8860, 4294901760
  %8862 = vmatpush1.msra.mxu0 %v8861
  %8863 = vmatprep.subr.mxu0 0.0
  %8864 = vmatpush1.msra.mxu0 0.0
  %8865 = vmatprep.subr.mxu0 0.0
  %8866 = vmatpush1.msra.mxu0 0.0
  %8867 = vmatprep.subr.mxu0 0.0
  %8868 = vmatpush1.msra.mxu0 0.0
  %8869 = vmatprep.subr.mxu0 0.0
  %8870 = vmatpush1.msra.mxu0 0.0
  %8871 = vmatprep.subr.mxu0 0.0
  %8872 = vmatpush1.msra.mxu0 0.0
  %8873 = vmatprep.subr.mxu0 0.0
  %8874 = vmatpush1.msra.mxu0 0.0
  %8875 = vmatprep.subr.mxu0 0.0
  %8876 = vmatpush1.msra.mxu0 0.0
  %8877 = vmatprep.subr.mxu0 0.0
  %8878 = vmatpush1.msra.mxu0 0.0
  %8879 = vmatprep.subr.mxu0 0.0
  %8880 = vmatpush1.msra.mxu0 0.0
  %8881 = vmatprep.subr.mxu0 0.0
  %8882 = vmatpush1.msra.mxu0 0.0
  %8883 = vmatprep.subr.mxu0 0.0
  %8884 = vmatpush1.msra.mxu0 0.0
  %8885 = vmatprep.subr.mxu0 0.0
  %8886 = vmatpush1.msra.mxu0 0.0
  %8887 = vmatprep.subr.mxu0 0.0
  %8888 = vmatpush1.msra.mxu0 0.0
  %8889 = vmatprep.subr.mxu0 0.0
  %8890 = vmatpush1.msra.mxu0 0.0
  %8891 = vmatprep.subr.mxu0 0.0
  %8892 = vmatpush1.msra.mxu0 0.0
  %8893 = vmatprep.subr.mxu0 0.0
  %8894 = vmatpush1.msra.mxu0 0.0
  %8895 = vmatprep.subr.mxu0 0.0
  %8896 = vmatpush1.msra.mxu0 0.0
  %8897 = vmatprep.subr.mxu0 0.0
  %8898 = vmatpush1.msra.mxu0 0.0
  %8899 = vmatprep.subr.mxu0 0.0
  %8900 = vmatpush1.msra.mxu0 0.0
  %8901 = vmatprep.subr.mxu0 0.0
  %8902 = vmatpush1.msra.mxu0 0.0
  %8903 = vmatprep.subr.mxu0 0.0
  %8904 = vmatpush1.msra.mxu0 0.0
  %8905 = vmatprep.subr.mxu0 0.0
  %8906 = vmatpush1.msra.mxu0 0.0
  %8907 = vmatprep.subr.mxu0 0.0
  %8908 = vmatpush1.msra.mxu0 0.0
  %8909 = vmatprep.subr.mxu0 0.0
  %8910 = vmatpush1.msra.mxu0 0.0
  %8911 = vmatprep.subr.mxu0 0.0
  %8912 = vmatpush1.msra.mxu0 0.0
  %8913 = vmatprep.subr.mxu0 0.0
  %8914 = vmatpush1.msra.mxu0 0.0
  %8915 = vmatprep.subr.mxu0 0.0
  %8916 = vmatpush1.msra.mxu0 0.0
  %8917 = vmatprep.subr.mxu0 0.0
  %8918 = vmatpush1.msra.mxu0 0.0
  %8919 = vmatprep.subr.mxu0 0.0
  %8920 = vmatpush1.msra.mxu0 0.0
  %8921 = vmatprep.subr.mxu0 0.0
  %8922 = vmatpush1.msra.mxu0 0.0
  %8923 = vmatprep.mubr.f32.mxu0 0.0
  %v8924 = vand.u32 %v8542, 4294901760
  %8925 = vmatmul.mubr.f32.gmra.mrb[0].mxu0 %v8924
  %v8926 = vpop.f32.mrb[0].mxu0
  %v8927 = vadd.f32 %v8850, %v8926
  %v8928 = vpop.f32.mrb[0].mxu0
  %8929 = vdwg.mxu0
  %8930 = vmatprep.subr.mxu0 0.0
  %v8931 = vand.u32 %v5520, 4294901760
  %8932 = vmatpush1.msra.mxu0 %v8931
  %8933 = vmatprep.subr.mxu0 0.0
  %v8934 = vand.u32 %v5521, 4294901760
  %8935 = vmatpush1.msra.mxu0 %v8934
  %8936 = vmatprep.subr.mxu0 0.0
  %8937 = vmatpush1.msra.mxu0 0.0
  %8938 = vmatprep.subr.mxu0 0.0
  %8939 = vmatpush1.msra.mxu0 0.0
  %8940 = vmatprep.subr.mxu0 0.0
  %8941 = vmatpush1.msra.mxu0 0.0
  %8942 = vmatprep.subr.mxu0 0.0
  %8943 = vmatpush1.msra.mxu0 0.0
  %8944 = vmatprep.subr.mxu0 0.0
  %8945 = vmatpush1.msra.mxu0 0.0
  %8946 = vmatprep.subr.mxu0 0.0
  %8947 = vmatpush1.msra.mxu0 0.0
  %8948 = vmatprep.subr.mxu0 0.0
  %8949 = vmatpush1.msra.mxu0 0.0
  %8950 = vmatprep.subr.mxu0 0.0
  %8951 = vmatpush1.msra.mxu0 0.0
  %8952 = vmatprep.subr.mxu0 0.0
  %8953 = vmatpush1.msra.mxu0 0.0
  %8954 = vmatprep.subr.mxu0 0.0
  %8955 = vmatpush1.msra.mxu0 0.0
  %8956 = vmatprep.subr.mxu0 0.0
  %8957 = vmatpush1.msra.mxu0 0.0
  %8958 = vmatprep.subr.mxu0 0.0
  %8959 = vmatpush1.msra.mxu0 0.0
  %8960 = vmatprep.subr.mxu0 0.0
  %8961 = vmatpush1.msra.mxu0 0.0
  %8962 = vmatprep.subr.mxu0 0.0
  %8963 = vmatpush1.msra.mxu0 0.0
  %8964 = vmatprep.subr.mxu0 0.0
  %8965 = vmatpush1.msra.mxu0 0.0
  %8966 = vmatprep.subr.mxu0 0.0
  %8967 = vmatpush1.msra.mxu0 0.0
  %8968 = vmatprep.subr.mxu0 0.0
  %8969 = vmatpush1.msra.mxu0 0.0
  %8970 = vmatprep.subr.mxu0 0.0
  %8971 = vmatpush1.msra.mxu0 0.0
  %8972 = vmatprep.subr.mxu0 0.0
  %8973 = vmatpush1.msra.mxu0 0.0
  %8974 = vmatprep.subr.mxu0 0.0
  %8975 = vmatpush1.msra.mxu0 0.0
  %8976 = vmatprep.subr.mxu0 0.0
  %8977 = vmatpush1.msra.mxu0 0.0
  %8978 = vmatprep.subr.mxu0 0.0
  %8979 = vmatpush1.msra.mxu0 0.0
  %8980 = vmatprep.subr.mxu0 0.0
  %8981 = vmatpush1.msra.mxu0 0.0
  %8982 = vmatprep.subr.mxu0 0.0
  %8983 = vmatpush1.msra.mxu0 0.0
  %8984 = vmatprep.subr.mxu0 0.0
  %8985 = vmatpush1.msra.mxu0 0.0
  %8986 = vmatprep.subr.mxu0 0.0
  %8987 = vmatpush1.msra.mxu0 0.0
  %8988 = vmatprep.subr.mxu0 0.0
  %8989 = vmatpush1.msra.mxu0 0.0
  %8990 = vmatprep.subr.mxu0 0.0
  %8991 = vmatpush1.msra.mxu0 0.0
  %8992 = vmatprep.subr.mxu0 0.0
  %8993 = vmatpush1.msra.mxu0 0.0
  %8994 = vmatprep.subr.mxu0 0.0
  %8995 = vmatpush1.msra.mxu0 0.0
  %8996 = vmatprep.mubr.f32.mxu0 0.0
  %v8997 = vand.u32 %v8542, 4294901760
  %8998 = vmatmul.mubr.f32.gmra.mrb[0].mxu0 %v8997
  %v8999 = vpop.f32.mrb[0].mxu0
  %v9000 = vadd.f32 %v8927, %v8999
  %v9001 = vpop.f32.mrb[0].mxu0
  %9002 = vdwg.mxu0
  %v9003 = vmul.f32 %v5490, %v8529
  %v9004 = vmul.f32 %v5501, %v8536
  %v9005 = vsub.f32 %v9003, %v9004
  %v9006 = vmul.f32 %v5512, %v9000
  %v9007 = vadd.f32 %v9005, %v9006
  %v9009 = vrot.slane %v9000, 2
  %v9011 = vmul.f32 %v5519, %v9009
  %v9012 = vsub.f32 %v9007, %v9011
  %v9013 = vmul.f32 %v5490, %v8536
  %v9014 = vmul.f32 %v5501, %v8529
  %v9015 = vadd.f32 %v9013, %v9014
  %v9016 = vmul.f32 %v5512, %v9009
  %v9017 = vadd.f32 %v9015, %v9016
  %v9018 = vmul.f32 %v5519, %v9000
  %v9019 = vadd.f32 %v9017, %v9018
  %v9021 = vrot.slane %v9019, 6
  %v9023 = vsel %vm33, %v9012, %v9021
  %v9025 = vsel %vm5622, %v9023, 0
  %9027 = vmatprep.subr.mxu0 0.0
  %v9028 = vand.u32 %v5568, 4294901760
  %9029 = vmatpush1.msra.mxu0 %v9028
  %9030 = vmatprep.subr.mxu0 0.0
  %v9031 = vand.u32 %v5569, 4294901760
  %9032 = vmatpush1.msra.mxu0 %v9031
  %9033 = vmatprep.subr.mxu0 0.0
  %9034 = vmatpush1.msra.mxu0 0.0
  %9035 = vmatprep.subr.mxu0 0.0
  %9036 = vmatpush1.msra.mxu0 0.0
  %9037 = vmatprep.subr.mxu0 0.0
  %9038 = vmatpush1.msra.mxu0 0.0
  %9039 = vmatprep.subr.mxu0 0.0
  %9040 = vmatpush1.msra.mxu0 0.0
  %9041 = vmatprep.subr.mxu0 0.0
  %9042 = vmatpush1.msra.mxu0 0.0
  %9043 = vmatprep.subr.mxu0 0.0
  %9044 = vmatpush1.msra.mxu0 0.0
  %9045 = vmatprep.subr.mxu0 0.0
  %9046 = vmatpush1.msra.mxu0 0.0
  %9047 = vmatprep.subr.mxu0 0.0
  %9048 = vmatpush1.msra.mxu0 0.0
  %9049 = vmatprep.subr.mxu0 0.0
  %9050 = vmatpush1.msra.mxu0 0.0
  %9051 = vmatprep.subr.mxu0 0.0
  %9052 = vmatpush1.msra.mxu0 0.0
  %9053 = vmatprep.subr.mxu0 0.0
  %9054 = vmatpush1.msra.mxu0 0.0
  %9055 = vmatprep.subr.mxu0 0.0
  %9056 = vmatpush1.msra.mxu0 0.0
  %9057 = vmatprep.subr.mxu0 0.0
  %9058 = vmatpush1.msra.mxu0 0.0
  %9059 = vmatprep.subr.mxu0 0.0
  %9060 = vmatpush1.msra.mxu0 0.0
  %9061 = vmatprep.subr.mxu0 0.0
  %9062 = vmatpush1.msra.mxu0 0.0
  %9063 = vmatprep.subr.mxu0 0.0
  %9064 = vmatpush1.msra.mxu0 0.0
  %9065 = vmatprep.subr.mxu0 0.0
  %9066 = vmatpush1.msra.mxu0 0.0
  %9067 = vmatprep.subr.mxu0 0.0
  %9068 = vmatpush1.msra.mxu0 0.0
  %9069 = vmatprep.subr.mxu0 0.0
  %9070 = vmatpush1.msra.mxu0 0.0
  %9071 = vmatprep.subr.mxu0 0.0
  %9072 = vmatpush1.msra.mxu0 0.0
  %9073 = vmatprep.subr.mxu0 0.0
  %9074 = vmatpush1.msra.mxu0 0.0
  %9075 = vmatprep.subr.mxu0 0.0
  %9076 = vmatpush1.msra.mxu0 0.0
  %9077 = vmatprep.subr.mxu0 0.0
  %9078 = vmatpush1.msra.mxu0 0.0
  %9079 = vmatprep.subr.mxu0 0.0
  %9080 = vmatpush1.msra.mxu0 0.0
  %9081 = vmatprep.subr.mxu0 0.0
  %9082 = vmatpush1.msra.mxu0 0.0
  %9083 = vmatprep.subr.mxu0 0.0
  %9084 = vmatpush1.msra.mxu0 0.0
  %9085 = vmatprep.subr.mxu0 0.0
  %9086 = vmatpush1.msra.mxu0 0.0
  %9087 = vmatprep.subr.mxu0 0.0
  %9088 = vmatpush1.msra.mxu0 0.0
  %9089 = vmatprep.subr.mxu0 0.0
  %9090 = vmatpush1.msra.mxu0 0.0
  %9091 = vmatprep.subr.mxu0 0.0
  %9092 = vmatpush1.msra.mxu0 0.0
  %9093 = vmatprep.mubr.f32.mxu0 0.0
  %v9094 = vand.u32 %v9025, 4294901760
  %v9095 = vsub.f32 %v9025, %v9094
  %v9096 = vand.u32 %v9095, 4294901760
  %v9097 = vsub.f32 %v9095, %v9096
  %v9098 = vand.u32 %v9097, 4294901760
  %9099 = vmatmul.mubr.f32.gmra.mrb[0].mxu0 %v9098
  %v9100 = vpop.f32.mrb[0].mxu0
  %v9101 = vadd.f32 0.0, %v9100
  %v9102 = vpop.f32.mrb[0].mxu0
  %9103 = vdwg.mxu0
  %9104 = vmatprep.subr.mxu0 0.0
  %v9105 = vand.u32 %v5568, 4294901760
  %v9106 = vsub.f32 %v5568, %v9105
  %v9107 = vand.u32 %v9106, 4294901760
  %v9108 = vsub.f32 %v9106, %v9107
  %v9109 = vand.u32 %v9108, 4294901760
  %9110 = vmatpush1.msra.mxu0 %v9109
  %9111 = vmatprep.subr.mxu0 0.0
  %v9112 = vand.u32 %v5569, 4294901760
  %v9113 = vsub.f32 %v5569, %v9112
  %v9114 = vand.u32 %v9113, 4294901760
  %v9115 = vsub.f32 %v9113, %v9114
  %v9116 = vand.u32 %v9115, 4294901760
  %9117 = vmatpush1.msra.mxu0 %v9116
  %9118 = vmatprep.subr.mxu0 0.0
  %9119 = vmatpush1.msra.mxu0 0.0
  %9120 = vmatprep.subr.mxu0 0.0
  %9121 = vmatpush1.msra.mxu0 0.0
  %9122 = vmatprep.subr.mxu0 0.0
  %9123 = vmatpush1.msra.mxu0 0.0
  %9124 = vmatprep.subr.mxu0 0.0
  %9125 = vmatpush1.msra.mxu0 0.0
  %9126 = vmatprep.subr.mxu0 0.0
  %9127 = vmatpush1.msra.mxu0 0.0
  %9128 = vmatprep.subr.mxu0 0.0
  %9129 = vmatpush1.msra.mxu0 0.0
  %9130 = vmatprep.subr.mxu0 0.0
  %9131 = vmatpush1.msra.mxu0 0.0
  %9132 = vmatprep.subr.mxu0 0.0
  %9133 = vmatpush1.msra.mxu0 0.0
  %9134 = vmatprep.subr.mxu0 0.0
  %9135 = vmatpush1.msra.mxu0 0.0
  %9136 = vmatprep.subr.mxu0 0.0
  %9137 = vmatpush1.msra.mxu0 0.0
  %9138 = vmatprep.subr.mxu0 0.0
  %9139 = vmatpush1.msra.mxu0 0.0
  %9140 = vmatprep.subr.mxu0 0.0
  %9141 = vmatpush1.msra.mxu0 0.0
  %9142 = vmatprep.subr.mxu0 0.0
  %9143 = vmatpush1.msra.mxu0 0.0
  %9144 = vmatprep.subr.mxu0 0.0
  %9145 = vmatpush1.msra.mxu0 0.0
  %9146 = vmatprep.subr.mxu0 0.0
  %9147 = vmatpush1.msra.mxu0 0.0
  %9148 = vmatprep.subr.mxu0 0.0
  %9149 = vmatpush1.msra.mxu0 0.0
  %9150 = vmatprep.subr.mxu0 0.0
  %9151 = vmatpush1.msra.mxu0 0.0
  %9152 = vmatprep.subr.mxu0 0.0
  %9153 = vmatpush1.msra.mxu0 0.0
  %9154 = vmatprep.subr.mxu0 0.0
  %9155 = vmatpush1.msra.mxu0 0.0
  %9156 = vmatprep.subr.mxu0 0.0
  %9157 = vmatpush1.msra.mxu0 0.0
  %9158 = vmatprep.subr.mxu0 0.0
  %9159 = vmatpush1.msra.mxu0 0.0
  %9160 = vmatprep.subr.mxu0 0.0
  %9161 = vmatpush1.msra.mxu0 0.0
  %9162 = vmatprep.subr.mxu0 0.0
  %9163 = vmatpush1.msra.mxu0 0.0
  %9164 = vmatprep.subr.mxu0 0.0
  %9165 = vmatpush1.msra.mxu0 0.0
  %9166 = vmatprep.subr.mxu0 0.0
  %9167 = vmatpush1.msra.mxu0 0.0
  %9168 = vmatprep.subr.mxu0 0.0
  %9169 = vmatpush1.msra.mxu0 0.0
  %9170 = vmatprep.subr.mxu0 0.0
  %9171 = vmatpush1.msra.mxu0 0.0
  %9172 = vmatprep.subr.mxu0 0.0
  %9173 = vmatpush1.msra.mxu0 0.0
  %9174 = vmatprep.subr.mxu0 0.0
  %9175 = vmatpush1.msra.mxu0 0.0
  %9176 = vmatprep.subr.mxu0 0.0
  %9177 = vmatpush1.msra.mxu0 0.0
  %9178 = vmatprep.mubr.f32.mxu0 0.0
  %v9179 = vand.u32 %v9025, 4294901760
  %9180 = vmatmul.mubr.f32.gmra.mrb[0].mxu0 %v9179
  %v9181 = vpop.f32.mrb[0].mxu0
  %v9182 = vadd.f32 %v9101, %v9181
  %v9183 = vpop.f32.mrb[0].mxu0
  %9184 = vdwg.mxu0
  %9185 = vmatprep.subr.mxu0 0.0
  %v9186 = vand.u32 %v5568, 4294901760
  %v9187 = vsub.f32 %v5568, %v9186
  %9188 = vmatpush1.msra.mxu0 %v9187
  %9189 = vmatprep.subr.mxu0 0.0
  %v9190 = vand.u32 %v5569, 4294901760
  %v9191 = vsub.f32 %v5569, %v9190
  %9192 = vmatpush1.msra.mxu0 %v9191
  %9193 = vmatprep.subr.mxu0 0.0
  %9194 = vmatpush1.msra.mxu0 0.0
  %9195 = vmatprep.subr.mxu0 0.0
  %9196 = vmatpush1.msra.mxu0 0.0
  %9197 = vmatprep.subr.mxu0 0.0
  %9198 = vmatpush1.msra.mxu0 0.0
  %9199 = vmatprep.subr.mxu0 0.0
  %9200 = vmatpush1.msra.mxu0 0.0
  %9201 = vmatprep.subr.mxu0 0.0
  %9202 = vmatpush1.msra.mxu0 0.0
  %9203 = vmatprep.subr.mxu0 0.0
  %9204 = vmatpush1.msra.mxu0 0.0
  %9205 = vmatprep.subr.mxu0 0.0
  %9206 = vmatpush1.msra.mxu0 0.0
  %9207 = vmatprep.subr.mxu0 0.0
  %9208 = vmatpush1.msra.mxu0 0.0
  %9209 = vmatprep.subr.mxu0 0.0
  %9210 = vmatpush1.msra.mxu0 0.0
  %9211 = vmatprep.subr.mxu0 0.0
  %9212 = vmatpush1.msra.mxu0 0.0
  %9213 = vmatprep.subr.mxu0 0.0
  %9214 = vmatpush1.msra.mxu0 0.0
  %9215 = vmatprep.subr.mxu0 0.0
  %9216 = vmatpush1.msra.mxu0 0.0
  %9217 = vmatprep.subr.mxu0 0.0
  %9218 = vmatpush1.msra.mxu0 0.0
  %9219 = vmatprep.subr.mxu0 0.0
  %9220 = vmatpush1.msra.mxu0 0.0
  %9221 = vmatprep.subr.mxu0 0.0
  %9222 = vmatpush1.msra.mxu0 0.0
  %9223 = vmatprep.subr.mxu0 0.0
  %9224 = vmatpush1.msra.mxu0 0.0
  %9225 = vmatprep.subr.mxu0 0.0
  %9226 = vmatpush1.msra.mxu0 0.0
  %9227 = vmatprep.subr.mxu0 0.0
  %9228 = vmatpush1.msra.mxu0 0.0
  %9229 = vmatprep.subr.mxu0 0.0
  %9230 = vmatpush1.msra.mxu0 0.0
  %9231 = vmatprep.subr.mxu0 0.0
  %9232 = vmatpush1.msra.mxu0 0.0
  %9233 = vmatprep.subr.mxu0 0.0
  %9234 = vmatpush1.msra.mxu0 0.0
  %9235 = vmatprep.subr.mxu0 0.0
  %9236 = vmatpush1.msra.mxu0 0.0
  %9237 = vmatprep.subr.mxu0 0.0
  %9238 = vmatpush1.msra.mxu0 0.0
  %9239 = vmatprep.subr.mxu0 0.0
  %9240 = vmatpush1.msra.mxu0 0.0
  %9241 = vmatprep.subr.mxu0 0.0
  %9242 = vmatpush1.msra.mxu0 0.0
  %9243 = vmatprep.subr.mxu0 0.0
  %9244 = vmatpush1.msra.mxu0 0.0
  %9245 = vmatprep.subr.mxu0 0.0
  %9246 = vmatpush1.msra.mxu0 0.0
  %9247 = vmatprep.subr.mxu0 0.0
  %9248 = vmatpush1.msra.mxu0 0.0
  %9249 = vmatprep.subr.mxu0 0.0
  %9250 = vmatpush1.msra.mxu0 0.0
  %9251 = vmatprep.subr.mxu0 0.0
  %9252 = vmatpush1.msra.mxu0 0.0
  %9253 = vmatprep.mubr.f32.mxu0 0.0
  %v9254 = vand.u32 %v9025, 4294901760
  %v9255 = vsub.f32 %v9025, %v9254
  %9256 = vmatmul.mubr.f32.gmra.mrb[0].mxu0 %v9255
  %v9257 = vpop.f32.mrb[0].mxu0
  %v9258 = vadd.f32 %v9182, %v9257
  %v9259 = vpop.f32.mrb[0].mxu0
  %9260 = vdwg.mxu0
  %9261 = vmatprep.subr.mxu0 0.0
  %v9262 = vand.u32 %v5568, 4294901760
  %9263 = vmatpush1.msra.mxu0 %v9262
  %9264 = vmatprep.subr.mxu0 0.0
  %v9265 = vand.u32 %v5569, 4294901760
  %9266 = vmatpush1.msra.mxu0 %v9265
  %9267 = vmatprep.subr.mxu0 0.0
  %9268 = vmatpush1.msra.mxu0 0.0
  %9269 = vmatprep.subr.mxu0 0.0
  %9270 = vmatpush1.msra.mxu0 0.0
  %9271 = vmatprep.subr.mxu0 0.0
  %9272 = vmatpush1.msra.mxu0 0.0
  %9273 = vmatprep.subr.mxu0 0.0
  %9274 = vmatpush1.msra.mxu0 0.0
  %9275 = vmatprep.subr.mxu0 0.0
  %9276 = vmatpush1.msra.mxu0 0.0
  %9277 = vmatprep.subr.mxu0 0.0
  %9278 = vmatpush1.msra.mxu0 0.0
  %9279 = vmatprep.subr.mxu0 0.0
  %9280 = vmatpush1.msra.mxu0 0.0
  %9281 = vmatprep.subr.mxu0 0.0
  %9282 = vmatpush1.msra.mxu0 0.0
  %9283 = vmatprep.subr.mxu0 0.0
  %9284 = vmatpush1.msra.mxu0 0.0
  %9285 = vmatprep.subr.mxu0 0.0
  %9286 = vmatpush1.msra.mxu0 0.0
  %9287 = vmatprep.subr.mxu0 0.0
  %9288 = vmatpush1.msra.mxu0 0.0
  %9289 = vmatprep.subr.mxu0 0.0
  %9290 = vmatpush1.msra.mxu0 0.0
  %9291 = vmatprep.subr.mxu0 0.0
  %9292 = vmatpush1.msra.mxu0 0.0
  %9293 = vmatprep.subr.mxu0 0.0
  %9294 = vmatpush1.msra.mxu0 0.0
  %9295 = vmatprep.subr.mxu0 0.0
  %9296 = vmatpush1.msra.mxu0 0.0
  %9297 = vmatprep.subr.mxu0 0.0
  %9298 = vmatpush1.msra.mxu0 0.0
  %9299 = vmatprep.subr.mxu0 0.0
  %9300 = vmatpush1.msra.mxu0 0.0
  %9301 = vmatprep.subr.mxu0 0.0
  %9302 = vmatpush1.msra.mxu0 0.0
  %9303 = vmatprep.subr.mxu0 0.0
  %9304 = vmatpush1.msra.mxu0 0.0
  %9305 = vmatprep.subr.mxu0 0.0
  %9306 = vmatpush1.msra.mxu0 0.0
  %9307 = vmatprep.subr.mxu0 0.0
  %9308 = vmatpush1.msra.mxu0 0.0
  %9309 = vmatprep.subr.mxu0 0.0
  %9310 = vmatpush1.msra.mxu0 0.0
  %9311 = vmatprep.subr.mxu0 0.0
  %9312 = vmatpush1.msra.mxu0 0.0
  %9313 = vmatprep.subr.mxu0 0.0
  %9314 = vmatpush1.msra.mxu0 0.0
  %9315 = vmatprep.subr.mxu0 0.0
  %9316 = vmatpush1.msra.mxu0 0.0
  %9317 = vmatprep.subr.mxu0 0.0
  %9318 = vmatpush1.msra.mxu0 0.0
  %9319 = vmatprep.subr.mxu0 0.0
  %9320 = vmatpush1.msra.mxu0 0.0
  %9321 = vmatprep.subr.mxu0 0.0
  %9322 = vmatpush1.msra.mxu0 0.0
  %9323 = vmatprep.subr.mxu0 0.0
  %9324 = vmatpush1.msra.mxu0 0.0
  %9325 = vmatprep.subr.mxu0 0.0
  %9326 = vmatpush1.msra.mxu0 0.0
  %9327 = vmatprep.mubr.f32.mxu0 0.0
  %v9328 = vand.u32 %v9025, 4294901760
  %v9329 = vsub.f32 %v9025, %v9328
  %v9330 = vand.u32 %v9329, 4294901760
  %9331 = vmatmul.mubr.f32.gmra.mrb[0].mxu0 %v9330
  %v9332 = vpop.f32.mrb[0].mxu0
  %v9333 = vadd.f32 %v9258, %v9332
  %v9334 = vpop.f32.mrb[0].mxu0
  %9335 = vdwg.mxu0
  %9336 = vmatprep.subr.mxu0 0.0
  %v9337 = vand.u32 %v5568, 4294901760
  %v9338 = vsub.f32 %v5568, %v9337
  %v9339 = vand.u32 %v9338, 4294901760
  %9340 = vmatpush1.msra.mxu0 %v9339
  %9341 = vmatprep.subr.mxu0 0.0
  %v9342 = vand.u32 %v5569, 4294901760
  %v9343 = vsub.f32 %v5569, %v9342
  %v9344 = vand.u32 %v9343, 4294901760
  %9345 = vmatpush1.msra.mxu0 %v9344
  %9346 = vmatprep.subr.mxu0 0.0
  %9347 = vmatpush1.msra.mxu0 0.0
  %9348 = vmatprep.subr.mxu0 0.0
  %9349 = vmatpush1.msra.mxu0 0.0
  %9350 = vmatprep.subr.mxu0 0.0
  %9351 = vmatpush1.msra.mxu0 0.0
  %9352 = vmatprep.subr.mxu0 0.0
  %9353 = vmatpush1.msra.mxu0 0.0
  %9354 = vmatprep.subr.mxu0 0.0
  %9355 = vmatpush1.msra.mxu0 0.0
  %9356 = vmatprep.subr.mxu0 0.0
  %9357 = vmatpush1.msra.mxu0 0.0
  %9358 = vmatprep.subr.mxu0 0.0
  %9359 = vmatpush1.msra.mxu0 0.0
  %9360 = vmatprep.subr.mxu0 0.0
  %9361 = vmatpush1.msra.mxu0 0.0
  %9362 = vmatprep.subr.mxu0 0.0
  %9363 = vmatpush1.msra.mxu0 0.0
  %9364 = vmatprep.subr.mxu0 0.0
  %9365 = vmatpush1.msra.mxu0 0.0
  %9366 = vmatprep.subr.mxu0 0.0
  %9367 = vmatpush1.msra.mxu0 0.0
  %9368 = vmatprep.subr.mxu0 0.0
  %9369 = vmatpush1.msra.mxu0 0.0
  %9370 = vmatprep.subr.mxu0 0.0
  %9371 = vmatpush1.msra.mxu0 0.0
  %9372 = vmatprep.subr.mxu0 0.0
  %9373 = vmatpush1.msra.mxu0 0.0
  %9374 = vmatprep.subr.mxu0 0.0
  %9375 = vmatpush1.msra.mxu0 0.0
  %9376 = vmatprep.subr.mxu0 0.0
  %9377 = vmatpush1.msra.mxu0 0.0
  %9378 = vmatprep.subr.mxu0 0.0
  %9379 = vmatpush1.msra.mxu0 0.0
  %9380 = vmatprep.subr.mxu0 0.0
  %9381 = vmatpush1.msra.mxu0 0.0
  %9382 = vmatprep.subr.mxu0 0.0
  %9383 = vmatpush1.msra.mxu0 0.0
  %9384 = vmatprep.subr.mxu0 0.0
  %9385 = vmatpush1.msra.mxu0 0.0
  %9386 = vmatprep.subr.mxu0 0.0
  %9387 = vmatpush1.msra.mxu0 0.0
  %9388 = vmatprep.subr.mxu0 0.0
  %9389 = vmatpush1.msra.mxu0 0.0
  %9390 = vmatprep.subr.mxu0 0.0
  %9391 = vmatpush1.msra.mxu0 0.0
  %9392 = vmatprep.subr.mxu0 0.0
  %9393 = vmatpush1.msra.mxu0 0.0
  %9394 = vmatprep.subr.mxu0 0.0
  %9395 = vmatpush1.msra.mxu0 0.0
  %9396 = vmatprep.subr.mxu0 0.0
  %9397 = vmatpush1.msra.mxu0 0.0
  %9398 = vmatprep.subr.mxu0 0.0
  %9399 = vmatpush1.msra.mxu0 0.0
  %9400 = vmatprep.subr.mxu0 0.0
  %9401 = vmatpush1.msra.mxu0 0.0
  %9402 = vmatprep.subr.mxu0 0.0
  %9403 = vmatpush1.msra.mxu0 0.0
  %9404 = vmatprep.subr.mxu0 0.0
  %9405 = vmatpush1.msra.mxu0 0.0
  %9406 = vmatprep.mubr.f32.mxu0 0.0
  %v9407 = vand.u32 %v9025, 4294901760
  %9408 = vmatmul.mubr.f32.gmra.mrb[0].mxu0 %v9407
  %v9409 = vpop.f32.mrb[0].mxu0
  %v9410 = vadd.f32 %v9333, %v9409
  %v9411 = vpop.f32.mrb[0].mxu0
  %9412 = vdwg.mxu0
  %9413 = vmatprep.subr.mxu0 0.0
  %v9414 = vand.u32 %v5568, 4294901760
  %9415 = vmatpush1.msra.mxu0 %v9414
  %9416 = vmatprep.subr.mxu0 0.0
  %v9417 = vand.u32 %v5569, 4294901760
  %9418 = vmatpush1.msra.mxu0 %v9417
  %9419 = vmatprep.subr.mxu0 0.0
  %9420 = vmatpush1.msra.mxu0 0.0
  %9421 = vmatprep.subr.mxu0 0.0
  %9422 = vmatpush1.msra.mxu0 0.0
  %9423 = vmatprep.subr.mxu0 0.0
  %9424 = vmatpush1.msra.mxu0 0.0
  %9425 = vmatprep.subr.mxu0 0.0
  %9426 = vmatpush1.msra.mxu0 0.0
  %9427 = vmatprep.subr.mxu0 0.0
  %9428 = vmatpush1.msra.mxu0 0.0
  %9429 = vmatprep.subr.mxu0 0.0
  %9430 = vmatpush1.msra.mxu0 0.0
  %9431 = vmatprep.subr.mxu0 0.0
  %9432 = vmatpush1.msra.mxu0 0.0
  %9433 = vmatprep.subr.mxu0 0.0
  %9434 = vmatpush1.msra.mxu0 0.0
  %9435 = vmatprep.subr.mxu0 0.0
  %9436 = vmatpush1.msra.mxu0 0.0
  %9437 = vmatprep.subr.mxu0 0.0
  %9438 = vmatpush1.msra.mxu0 0.0
  %9439 = vmatprep.subr.mxu0 0.0
  %9440 = vmatpush1.msra.mxu0 0.0
  %9441 = vmatprep.subr.mxu0 0.0
  %9442 = vmatpush1.msra.mxu0 0.0
  %9443 = vmatprep.subr.mxu0 0.0
  %9444 = vmatpush1.msra.mxu0 0.0
  %9445 = vmatprep.subr.mxu0 0.0
  %9446 = vmatpush1.msra.mxu0 0.0
  %9447 = vmatprep.subr.mxu0 0.0
  %9448 = vmatpush1.msra.mxu0 0.0
  %9449 = vmatprep.subr.mxu0 0.0
  %9450 = vmatpush1.msra.mxu0 0.0
  %9451 = vmatprep.subr.mxu0 0.0
  %9452 = vmatpush1.msra.mxu0 0.0
  %9453 = vmatprep.subr.mxu0 0.0
  %9454 = vmatpush1.msra.mxu0 0.0
  %9455 = vmatprep.subr.mxu0 0.0
  %9456 = vmatpush1.msra.mxu0 0.0
  %9457 = vmatprep.subr.mxu0 0.0
  %9458 = vmatpush1.msra.mxu0 0.0
  %9459 = vmatprep.subr.mxu0 0.0
  %9460 = vmatpush1.msra.mxu0 0.0
  %9461 = vmatprep.subr.mxu0 0.0
  %9462 = vmatpush1.msra.mxu0 0.0
  %9463 = vmatprep.subr.mxu0 0.0
  %9464 = vmatpush1.msra.mxu0 0.0
  %9465 = vmatprep.subr.mxu0 0.0
  %9466 = vmatpush1.msra.mxu0 0.0
  %9467 = vmatprep.subr.mxu0 0.0
  %9468 = vmatpush1.msra.mxu0 0.0
  %9469 = vmatprep.subr.mxu0 0.0
  %9470 = vmatpush1.msra.mxu0 0.0
  %9471 = vmatprep.subr.mxu0 0.0
  %9472 = vmatpush1.msra.mxu0 0.0
  %9473 = vmatprep.subr.mxu0 0.0
  %9474 = vmatpush1.msra.mxu0 0.0
  %9475 = vmatprep.subr.mxu0 0.0
  %9476 = vmatpush1.msra.mxu0 0.0
  %9477 = vmatprep.subr.mxu0 0.0
  %9478 = vmatpush1.msra.mxu0 0.0
  %9479 = vmatprep.mubr.f32.mxu0 0.0
  %v9480 = vand.u32 %v9025, 4294901760
  %9481 = vmatmul.mubr.f32.gmra.mrb[0].mxu0 %v9480
  %v9482 = vpop.f32.mrb[0].mxu0
  %v9483 = vadd.f32 %v9410, %v9482
  %v9484 = vpop.f32.mrb[0].mxu0
  %9485 = vdwg.mxu0
  %v9486 = vmul.f32 %v5538, %v9012
  %v9487 = vmul.f32 %v5549, %v9019
  %v9488 = vsub.f32 %v9486, %v9487
  %v9489 = vmul.f32 %v5560, %v9483
  %v9490 = vadd.f32 %v9488, %v9489
  %v9492 = vrot.slane %v9483, 2
  %v9494 = vmul.f32 %v5567, %v9492
  %v9495 = vsub.f32 %v9490, %v9494
  %v9496 = vmul.f32 %v5538, %v9019
  %v9497 = vmul.f32 %v5549, %v9012
  %v9498 = vadd.f32 %v9496, %v9497
  %v9499 = vmul.f32 %v5560, %v9492
  %v9500 = vadd.f32 %v9498, %v9499
  %v9501 = vmul.f32 %v5567, %v9483
  %v9502 = vadd.f32 %v9500, %v9501
  %v9504 = vrot.slane %v9502, 6
  %v9506 = vsel %vm33, %v9495, %v9504
  %v9508 = vsel %vm5622, %v9506, 0
  %9510 = vmatprep.subr.mxu0 0.0
  %v9511 = vand.u32 %v5616, 4294901760
  %9512 = vmatpush1.msra.mxu0 %v9511
  %9513 = vmatprep.subr.mxu0 0.0
  %v9514 = vand.u32 %v5617, 4294901760
  %9515 = vmatpush1.msra.mxu0 %v9514
  %9516 = vmatprep.subr.mxu0 0.0
  %9517 = vmatpush1.msra.mxu0 0.0
  %9518 = vmatprep.subr.mxu0 0.0
  %9519 = vmatpush1.msra.mxu0 0.0
  %9520 = vmatprep.subr.mxu0 0.0
  %9521 = vmatpush1.msra.mxu0 0.0
  %9522 = vmatprep.subr.mxu0 0.0
  %9523 = vmatpush1.msra.mxu0 0.0
  %9524 = vmatprep.subr.mxu0 0.0
  %9525 = vmatpush1.msra.mxu0 0.0
  %9526 = vmatprep.subr.mxu0 0.0
  %9527 = vmatpush1.msra.mxu0 0.0
  %9528 = vmatprep.subr.mxu0 0.0
  %9529 = vmatpush1.msra.mxu0 0.0
  %9530 = vmatprep.subr.mxu0 0.0
  %9531 = vmatpush1.msra.mxu0 0.0
  %9532 = vmatprep.subr.mxu0 0.0
  %9533 = vmatpush1.msra.mxu0 0.0
  %9534 = vmatprep.subr.mxu0 0.0
  %9535 = vmatpush1.msra.mxu0 0.0
  %9536 = vmatprep.subr.mxu0 0.0
  %9537 = vmatpush1.msra.mxu0 0.0
  %9538 = vmatprep.subr.mxu0 0.0
  %9539 = vmatpush1.msra.mxu0 0.0
  %9540 = vmatprep.subr.mxu0 0.0
  %9541 = vmatpush1.msra.mxu0 0.0
  %9542 = vmatprep.subr.mxu0 0.0
  %9543 = vmatpush1.msra.mxu0 0.0
  %9544 = vmatprep.subr.mxu0 0.0
  %9545 = vmatpush1.msra.mxu0 0.0
  %9546 = vmatprep.subr.mxu0 0.0
  %9547 = vmatpush1.msra.mxu0 0.0
  %9548 = vmatprep.subr.mxu0 0.0
  %9549 = vmatpush1.msra.mxu0 0.0
  %9550 = vmatprep.subr.mxu0 0.0
  %9551 = vmatpush1.msra.mxu0 0.0
  %9552 = vmatprep.subr.mxu0 0.0
  %9553 = vmatpush1.msra.mxu0 0.0
  %9554 = vmatprep.subr.mxu0 0.0
  %9555 = vmatpush1.msra.mxu0 0.0
  %9556 = vmatprep.subr.mxu0 0.0
  %9557 = vmatpush1.msra.mxu0 0.0
  %9558 = vmatprep.subr.mxu0 0.0
  %9559 = vmatpush1.msra.mxu0 0.0
  %9560 = vmatprep.subr.mxu0 0.0
  %9561 = vmatpush1.msra.mxu0 0.0
  %9562 = vmatprep.subr.mxu0 0.0
  %9563 = vmatpush1.msra.mxu0 0.0
  %9564 = vmatprep.subr.mxu0 0.0
  %9565 = vmatpush1.msra.mxu0 0.0
  %9566 = vmatprep.subr.mxu0 0.0
  %9567 = vmatpush1.msra.mxu0 0.0
  %9568 = vmatprep.subr.mxu0 0.0
  %9569 = vmatpush1.msra.mxu0 0.0
  %9570 = vmatprep.subr.mxu0 0.0
  %9571 = vmatpush1.msra.mxu0 0.0
  %9572 = vmatprep.subr.mxu0 0.0
  %9573 = vmatpush1.msra.mxu0 0.0
  %9574 = vmatprep.subr.mxu0 0.0
  %9575 = vmatpush1.msra.mxu0 0.0
  %9576 = vmatprep.mubr.f32.mxu0 0.0
  %v9577 = vand.u32 %v9508, 4294901760
  %v9578 = vsub.f32 %v9508, %v9577
  %v9579 = vand.u32 %v9578, 4294901760
  %v9580 = vsub.f32 %v9578, %v9579
  %v9581 = vand.u32 %v9580, 4294901760
  %9582 = vmatmul.mubr.f32.gmra.mrb[0].mxu0 %v9581
  %v9583 = vpop.f32.mrb[0].mxu0
  %v9584 = vadd.f32 0.0, %v9583
  %v9585 = vpop.f32.mrb[0].mxu0
  %9586 = vdwg.mxu0
  %9587 = vmatprep.subr.mxu0 0.0
  %v9588 = vand.u32 %v5616, 4294901760
  %v9589 = vsub.f32 %v5616, %v9588
  %v9590 = vand.u32 %v9589, 4294901760
  %v9591 = vsub.f32 %v9589, %v9590
  %v9592 = vand.u32 %v9591, 4294901760
  %9593 = vmatpush1.msra.mxu0 %v9592
  %9594 = vmatprep.subr.mxu0 0.0
  %v9595 = vand.u32 %v5617, 4294901760
  %v9596 = vsub.f32 %v5617, %v9595
  %v9597 = vand.u32 %v9596, 4294901760
  %v9598 = vsub.f32 %v9596, %v9597
  %v9599 = vand.u32 %v9598, 4294901760
  %9600 = vmatpush1.msra.mxu0 %v9599
  %9601 = vmatprep.subr.mxu0 0.0
  %9602 = vmatpush1.msra.mxu0 0.0
  %9603 = vmatprep.subr.mxu0 0.0
  %9604 = vmatpush1.msra.mxu0 0.0
  %9605 = vmatprep.subr.mxu0 0.0
  %9606 = vmatpush1.msra.mxu0 0.0
  %9607 = vmatprep.subr.mxu0 0.0
  %9608 = vmatpush1.msra.mxu0 0.0
  %9609 = vmatprep.subr.mxu0 0.0
  %9610 = vmatpush1.msra.mxu0 0.0
  %9611 = vmatprep.subr.mxu0 0.0
  %9612 = vmatpush1.msra.mxu0 0.0
  %9613 = vmatprep.subr.mxu0 0.0
  %9614 = vmatpush1.msra.mxu0 0.0
  %9615 = vmatprep.subr.mxu0 0.0
  %9616 = vmatpush1.msra.mxu0 0.0
  %9617 = vmatprep.subr.mxu0 0.0
  %9618 = vmatpush1.msra.mxu0 0.0
  %9619 = vmatprep.subr.mxu0 0.0
  %9620 = vmatpush1.msra.mxu0 0.0
  %9621 = vmatprep.subr.mxu0 0.0
  %9622 = vmatpush1.msra.mxu0 0.0
  %9623 = vmatprep.subr.mxu0 0.0
  %9624 = vmatpush1.msra.mxu0 0.0
  %9625 = vmatprep.subr.mxu0 0.0
  %9626 = vmatpush1.msra.mxu0 0.0
  %9627 = vmatprep.subr.mxu0 0.0
  %9628 = vmatpush1.msra.mxu0 0.0
  %9629 = vmatprep.subr.mxu0 0.0
  %9630 = vmatpush1.msra.mxu0 0.0
  %9631 = vmatprep.subr.mxu0 0.0
  %9632 = vmatpush1.msra.mxu0 0.0
  %9633 = vmatprep.subr.mxu0 0.0
  %9634 = vmatpush1.msra.mxu0 0.0
  %9635 = vmatprep.subr.mxu0 0.0
  %9636 = vmatpush1.msra.mxu0 0.0
  %9637 = vmatprep.subr.mxu0 0.0
  %9638 = vmatpush1.msra.mxu0 0.0
  %9639 = vmatprep.subr.mxu0 0.0
  %9640 = vmatpush1.msra.mxu0 0.0
  %9641 = vmatprep.subr.mxu0 0.0
  %9642 = vmatpush1.msra.mxu0 0.0
  %9643 = vmatprep.subr.mxu0 0.0
  %9644 = vmatpush1.msra.mxu0 0.0
  %9645 = vmatprep.subr.mxu0 0.0
  %9646 = vmatpush1.msra.mxu0 0.0
  %9647 = vmatprep.subr.mxu0 0.0
  %9648 = vmatpush1.msra.mxu0 0.0
  %9649 = vmatprep.subr.mxu0 0.0
  %9650 = vmatpush1.msra.mxu0 0.0
  %9651 = vmatprep.subr.mxu0 0.0
  %9652 = vmatpush1.msra.mxu0 0.0
  %9653 = vmatprep.subr.mxu0 0.0
  %9654 = vmatpush1.msra.mxu0 0.0
  %9655 = vmatprep.subr.mxu0 0.0
  %9656 = vmatpush1.msra.mxu0 0.0
  %9657 = vmatprep.subr.mxu0 0.0
  %9658 = vmatpush1.msra.mxu0 0.0
  %9659 = vmatprep.subr.mxu0 0.0
  %9660 = vmatpush1.msra.mxu0 0.0
  %9661 = vmatprep.mubr.f32.mxu0 0.0
  %v9662 = vand.u32 %v9508, 4294901760
  %9663 = vmatmul.mubr.f32.gmra.mrb[0].mxu0 %v9662
  %v9664 = vpop.f32.mrb[0].mxu0
  %v9665 = vadd.f32 %v9584, %v9664
  %v9666 = vpop.f32.mrb[0].mxu0
  %9667 = vdwg.mxu0
  %9668 = vmatprep.subr.mxu0 0.0
  %v9669 = vand.u32 %v5616, 4294901760
  %v9670 = vsub.f32 %v5616, %v9669
  %9671 = vmatpush1.msra.mxu0 %v9670
  %9672 = vmatprep.subr.mxu0 0.0
  %v9673 = vand.u32 %v5617, 4294901760
  %v9674 = vsub.f32 %v5617, %v9673
  %9675 = vmatpush1.msra.mxu0 %v9674
  %9676 = vmatprep.subr.mxu0 0.0
  %9677 = vmatpush1.msra.mxu0 0.0
  %9678 = vmatprep.subr.mxu0 0.0
  %9679 = vmatpush1.msra.mxu0 0.0
  %9680 = vmatprep.subr.mxu0 0.0
  %9681 = vmatpush1.msra.mxu0 0.0
  %9682 = vmatprep.subr.mxu0 0.0
  %9683 = vmatpush1.msra.mxu0 0.0
  %9684 = vmatprep.subr.mxu0 0.0
  %9685 = vmatpush1.msra.mxu0 0.0
  %9686 = vmatprep.subr.mxu0 0.0
  %9687 = vmatpush1.msra.mxu0 0.0
  %9688 = vmatprep.subr.mxu0 0.0
  %9689 = vmatpush1.msra.mxu0 0.0
  %9690 = vmatprep.subr.mxu0 0.0
  %9691 = vmatpush1.msra.mxu0 0.0
  %9692 = vmatprep.subr.mxu0 0.0
  %9693 = vmatpush1.msra.mxu0 0.0
  %9694 = vmatprep.subr.mxu0 0.0
  %9695 = vmatpush1.msra.mxu0 0.0
  %9696 = vmatprep.subr.mxu0 0.0
  %9697 = vmatpush1.msra.mxu0 0.0
  %9698 = vmatprep.subr.mxu0 0.0
  %9699 = vmatpush1.msra.mxu0 0.0
  %9700 = vmatprep.subr.mxu0 0.0
  %9701 = vmatpush1.msra.mxu0 0.0
  %9702 = vmatprep.subr.mxu0 0.0
  %9703 = vmatpush1.msra.mxu0 0.0
  %9704 = vmatprep.subr.mxu0 0.0
  %9705 = vmatpush1.msra.mxu0 0.0
  %9706 = vmatprep.subr.mxu0 0.0
  %9707 = vmatpush1.msra.mxu0 0.0
  %9708 = vmatprep.subr.mxu0 0.0
  %9709 = vmatpush1.msra.mxu0 0.0
  %9710 = vmatprep.subr.mxu0 0.0
  %9711 = vmatpush1.msra.mxu0 0.0
  %9712 = vmatprep.subr.mxu0 0.0
  %9713 = vmatpush1.msra.mxu0 0.0
  %9714 = vmatprep.subr.mxu0 0.0
  %9715 = vmatpush1.msra.mxu0 0.0
  %9716 = vmatprep.subr.mxu0 0.0
  %9717 = vmatpush1.msra.mxu0 0.0
  %9718 = vmatprep.subr.mxu0 0.0
  %9719 = vmatpush1.msra.mxu0 0.0
  %9720 = vmatprep.subr.mxu0 0.0
  %9721 = vmatpush1.msra.mxu0 0.0
  %9722 = vmatprep.subr.mxu0 0.0
  %9723 = vmatpush1.msra.mxu0 0.0
  %9724 = vmatprep.subr.mxu0 0.0
  %9725 = vmatpush1.msra.mxu0 0.0
  %9726 = vmatprep.subr.mxu0 0.0
  %9727 = vmatpush1.msra.mxu0 0.0
  %9728 = vmatprep.subr.mxu0 0.0
  %9729 = vmatpush1.msra.mxu0 0.0
  %9730 = vmatprep.subr.mxu0 0.0
  %9731 = vmatpush1.msra.mxu0 0.0
  %9732 = vmatprep.subr.mxu0 0.0
  %9733 = vmatpush1.msra.mxu0 0.0
  %9734 = vmatprep.subr.mxu0 0.0
  %9735 = vmatpush1.msra.mxu0 0.0
  %9736 = vmatprep.mubr.f32.mxu0 0.0
  %v9737 = vand.u32 %v9508, 4294901760
  %v9738 = vsub.f32 %v9508, %v9737
  %9739 = vmatmul.mubr.f32.gmra.mrb[0].mxu0 %v9738
  %v9740 = vpop.f32.mrb[0].mxu0
  %v9741 = vadd.f32 %v9665, %v9740
  %v9742 = vpop.f32.mrb[0].mxu0
  %9743 = vdwg.mxu0
  %9744 = vmatprep.subr.mxu0 0.0
  %v9745 = vand.u32 %v5616, 4294901760
  %9746 = vmatpush1.msra.mxu0 %v9745
  %9747 = vmatprep.subr.mxu0 0.0
  %v9748 = vand.u32 %v5617, 4294901760
  %9749 = vmatpush1.msra.mxu0 %v9748
  %9750 = vmatprep.subr.mxu0 0.0
  %9751 = vmatpush1.msra.mxu0 0.0
  %9752 = vmatprep.subr.mxu0 0.0
  %9753 = vmatpush1.msra.mxu0 0.0
  %9754 = vmatprep.subr.mxu0 0.0
  %9755 = vmatpush1.msra.mxu0 0.0
  %9756 = vmatprep.subr.mxu0 0.0
  %9757 = vmatpush1.msra.mxu0 0.0
  %9758 = vmatprep.subr.mxu0 0.0
  %9759 = vmatpush1.msra.mxu0 0.0
  %9760 = vmatprep.subr.mxu0 0.0
  %9761 = vmatpush1.msra.mxu0 0.0
  %9762 = vmatprep.subr.mxu0 0.0
  %9763 = vmatpush1.msra.mxu0 0.0
  %9764 = vmatprep.subr.mxu0 0.0
  %9765 = vmatpush1.msra.mxu0 0.0
  %9766 = vmatprep.subr.mxu0 0.0
  %9767 = vmatpush1.msra.mxu0 0.0
  %9768 = vmatprep.subr.mxu0 0.0
  %9769 = vmatpush1.msra.mxu0 0.0
  %9770 = vmatprep.subr.mxu0 0.0
  %9771 = vmatpush1.msra.mxu0 0.0
  %9772 = vmatprep.subr.mxu0 0.0
  %9773 = vmatpush1.msra.mxu0 0.0
  %9774 = vmatprep.subr.mxu0 0.0
  %9775 = vmatpush1.msra.mxu0 0.0
  %9776 = vmatprep.subr.mxu0 0.0
  %9777 = vmatpush1.msra.mxu0 0.0
  %9778 = vmatprep.subr.mxu0 0.0
  %9779 = vmatpush1.msra.mxu0 0.0
  %9780 = vmatprep.subr.mxu0 0.0
  %9781 = vmatpush1.msra.mxu0 0.0
  %9782 = vmatprep.subr.mxu0 0.0
  %9783 = vmatpush1.msra.mxu0 0.0
  %9784 = vmatprep.subr.mxu0 0.0
  %9785 = vmatpush1.msra.mxu0 0.0
  %9786 = vmatprep.subr.mxu0 0.0
  %9787 = vmatpush1.msra.mxu0 0.0
  %9788 = vmatprep.subr.mxu0 0.0
  %9789 = vmatpush1.msra.mxu0 0.0
  %9790 = vmatprep.subr.mxu0 0.0
  %9791 = vmatpush1.msra.mxu0 0.0
  %9792 = vmatprep.subr.mxu0 0.0
  %9793 = vmatpush1.msra.mxu0 0.0
  %9794 = vmatprep.subr.mxu0 0.0
  %9795 = vmatpush1.msra.mxu0 0.0
  %9796 = vmatprep.subr.mxu0 0.0
  %9797 = vmatpush1.msra.mxu0 0.0
  %9798 = vmatprep.subr.mxu0 0.0
  %9799 = vmatpush1.msra.mxu0 0.0
  %9800 = vmatprep.subr.mxu0 0.0
  %9801 = vmatpush1.msra.mxu0 0.0
  %9802 = vmatprep.subr.mxu0 0.0
  %9803 = vmatpush1.msra.mxu0 0.0
  %9804 = vmatprep.subr.mxu0 0.0
  %9805 = vmatpush1.msra.mxu0 0.0
  %9806 = vmatprep.subr.mxu0 0.0
  %9807 = vmatpush1.msra.mxu0 0.0
  %9808 = vmatprep.subr.mxu0 0.0
  %9809 = vmatpush1.msra.mxu0 0.0
  %9810 = vmatprep.mubr.f32.mxu0 0.0
  %v9811 = vand.u32 %v9508, 4294901760
  %v9812 = vsub.f32 %v9508, %v9811
  %v9813 = vand.u32 %v9812, 4294901760
  %9814 = vmatmul.mubr.f32.gmra.mrb[0].mxu0 %v9813
  %v9815 = vpop.f32.mrb[0].mxu0
  %v9816 = vadd.f32 %v9741, %v9815
  %v9817 = vpop.f32.mrb[0].mxu0
  %9818 = vdwg.mxu0
  %9819 = vmatprep.subr.mxu0 0.0
  %v9820 = vand.u32 %v5616, 4294901760
  %v9821 = vsub.f32 %v5616, %v9820
  %v9822 = vand.u32 %v9821, 4294901760
  %9823 = vmatpush1.msra.mxu0 %v9822
  %9824 = vmatprep.subr.mxu0 0.0
  %v9825 = vand.u32 %v5617, 4294901760
  %v9826 = vsub.f32 %v5617, %v9825
  %v9827 = vand.u32 %v9826, 4294901760
  %9828 = vmatpush1.msra.mxu0 %v9827
  %9829 = vmatprep.subr.mxu0 0.0
  %9830 = vmatpush1.msra.mxu0 0.0
  %9831 = vmatprep.subr.mxu0 0.0
  %9832 = vmatpush1.msra.mxu0 0.0
  %9833 = vmatprep.subr.mxu0 0.0
  %9834 = vmatpush1.msra.mxu0 0.0
  %9835 = vmatprep.subr.mxu0 0.0
  %9836 = vmatpush1.msra.mxu0 0.0
  %9837 = vmatprep.subr.mxu0 0.0
  %9838 = vmatpush1.msra.mxu0 0.0
  %9839 = vmatprep.subr.mxu0 0.0
  %9840 = vmatpush1.msra.mxu0 0.0
  %9841 = vmatprep.subr.mxu0 0.0
  %9842 = vmatpush1.msra.mxu0 0.0
  %9843 = vmatprep.subr.mxu0 0.0
  %9844 = vmatpush1.msra.mxu0 0.0
  %9845 = vmatprep.subr.mxu0 0.0
  %9846 = vmatpush1.msra.mxu0 0.0
  %9847 = vmatprep.subr.mxu0 0.0
  %9848 = vmatpush1.msra.mxu0 0.0
  %9849 = vmatprep.subr.mxu0 0.0
  %9850 = vmatpush1.msra.mxu0 0.0
  %9851 = vmatprep.subr.mxu0 0.0
  %9852 = vmatpush1.msra.mxu0 0.0
  %9853 = vmatprep.subr.mxu0 0.0
  %9854 = vmatpush1.msra.mxu0 0.0
  %9855 = vmatprep.subr.mxu0 0.0
  %9856 = vmatpush1.msra.mxu0 0.0
  %9857 = vmatprep.subr.mxu0 0.0
  %9858 = vmatpush1.msra.mxu0 0.0
  %9859 = vmatprep.subr.mxu0 0.0
  %9860 = vmatpush1.msra.mxu0 0.0
  %9861 = vmatprep.subr.mxu0 0.0
  %9862 = vmatpush1.msra.mxu0 0.0
  %9863 = vmatprep.subr.mxu0 0.0
  %9864 = vmatpush1.msra.mxu0 0.0
  %9865 = vmatprep.subr.mxu0 0.0
  %9866 = vmatpush1.msra.mxu0 0.0
  %9867 = vmatprep.subr.mxu0 0.0
  %9868 = vmatpush1.msra.mxu0 0.0
  %9869 = vmatprep.subr.mxu0 0.0
  %9870 = vmatpush1.msra.mxu0 0.0
  %9871 = vmatprep.subr.mxu0 0.0
  %9872 = vmatpush1.msra.mxu0 0.0
  %9873 = vmatprep.subr.mxu0 0.0
  %9874 = vmatpush1.msra.mxu0 0.0
  %9875 = vmatprep.subr.mxu0 0.0
  %9876 = vmatpush1.msra.mxu0 0.0
  %9877 = vmatprep.subr.mxu0 0.0
  %9878 = vmatpush1.msra.mxu0 0.0
  %9879 = vmatprep.subr.mxu0 0.0
  %9880 = vmatpush1.msra.mxu0 0.0
  %9881 = vmatprep.subr.mxu0 0.0
  %9882 = vmatpush1.msra.mxu0 0.0
  %9883 = vmatprep.subr.mxu0 0.0
  %9884 = vmatpush1.msra.mxu0 0.0
  %9885 = vmatprep.subr.mxu0 0.0
  %9886 = vmatpush1.msra.mxu0 0.0
  %9887 = vmatprep.subr.mxu0 0.0
  %9888 = vmatpush1.msra.mxu0 0.0
  %9889 = vmatprep.mubr.f32.mxu0 0.0
  %v9890 = vand.u32 %v9508, 4294901760
  %9891 = vmatmul.mubr.f32.gmra.mrb[0].mxu0 %v9890
  %v9892 = vpop.f32.mrb[0].mxu0
  %v9893 = vadd.f32 %v9816, %v9892
  %v9894 = vpop.f32.mrb[0].mxu0
  %9895 = vdwg.mxu0
  %9896 = vmatprep.subr.mxu0 0.0
  %v9897 = vand.u32 %v5616, 4294901760
  %9898 = vmatpush1.msra.mxu0 %v9897
  %9899 = vmatprep.subr.mxu0 0.0
  %v9900 = vand.u32 %v5617, 4294901760
  %9901 = vmatpush1.msra.mxu0 %v9900
  %9902 = vmatprep.subr.mxu0 0.0
  %9903 = vmatpush1.msra.mxu0 0.0
  %9904 = vmatprep.subr.mxu0 0.0
  %9905 = vmatpush1.msra.mxu0 0.0
  %9906 = vmatprep.subr.mxu0 0.0
  %9907 = vmatpush1.msra.mxu0 0.0
  %9908 = vmatprep.subr.mxu0 0.0
  %9909 = vmatpush1.msra.mxu0 0.0
  %9910 = vmatprep.subr.mxu0 0.0
  %9911 = vmatpush1.msra.mxu0 0.0
  %9912 = vmatprep.subr.mxu0 0.0
  %9913 = vmatpush1.msra.mxu0 0.0
  %9914 = vmatprep.subr.mxu0 0.0
  %9915 = vmatpush1.msra.mxu0 0.0
  %9916 = vmatprep.subr.mxu0 0.0
  %9917 = vmatpush1.msra.mxu0 0.0
  %9918 = vmatprep.subr.mxu0 0.0
  %9919 = vmatpush1.msra.mxu0 0.0
  %9920 = vmatprep.subr.mxu0 0.0
  %9921 = vmatpush1.msra.mxu0 0.0
  %9922 = vmatprep.subr.mxu0 0.0
  %9923 = vmatpush1.msra.mxu0 0.0
  %9924 = vmatprep.subr.mxu0 0.0
  %9925 = vmatpush1.msra.mxu0 0.0
  %9926 = vmatprep.subr.mxu0 0.0
  %9927 = vmatpush1.msra.mxu0 0.0
  %9928 = vmatprep.subr.mxu0 0.0
  %9929 = vmatpush1.msra.mxu0 0.0
  %9930 = vmatprep.subr.mxu0 0.0
  %9931 = vmatpush1.msra.mxu0 0.0
  %9932 = vmatprep.subr.mxu0 0.0
  %9933 = vmatpush1.msra.mxu0 0.0
  %9934 = vmatprep.subr.mxu0 0.0
  %9935 = vmatpush1.msra.mxu0 0.0
  %9936 = vmatprep.subr.mxu0 0.0
  %9937 = vmatpush1.msra.mxu0 0.0
  %9938 = vmatprep.subr.mxu0 0.0
  %9939 = vmatpush1.msra.mxu0 0.0
  %9940 = vmatprep.subr.mxu0 0.0
  %9941 = vmatpush1.msra.mxu0 0.0
  %9942 = vmatprep.subr.mxu0 0.0
  %9943 = vmatpush1.msra.mxu0 0.0
  %9944 = vmatprep.subr.mxu0 0.0
  %9945 = vmatpush1.msra.mxu0 0.0
  %9946 = vmatprep.subr.mxu0 0.0
  %9947 = vmatpush1.msra.mxu0 0.0
  %9948 = vmatprep.subr.mxu0 0.0
  %9949 = vmatpush1.msra.mxu0 0.0
  %9950 = vmatprep.subr.mxu0 0.0
  %9951 = vmatpush1.msra.mxu0 0.0
  %9952 = vmatprep.subr.mxu0 0.0
  %9953 = vmatpush1.msra.mxu0 0.0
  %9954 = vmatprep.subr.mxu0 0.0
  %9955 = vmatpush1.msra.mxu0 0.0
  %9956 = vmatprep.subr.mxu0 0.0
  %9957 = vmatpush1.msra.mxu0 0.0
  %9958 = vmatprep.subr.mxu0 0.0
  %9959 = vmatpush1.msra.mxu0 0.0
  %9960 = vmatprep.subr.mxu0 0.0
  %9961 = vmatpush1.msra.mxu0 0.0
  %9962 = vmatprep.mubr.f32.mxu0 0.0
  %v9963 = vand.u32 %v9508, 4294901760
  %9964 = vmatmul.mubr.f32.gmra.mrb[0].mxu0 %v9963
  %v9965 = vpop.f32.mrb[0].mxu0
  %v9966 = vadd.f32 %v9893, %v9965
  %v9967 = vpop.f32.mrb[0].mxu0
  %9968 = vdwg.mxu0
  %v9969 = vmul.f32 %v5586, %v9495
  %v9970 = vmul.f32 %v5597, %v9502
  %v9971 = vsub.f32 %v9969, %v9970
  %v9972 = vmul.f32 %v5608, %v9966
  %v9973 = vadd.f32 %v9971, %v9972
  %v9975 = vrot.slane %v9966, 2
  %v9977 = vmul.f32 %v5615, %v9975
  %v9978 = vsub.f32 %v9973, %v9977
  %v9979 = vmul.f32 %v5586, %v9502
  %v9980 = vmul.f32 %v5597, %v9495
  %v9981 = vadd.f32 %v9979, %v9980
  %v9982 = vmul.f32 %v5608, %v9975
  %v9983 = vadd.f32 %v9981, %v9982
  %v9984 = vmul.f32 %v5615, %v9966
  %v9985 = vadd.f32 %v9983, %v9984
  %v9986 = vld [vmem:[%s1 + $0xa0] sm:$0xff]
  %v9987 = vld [vmem:[%s1 + $0xa8] sm:$0xff]
  %v9988 = vld [vmem:[%s1 + $0xb0] sm:$0xff]
  %v9989 = vld [vmem:[%s1 + $0xb8] sm:$0xff]
  %9991 = vrot.lane.b32.xlu0 %v9985, 16
  %v9992 = vpop.permute.xlu0 %9991
  %v9994 = vsel %vm5622, %v9978, %v9992
  %v9996 = vsel %vm7560, %v9994, 0
  %9998 = vmatprep.subr.mxu0 0.0
  %v9999 = vand.u32 %v9986, 4294901760
  %10000 = vmatpush1.msra.mxu0 %v9999
  %10001 = vmatprep.subr.mxu0 0.0
  %v10002 = vand.u32 %v9987, 4294901760
  %10003 = vmatpush1.msra.mxu0 %v10002
  %10004 = vmatprep.subr.mxu0 0.0
  %v10005 = vand.u32 %v9988, 4294901760
  %10006 = vmatpush1.msra.mxu0 %v10005
  %10007 = vmatprep.subr.mxu0 0.0
  %v10008 = vand.u32 %v9989, 4294901760
  %10009 = vmatpush1.msra.mxu0 %v10008
  %10010 = vmatprep.subr.mxu0 0.0
  %10011 = vmatpush1.msra.mxu0 0.0
  %10012 = vmatprep.subr.mxu0 0.0
  %10013 = vmatpush1.msra.mxu0 0.0
  %10014 = vmatprep.subr.mxu0 0.0
  %10015 = vmatpush1.msra.mxu0 0.0
  %10016 = vmatprep.subr.mxu0 0.0
  %10017 = vmatpush1.msra.mxu0 0.0
  %10018 = vmatprep.subr.mxu0 0.0
  %10019 = vmatpush1.msra.mxu0 0.0
  %10020 = vmatprep.subr.mxu0 0.0
  %10021 = vmatpush1.msra.mxu0 0.0
  %10022 = vmatprep.subr.mxu0 0.0
  %10023 = vmatpush1.msra.mxu0 0.0
  %10024 = vmatprep.subr.mxu0 0.0
  %10025 = vmatpush1.msra.mxu0 0.0
  %10026 = vmatprep.subr.mxu0 0.0
  %10027 = vmatpush1.msra.mxu0 0.0
  %10028 = vmatprep.subr.mxu0 0.0
  %10029 = vmatpush1.msra.mxu0 0.0
  %10030 = vmatprep.subr.mxu0 0.0
  %10031 = vmatpush1.msra.mxu0 0.0
  %10032 = vmatprep.subr.mxu0 0.0
  %10033 = vmatpush1.msra.mxu0 0.0
  %10034 = vmatprep.subr.mxu0 0.0
  %10035 = vmatpush1.msra.mxu0 0.0
  %10036 = vmatprep.subr.mxu0 0.0
  %10037 = vmatpush1.msra.mxu0 0.0
  %10038 = vmatprep.subr.mxu0 0.0
  %10039 = vmatpush1.msra.mxu0 0.0
  %10040 = vmatprep.subr.mxu0 0.0
  %10041 = vmatpush1.msra.mxu0 0.0
  %10042 = vmatprep.subr.mxu0 0.0
  %10043 = vmatpush1.msra.mxu0 0.0
  %10044 = vmatprep.subr.mxu0 0.0
  %10045 = vmatpush1.msra.mxu0 0.0
  %10046 = vmatprep.subr.mxu0 0.0
  %10047 = vmatpush1.msra.mxu0 0.0
  %10048 = vmatprep.subr.mxu0 0.0
  %10049 = vmatpush1.msra.mxu0 0.0
  %10050 = vmatprep.subr.mxu0 0.0
  %10051 = vmatpush1.msra.mxu0 0.0
  %10052 = vmatprep.subr.mxu0 0.0
  %10053 = vmatpush1.msra.mxu0 0.0
  %10054 = vmatprep.subr.mxu0 0.0
  %10055 = vmatpush1.msra.mxu0 0.0
  %10056 = vmatprep.subr.mxu0 0.0
  %10057 = vmatpush1.msra.mxu0 0.0
  %10058 = vmatprep.subr.mxu0 0.0
  %10059 = vmatpush1.msra.mxu0 0.0
  %10060 = vmatprep.subr.mxu0 0.0
  %10061 = vmatpush1.msra.mxu0 0.0
  %10062 = vmatprep.subr.mxu0 0.0
  %10063 = vmatpush1.msra.mxu0 0.0
  %10064 = vmatprep.subr.mxu0 0.0
  %10065 = vmatpush1.msra.mxu0 0.0
  %10066 = vmatprep.mubr.f32.mxu0 0.0
  %v10067 = vand.u32 %v9996, 4294901760
  %v10068 = vsub.f32 %v9996, %v10067
  %v10069 = vand.u32 %v10068, 4294901760
  %v10070 = vsub.f32 %v10068, %v10069
  %v10071 = vand.u32 %v10070, 4294901760
  %10072 = vmatmul.mubr.f32.gmra.mrb[0].mxu0 %v10071
  %v10073 = vpop.f32.mrb[0].mxu0
  %v10074 = vadd.f32 0.0, %v10073
  %v10075 = vpop.f32.mrb[0].mxu0
  %10076 = vdwg.mxu0
  %10077 = vmatprep.subr.mxu0 0.0
  %v10078 = vand.u32 %v9986, 4294901760
  %v10079 = vsub.f32 %v9986, %v10078
  %v10080 = vand.u32 %v10079, 4294901760
  %v10081 = vsub.f32 %v10079, %v10080
  %v10082 = vand.u32 %v10081, 4294901760
  %10083 = vmatpush1.msra.mxu0 %v10082
  %10084 = vmatprep.subr.mxu0 0.0
  %v10085 = vand.u32 %v9987, 4294901760
  %v10086 = vsub.f32 %v9987, %v10085
  %v10087 = vand.u32 %v10086, 4294901760
  %v10088 = vsub.f32 %v10086, %v10087
  %v10089 = vand.u32 %v10088, 4294901760
  %10090 = vmatpush1.msra.mxu0 %v10089
  %10091 = vmatprep.subr.mxu0 0.0
  %v10092 = vand.u32 %v9988, 4294901760
  %v10093 = vsub.f32 %v9988, %v10092
  %v10094 = vand.u32 %v10093, 4294901760
  %v10095 = vsub.f32 %v10093, %v10094
  %v10096 = vand.u32 %v10095, 4294901760
  %10097 = vmatpush1.msra.mxu0 %v10096
  %10098 = vmatprep.subr.mxu0 0.0
  %v10099 = vand.u32 %v9989, 4294901760
  %v10100 = vsub.f32 %v9989, %v10099
  %v10101 = vand.u32 %v10100, 4294901760
  %v10102 = vsub.f32 %v10100, %v10101
  %v10103 = vand.u32 %v10102, 4294901760
  %10104 = vmatpush1.msra.mxu0 %v10103
  %10105 = vmatprep.subr.mxu0 0.0
  %10106 = vmatpush1.msra.mxu0 0.0
  %10107 = vmatprep.subr.mxu0 0.0
  %10108 = vmatpush1.msra.mxu0 0.0
  %10109 = vmatprep.subr.mxu0 0.0
  %10110 = vmatpush1.msra.mxu0 0.0
  %10111 = vmatprep.subr.mxu0 0.0
  %10112 = vmatpush1.msra.mxu0 0.0
  %10113 = vmatprep.subr.mxu0 0.0
  %10114 = vmatpush1.msra.mxu0 0.0
  %10115 = vmatprep.subr.mxu0 0.0
  %10116 = vmatpush1.msra.mxu0 0.0
  %10117 = vmatprep.subr.mxu0 0.0
  %10118 = vmatpush1.msra.mxu0 0.0
  %10119 = vmatprep.subr.mxu0 0.0
  %10120 = vmatpush1.msra.mxu0 0.0
  %10121 = vmatprep.subr.mxu0 0.0
  %10122 = vmatpush1.msra.mxu0 0.0
  %10123 = vmatprep.subr.mxu0 0.0
  %10124 = vmatpush1.msra.mxu0 0.0
  %10125 = vmatprep.subr.mxu0 0.0
  %10126 = vmatpush1.msra.mxu0 0.0
  %10127 = vmatprep.subr.mxu0 0.0
  %10128 = vmatpush1.msra.mxu0 0.0
  %10129 = vmatprep.subr.mxu0 0.0
  %10130 = vmatpush1.msra.mxu0 0.0
  %10131 = vmatprep.subr.mxu0 0.0
  %10132 = vmatpush1.msra.mxu0 0.0
  %10133 = vmatprep.subr.mxu0 0.0
  %10134 = vmatpush1.msra.mxu0 0.0
  %10135 = vmatprep.subr.mxu0 0.0
  %10136 = vmatpush1.msra.mxu0 0.0
  %10137 = vmatprep.subr.mxu0 0.0
  %10138 = vmatpush1.msra.mxu0 0.0
  %10139 = vmatprep.subr.mxu0 0.0
  %10140 = vmatpush1.msra.mxu0 0.0
  %10141 = vmatprep.subr.mxu0 0.0
  %10142 = vmatpush1.msra.mxu0 0.0
  %10143 = vmatprep.subr.mxu0 0.0
  %10144 = vmatpush1.msra.mxu0 0.0
  %10145 = vmatprep.subr.mxu0 0.0
  %10146 = vmatpush1.msra.mxu0 0.0
  %10147 = vmatprep.subr.mxu0 0.0
  %10148 = vmatpush1.msra.mxu0 0.0
  %10149 = vmatprep.subr.mxu0 0.0
  %10150 = vmatpush1.msra.mxu0 0.0
  %10151 = vmatprep.subr.mxu0 0.0
  %10152 = vmatpush1.msra.mxu0 0.0
  %10153 = vmatprep.subr.mxu0 0.0
  %10154 = vmatpush1.msra.mxu0 0.0
  %10155 = vmatprep.subr.mxu0 0.0
  %10156 = vmatpush1.msra.mxu0 0.0
  %10157 = vmatprep.subr.mxu0 0.0
  %10158 = vmatpush1.msra.mxu0 0.0
  %10159 = vmatprep.subr.mxu0 0.0
  %10160 = vmatpush1.msra.mxu0 0.0
  %10161 = vmatprep.mubr.f32.mxu0 0.0
  %v10162 = vand.u32 %v9996, 4294901760
  %10163 = vmatmul.mubr.f32.gmra.mrb[0].mxu0 %v10162
  %v10164 = vpop.f32.mrb[0].mxu0
  %v10165 = vadd.f32 %v10074, %v10164
  %v10166 = vpop.f32.mrb[0].mxu0
  %10167 = vdwg.mxu0
  %10168 = vmatprep.subr.mxu0 0.0
  %v10169 = vand.u32 %v9986, 4294901760
  %v10170 = vsub.f32 %v9986, %v10169
  %10171 = vmatpush1.msra.mxu0 %v10170
  %10172 = vmatprep.subr.mxu0 0.0
  %v10173 = vand.u32 %v9987, 4294901760
  %v10174 = vsub.f32 %v9987, %v10173
  %10175 = vmatpush1.msra.mxu0 %v10174
  %10176 = vmatprep.subr.mxu0 0.0
  %v10177 = vand.u32 %v9988, 4294901760
  %v10178 = vsub.f32 %v9988, %v10177
  %10179 = vmatpush1.msra.mxu0 %v10178
  %10180 = vmatprep.subr.mxu0 0.0
  %v10181 = vand.u32 %v9989, 4294901760
  %v10182 = vsub.f32 %v9989, %v10181
  %10183 = vmatpush1.msra.mxu0 %v10182
  %10184 = vmatprep.subr.mxu0 0.0
  %10185 = vmatpush1.msra.mxu0 0.0
  %10186 = vmatprep.subr.mxu0 0.0
  %10187 = vmatpush1.msra.mxu0 0.0
  %10188 = vmatprep.subr.mxu0 0.0
  %10189 = vmatpush1.msra.mxu0 0.0
  %10190 = vmatprep.subr.mxu0 0.0
  %10191 = vmatpush1.msra.mxu0 0.0
  %10192 = vmatprep.subr.mxu0 0.0
  %10193 = vmatpush1.msra.mxu0 0.0
  %10194 = vmatprep.subr.mxu0 0.0
  %10195 = vmatpush1.msra.mxu0 0.0
  %10196 = vmatprep.subr.mxu0 0.0
  %10197 = vmatpush1.msra.mxu0 0.0
  %10198 = vmatprep.subr.mxu0 0.0
  %10199 = vmatpush1.msra.mxu0 0.0
  %10200 = vmatprep.subr.mxu0 0.0
  %10201 = vmatpush1.msra.mxu0 0.0
  %10202 = vmatprep.subr.mxu0 0.0
  %10203 = vmatpush1.msra.mxu0 0.0
  %10204 = vmatprep.subr.mxu0 0.0
  %10205 = vmatpush1.msra.mxu0 0.0
  %10206 = vmatprep.subr.mxu0 0.0
  %10207 = vmatpush1.msra.mxu0 0.0
  %10208 = vmatprep.subr.mxu0 0.0
  %10209 = vmatpush1.msra.mxu0 0.0
  %10210 = vmatprep.subr.mxu0 0.0
  %10211 = vmatpush1.msra.mxu0 0.0
  %10212 = vmatprep.subr.mxu0 0.0
  %10213 = vmatpush1.msra.mxu0 0.0
  %10214 = vmatprep.subr.mxu0 0.0
  %10215 = vmatpush1.msra.mxu0 0.0
  %10216 = vmatprep.subr.mxu0 0.0
  %10217 = vmatpush1.msra.mxu0 0.0
  %10218 = vmatprep.subr.mxu0 0.0
  %10219 = vmatpush1.msra.mxu0 0.0
  %10220 = vmatprep.subr.mxu0 0.0
  %10221 = vmatpush1.msra.mxu0 0.0
  %10222 = vmatprep.subr.mxu0 0.0
  %10223 = vmatpush1.msra.mxu0 0.0
  %10224 = vmatprep.subr.mxu0 0.0
  %10225 = vmatpush1.msra.mxu0 0.0
  %10226 = vmatprep.subr.mxu0 0.0
  %10227 = vmatpush1.msra.mxu0 0.0
  %10228 = vmatprep.subr.mxu0 0.0
  %10229 = vmatpush1.msra.mxu0 0.0
  %10230 = vmatprep.subr.mxu0 0.0
  %10231 = vmatpush1.msra.mxu0 0.0
  %10232 = vmatprep.subr.mxu0 0.0
  %10233 = vmatpush1.msra.mxu0 0.0
  %10234 = vmatprep.subr.mxu0 0.0
  %10235 = vmatpush1.msra.mxu0 0.0
  %10236 = vmatprep.subr.mxu0 0.0
  %10237 = vmatpush1.msra.mxu0 0.0
  %10238 = vmatprep.subr.mxu0 0.0
  %10239 = vmatpush1.msra.mxu0 0.0
  %10240 = vmatprep.mubr.f32.mxu0 0.0
  %v10241 = vand.u32 %v9996, 4294901760
  %v10242 = vsub.f32 %v9996, %v10241
  %10243 = vmatmul.mubr.f32.gmra.mrb[0].mxu0 %v10242
  %v10244 = vpop.f32.mrb[0].mxu0
  %v10245 = vadd.f32 %v10165, %v10244
  %v10246 = vpop.f32.mrb[0].mxu0
  %10247 = vdwg.mxu0
  %10248 = vmatprep.subr.mxu0 0.0
  %v10249 = vand.u32 %v9986, 4294901760
  %10250 = vmatpush1.msra.mxu0 %v10249
  %10251 = vmatprep.subr.mxu0 0.0
  %v10252 = vand.u32 %v9987, 4294901760
  %10253 = vmatpush1.msra.mxu0 %v10252
  %10254 = vmatprep.subr.mxu0 0.0
  %v10255 = vand.u32 %v9988, 4294901760
  %10256 = vmatpush1.msra.mxu0 %v10255
  %10257 = vmatprep.subr.mxu0 0.0
  %v10258 = vand.u32 %v9989, 4294901760
  %10259 = vmatpush1.msra.mxu0 %v10258
  %10260 = vmatprep.subr.mxu0 0.0
  %10261 = vmatpush1.msra.mxu0 0.0
  %10262 = vmatprep.subr.mxu0 0.0
  %10263 = vmatpush1.msra.mxu0 0.0
  %10264 = vmatprep.subr.mxu0 0.0
  %10265 = vmatpush1.msra.mxu0 0.0
  %10266 = vmatprep.subr.mxu0 0.0
  %10267 = vmatpush1.msra.mxu0 0.0
  %10268 = vmatprep.subr.mxu0 0.0
  %10269 = vmatpush1.msra.mxu0 0.0
  %10270 = vmatprep.subr.mxu0 0.0
  %10271 = vmatpush1.msra.mxu0 0.0
  %10272 = vmatprep.subr.mxu0 0.0
  %10273 = vmatpush1.msra.mxu0 0.0
  %10274 = vmatprep.subr.mxu0 0.0
  %10275 = vmatpush1.msra.mxu0 0.0
  %10276 = vmatprep.subr.mxu0 0.0
  %10277 = vmatpush1.msra.mxu0 0.0
  %10278 = vmatprep.subr.mxu0 0.0
  %10279 = vmatpush1.msra.mxu0 0.0
  %10280 = vmatprep.subr.mxu0 0.0
  %10281 = vmatpush1.msra.mxu0 0.0
  %10282 = vmatprep.subr.mxu0 0.0
  %10283 = vmatpush1.msra.mxu0 0.0
  %10284 = vmatprep.subr.mxu0 0.0
  %10285 = vmatpush1.msra.mxu0 0.0
  %10286 = vmatprep.subr.mxu0 0.0
  %10287 = vmatpush1.msra.mxu0 0.0
  %10288 = vmatprep.subr.mxu0 0.0
  %10289 = vmatpush1.msra.mxu0 0.0
  %10290 = vmatprep.subr.mxu0 0.0
  %10291 = vmatpush1.msra.mxu0 0.0
  %10292 = vmatprep.subr.mxu0 0.0
  %10293 = vmatpush1.msra.mxu0 0.0
  %10294 = vmatprep.subr.mxu0 0.0
  %10295 = vmatpush1.msra.mxu0 0.0
  %10296 = vmatprep.subr.mxu0 0.0
  %10297 = vmatpush1.msra.mxu0 0.0
  %10298 = vmatprep.subr.mxu0 0.0
  %10299 = vmatpush1.msra.mxu0 0.0
  %10300 = vmatprep.subr.mxu0 0.0
  %10301 = vmatpush1.msra.mxu0 0.0
  %10302 = vmatprep.subr.mxu0 0.0
  %10303 = vmatpush1.msra.mxu0 0.0
  %10304 = vmatprep.subr.mxu0 0.0
  %10305 = vmatpush1.msra.mxu0 0.0
  %10306 = vmatprep.subr.mxu0 0.0
  %10307 = vmatpush1.msra.mxu0 0.0
  %10308 = vmatprep.subr.mxu0 0.0
  %10309 = vmatpush1.msra.mxu0 0.0
  %10310 = vmatprep.subr.mxu0 0.0
  %10311 = vmatpush1.msra.mxu0 0.0
  %10312 = vmatprep.subr.mxu0 0.0
  %10313 = vmatpush1.msra.mxu0 0.0
  %10314 = vmatprep.subr.mxu0 0.0
  %10315 = vmatpush1.msra.mxu0 0.0
  %10316 = vmatprep.mubr.f32.mxu0 0.0
  %v10317 = vand.u32 %v9996, 4294901760
  %v10318 = vsub.f32 %v9996, %v10317
  %v10319 = vand.u32 %v10318, 4294901760
  %10320 = vmatmul.mubr.f32.gmra.mrb[0].mxu0 %v10319
  %v10321 = vpop.f32.mrb[0].mxu0
  %v10322 = vadd.f32 %v10245, %v10321
  %v10323 = vpop.f32.mrb[0].mxu0
  %10324 = vdwg.mxu0
  %10325 = vmatprep.subr.mxu0 0.0
  %v10326 = vand.u32 %v9986, 4294901760
  %v10327 = vsub.f32 %v9986, %v10326
  %v10328 = vand.u32 %v10327, 4294901760
  %10329 = vmatpush1.msra.mxu0 %v10328
  %10330 = vmatprep.subr.mxu0 0.0
  %v10331 = vand.u32 %v9987, 4294901760
  %v10332 = vsub.f32 %v9987, %v10331
  %v10333 = vand.u32 %v10332, 4294901760
  %10334 = vmatpush1.msra.mxu0 %v10333
  %10335 = vmatprep.subr.mxu0 0.0
  %v10336 = vand.u32 %v9988, 4294901760
  %v10337 = vsub.f32 %v9988, %v10336
  %v10338 = vand.u32 %v10337, 4294901760
  %10339 = vmatpush1.msra.mxu0 %v10338
  %10340 = vmatprep.subr.mxu0 0.0
  %v10341 = vand.u32 %v9989, 4294901760
  %v10342 = vsub.f32 %v9989, %v10341
  %v10343 = vand.u32 %v10342, 4294901760
  %10344 = vmatpush1.msra.mxu0 %v10343
  %10345 = vmatprep.subr.mxu0 0.0
  %10346 = vmatpush1.msra.mxu0 0.0
  %10347 = vmatprep.subr.mxu0 0.0
  %10348 = vmatpush1.msra.mxu0 0.0
  %10349 = vmatprep.subr.mxu0 0.0
  %10350 = vmatpush1.msra.mxu0 0.0
  %10351 = vmatprep.subr.mxu0 0.0
  %10352 = vmatpush1.msra.mxu0 0.0
  %10353 = vmatprep.subr.mxu0 0.0
  %10354 = vmatpush1.msra.mxu0 0.0
  %10355 = vmatprep.subr.mxu0 0.0
  %10356 = vmatpush1.msra.mxu0 0.0
  %10357 = vmatprep.subr.mxu0 0.0
  %10358 = vmatpush1.msra.mxu0 0.0
  %10359 = vmatprep.subr.mxu0 0.0
  %10360 = vmatpush1.msra.mxu0 0.0
  %10361 = vmatprep.subr.mxu0 0.0
  %10362 = vmatpush1.msra.mxu0 0.0
  %10363 = vmatprep.subr.mxu0 0.0
  %10364 = vmatpush1.msra.mxu0 0.0
  %10365 = vmatprep.subr.mxu0 0.0
  %10366 = vmatpush1.msra.mxu0 0.0
  %10367 = vmatprep.subr.mxu0 0.0
  %10368 = vmatpush1.msra.mxu0 0.0
  %10369 = vmatprep.subr.mxu0 0.0
  %10370 = vmatpush1.msra.mxu0 0.0
  %10371 = vmatprep.subr.mxu0 0.0
  %10372 = vmatpush1.msra.mxu0 0.0
  %10373 = vmatprep.subr.mxu0 0.0
  %10374 = vmatpush1.msra.mxu0 0.0
  %10375 = vmatprep.subr.mxu0 0.0
  %10376 = vmatpush1.msra.mxu0 0.0
  %10377 = vmatprep.subr.mxu0 0.0
  %10378 = vmatpush1.msra.mxu0 0.0
  %10379 = vmatprep.subr.mxu0 0.0
  %10380 = vmatpush1.msra.mxu0 0.0
  %10381 = vmatprep.subr.mxu0 0.0
  %10382 = vmatpush1.msra.mxu0 0.0
  %10383 = vmatprep.subr.mxu0 0.0
  %10384 = vmatpush1.msra.mxu0 0.0
  %10385 = vmatprep.subr.mxu0 0.0
  %10386 = vmatpush1.msra.mxu0 0.0
  %10387 = vmatprep.subr.mxu0 0.0
  %10388 = vmatpush1.msra.mxu0 0.0
  %10389 = vmatprep.subr.mxu0 0.0
  %10390 = vmatpush1.msra.mxu0 0.0
  %10391 = vmatprep.subr.mxu0 0.0
  %10392 = vmatpush1.msra.mxu0 0.0
  %10393 = vmatprep.subr.mxu0 0.0
  %10394 = vmatpush1.msra.mxu0 0.0
  %10395 = vmatprep.subr.mxu0 0.0
  %10396 = vmatpush1.msra.mxu0 0.0
  %10397 = vmatprep.subr.mxu0 0.0
  %10398 = vmatpush1.msra.mxu0 0.0
  %10399 = vmatprep.subr.mxu0 0.0
  %10400 = vmatpush1.msra.mxu0 0.0
  %10401 = vmatprep.mubr.f32.mxu0 0.0
  %v10402 = vand.u32 %v9996, 4294901760
  %10403 = vmatmul.mubr.f32.gmra.mrb[0].mxu0 %v10402
  %v10404 = vpop.f32.mrb[0].mxu0
  %v10405 = vadd.f32 %v10322, %v10404
  %v10406 = vpop.f32.mrb[0].mxu0
  %10407 = vdwg.mxu0
  %10408 = vmatprep.subr.mxu0 0.0
  %v10409 = vand.u32 %v9986, 4294901760
  %10410 = vmatpush1.msra.mxu0 %v10409
  %10411 = vmatprep.subr.mxu0 0.0
  %v10412 = vand.u32 %v9987, 4294901760
  %10413 = vmatpush1.msra.mxu0 %v10412
  %10414 = vmatprep.subr.mxu0 0.0
  %v10415 = vand.u32 %v9988, 4294901760
  %10416 = vmatpush1.msra.mxu0 %v10415
  %10417 = vmatprep.subr.mxu0 0.0
  %v10418 = vand.u32 %v9989, 4294901760
  %10419 = vmatpush1.msra.mxu0 %v10418
  %10420 = vmatprep.subr.mxu0 0.0
  %10421 = vmatpush1.msra.mxu0 0.0
  %10422 = vmatprep.subr.mxu0 0.0
  %10423 = vmatpush1.msra.mxu0 0.0
  %10424 = vmatprep.subr.mxu0 0.0
  %10425 = vmatpush1.msra.mxu0 0.0
  %10426 = vmatprep.subr.mxu0 0.0
  %10427 = vmatpush1.msra.mxu0 0.0
  %10428 = vmatprep.subr.mxu0 0.0
  %10429 = vmatpush1.msra.mxu0 0.0
  %10430 = vmatprep.subr.mxu0 0.0
  %10431 = vmatpush1.msra.mxu0 0.0
  %10432 = vmatprep.subr.mxu0 0.0
  %10433 = vmatpush1.msra.mxu0 0.0
  %10434 = vmatprep.subr.mxu0 0.0
  %10435 = vmatpush1.msra.mxu0 0.0
  %10436 = vmatprep.subr.mxu0 0.0
  %10437 = vmatpush1.msra.mxu0 0.0
  %10438 = vmatprep.subr.mxu0 0.0
  %10439 = vmatpush1.msra.mxu0 0.0
  %10440 = vmatprep.subr.mxu0 0.0
  %10441 = vmatpush1.msra.mxu0 0.0
  %10442 = vmatprep.subr.mxu0 0.0
  %10443 = vmatpush1.msra.mxu0 0.0
  %10444 = vmatprep.subr.mxu0 0.0
  %10445 = vmatpush1.msra.mxu0 0.0
  %10446 = vmatprep.subr.mxu0 0.0
  %10447 = vmatpush1.msra.mxu0 0.0
  %10448 = vmatprep.subr.mxu0 0.0
  %10449 = vmatpush1.msra.mxu0 0.0
  %10450 = vmatprep.subr.mxu0 0.0
  %10451 = vmatpush1.msra.mxu0 0.0
  %10452 = vmatprep.subr.mxu0 0.0
  %10453 = vmatpush1.msra.mxu0 0.0
  %10454 = vmatprep.subr.mxu0 0.0
  %10455 = vmatpush1.msra.mxu0 0.0
  %10456 = vmatprep.subr.mxu0 0.0
  %10457 = vmatpush1.msra.mxu0 0.0
  %10458 = vmatprep.subr.mxu0 0.0
  %10459 = vmatpush1.msra.mxu0 0.0
  %10460 = vmatprep.subr.mxu0 0.0
  %10461 = vmatpush1.msra.mxu0 0.0
  %10462 = vmatprep.subr.mxu0 0.0
  %10463 = vmatpush1.msra.mxu0 0.0
  %10464 = vmatprep.subr.mxu0 0.0
  %10465 = vmatpush1.msra.mxu0 0.0
  %10466 = vmatprep.subr.mxu0 0.0
  %10467 = vmatpush1.msra.mxu0 0.0
  %10468 = vmatprep.subr.mxu0 0.0
  %10469 = vmatpush1.msra.mxu0 0.0
  %10470 = vmatprep.subr.mxu0 0.0
  %10471 = vmatpush1.msra.mxu0 0.0
  %10472 = vmatprep.subr.mxu0 0.0
  %10473 = vmatpush1.msra.mxu0 0.0
  %10474 = vmatprep.subr.mxu0 0.0
  %10475 = vmatpush1.msra.mxu0 0.0
  %10476 = vmatprep.mubr.f32.mxu0 0.0
  %v10477 = vand.u32 %v9996, 4294901760
  %10478 = vmatmul.mubr.f32.gmra.mrb[0].mxu0 %v10477
  %v10479 = vpop.f32.mrb[0].mxu0
  %v10480 = vadd.f32 %v10405, %v10479
  %v10481 = vpop.f32.mrb[0].mxu0
  %10482 = vdwg.mxu0
  %v10483 = vmul.f32 %v10480, %v10480
  %10485 = vrot.lane.b32.xlu0 %v10483, 112
  %v10486 = vpop.permute.xlu0 %10485
  %v10488 = vadd.f32 %v10483, %v10486
  %v10489 = vld [vmem:[%s1 + $0xc4] sm:$0x1]
  %v10490 = vld [vmem:[%s1 + $0xc5] sm:$0x1]
  %v10491 = vlaneseq
  %v10492 = vshrl.u32 %v10491, 7
  %v10493 = vsub.s32 0, %v10492
  %v10494 = vrot.slane %v10489, %v10493
  %v10495 = vmul.f32 %v10488, %v10494
  %vm10496 = vcmask 123904
  %v10497 = vsel %vm10496, %v10495, 0.0
  %10498 = vadd.xlane.f32.xlu0 %v10497
  %v10499 = vpop.xlane.xlu0 %10498
  %v10500 = vlaneseq
  %v10501 = vshrl.u32 %v10500, 7
  %v10502 = vsub.s32 0, %v10501
  %v10503 = vrot.slane %v10490, %v10502
  %v10504 = vadd.f32 %v10499, %v10503
  %v10505 = vtanh.pop %v10504
  %v10506 = vmul.f32 %v10505, 3.0
  %vm10507 = vcmask 1024
  %10508 = vst.msk [vmem:[%s2] sm:$0x3] %vm10507, %v10506
  // Predicated region
  $region10: #{forward.1} parent=0 // pred_check
    _
  $region11: #{forward.1} parent=0 // pred_check_branch
    %10510 = sbr.rel (0) target = $region13
  $region12: #{forward.1} parent=0 // pred_region
    _
  $region13: #{forward.1} parent=0 // pred_fallthru
    _
  // Predicated region
  $region14: #{forward.1} parent=0 // pred_check
    _
  $region15: #{forward.1} parent=0 // pred_check_branch
    %10512 = sbr.rel (0) target = $region17
  $region16: #{forward.1} parent=0 // pred_region
    _
  $region17: #{forward.1} parent=0 // pred_fallthru
    _

</llo_original>
